<compile_context>
chip_gen: v6e
topology: v6e:2x2x1
jax: 0.10.0
libtpu: 0.0.40
codegen_flags: <defaults>
</compile_context>

<pallas_src>
import functools

import jax
import jax.numpy as jnp
from jax.experimental import pallas as pl
from jax.experimental.pallas import tpu as pltpu


def _fused_encoder_kernel(*refs, layer_kws, acts):
    """Fused conv(1,kw) + per-channel affine + activation chain.

    Ref layout (n = number of layers):
      refs[0]              x_ref  (Mb, Cin0)          f32,  VMEM (row block)
      refs[1 : 1+n]        w_hbm  (kw*Cin, Cout)      int8, HBM  (pl.ANY)
      refs[1+n : 1+2n]     ss     (2, Cout)           f32,  VMEM
                                  row 0 = BN-scale * int8-dequant, row 1 = shift
      refs[1+2n]           o_ref  (Mb, Cf)            f32,  VMEM (row block)
      refs[2+2n : 2+3n]    w_buf  VMEM int8 scratch matching each w_hbm
      refs[2+3n]           sems   DMA semaphores, shape (n,)
    """
    n = len(layer_kws)
    x_ref = refs[0]
    w_hbm = refs[1:1 + n]
    ss = refs[1 + n:1 + 2 * n]
    o_ref = refs[1 + 2 * n]
    w_buf = refs[2 + 2 * n:2 + 3 * n]
    sems = refs[2 + 3 * n]

    step = pl.program_id(0)
    copies = [pltpu.make_async_copy(w_hbm[i], w_buf[i], sems.at[i])
              for i in range(n)]

    # Weight DMAs issue once (step 0) in consumption order; the int8 buffers
    # persist in scratch for every later row-block step, amortizing the
    # ~4 MiB weight stream over all rows.
    @pl.when(step == 0)
    def _start_all():
        for cp in copies:
            cp.start()

    a = x_ref[...]                              # (Mb, Cin0) f32 activations

    for i in range(n):
        # Only step 0 waits (it issued the copies); later steps reuse scratch.
        @pl.when(step == 0)
        def _wait(cp=copies[i]):
            cp.wait()

        kw = layer_kws[i]
        # int8 -> bf16 dequant for the MXU (exact: |q| <= 127); the
        # per-channel dequant scale is folded into `scale` below.
        w_bf = w_buf[i][...].astype(jnp.bfloat16)           # (kw*Cin, Cout)

        # In-kernel im2col: assemble (Mb, kw*Cin) so ALL (row, position)
        # pairs share one matmul per layer (rows batched into the M dim).
        if kw == 1:
            lhs = a
        else:
            taps = [a]
            for t in range(1, kw):
                # Rotate rows up by t (two slices + concat, f32).  Wrapped /
                # cross-frame rows only ever land in output positions beyond
                # the valid conv width of their frame block, so they never
                # contaminate real outputs (sliced away by the wrapper).
                taps.append(jnp.concatenate([a[t:, :], a[:t, :]], axis=0))
            lhs = jnp.concatenate(taps, axis=1)             # (Mb, kw*Cin)

        z = jnp.dot(lhs.astype(jnp.bfloat16), w_bf,
                    preferred_element_type=jnp.float32)     # (Mb, Cout) f32

        scale = ss[i][0:1, :]      # folded BN-scale * int8-dequant scale
        shift = ss[i][1:2, :]      # folded BN beta + conv bias
        z = z * scale + shift
        if acts[i] == "swish":
            a = z * jax.nn.sigmoid(z)                       # intended Swish
        else:
            a = jnp.tanh(z)

    o_ref[...] = a.astype(o_ref.dtype)


def encoder2_conv_chain(x2d, params, w0):
    """Runs the whole 7-layer conv chain in one Pallas kernel.

    x2d    : (M, Cin0) f32 rows layout, M = R * w0 (R frames, w0 = input width).
    params : list of {"w": int8 (kw, Cin, Cout), "scale","shift": f32 (Cout,)}
    Returns (M_pad, Cout_last) f32; row r*w0 + wo is a valid output for
    wo < w0 - sum(kw - 1).
    """
    M, cin0 = x2d.shape
    n = len(params)
    layer_kws = tuple(int(p["w"].shape[0]) for p in params)
    acts = ("swish",) * (n - 1) + ("tanh",)
    cf = int(params[-1]["w"].shape[2])

    assert M % w0 == 0
    r = M // w0
    r_blk = min(r, 64)                      # frames per grid step
    blk_rows = r_blk * w0                   # multiple of 8 when w0 = 8
    n_blocks = pl.cdiv(r, r_blk)
    m_pad = n_blocks * blk_rows
    if m_pad != M:
        x2d = jnp.pad(x2d, ((0, m_pad - M), (0, 0)))

    # Flatten weights to (kw*Cin, Cout) on the host side (free reshape).
    w_list = [p["w"].reshape(-1, p["w"].shape[2]) for p in params]
    ss_list = [jnp.stack([p["scale"], p["shift"]], axis=0) for p in params]

    hbm = pl.BlockSpec(memory_space=pl.ANY)
    ss_specs = [pl.BlockSpec(s.shape, lambda i: (0, 0)) for s in ss_list]

    kernel = functools.partial(_fused_encoder_kernel,
                               layer_kws=layer_kws, acts=acts)
    return pl.pallas_call(
        kernel,
        out_shape=jax.ShapeDtypeStruct((m_pad, cf), jnp.float32),
        grid=(n_blocks,),
        in_specs=[pl.BlockSpec((blk_rows, cin0), lambda i: (i, 0))]
                 + [hbm] * n + ss_specs,
        out_specs=pl.BlockSpec((blk_rows, cf), lambda i: (i, 0)),
        scratch_shapes=[pltpu.VMEM(w.shape, jnp.int8) for w in w_list]
                       + [pltpu.SemaphoreType.DMA((n,))],
        compiler_params=pltpu.CompilerParams(
            # "arbitrary": keep the grid sequential on one core so the
            # weights-fetched-on-step-0 invariant holds.
            dimension_semantics=("arbitrary",),
            # ~4 MiB int8 scratch + ~3 MiB bf16 dequant temp + small blocks;
            # 32 MiB is safe on v5e/v6e (128 MiB) and v7x (64 MiB physical).
            vmem_limit_bytes=32 * 1024 * 1024),
    )(x2d, *w_list, *ss_list)


def init_layer(key, cin, cout, kw, bn=True):
    """Deterministic synthetic parameters for one conv_util block."""
    k_w, k_b, k_g, k_be, k_m, k_v = jax.random.split(key, 6)
    fan_in = cin * kw
    w = jax.random.normal(k_w, (kw, cin, cout), jnp.float32) / jnp.sqrt(fan_in)
    b = 0.1 * jax.random.normal(k_b, (cout,), jnp.float32)
    if bn:
        gamma = 1.0 + 0.1 * jax.random.normal(k_g, (cout,), jnp.float32)
        beta = 0.1 * jax.random.normal(k_be, (cout,), jnp.float32)
        r_mean = 0.1 * jax.random.normal(k_m, (cout,), jnp.float32)
        r_var = 1.0 + 0.1 * jnp.abs(jax.random.normal(k_v, (cout,), jnp.float32))
        eps = 1e-5
        scale = gamma / jnp.sqrt(r_var + eps)
        shift = beta + scale * (b - r_mean)
    else:
        scale = jnp.ones((cout,), jnp.float32)
        shift = b
    # Per-output-channel int8 quantization of the weights (halves the HBM
    # weight traffic that bounds the kernel); the dequant scale is folded into
    # the folded-BN affine so the kernel applies a single multiply-add.
    w2 = w.reshape(kw * cin, cout)
    qs = jnp.maximum(jnp.max(jnp.abs(w2), axis=0), 1e-12) / 127.0
    w_q = jnp.clip(jnp.round(w2 / qs), -127, 127).astype(jnp.int8)
    return {"w": w_q.reshape(kw, cin, cout),
            "scale": scale * qs,
            "shift": shift}


def encoder2_forward(params, x_nchw):
    """Reproduces Encoder2.forward. x_nchw: (N, dim//16, H, W) with H % 16 == 0."""
    N, C, H, W = x_nchw.shape
    h = H // 16
    # torch.split(x, H//16, -2) then concat along channels (dims -2 and 1)
    x = jnp.concatenate([x_nchw[:, :, i * h:(i + 1) * h, :] for i in range(16)],
                        axis=1)                       # (N, 16*C, H/16, W)
    # NCHW -> rows layout: channels on lanes, (frame, width) on rows.
    x = jnp.transpose(x, (0, 2, 3, 1))                # (N, H', W, 16*C)
    Nn, Hh, Ww, Cc = x.shape
    x2d = x.reshape(Nn * Hh * Ww, Cc)                 # (M, Cin0)

    shrink = sum(int(p["w"].shape[0]) - 1 for p in params)
    wf = Ww - shrink
    cf = int(params[-1]["w"].shape[2])

    out2d = encoder2_conv_chain(x2d, params, w0=Ww)   # one fused Pallas kernel

    r = Nn * Hh
    out = out2d[:r * Ww].reshape(r, Ww, cf)[:, :wf, :]   # keep valid positions
    out = out.reshape(Nn, Hh, wf, cf)
    out = jnp.transpose(out, (0, 3, 1, 2))               # NCHW: (N, 64, H', Wf)

    # split 64 channels into 16 chunks of 4, concat along H
    cch = out.shape[1] // 16
    out = jnp.concatenate([out[:, i * cch:(i + 1) * cch] for i in range(16)],
                          axis=2)
    # split H into 2 chunks, concat along channels
    hh = out.shape[2] // 2
    out = jnp.concatenate([out[:, :, i * hh:(i + 1) * hh, :] for i in range(2)],
                          axis=1)
    return out.astype(jnp.float32)


if __name__ == "__main__":
    dim = 128
    key = jax.random.PRNGKey(0)
    kx, k0, k1, k2, k3, k4, k5, k6 = jax.random.split(key, 8)

    # (cin, cout, kw, bn) for g0..g5 and the final bottleneck conv `g`
    layer_defs = [
        (dim, 256, 1, True),        # g0: (1,1)
        (256, 512, 3, True),        # g1: (1,3)
        (512, 640, 3, True),        # g2: (1,3)
        (640, 640, 1, True),        # g3: (1,1)
        (640, 640, 3, True),        # g4: (1,3)
        (640, 768, 2, True),        # g5: (1,2)  (cin bridged from 640, see TODO)
        (768, 64, 1, False),        # g : (1,1), no BN, followed by tanh
    ]
    params = [init_layer(k, *d) for k, d in
              zip((k0, k1, k2, k3, k4, k5, k6), layer_defs)]

    # Input: NCHW with C = dim // 16 = 8 channels, H = 16 (split into 16), W = 8.
    x = jax.random.normal(kx, (2, dim // 16, 16, 8), jnp.float32)

    out = jax.jit(encoder2_forward)(params, x)
    out = jax.block_until_ready(out)
    assert out.shape == (2, 8, 8, 1), out.shape
    assert out.dtype == jnp.float32
    assert bool(jnp.all(jnp.isfinite(out)))
    assert bool(jnp.all(jnp.abs(out) <= 1.0))         # final op is tanh
    print("KERNEL_OK")
</pallas_src>

<mosaic_0001>
module attributes {stable_mosaic.version = 11 : i64} {
  func.func @_fused_encoder_kernel(%arg0: i32, %arg1: memref<16x128xf32, #tpu.memory_space<vmem>>, %arg2: memref<128x256xi8, #tpu.memory_space<any>>, %arg3: memref<768x512xi8, #tpu.memory_space<any>>, %arg4: memref<1536x640xi8, #tpu.memory_space<any>>, %arg5: memref<640x640xi8, #tpu.memory_space<any>>, %arg6: memref<1920x640xi8, #tpu.memory_space<any>>, %arg7: memref<1280x768xi8, #tpu.memory_space<any>>, %arg8: memref<768x64xi8, #tpu.memory_space<any>>, %arg9: memref<2x256xf32, #tpu.memory_space<vmem>>, %arg10: memref<2x512xf32, #tpu.memory_space<vmem>>, %arg11: memref<2x640xf32, #tpu.memory_space<vmem>>, %arg12: memref<2x640xf32, #tpu.memory_space<vmem>>, %arg13: memref<2x640xf32, #tpu.memory_space<vmem>>, %arg14: memref<2x768xf32, #tpu.memory_space<vmem>>, %arg15: memref<2x64xf32, #tpu.memory_space<vmem>>, %arg16: memref<16x64xf32, #tpu.memory_space<vmem>>, %arg17: memref<128x256xi8, #tpu.memory_space<vmem>>, %arg18: memref<768x512xi8, #tpu.memory_space<vmem>>, %arg19: memref<1536x640xi8, #tpu.memory_space<vmem>>, %arg20: memref<640x640xi8, #tpu.memory_space<vmem>>, %arg21: memref<1920x640xi8, #tpu.memory_space<vmem>>, %arg22: memref<1280x768xi8, #tpu.memory_space<vmem>>, %arg23: memref<768x64xi8, #tpu.memory_space<vmem>>, %arg24: memref<7x!tpu.dma_semaphore, #tpu.memory_space<semaphore_mem>>) attributes {dimension_semantics = [#tpu.dimension_semantics<arbitrary>], iteration_bounds = array<i64: 1>, scalar_prefetch = 0 : i64, scratch_operands = 8 : i64, tpu.core_type = #tpu.core_type<tc>, window_params = [{transform_indices = @transform_0, window_bounds = array<i64: 16, 128>}, {}, {}, {}, {}, {}, {}, {}, {pipeline_mode = #tpu.pipeline_mode<synchronous>, transform_indices = @transform_8, window_bounds = array<i64: 2, 256>}, {pipeline_mode = #tpu.pipeline_mode<synchronous>, transform_indices = @transform_9, window_bounds = array<i64: 2, 512>}, {pipeline_mode = #tpu.pipeline_mode<synchronous>, transform_indices = @transform_10, window_bounds = array<i64: 2, 640>}, {pipeline_mode = #tpu.pipeline_mode<synchronous>, transform_indices = @transform_11, window_bounds = array<i64: 2, 640>}, {pipeline_mode = #tpu.pipeline_mode<synchronous>, transform_indices = @transform_12, window_bounds = array<i64: 2, 640>}, {pipeline_mode = #tpu.pipeline_mode<synchronous>, transform_indices = @transform_13, window_bounds = array<i64: 2, 768>}, {pipeline_mode = #tpu.pipeline_mode<synchronous>, transform_indices = @transform_14, window_bounds = array<i64: 2, 64>}, {transform_indices = @transform_15, window_bounds = array<i64: 16, 64>}]} {
    %c0_i32 = arith.constant 0 : i32
    %0 = arith.cmpi eq, %arg0, %c0_i32 : i32
    %1 = arith.extui %0 : i1 to i32
    %c0_i32_0 = arith.constant 0 : i32
    %c1_i32 = arith.constant 1 : i32
    %c2_i32 = arith.constant 2 : i32
    %c3_i32 = arith.constant 3 : i32
    %c4_i32 = arith.constant 4 : i32
    %c5_i32 = arith.constant 5 : i32
    %c6_i32 = arith.constant 6 : i32
    %c0_i32_1 = arith.constant 0 : i32
    %2 = arith.cmpi ne, %1, %c0_i32_1 : i32
    scf.if %2 {
      %158 = tpu.memref_slice %arg24[%c0_i32_0] : memref<7x!tpu.dma_semaphore, #tpu.memory_space<semaphore_mem>> -> memref<1x!tpu.dma_semaphore, #tpu.memory_space<semaphore_mem>>
      %159 = tpu.memref_squeeze %158 : memref<1x!tpu.dma_semaphore, #tpu.memory_space<semaphore_mem>> -> memref<!tpu.dma_semaphore, #tpu.memory_space<semaphore_mem>>
      tpu.enqueue_dma source(%arg2 : memref<128x256xi8, #tpu.memory_space<any>>) target(%arg17 : memref<128x256xi8, #tpu.memory_space<vmem>>) target_semaphore(%159 : memref<!tpu.dma_semaphore, #tpu.memory_space<semaphore_mem>>)
      %160 = tpu.memref_slice %arg24[%c1_i32] : memref<7x!tpu.dma_semaphore, #tpu.memory_space<semaphore_mem>> -> memref<1x!tpu.dma_semaphore, #tpu.memory_space<semaphore_mem>>
      %161 = tpu.memref_squeeze %160 : memref<1x!tpu.dma_semaphore, #tpu.memory_space<semaphore_mem>> -> memref<!tpu.dma_semaphore, #tpu.memory_space<semaphore_mem>>
      tpu.enqueue_dma source(%arg3 : memref<768x512xi8, #tpu.memory_space<any>>) target(%arg18 : memref<768x512xi8, #tpu.memory_space<vmem>>) target_semaphore(%161 : memref<!tpu.dma_semaphore, #tpu.memory_space<semaphore_mem>>)
      %162 = tpu.memref_slice %arg24[%c2_i32] : memref<7x!tpu.dma_semaphore, #tpu.memory_space<semaphore_mem>> -> memref<1x!tpu.dma_semaphore, #tpu.memory_space<semaphore_mem>>
      %163 = tpu.memref_squeeze %162 : memref<1x!tpu.dma_semaphore, #tpu.memory_space<semaphore_mem>> -> memref<!tpu.dma_semaphore, #tpu.memory_space<semaphore_mem>>
      tpu.enqueue_dma source(%arg4 : memref<1536x640xi8, #tpu.memory_space<any>>) target(%arg19 : memref<1536x640xi8, #tpu.memory_space<vmem>>) target_semaphore(%163 : memref<!tpu.dma_semaphore, #tpu.memory_space<semaphore_mem>>)
      %164 = tpu.memref_slice %arg24[%c3_i32] : memref<7x!tpu.dma_semaphore, #tpu.memory_space<semaphore_mem>> -> memref<1x!tpu.dma_semaphore, #tpu.memory_space<semaphore_mem>>
      %165 = tpu.memref_squeeze %164 : memref<1x!tpu.dma_semaphore, #tpu.memory_space<semaphore_mem>> -> memref<!tpu.dma_semaphore, #tpu.memory_space<semaphore_mem>>
      tpu.enqueue_dma source(%arg5 : memref<640x640xi8, #tpu.memory_space<any>>) target(%arg20 : memref<640x640xi8, #tpu.memory_space<vmem>>) target_semaphore(%165 : memref<!tpu.dma_semaphore, #tpu.memory_space<semaphore_mem>>)
      %166 = tpu.memref_slice %arg24[%c4_i32] : memref<7x!tpu.dma_semaphore, #tpu.memory_space<semaphore_mem>> -> memref<1x!tpu.dma_semaphore, #tpu.memory_space<semaphore_mem>>
      %167 = tpu.memref_squeeze %166 : memref<1x!tpu.dma_semaphore, #tpu.memory_space<semaphore_mem>> -> memref<!tpu.dma_semaphore, #tpu.memory_space<semaphore_mem>>
      tpu.enqueue_dma source(%arg6 : memref<1920x640xi8, #tpu.memory_space<any>>) target(%arg21 : memref<1920x640xi8, #tpu.memory_space<vmem>>) target_semaphore(%167 : memref<!tpu.dma_semaphore, #tpu.memory_space<semaphore_mem>>)
      %168 = tpu.memref_slice %arg24[%c5_i32] : memref<7x!tpu.dma_semaphore, #tpu.memory_space<semaphore_mem>> -> memref<1x!tpu.dma_semaphore, #tpu.memory_space<semaphore_mem>>
      %169 = tpu.memref_squeeze %168 : memref<1x!tpu.dma_semaphore, #tpu.memory_space<semaphore_mem>> -> memref<!tpu.dma_semaphore, #tpu.memory_space<semaphore_mem>>
      tpu.enqueue_dma source(%arg7 : memref<1280x768xi8, #tpu.memory_space<any>>) target(%arg22 : memref<1280x768xi8, #tpu.memory_space<vmem>>) target_semaphore(%169 : memref<!tpu.dma_semaphore, #tpu.memory_space<semaphore_mem>>)
      %170 = tpu.memref_slice %arg24[%c6_i32] : memref<7x!tpu.dma_semaphore, #tpu.memory_space<semaphore_mem>> -> memref<1x!tpu.dma_semaphore, #tpu.memory_space<semaphore_mem>>
      %171 = tpu.memref_squeeze %170 : memref<1x!tpu.dma_semaphore, #tpu.memory_space<semaphore_mem>> -> memref<!tpu.dma_semaphore, #tpu.memory_space<semaphore_mem>>
      tpu.enqueue_dma source(%arg8 : memref<768x64xi8, #tpu.memory_space<any>>) target(%arg23 : memref<768x64xi8, #tpu.memory_space<vmem>>) target_semaphore(%171 : memref<!tpu.dma_semaphore, #tpu.memory_space<semaphore_mem>>)
    } else {
    }
    %c0 = arith.constant 0 : index
    %c0_2 = arith.constant 0 : index
    %3 = vector.load %arg1[%c0, %c0_2] : memref<16x128xf32, #tpu.memory_space<vmem>>, vector<16x128xf32>
    %c0_i32_3 = arith.constant 0 : i32
    %4 = arith.cmpi eq, %arg0, %c0_i32_3 : i32
    %5 = arith.extui %4 : i1 to i32
    %c0_i32_4 = arith.constant 0 : i32
    %c0_i32_5 = arith.constant 0 : i32
    %6 = arith.cmpi ne, %5, %c0_i32_5 : i32
    scf.if %6 {
      %158 = tpu.memref_slice %arg24[%c0_i32_4] : memref<7x!tpu.dma_semaphore, #tpu.memory_space<semaphore_mem>> -> memref<1x!tpu.dma_semaphore, #tpu.memory_space<semaphore_mem>>
      %159 = tpu.memref_squeeze %158 : memref<1x!tpu.dma_semaphore, #tpu.memory_space<semaphore_mem>> -> memref<!tpu.dma_semaphore, #tpu.memory_space<semaphore_mem>>
      tpu.wait_dma2 semaphore(%159 : memref<!tpu.dma_semaphore, #tpu.memory_space<semaphore_mem>>) src(%arg2 : memref<128x256xi8, #tpu.memory_space<any>>) dst(%arg17 : memref<128x256xi8, #tpu.memory_space<vmem>>)
    } else {
    }
    %c0_6 = arith.constant 0 : index
    %c0_7 = arith.constant 0 : index
    %7 = vector.load %arg17[%c0_6, %c0_7] : memref<128x256xi8, #tpu.memory_space<vmem>>, vector<128x256xi8>
    %8 = arith.sitofp %7 : vector<128x256xi8> to vector<128x256xbf16>
    %9 = arith.truncf %3 : vector<16x128xf32> to vector<16x128xbf16>
    %cst = arith.constant dense<0.000000e+00> : vector<16x256xf32>
    %10 = tpu.matmul %9, %8, %cst {dimension_numbers = #tpu.dot_dimension_numbers<[1], [0], [0], [1], [0, 0, 1, 1], [], []>} : vector<16x128xbf16>, vector<128x256xbf16>, vector<16x256xf32> -> vector<16x256xf32>
    %c0_8 = arith.constant 0 : index
    %c0_9 = arith.constant 0 : index
    %11 = vector.load %arg9[%c0_8, %c0_9] : memref<2x256xf32, #tpu.memory_space<vmem>>, vector<1x256xf32>
    %c1 = arith.constant 1 : index
    %c0_10 = arith.constant 0 : index
    %12 = vector.load %arg9[%c1, %c0_10] : memref<2x256xf32, #tpu.memory_space<vmem>>, vector<1x256xf32>
    %13 = vector.broadcast %11 : vector<1x256xf32> to vector<16x256xf32>
    %14 = arith.mulf %10, %13 : vector<16x256xf32>
    %15 = vector.broadcast %12 : vector<1x256xf32> to vector<16x256xf32>
    %16 = arith.addf %14, %15 : vector<16x256xf32>
    %17 = arith.negf %16 : vector<16x256xf32>
    %18 = math.exp %17 : vector<16x256xf32>
    %cst_11 = arith.constant 1.000000e+00 : f32
    %19 = vector.broadcast %cst_11 : f32 to vector<16x256xf32>
    %20 = arith.addf %19, %18 : vector<16x256xf32>
    %21 = arith.divf %19, %20 : vector<16x256xf32>
    %22 = arith.mulf %16, %21 : vector<16x256xf32>
    %c0_i32_12 = arith.constant 0 : i32
    %23 = arith.cmpi eq, %arg0, %c0_i32_12 : i32
    %24 = arith.extui %23 : i1 to i32
    %c1_i32_13 = arith.constant 1 : i32
    %c0_i32_14 = arith.constant 0 : i32
    %25 = arith.cmpi ne, %24, %c0_i32_14 : i32
    scf.if %25 {
      %158 = tpu.memref_slice %arg24[%c1_i32_13] : memref<7x!tpu.dma_semaphore, #tpu.memory_space<semaphore_mem>> -> memref<1x!tpu.dma_semaphore, #tpu.memory_space<semaphore_mem>>
      %159 = tpu.memref_squeeze %158 : memref<1x!tpu.dma_semaphore, #tpu.memory_space<semaphore_mem>> -> memref<!tpu.dma_semaphore, #tpu.memory_space<semaphore_mem>>
      tpu.wait_dma2 semaphore(%159 : memref<!tpu.dma_semaphore, #tpu.memory_space<semaphore_mem>>) src(%arg3 : memref<768x512xi8, #tpu.memory_space<any>>) dst(%arg18 : memref<768x512xi8, #tpu.memory_space<vmem>>)
    } else {
    }
    %c0_15 = arith.constant 0 : index
    %c0_16 = arith.constant 0 : index
    %26 = vector.load %arg18[%c0_15, %c0_16] : memref<768x512xi8, #tpu.memory_space<vmem>>, vector<768x512xi8>
    %27 = arith.sitofp %26 : vector<768x512xi8> to vector<768x512xbf16>
    %28 = vector.extract_strided_slice %22 {offsets = [1, 0], sizes = [15, 256], strides = [1, 1]} : vector<16x256xf32> to vector<15x256xf32>
    %29 = vector.extract_strided_slice %22 {offsets = [0, 0], sizes = [1, 256], strides = [1, 1]} : vector<16x256xf32> to vector<1x256xf32>
    %30 = tpu.concatenate %28, %29 in 0 : vector<15x256xf32>, vector<1x256xf32> -> vector<16x256xf32>
    %31 = vector.extract_strided_slice %22 {offsets = [2, 0], sizes = [14, 256], strides = [1, 1]} : vector<16x256xf32> to vector<14x256xf32>
    %32 = vector.extract_strided_slice %22 {offsets = [0, 0], sizes = [2, 256], strides = [1, 1]} : vector<16x256xf32> to vector<2x256xf32>
    %33 = tpu.concatenate %31, %32 in 0 : vector<14x256xf32>, vector<2x256xf32> -> vector<16x256xf32>
    %34 = tpu.concatenate %22, %30, %33 in 1 : vector<16x256xf32>, vector<16x256xf32>, vector<16x256xf32> -> vector<16x768xf32>
    %35 = arith.truncf %34 : vector<16x768xf32> to vector<16x768xbf16>
    %cst_17 = arith.constant dense<0.000000e+00> : vector<16x512xf32>
    %36 = tpu.matmul %35, %27, %cst_17 {dimension_numbers = #tpu.dot_dimension_numbers<[1], [0], [0], [1], [0, 0, 1, 1], [], []>} : vector<16x768xbf16>, vector<768x512xbf16>, vector<16x512xf32> -> vector<16x512xf32>
    %c0_18 = arith.constant 0 : index
    %c0_19 = arith.constant 0 : index
    %37 = vector.load %arg10[%c0_18, %c0_19] : memref<2x512xf32, #tpu.memory_space<vmem>>, vector<1x512xf32>
    %c1_20 = arith.constant 1 : index
    %c0_21 = arith.constant 0 : index
    %38 = vector.load %arg10[%c1_20, %c0_21] : memref<2x512xf32, #tpu.memory_space<vmem>>, vector<1x512xf32>
    %39 = vector.broadcast %37 : vector<1x512xf32> to vector<16x512xf32>
    %40 = arith.mulf %36, %39 : vector<16x512xf32>
    %41 = vector.broadcast %38 : vector<1x512xf32> to vector<16x512xf32>
    %42 = arith.addf %40, %41 : vector<16x512xf32>
    %43 = arith.negf %42 : vector<16x512xf32>
    %44 = math.exp %43 : vector<16x512xf32>
    %cst_22 = arith.constant 1.000000e+00 : f32
    %45 = vector.broadcast %cst_22 : f32 to vector<16x512xf32>
    %46 = arith.addf %45, %44 : vector<16x512xf32>
    %47 = arith.divf %45, %46 : vector<16x512xf32>
    %48 = arith.mulf %42, %47 : vector<16x512xf32>
    %c0_i32_23 = arith.constant 0 : i32
    %49 = arith.cmpi eq, %arg0, %c0_i32_23 : i32
    %50 = arith.extui %49 : i1 to i32
    %c2_i32_24 = arith.constant 2 : i32
    %c0_i32_25 = arith.constant 0 : i32
    %51 = arith.cmpi ne, %50, %c0_i32_25 : i32
    scf.if %51 {
      %158 = tpu.memref_slice %arg24[%c2_i32_24] : memref<7x!tpu.dma_semaphore, #tpu.memory_space<semaphore_mem>> -> memref<1x!tpu.dma_semaphore, #tpu.memory_space<semaphore_mem>>
      %159 = tpu.memref_squeeze %158 : memref<1x!tpu.dma_semaphore, #tpu.memory_space<semaphore_mem>> -> memref<!tpu.dma_semaphore, #tpu.memory_space<semaphore_mem>>
      tpu.wait_dma2 semaphore(%159 : memref<!tpu.dma_semaphore, #tpu.memory_space<semaphore_mem>>) src(%arg4 : memref<1536x640xi8, #tpu.memory_space<any>>) dst(%arg19 : memref<1536x640xi8, #tpu.memory_space<vmem>>)
    } else {
    }
    %c0_26 = arith.constant 0 : index
    %c0_27 = arith.constant 0 : index
    %52 = vector.load %arg19[%c0_26, %c0_27] : memref<1536x640xi8, #tpu.memory_space<vmem>>, vector<1536x640xi8>
    %53 = arith.sitofp %52 : vector<1536x640xi8> to vector<1536x640xbf16>
    %54 = vector.extract_strided_slice %48 {offsets = [1, 0], sizes = [15, 512], strides = [1, 1]} : vector<16x512xf32> to vector<15x512xf32>
    %55 = vector.extract_strided_slice %48 {offsets = [0, 0], sizes = [1, 512], strides = [1, 1]} : vector<16x512xf32> to vector<1x512xf32>
    %56 = tpu.concatenate %54, %55 in 0 : vector<15x512xf32>, vector<1x512xf32> -> vector<16x512xf32>
    %57 = vector.extract_strided_slice %48 {offsets = [2, 0], sizes = [14, 512], strides = [1, 1]} : vector<16x512xf32> to vector<14x512xf32>
    %58 = vector.extract_strided_slice %48 {offsets = [0, 0], sizes = [2, 512], strides = [1, 1]} : vector<16x512xf32> to vector<2x512xf32>
    %59 = tpu.concatenate %57, %58 in 0 : vector<14x512xf32>, vector<2x512xf32> -> vector<16x512xf32>
    %60 = tpu.concatenate %48, %56, %59 in 1 : vector<16x512xf32>, vector<16x512xf32>, vector<16x512xf32> -> vector<16x1536xf32>
    %61 = arith.truncf %60 : vector<16x1536xf32> to vector<16x1536xbf16>
    %cst_28 = arith.constant dense<0.000000e+00> : vector<16x640xf32>
    %62 = tpu.matmul %61, %53, %cst_28 {dimension_numbers = #tpu.dot_dimension_numbers<[1], [0], [0], [1], [0, 0, 1, 1], [], []>} : vector<16x1536xbf16>, vector<1536x640xbf16>, vector<16x640xf32> -> vector<16x640xf32>
    %c0_29 = arith.constant 0 : index
    %c0_30 = arith.constant 0 : index
    %63 = vector.load %arg11[%c0_29, %c0_30] : memref<2x640xf32, #tpu.memory_space<vmem>>, vector<1x640xf32>
    %c1_31 = arith.constant 1 : index
    %c0_32 = arith.constant 0 : index
    %64 = vector.load %arg11[%c1_31, %c0_32] : memref<2x640xf32, #tpu.memory_space<vmem>>, vector<1x640xf32>
    %65 = vector.broadcast %63 : vector<1x640xf32> to vector<16x640xf32>
    %66 = arith.mulf %62, %65 : vector<16x640xf32>
    %67 = vector.broadcast %64 : vector<1x640xf32> to vector<16x640xf32>
    %68 = arith.addf %66, %67 : vector<16x640xf32>
    %69 = arith.negf %68 : vector<16x640xf32>
    %70 = math.exp %69 : vector<16x640xf32>
    %cst_33 = arith.constant 1.000000e+00 : f32
    %71 = vector.broadcast %cst_33 : f32 to vector<16x640xf32>
    %72 = arith.addf %71, %70 : vector<16x640xf32>
    %73 = arith.divf %71, %72 : vector<16x640xf32>
    %74 = arith.mulf %68, %73 : vector<16x640xf32>
    %c0_i32_34 = arith.constant 0 : i32
    %75 = arith.cmpi eq, %arg0, %c0_i32_34 : i32
    %76 = arith.extui %75 : i1 to i32
    %c3_i32_35 = arith.constant 3 : i32
    %c0_i32_36 = arith.constant 0 : i32
    %77 = arith.cmpi ne, %76, %c0_i32_36 : i32
    scf.if %77 {
      %158 = tpu.memref_slice %arg24[%c3_i32_35] : memref<7x!tpu.dma_semaphore, #tpu.memory_space<semaphore_mem>> -> memref<1x!tpu.dma_semaphore, #tpu.memory_space<semaphore_mem>>
      %159 = tpu.memref_squeeze %158 : memref<1x!tpu.dma_semaphore, #tpu.memory_space<semaphore_mem>> -> memref<!tpu.dma_semaphore, #tpu.memory_space<semaphore_mem>>
      tpu.wait_dma2 semaphore(%159 : memref<!tpu.dma_semaphore, #tpu.memory_space<semaphore_mem>>) src(%arg5 : memref<640x640xi8, #tpu.memory_space<any>>) dst(%arg20 : memref<640x640xi8, #tpu.memory_space<vmem>>)
    } else {
    }
    %c0_37 = arith.constant 0 : index
    %c0_38 = arith.constant 0 : index
    %78 = vector.load %arg20[%c0_37, %c0_38] : memref<640x640xi8, #tpu.memory_space<vmem>>, vector<640x640xi8>
    %79 = arith.sitofp %78 : vector<640x640xi8> to vector<640x640xbf16>
    %80 = arith.truncf %74 : vector<16x640xf32> to vector<16x640xbf16>
    %cst_39 = arith.constant dense<0.000000e+00> : vector<16x640xf32>
    %81 = tpu.matmul %80, %79, %cst_39 {dimension_numbers = #tpu.dot_dimension_numbers<[1], [0], [0], [1], [0, 0, 1, 1], [], []>} : vector<16x640xbf16>, vector<640x640xbf16>, vector<16x640xf32> -> vector<16x640xf32>
    %c0_40 = arith.constant 0 : index
    %c0_41 = arith.constant 0 : index
    %82 = vector.load %arg12[%c0_40, %c0_41] : memref<2x640xf32, #tpu.memory_space<vmem>>, vector<1x640xf32>
    %c1_42 = arith.constant 1 : index
    %c0_43 = arith.constant 0 : index
    %83 = vector.load %arg12[%c1_42, %c0_43] : memref<2x640xf32, #tpu.memory_space<vmem>>, vector<1x640xf32>
    %84 = vector.broadcast %82 : vector<1x640xf32> to vector<16x640xf32>
    %85 = arith.mulf %81, %84 : vector<16x640xf32>
    %86 = vector.broadcast %83 : vector<1x640xf32> to vector<16x640xf32>
    %87 = arith.addf %85, %86 : vector<16x640xf32>
    %88 = arith.negf %87 : vector<16x640xf32>
    %89 = math.exp %88 : vector<16x640xf32>
    %cst_44 = arith.constant 1.000000e+00 : f32
    %90 = vector.broadcast %cst_44 : f32 to vector<16x640xf32>
    %91 = arith.addf %90, %89 : vector<16x640xf32>
    %92 = arith.divf %90, %91 : vector<16x640xf32>
    %93 = arith.mulf %87, %92 : vector<16x640xf32>
    %c0_i32_45 = arith.constant 0 : i32
    %94 = arith.cmpi eq, %arg0, %c0_i32_45 : i32
    %95 = arith.extui %94 : i1 to i32
    %c4_i32_46 = arith.constant 4 : i32
    %c0_i32_47 = arith.constant 0 : i32
    %96 = arith.cmpi ne, %95, %c0_i32_47 : i32
    scf.if %96 {
      %158 = tpu.memref_slice %arg24[%c4_i32_46] : memref<7x!tpu.dma_semaphore, #tpu.memory_space<semaphore_mem>> -> memref<1x!tpu.dma_semaphore, #tpu.memory_space<semaphore_mem>>
      %159 = tpu.memref_squeeze %158 : memref<1x!tpu.dma_semaphore, #tpu.memory_space<semaphore_mem>> -> memref<!tpu.dma_semaphore, #tpu.memory_space<semaphore_mem>>
      tpu.wait_dma2 semaphore(%159 : memref<!tpu.dma_semaphore, #tpu.memory_space<semaphore_mem>>) src(%arg6 : memref<1920x640xi8, #tpu.memory_space<any>>) dst(%arg21 : memref<1920x640xi8, #tpu.memory_space<vmem>>)
    } else {
    }
    %c0_48 = arith.constant 0 : index
    %c0_49 = arith.constant 0 : index
    %97 = vector.load %arg21[%c0_48, %c0_49] : memref<1920x640xi8, #tpu.memory_space<vmem>>, vector<1920x640xi8>
    %98 = arith.sitofp %97 : vector<1920x640xi8> to vector<1920x640xbf16>
    %99 = vector.extract_strided_slice %93 {offsets = [1, 0], sizes = [15, 640], strides = [1, 1]} : vector<16x640xf32> to vector<15x640xf32>
    %100 = vector.extract_strided_slice %93 {offsets = [0, 0], sizes = [1, 640], strides = [1, 1]} : vector<16x640xf32> to vector<1x640xf32>
    %101 = tpu.concatenate %99, %100 in 0 : vector<15x640xf32>, vector<1x640xf32> -> vector<16x640xf32>
    %102 = vector.extract_strided_slice %93 {offsets = [2, 0], sizes = [14, 640], strides = [1, 1]} : vector<16x640xf32> to vector<14x640xf32>
    %103 = vector.extract_strided_slice %93 {offsets = [0, 0], sizes = [2, 640], strides = [1, 1]} : vector<16x640xf32> to vector<2x640xf32>
    %104 = tpu.concatenate %102, %103 in 0 : vector<14x640xf32>, vector<2x640xf32> -> vector<16x640xf32>
    %105 = tpu.concatenate %93, %101, %104 in 1 : vector<16x640xf32>, vector<16x640xf32>, vector<16x640xf32> -> vector<16x1920xf32>
    %106 = arith.truncf %105 : vector<16x1920xf32> to vector<16x1920xbf16>
    %cst_50 = arith.constant dense<0.000000e+00> : vector<16x640xf32>
    %107 = tpu.matmul %106, %98, %cst_50 {dimension_numbers = #tpu.dot_dimension_numbers<[1], [0], [0], [1], [0, 0, 1, 1], [], []>} : vector<16x1920xbf16>, vector<1920x640xbf16>, vector<16x640xf32> -> vector<16x640xf32>
    %c0_51 = arith.constant 0 : index
    %c0_52 = arith.constant 0 : index
    %108 = vector.load %arg13[%c0_51, %c0_52] : memref<2x640xf32, #tpu.memory_space<vmem>>, vector<1x640xf32>
    %c1_53 = arith.constant 1 : index
    %c0_54 = arith.constant 0 : index
    %109 = vector.load %arg13[%c1_53, %c0_54] : memref<2x640xf32, #tpu.memory_space<vmem>>, vector<1x640xf32>
    %110 = vector.broadcast %108 : vector<1x640xf32> to vector<16x640xf32>
    %111 = arith.mulf %107, %110 : vector<16x640xf32>
    %112 = vector.broadcast %109 : vector<1x640xf32> to vector<16x640xf32>
    %113 = arith.addf %111, %112 : vector<16x640xf32>
    %114 = arith.negf %113 : vector<16x640xf32>
    %115 = math.exp %114 : vector<16x640xf32>
    %cst_55 = arith.constant 1.000000e+00 : f32
    %116 = vector.broadcast %cst_55 : f32 to vector<16x640xf32>
    %117 = arith.addf %116, %115 : vector<16x640xf32>
    %118 = arith.divf %116, %117 : vector<16x640xf32>
    %119 = arith.mulf %113, %118 : vector<16x640xf32>
    %c0_i32_56 = arith.constant 0 : i32
    %120 = arith.cmpi eq, %arg0, %c0_i32_56 : i32
    %121 = arith.extui %120 : i1 to i32
    %c5_i32_57 = arith.constant 5 : i32
    %c0_i32_58 = arith.constant 0 : i32
    %122 = arith.cmpi ne, %121, %c0_i32_58 : i32
    scf.if %122 {
      %158 = tpu.memref_slice %arg24[%c5_i32_57] : memref<7x!tpu.dma_semaphore, #tpu.memory_space<semaphore_mem>> -> memref<1x!tpu.dma_semaphore, #tpu.memory_space<semaphore_mem>>
      %159 = tpu.memref_squeeze %158 : memref<1x!tpu.dma_semaphore, #tpu.memory_space<semaphore_mem>> -> memref<!tpu.dma_semaphore, #tpu.memory_space<semaphore_mem>>
      tpu.wait_dma2 semaphore(%159 : memref<!tpu.dma_semaphore, #tpu.memory_space<semaphore_mem>>) src(%arg7 : memref<1280x768xi8, #tpu.memory_space<any>>) dst(%arg22 : memref<1280x768xi8, #tpu.memory_space<vmem>>)
    } else {
    }
    %c0_59 = arith.constant 0 : index
    %c0_60 = arith.constant 0 : index
    %123 = vector.load %arg22[%c0_59, %c0_60] : memref<1280x768xi8, #tpu.memory_space<vmem>>, vector<1280x768xi8>
    %124 = arith.sitofp %123 : vector<1280x768xi8> to vector<1280x768xbf16>
    %125 = vector.extract_strided_slice %119 {offsets = [1, 0], sizes = [15, 640], strides = [1, 1]} : vector<16x640xf32> to vector<15x640xf32>
    %126 = vector.extract_strided_slice %119 {offsets = [0, 0], sizes = [1, 640], strides = [1, 1]} : vector<16x640xf32> to vector<1x640xf32>
    %127 = tpu.concatenate %125, %126 in 0 : vector<15x640xf32>, vector<1x640xf32> -> vector<16x640xf32>
    %128 = tpu.concatenate %119, %127 in 1 : vector<16x640xf32>, vector<16x640xf32> -> vector<16x1280xf32>
    %129 = arith.truncf %128 : vector<16x1280xf32> to vector<16x1280xbf16>
    %cst_61 = arith.constant dense<0.000000e+00> : vector<16x768xf32>
    %130 = tpu.matmul %129, %124, %cst_61 {dimension_numbers = #tpu.dot_dimension_numbers<[1], [0], [0], [1], [0, 0, 1, 1], [], []>} : vector<16x1280xbf16>, vector<1280x768xbf16>, vector<16x768xf32> -> vector<16x768xf32>
    %c0_62 = arith.constant 0 : index
    %c0_63 = arith.constant 0 : index
    %131 = vector.load %arg14[%c0_62, %c0_63] : memref<2x768xf32, #tpu.memory_space<vmem>>, vector<1x768xf32>
    %c1_64 = arith.constant 1 : index
    %c0_65 = arith.constant 0 : index
    %132 = vector.load %arg14[%c1_64, %c0_65] : memref<2x768xf32, #tpu.memory_space<vmem>>, vector<1x768xf32>
    %133 = vector.broadcast %131 : vector<1x768xf32> to vector<16x768xf32>
    %134 = arith.mulf %130, %133 : vector<16x768xf32>
    %135 = vector.broadcast %132 : vector<1x768xf32> to vector<16x768xf32>
    %136 = arith.addf %134, %135 : vector<16x768xf32>
    %137 = arith.negf %136 : vector<16x768xf32>
    %138 = math.exp %137 : vector<16x768xf32>
    %cst_66 = arith.constant 1.000000e+00 : f32
    %139 = vector.broadcast %cst_66 : f32 to vector<16x768xf32>
    %140 = arith.addf %139, %138 : vector<16x768xf32>
    %141 = arith.divf %139, %140 : vector<16x768xf32>
    %142 = arith.mulf %136, %141 : vector<16x768xf32>
    %c0_i32_67 = arith.constant 0 : i32
    %143 = arith.cmpi eq, %arg0, %c0_i32_67 : i32
    %144 = arith.extui %143 : i1 to i32
    %c6_i32_68 = arith.constant 6 : i32
    %c0_i32_69 = arith.constant 0 : i32
    %145 = arith.cmpi ne, %144, %c0_i32_69 : i32
    scf.if %145 {
      %158 = tpu.memref_slice %arg24[%c6_i32_68] : memref<7x!tpu.dma_semaphore, #tpu.memory_space<semaphore_mem>> -> memref<1x!tpu.dma_semaphore, #tpu.memory_space<semaphore_mem>>
      %159 = tpu.memref_squeeze %158 : memref<1x!tpu.dma_semaphore, #tpu.memory_space<semaphore_mem>> -> memref<!tpu.dma_semaphore, #tpu.memory_space<semaphore_mem>>
      tpu.wait_dma2 semaphore(%159 : memref<!tpu.dma_semaphore, #tpu.memory_space<semaphore_mem>>) src(%arg8 : memref<768x64xi8, #tpu.memory_space<any>>) dst(%arg23 : memref<768x64xi8, #tpu.memory_space<vmem>>)
    } else {
    }
    %c0_70 = arith.constant 0 : index
    %c0_71 = arith.constant 0 : index
    %146 = vector.load %arg23[%c0_70, %c0_71] : memref<768x64xi8, #tpu.memory_space<vmem>>, vector<768x64xi8>
    %147 = arith.sitofp %146 : vector<768x64xi8> to vector<768x64xbf16>
    %148 = arith.truncf %142 : vector<16x768xf32> to vector<16x768xbf16>
    %cst_72 = arith.constant dense<0.000000e+00> : vector<16x64xf32>
    %149 = tpu.matmul %148, %147, %cst_72 {dimension_numbers = #tpu.dot_dimension_numbers<[1], [0], [0], [1], [0, 0, 1, 1], [], []>} : vector<16x768xbf16>, vector<768x64xbf16>, vector<16x64xf32> -> vector<16x64xf32>
    %c0_73 = arith.constant 0 : index
    %c0_74 = arith.constant 0 : index
    %150 = vector.load %arg15[%c0_73, %c0_74] : memref<2x64xf32, #tpu.memory_space<vmem>>, vector<1x64xf32>
    %c1_75 = arith.constant 1 : index
    %c0_76 = arith.constant 0 : index
    %151 = vector.load %arg15[%c1_75, %c0_76] : memref<2x64xf32, #tpu.memory_space<vmem>>, vector<1x64xf32>
    %152 = vector.broadcast %150 : vector<1x64xf32> to vector<16x64xf32>
    %153 = arith.mulf %149, %152 : vector<16x64xf32>
    %154 = vector.broadcast %151 : vector<1x64xf32> to vector<16x64xf32>
    %155 = arith.addf %153, %154 : vector<16x64xf32>
    %156 = math.tanh %155 : vector<16x64xf32>
    %c0_77 = arith.constant 0 : index
    %c0_78 = arith.constant 0 : index
    %157 = vector.load %arg16[%c0_77, %c0_78] : memref<16x64xf32, #tpu.memory_space<vmem>>, vector<16x64xf32>
    tpu.vector_store %arg16[%c0_77, %c0_78], %156 {strides = array<i32>} : memref<16x64xf32, #tpu.memory_space<vmem>>, vector<16x64xf32>,
    return
  }
  func.func @transform_0(%arg0: i32) -> (i32, i32) {
    %c0_i32 = arith.constant 0 : i32
    %c0_i32_0 = arith.constant 0 : i32
    return %arg0, %c0_i32 : i32, i32
  }
  func.func @transform_8(%arg0: i32) -> (i32, i32) {
    %c0_i32 = arith.constant 0 : i32
    %c0_i32_0 = arith.constant 0 : i32
    %c0_i32_1 = arith.constant 0 : i32
    return %c0_i32, %c0_i32_0 : i32, i32
  }
  func.func @transform_9(%arg0: i32) -> (i32, i32) {
    %c0_i32 = arith.constant 0 : i32
    %c0_i32_0 = arith.constant 0 : i32
    %c0_i32_1 = arith.constant 0 : i32
    return %c0_i32, %c0_i32_0 : i32, i32
  }
  func.func @transform_10(%arg0: i32) -> (i32, i32) {
    %c0_i32 = arith.constant 0 : i32
    %c0_i32_0 = arith.constant 0 : i32
    %c0_i32_1 = arith.constant 0 : i32
    return %c0_i32, %c0_i32_0 : i32, i32
  }
  func.func @transform_11(%arg0: i32) -> (i32, i32) {
    %c0_i32 = arith.constant 0 : i32
    %c0_i32_0 = arith.constant 0 : i32
    %c0_i32_1 = arith.constant 0 : i32
    return %c0_i32, %c0_i32_0 : i32, i32
  }
  func.func @transform_12(%arg0: i32) -> (i32, i32) {
    %c0_i32 = arith.constant 0 : i32
    %c0_i32_0 = arith.constant 0 : i32
    %c0_i32_1 = arith.constant 0 : i32
    return %c0_i32, %c0_i32_0 : i32, i32
  }
  func.func @transform_13(%arg0: i32) -> (i32, i32) {
    %c0_i32 = arith.constant 0 : i32
    %c0_i32_0 = arith.constant 0 : i32
    %c0_i32_1 = arith.constant 0 : i32
    return %c0_i32, %c0_i32_0 : i32, i32
  }
  func.func @transform_14(%arg0: i32) -> (i32, i32) {
    %c0_i32 = arith.constant 0 : i32
    %c0_i32_0 = arith.constant 0 : i32
    %c0_i32_1 = arith.constant 0 : i32
    return %c0_i32, %c0_i32_0 : i32, i32
  }
  func.func @transform_15(%arg0: i32) -> (i32, i32) {
    %c0_i32 = arith.constant 0 : i32
    %c0_i32_0 = arith.constant 0 : i32
    return %arg0, %c0_i32 : i32, i32
  }
}

</mosaic_0001>

<llo_original>
// kernel: encoder2_forward.1
$region0: #{encoder2_forward.1}
  #allocation0 [shape = 'u32[]', space=smem, size = 0x4, offset = 0x4, fixed_abs, tag = 'smem constant byte address 0x4 - core index']
  #allocation1 [shape = 'u32[144,128]{1,0:T(1,128)}', space=vmem, size = 0x12000, scoped, tag = 'internal scratch']
  #allocation2 [shape = 's8[128,256]{1,0:T(32,128)(4,1)}', space=vmem, size = 0x8000, scoped, tag = 'scratch operand']
  #allocation3 [shape = 's8[768,512]{1,0:T(32,128)(4,1)}', space=vmem, size = 0x60000, scoped, tag = 'scratch operand']
  #allocation4 [shape = 's8[1536,640]{1,0:T(32,128)(4,1)}', space=vmem, size = 0xf0000, scoped, tag = 'scratch operand']
  #allocation5 [shape = 's8[640,640]{1,0:T(32,128)(4,1)}', space=vmem, size = 0x64000, scoped, tag = 'scratch operand']
  #allocation6 [shape = 's8[1920,640]{1,0:T(32,128)(4,1)}', space=vmem, size = 0x12c000, scoped, tag = 'scratch operand']
  #allocation7 [shape = 's8[1280,768]{1,0:T(32,128)(4,1)}', space=vmem, size = 0xf0000, scoped, tag = 'scratch operand']
  #allocation8 [shape = 's8[768,64]{1,0:T(32,128)(4,1)}', space=vmem, size = 0x18000, scoped, tag = 'scratch operand']
  #allocation9 [shape = 's32[7]{0}', space=sflag, size = 0x1c, scoped, tag = 'scratch operand']
  #allocation10 [shape = 's32[]', space=sflag, size = 0x4, offset = 0, fixed_abs, tag = 'sflag constant byte address 0x0 - dummy sync flag']
  #allocation11 [shape = 's32[]', space=sflag, size = 0x4, offset = 0, fixed_abs, tag = 'sflag constant byte address 0x0 - dummy sync flag']
  #allocation12 [shape = 's32[]', space=sflag, size = 0x4, offset = 0, fixed_abs, tag = 'sflag constant byte address 0x0 - dummy sync flag']
  #allocation13 [shape = 'u32[]', space=smem, size = 0x4, offset = 0x44, fixed_abs, tag = 'smem constant byte address 0x44 - assertion arg 0']
  #allocation14 [shape = 'u32[]', space=smem, size = 0x4, offset = 0x48, fixed_abs, tag = 'smem constant byte address 0x48 - assertion arg 1']
  #allocation15 [shape = 's32[]', space=sflag, size = 0x4, offset = 0, fixed_abs, tag = 'sflag constant byte address 0x0 - dummy sync flag']
  #allocation16 [shape = 's32[]', space=sflag, size = 0x4, offset = 0, fixed_abs, tag = 'sflag constant byte address 0x0 - dummy sync flag']
  #allocation17 [shape = 's32[]', space=sflag, size = 0x4, offset = 0, fixed_abs, tag = 'sflag constant byte address 0x0 - dummy sync flag']
  #allocation18 [shape = 's32[]', space=sflag, size = 0x4, offset = 0, fixed_abs, tag = 'sflag constant byte address 0x0 - dummy sync flag']
  #allocation19 [shape = 's32[]', space=sflag, size = 0x4, offset = 0, fixed_abs, tag = 'sflag constant byte address 0x0 - dummy sync flag']
  %s0 = inlined_call_operand.vmem [shape: f32[16,128], index: 0, kind: input, shape index: {}]
  %s1 = inlined_call_operand.vmem [shape: s8[128,256], index: 1, kind: input, shape index: {}]
  %s2 = inlined_call_operand.hbm [shape: s8[768,512], index: 2, kind: input, shape index: {}]
  %s3 = inlined_call_operand.vmem [shape: s8[1536,640], index: 3, kind: input, shape index: {}]
  %s4 = inlined_call_operand.vmem [shape: s8[640,640], index: 4, kind: input, shape index: {}]
  %s5 = inlined_call_operand.vmem [shape: s8[1920,640], index: 5, kind: input, shape index: {}]
  %s6 = inlined_call_operand.vmem [shape: s8[1280,768], index: 6, kind: input, shape index: {}]
  %s7 = inlined_call_operand.vmem [shape: s8[768,64], index: 7, kind: input, shape index: {}]
  %s8 = inlined_call_operand.vmem [shape: f32[2,256], index: 8, kind: input, shape index: {}]
  %s9 = inlined_call_operand.vmem [shape: f32[2,512], index: 9, kind: input, shape index: {}]
  %s10 = inlined_call_operand.vmem [shape: f32[2,640], index: 10, kind: input, shape index: {}]
  %s11 = inlined_call_operand.vmem [shape: f32[2,640], index: 11, kind: input, shape index: {}]
  %s12 = inlined_call_operand.vmem [shape: f32[2,640], index: 12, kind: input, shape index: {}]
  %s13 = inlined_call_operand.vmem [shape: f32[2,768], index: 13, kind: input, shape index: {}]
  %s14 = inlined_call_operand.vmem [shape: f32[2,64], index: 14, kind: input, shape index: {}]
  %s15 = inlined_call_operand.vmem [shape: f32[16,64], index: 15, kind: output, shape index: {}]
  %s16 = sld [smem:[#allocation0]]
  $region282: #{encoder2_forward.1} parent=0
    _
  %s18 = ssub.s32 1, %s16
  %s19 = scalar_select 0, %s18, %s16
  // Predicated region
  $region2: #{encoder2_forward.1} parent=0 // pred_check
    _
  $region3: #{encoder2_forward.1} parent=0 // pred_check_branch
    %21 = sbr.rel (0) target = $region5
  $region4: #{encoder2_forward.1} parent=0 // pred_region
    _
  $region5: #{encoder2_forward.1} parent=0 // pred_fallthru
    _
  // Predicated region
  $region6: #{encoder2_forward.1} parent=0 // pred_check
    _
  $region7: #{encoder2_forward.1} parent=0 // pred_check_branch
    %23 = sbr.rel (0) target = $region9
  $region8: #{encoder2_forward.1} parent=0 // pred_region
    _
  $region9: #{encoder2_forward.1} parent=0 // pred_fallthru
    _
  // Predicated region
  $region10: #{encoder2_forward.1} parent=0 // pred_check
    _
  $region11: #{encoder2_forward.1} parent=0 // pred_check_branch
    %25 = sbr.rel (0) target = $region13
  $region12: #{encoder2_forward.1} parent=0 // pred_region
    _
  $region13: #{encoder2_forward.1} parent=0 // pred_fallthru
    _
  // Predicated region
  $region14: #{encoder2_forward.1} parent=0 // pred_check
    _
  $region15: #{encoder2_forward.1} parent=0 // pred_check_branch
    %27 = sbr.rel (0) target = $region17
  $region16: #{encoder2_forward.1} parent=0 // pred_region
    _
  $region17: #{encoder2_forward.1} parent=0 // pred_fallthru
    _
  // Predicated region
  $region18: #{encoder2_forward.1} parent=0 // pred_check
    _
  $region19: #{encoder2_forward.1} parent=0 // pred_check_branch
    %29 = sbr.rel (0) target = $region21
  $region20: #{encoder2_forward.1} parent=0 // pred_region
    _
  $region21: #{encoder2_forward.1} parent=0 // pred_fallthru
    _
  // Predicated region
  $region22: #{encoder2_forward.1} parent=0 // pred_check
    _
  $region23: #{encoder2_forward.1} parent=0 // pred_check_branch
    %31 = sbr.rel (0) target = $region25
  $region24: #{encoder2_forward.1} parent=0 // pred_region
    _
  $region25: #{encoder2_forward.1} parent=0 // pred_fallthru
    _
  // Predicated region
  $region26: #{encoder2_forward.1} parent=0 // pred_check
    _
  $region27: #{encoder2_forward.1} parent=0 // pred_check_branch
    %33 = sbr.rel (0) target = $region29
  $region28: #{encoder2_forward.1} parent=0 // pred_region
    _
  $region29: #{encoder2_forward.1} parent=0 // pred_fallthru
    _
  // Predicated region
  $region30: #{encoder2_forward.1} parent=0 // pred_check
    _
  $region31: #{encoder2_forward.1} parent=0 // pred_check_branch
    %35 = sbr.rel (0) target = $region33
  $region32: #{encoder2_forward.1} parent=0 // pred_region
    _
  $region33: #{encoder2_forward.1} parent=0 // pred_fallthru
    _
  %p37 = scmp.eq.s32.totalorder 0, 0
  // Predicated region
  $region34: #{encoder2_forward.1} parent=0 // pred_check
    %p38 = pneg %p37
  $region35: #{encoder2_forward.1} parent=0 // pred_check_branch
    %40 = sbr.rel (%p38) target = $region37
  $region36: #{encoder2_forward.1} parent=0 // pred_region
    %p42 = scmp.lt.u32.totalorder 64, 8
    %p43 = pneg %p42
    // Predicated region
    $region38: #{encoder2_forward.1} parent=36 // pred_check
      _
    $region39: #{encoder2_forward.1} parent=36 // pred_check_branch
      %45 = sbr.rel (%p42) target = $region41
    $region40: #{encoder2_forward.1} parent=36 // pred_region
      %s61 = sand.u32 64, 7
      %p62 = scmp.eq.s32.totalorder %s61, 0
      // Predicated region
      $region53: #{encoder2_forward.1} parent=40 // pred_check
        %p63 = pneg %p62
      $region54: #{encoder2_forward.1} parent=40 // pred_check_branch
        %65 = sbr.rel (%p63) target = $region56
      $region55: #{encoder2_forward.1} parent=40 // pred_region
        loop: start=0, step=1, limit=1
        $region57: #{encoder2_forward.1} parent=55 // loop_pre_header
          _
        $region58: #{encoder2_forward.1} parent=55 // loop_header
          %s67 = sphi 0, %s71
          %p68 = scmp.ge.s32.totalorder %s67, 1
          %s72 = sphi %s1, %s1
          %s73 = sphi [#allocation2], [#allocation2]
        $region59: #{encoder2_forward.1} parent=55 // loop_header_branch
          %70 = sbr.rel (%p68) target = $region63
        $region60: #{encoder2_forward.1} parent=55 // loop_body
          %v74 = vld [vmem:[%s72] sm:$0xff]
          %75 = vst [vmem:[%s73] sm:$0xff] %v74
          %v76 = vld [vmem:[%s72 + $0x8] sm:$0xff]
          %77 = vst [vmem:[%s73 + $0x8] sm:$0xff] %v76
          %v78 = vld [vmem:[%s72 + $0x10] sm:$0xff]
          %79 = vst [vmem:[%s73 + $0x10] sm:$0xff] %v78
          %v80 = vld [vmem:[%s72 + $0x18] sm:$0xff]
          %81 = vst [vmem:[%s73 + $0x18] sm:$0xff] %v80
          %v82 = vld [vmem:[%s72 + $0x20] sm:$0xff]
          %83 = vst [vmem:[%s73 + $0x20] sm:$0xff] %v82
          %v84 = vld [vmem:[%s72 + $0x28] sm:$0xff]
          %85 = vst [vmem:[%s73 + $0x28] sm:$0xff] %v84
          %v86 = vld [vmem:[%s72 + $0x30] sm:$0xff]
          %87 = vst [vmem:[%s73 + $0x30] sm:$0xff] %v86
          %v88 = vld [vmem:[%s72 + $0x38] sm:$0xff]
          %89 = vst [vmem:[%s73 + $0x38] sm:$0xff] %v88
        $region61: #{encoder2_forward.1} parent=55 // loop_footer
          %s71 = sadd.s32 1, %s67
        $region62: #{encoder2_forward.1} parent=55 // loop_footer_branch
          %66 = sbr.rel target = $region58
        $region63: #{encoder2_forward.1} parent=55 // loop_exit
          _
      $region56: #{encoder2_forward.1} parent=40 // pred_fallthru
        _
      %p90 = pneg %p62
      // Predicated region
      $region64: #{encoder2_forward.1} parent=40 // pred_check
        _
      $region65: #{encoder2_forward.1} parent=40 // pred_check_branch
        %92 = sbr.rel (%p62) target = $region67
      $region66: #{encoder2_forward.1} parent=40 // pred_region
        %s93 = sand.u32 64, 7
      $region67: #{encoder2_forward.1} parent=40 // pred_fallthru
        _
    $region41: #{encoder2_forward.1} parent=36 // pred_fallthru
      _
    // Predicated region
    $region42: #{encoder2_forward.1} parent=36 // pred_check
      %p46 = pneg %p42
    $region43: #{encoder2_forward.1} parent=36 // pred_check_branch
      %48 = sbr.rel (%p46) target = $region45
    $region44: #{encoder2_forward.1} parent=36 // pred_region
      %s49 = sshll.u32 1, 64
      %s50 = ssub.s32 %s49, 1
      loop: start=0, step=1, limit=1
      $region46: #{encoder2_forward.1} parent=44 // loop_pre_header
        _
      $region47: #{encoder2_forward.1} parent=44 // loop_header
        %s52 = sphi 0, %s56
        %p53 = scmp.ge.s32.totalorder %s52, 1
        %s57 = sphi %s1, %s1
        %s58 = sphi [#allocation2], [#allocation2]
      $region48: #{encoder2_forward.1} parent=44 // loop_header_branch
        %55 = sbr.rel (%p53) target = $region52
      $region49: #{encoder2_forward.1} parent=44 // loop_body
        %v59 = vld [vmem:[%s57] sm:%s50]
        %60 = vst [vmem:[%s58] sm:%s50] %v59
      $region50: #{encoder2_forward.1} parent=44 // loop_footer
        %s56 = sadd.s32 1, %s52
      $region51: #{encoder2_forward.1} parent=44 // loop_footer_branch
        %51 = sbr.rel target = $region47
      $region52: #{encoder2_forward.1} parent=44 // loop_exit
        _
    $region45: #{encoder2_forward.1} parent=36 // pred_fallthru
      _
    // Predicated region
    $region68: #{encoder2_forward.1} parent=36 // pred_check
      _
    $region69: #{encoder2_forward.1} parent=36 // pred_check_branch
      %96 = sbr.rel (0) target = $region71
    $region70: #{encoder2_forward.1} parent=36 // pred_region
      %97 = vsyncadd [#allocation9], 1024
    $region71: #{encoder2_forward.1} parent=36 // pred_fallthru
      _
    %s98 = scalar_lea.sflag [#allocation9], 1
    // Predicated region
    $region72: #{encoder2_forward.1} parent=36 // pred_check
      _
    $region73: #{encoder2_forward.1} parent=36 // pred_check_branch
      %100 = sbr.rel target = $region75
    $region74: #{encoder2_forward.1} parent=36 // pred_region
      %101 = sst [smem:[#allocation13]] [#allocation12]
      %102 = sst [smem:[#allocation14]] [#allocation11]
    $region75: #{encoder2_forward.1} parent=36 // pred_fallthru
      _
    %104 = shalt.err (0)
    %s106 = sshll.u32 [#allocation3], 4
    %s107 = int_to_ptr.vmem [resolvable:$true] %s106
    %109 = dma.hbm_to_vmem [thread:$0]  %s2, 12288, %s107, %s98
    %s110 = scalar_lea.sflag [#allocation9], 2
    %p112 = scmp.lt.u32.totalorder 1920, 8
    %p113 = pneg %p112
    // Predicated region
    $region76: #{encoder2_forward.1} parent=36 // pred_check
      _
    $region77: #{encoder2_forward.1} parent=36 // pred_check_branch
      %115 = sbr.rel (%p112) target = $region79
    $region78: #{encoder2_forward.1} parent=36 // pred_region
      %s131 = sand.u32 1920, 7
      %p132 = scmp.eq.s32.totalorder %s131, 0
      // Predicated region
      $region91: #{encoder2_forward.1} parent=78 // pred_check
        %p133 = pneg %p132
      $region92: #{encoder2_forward.1} parent=78 // pred_check_branch
        %135 = sbr.rel (%p133) target = $region94
      $region93: #{encoder2_forward.1} parent=78 // pred_region
        loop: start=0, step=1, limit=1
        $region95: #{encoder2_forward.1} parent=93 // loop_pre_header
          _
        $region96: #{encoder2_forward.1} parent=93 // loop_header
          %s137 = sphi 0, %s141
          %p138 = scmp.ge.s32.totalorder %s137, 1
          %s142 = sphi %s3, %s3
          %s143 = sphi [#allocation4], [#allocation4]
        $region97: #{encoder2_forward.1} parent=93 // loop_header_branch
          %140 = sbr.rel (%p138) target = $region101
        $region98: #{encoder2_forward.1} parent=93 // loop_body
          %v144 = vld [vmem:[%s142] sm:$0xff]
          %145 = vst [vmem:[%s143] sm:$0xff] %v144
          %v146 = vld [vmem:[%s142 + $0x8] sm:$0xff]
          %147 = vst [vmem:[%s143 + $0x8] sm:$0xff] %v146
          %v148 = vld [vmem:[%s142 + $0x10] sm:$0xff]
          %149 = vst [vmem:[%s143 + $0x10] sm:$0xff] %v148
          %v150 = vld [vmem:[%s142 + $0x18] sm:$0xff]
          %151 = vst [vmem:[%s143 + $0x18] sm:$0xff] %v150
          %v152 = vld [vmem:[%s142 + $0x20] sm:$0xff]
          %153 = vst [vmem:[%s143 + $0x20] sm:$0xff] %v152
          %v154 = vld [vmem:[%s142 + $0x28] sm:$0xff]
          %155 = vst [vmem:[%s143 + $0x28] sm:$0xff] %v154
          %v156 = vld [vmem:[%s142 + $0x30] sm:$0xff]
          %157 = vst [vmem:[%s143 + $0x30] sm:$0xff] %v156
          %v158 = vld [vmem:[%s142 + $0x38] sm:$0xff]
          %159 = vst [vmem:[%s143 + $0x38] sm:$0xff] %v158
          %v160 = vld [vmem:[%s142 + $0x40] sm:$0xff]
          %161 = vst [vmem:[%s143 + $0x40] sm:$0xff] %v160
          %v162 = vld [vmem:[%s142 + $0x48] sm:$0xff]
          %163 = vst [vmem:[%s143 + $0x48] sm:$0xff] %v162
          %v164 = vld [vmem:[%s142 + $0x50] sm:$0xff]
          %165 = vst [vmem:[%s143 + $0x50] sm:$0xff] %v164
          %v166 = vld [vmem:[%s142 + $0x58] sm:$0xff]
          %167 = vst [vmem:[%s143 + $0x58] sm:$0xff] %v166
          %v168 = vld [vmem:[%s142 + $0x60] sm:$0xff]
          %169 = vst [vmem:[%s143 + $0x60] sm:$0xff] %v168
          %v170 = vld [vmem:[%s142 + $0x68] sm:$0xff]
          %171 = vst [vmem:[%s143 + $0x68] sm:$0xff] %v170
          %v172 = vld [vmem:[%s142 + $0x70] sm:$0xff]
          %173 = vst [vmem:[%s143 + $0x70] sm:$0xff] %v172
          %v174 = vld [vmem:[%s142 + $0x78] sm:$0xff]
          %175 = vst [vmem:[%s143 + $0x78] sm:$0xff] %v174
          %v176 = vld [vmem:[%s142 + $0x80] sm:$0xff]
          %177 = vst [vmem:[%s143 + $0x80] sm:$0xff] %v176
          %v178 = vld [vmem:[%s142 + $0x88] sm:$0xff]
          %179 = vst [vmem:[%s143 + $0x88] sm:$0xff] %v178
          %v180 = vld [vmem:[%s142 + $0x90] sm:$0xff]
          %181 = vst [vmem:[%s143 + $0x90] sm:$0xff] %v180
          %v182 = vld [vmem:[%s142 + $0x98] sm:$0xff]
          %183 = vst [vmem:[%s143 + $0x98] sm:$0xff] %v182
          %v184 = vld [vmem:[%s142 + $0xa0] sm:$0xff]
          %185 = vst [vmem:[%s143 + $0xa0] sm:$0xff] %v184
          %v186 = vld [vmem:[%s142 + $0xa8] sm:$0xff]
          %187 = vst [vmem:[%s143 + $0xa8] sm:$0xff] %v186
          %v188 = vld [vmem:[%s142 + $0xb0] sm:$0xff]
          %189 = vst [vmem:[%s143 + $0xb0] sm:$0xff] %v188
          %v190 = vld [vmem:[%s142 + $0xb8] sm:$0xff]
          %191 = vst [vmem:[%s143 + $0xb8] sm:$0xff] %v190
          %v192 = vld [vmem:[%s142 + $0xc0] sm:$0xff]
          %193 = vst [vmem:[%s143 + $0xc0] sm:$0xff] %v192
          %v194 = vld [vmem:[%s142 + $0xc8] sm:$0xff]
          %195 = vst [vmem:[%s143 + $0xc8] sm:$0xff] %v194
          %v196 = vld [vmem:[%s142 + $0xd0] sm:$0xff]
          %197 = vst [vmem:[%s143 + $0xd0] sm:$0xff] %v196
          %v198 = vld [vmem:[%s142 + $0xd8] sm:$0xff]
          %199 = vst [vmem:[%s143 + $0xd8] sm:$0xff] %v198
          %v200 = vld [vmem:[%s142 + $0xe0] sm:$0xff]
          %201 = vst [vmem:[%s143 + $0xe0] sm:$0xff] %v200
          %v202 = vld [vmem:[%s142 + $0xe8] sm:$0xff]
          %203 = vst [vmem:[%s143 + $0xe8] sm:$0xff] %v202
          %v204 = vld [vmem:[%s142 + $0xf0] sm:$0xff]
          %205 = vst [vmem:[%s143 + $0xf0] sm:$0xff] %v204
          %v206 = vld [vmem:[%s142 + $0xf8] sm:$0xff]
          %207 = vst [vmem:[%s143 + $0xf8] sm:$0xff] %v206
          %v208 = vld [vmem:[%s142 + $0x100] sm:$0xff]
          %209 = vst [vmem:[%s143 + $0x100] sm:$0xff] %v208
          %v210 = vld [vmem:[%s142 + $0x108] sm:$0xff]
          %211 = vst [vmem:[%s143 + $0x108] sm:$0xff] %v210
          %v212 = vld [vmem:[%s142 + $0x110] sm:$0xff]
          %213 = vst [vmem:[%s143 + $0x110] sm:$0xff] %v212
          %v214 = vld [vmem:[%s142 + $0x118] sm:$0xff]
          %215 = vst [vmem:[%s143 + $0x118] sm:$0xff] %v214
          %v216 = vld [vmem:[%s142 + $0x120] sm:$0xff]
          %217 = vst [vmem:[%s143 + $0x120] sm:$0xff] %v216
          %v218 = vld [vmem:[%s142 + $0x128] sm:$0xff]
          %219 = vst [vmem:[%s143 + $0x128] sm:$0xff] %v218
          %v220 = vld [vmem:[%s142 + $0x130] sm:$0xff]
          %221 = vst [vmem:[%s143 + $0x130] sm:$0xff] %v220
          %v222 = vld [vmem:[%s142 + $0x138] sm:$0xff]
          %223 = vst [vmem:[%s143 + $0x138] sm:$0xff] %v222
          %v224 = vld [vmem:[%s142 + $0x140] sm:$0xff]
          %225 = vst [vmem:[%s143 + $0x140] sm:$0xff] %v224
          %v226 = vld [vmem:[%s142 + $0x148] sm:$0xff]
          %227 = vst [vmem:[%s143 + $0x148] sm:$0xff] %v226
          %v228 = vld [vmem:[%s142 + $0x150] sm:$0xff]
          %229 = vst [vmem:[%s143 + $0x150] sm:$0xff] %v228
          %v230 = vld [vmem:[%s142 + $0x158] sm:$0xff]
          %231 = vst [vmem:[%s143 + $0x158] sm:$0xff] %v230
          %v232 = vld [vmem:[%s142 + $0x160] sm:$0xff]
          %233 = vst [vmem:[%s143 + $0x160] sm:$0xff] %v232
          %v234 = vld [vmem:[%s142 + $0x168] sm:$0xff]
          %235 = vst [vmem:[%s143 + $0x168] sm:$0xff] %v234
          %v236 = vld [vmem:[%s142 + $0x170] sm:$0xff]
          %237 = vst [vmem:[%s143 + $0x170] sm:$0xff] %v236
          %v238 = vld [vmem:[%s142 + $0x178] sm:$0xff]
          %239 = vst [vmem:[%s143 + $0x178] sm:$0xff] %v238
          %v240 = vld [vmem:[%s142 + $0x180] sm:$0xff]
          %241 = vst [vmem:[%s143 + $0x180] sm:$0xff] %v240
          %v242 = vld [vmem:[%s142 + $0x188] sm:$0xff]
          %243 = vst [vmem:[%s143 + $0x188] sm:$0xff] %v242
          %v244 = vld [vmem:[%s142 + $0x190] sm:$0xff]
          %245 = vst [vmem:[%s143 + $0x190] sm:$0xff] %v244
          %v246 = vld [vmem:[%s142 + $0x198] sm:$0xff]
          %247 = vst [vmem:[%s143 + $0x198] sm:$0xff] %v246
          %v248 = vld [vmem:[%s142 + $0x1a0] sm:$0xff]
          %249 = vst [vmem:[%s143 + $0x1a0] sm:$0xff] %v248
          %v250 = vld [vmem:[%s142 + $0x1a8] sm:$0xff]
          %251 = vst [vmem:[%s143 + $0x1a8] sm:$0xff] %v250
          %v252 = vld [vmem:[%s142 + $0x1b0] sm:$0xff]
          %253 = vst [vmem:[%s143 + $0x1b0] sm:$0xff] %v252
          %v254 = vld [vmem:[%s142 + $0x1b8] sm:$0xff]
          %255 = vst [vmem:[%s143 + $0x1b8] sm:$0xff] %v254
          %v256 = vld [vmem:[%s142 + $0x1c0] sm:$0xff]
          %257 = vst [vmem:[%s143 + $0x1c0] sm:$0xff] %v256
          %v258 = vld [vmem:[%s142 + $0x1c8] sm:$0xff]
          %259 = vst [vmem:[%s143 + $0x1c8] sm:$0xff] %v258
          %v260 = vld [vmem:[%s142 + $0x1d0] sm:$0xff]
          %261 = vst [vmem:[%s143 + $0x1d0] sm:$0xff] %v260
          %v262 = vld [vmem:[%s142 + $0x1d8] sm:$0xff]
          %263 = vst [vmem:[%s143 + $0x1d8] sm:$0xff] %v262
          %v264 = vld [vmem:[%s142 + $0x1e0] sm:$0xff]
          %265 = vst [vmem:[%s143 + $0x1e0] sm:$0xff] %v264
          %v266 = vld [vmem:[%s142 + $0x1e8] sm:$0xff]
          %267 = vst [vmem:[%s143 + $0x1e8] sm:$0xff] %v266
          %v268 = vld [vmem:[%s142 + $0x1f0] sm:$0xff]
          %269 = vst [vmem:[%s143 + $0x1f0] sm:$0xff] %v268
          %v270 = vld [vmem:[%s142 + $0x1f8] sm:$0xff]
          %271 = vst [vmem:[%s143 + $0x1f8] sm:$0xff] %v270
          %v272 = vld [vmem:[%s142 + $0x200] sm:$0xff]
          %273 = vst [vmem:[%s143 + $0x200] sm:$0xff] %v272
          %v274 = vld [vmem:[%s142 + $0x208] sm:$0xff]
          %275 = vst [vmem:[%s143 + $0x208] sm:$0xff] %v274
          %v276 = vld [vmem:[%s142 + $0x210] sm:$0xff]
          %277 = vst [vmem:[%s143 + $0x210] sm:$0xff] %v276
          %v278 = vld [vmem:[%s142 + $0x218] sm:$0xff]
          %279 = vst [vmem:[%s143 + $0x218] sm:$0xff] %v278
          %v280 = vld [vmem:[%s142 + $0x220] sm:$0xff]
          %281 = vst [vmem:[%s143 + $0x220] sm:$0xff] %v280
          %v282 = vld [vmem:[%s142 + $0x228] sm:$0xff]
          %283 = vst [vmem:[%s143 + $0x228] sm:$0xff] %v282
          %v284 = vld [vmem:[%s142 + $0x230] sm:$0xff]
          %285 = vst [vmem:[%s143 + $0x230] sm:$0xff] %v284
          %v286 = vld [vmem:[%s142 + $0x238] sm:$0xff]
          %287 = vst [vmem:[%s143 + $0x238] sm:$0xff] %v286
          %v288 = vld [vmem:[%s142 + $0x240] sm:$0xff]
          %289 = vst [vmem:[%s143 + $0x240] sm:$0xff] %v288
          %v290 = vld [vmem:[%s142 + $0x248] sm:$0xff]
          %291 = vst [vmem:[%s143 + $0x248] sm:$0xff] %v290
          %v292 = vld [vmem:[%s142 + $0x250] sm:$0xff]
          %293 = vst [vmem:[%s143 + $0x250] sm:$0xff] %v292
          %v294 = vld [vmem:[%s142 + $0x258] sm:$0xff]
          %295 = vst [vmem:[%s143 + $0x258] sm:$0xff] %v294
          %v296 = vld [vmem:[%s142 + $0x260] sm:$0xff]
          %297 = vst [vmem:[%s143 + $0x260] sm:$0xff] %v296
          %v298 = vld [vmem:[%s142 + $0x268] sm:$0xff]
          %299 = vst [vmem:[%s143 + $0x268] sm:$0xff] %v298
          %v300 = vld [vmem:[%s142 + $0x270] sm:$0xff]
          %301 = vst [vmem:[%s143 + $0x270] sm:$0xff] %v300
          %v302 = vld [vmem:[%s142 + $0x278] sm:$0xff]
          %303 = vst [vmem:[%s143 + $0x278] sm:$0xff] %v302
          %v304 = vld [vmem:[%s142 + $0x280] sm:$0xff]
          %305 = vst [vmem:[%s143 + $0x280] sm:$0xff] %v304
          %v306 = vld [vmem:[%s142 + $0x288] sm:$0xff]
          %307 = vst [vmem:[%s143 + $0x288] sm:$0xff] %v306
          %v308 = vld [vmem:[%s142 + $0x290] sm:$0xff]
          %309 = vst [vmem:[%s143 + $0x290] sm:$0xff] %v308
          %v310 = vld [vmem:[%s142 + $0x298] sm:$0xff]
          %311 = vst [vmem:[%s143 + $0x298] sm:$0xff] %v310
          %v312 = vld [vmem:[%s142 + $0x2a0] sm:$0xff]
          %313 = vst [vmem:[%s143 + $0x2a0] sm:$0xff] %v312
          %v314 = vld [vmem:[%s142 + $0x2a8] sm:$0xff]
          %315 = vst [vmem:[%s143 + $0x2a8] sm:$0xff] %v314
          %v316 = vld [vmem:[%s142 + $0x2b0] sm:$0xff]
          %317 = vst [vmem:[%s143 + $0x2b0] sm:$0xff] %v316
          %v318 = vld [vmem:[%s142 + $0x2b8] sm:$0xff]
          %319 = vst [vmem:[%s143 + $0x2b8] sm:$0xff] %v318
          %v320 = vld [vmem:[%s142 + $0x2c0] sm:$0xff]
          %321 = vst [vmem:[%s143 + $0x2c0] sm:$0xff] %v320
          %v322 = vld [vmem:[%s142 + $0x2c8] sm:$0xff]
          %323 = vst [vmem:[%s143 + $0x2c8] sm:$0xff] %v322
          %v324 = vld [vmem:[%s142 + $0x2d0] sm:$0xff]
          %325 = vst [vmem:[%s143 + $0x2d0] sm:$0xff] %v324
          %v326 = vld [vmem:[%s142 + $0x2d8] sm:$0xff]
          %327 = vst [vmem:[%s143 + $0x2d8] sm:$0xff] %v326
          %v328 = vld [vmem:[%s142 + $0x2e0] sm:$0xff]
          %329 = vst [vmem:[%s143 + $0x2e0] sm:$0xff] %v328
          %v330 = vld [vmem:[%s142 + $0x2e8] sm:$0xff]
          %331 = vst [vmem:[%s143 + $0x2e8] sm:$0xff] %v330
          %v332 = vld [vmem:[%s142 + $0x2f0] sm:$0xff]
          %333 = vst [vmem:[%s143 + $0x2f0] sm:$0xff] %v332
          %v334 = vld [vmem:[%s142 + $0x2f8] sm:$0xff]
          %335 = vst [vmem:[%s143 + $0x2f8] sm:$0xff] %v334
          %v336 = vld [vmem:[%s142 + $0x300] sm:$0xff]
          %337 = vst [vmem:[%s143 + $0x300] sm:$0xff] %v336
          %v338 = vld [vmem:[%s142 + $0x308] sm:$0xff]
          %339 = vst [vmem:[%s143 + $0x308] sm:$0xff] %v338
          %v340 = vld [vmem:[%s142 + $0x310] sm:$0xff]
          %341 = vst [vmem:[%s143 + $0x310] sm:$0xff] %v340
          %v342 = vld [vmem:[%s142 + $0x318] sm:$0xff]
          %343 = vst [vmem:[%s143 + $0x318] sm:$0xff] %v342
          %v344 = vld [vmem:[%s142 + $0x320] sm:$0xff]
          %345 = vst [vmem:[%s143 + $0x320] sm:$0xff] %v344
          %v346 = vld [vmem:[%s142 + $0x328] sm:$0xff]
          %347 = vst [vmem:[%s143 + $0x328] sm:$0xff] %v346
          %v348 = vld [vmem:[%s142 + $0x330] sm:$0xff]
          %349 = vst [vmem:[%s143 + $0x330] sm:$0xff] %v348
          %v350 = vld [vmem:[%s142 + $0x338] sm:$0xff]
          %351 = vst [vmem:[%s143 + $0x338] sm:$0xff] %v350
          %v352 = vld [vmem:[%s142 + $0x340] sm:$0xff]
          %353 = vst [vmem:[%s143 + $0x340] sm:$0xff] %v352
          %v354 = vld [vmem:[%s142 + $0x348] sm:$0xff]
          %355 = vst [vmem:[%s143 + $0x348] sm:$0xff] %v354
          %v356 = vld [vmem:[%s142 + $0x350] sm:$0xff]
          %357 = vst [vmem:[%s143 + $0x350] sm:$0xff] %v356
          %v358 = vld [vmem:[%s142 + $0x358] sm:$0xff]
          %359 = vst [vmem:[%s143 + $0x358] sm:$0xff] %v358
          %v360 = vld [vmem:[%s142 + $0x360] sm:$0xff]
          %361 = vst [vmem:[%s143 + $0x360] sm:$0xff] %v360
          %v362 = vld [vmem:[%s142 + $0x368] sm:$0xff]
          %363 = vst [vmem:[%s143 + $0x368] sm:$0xff] %v362
          %v364 = vld [vmem:[%s142 + $0x370] sm:$0xff]
          %365 = vst [vmem:[%s143 + $0x370] sm:$0xff] %v364
          %v366 = vld [vmem:[%s142 + $0x378] sm:$0xff]
          %367 = vst [vmem:[%s143 + $0x378] sm:$0xff] %v366
          %v368 = vld [vmem:[%s142 + $0x380] sm:$0xff]
          %369 = vst [vmem:[%s143 + $0x380] sm:$0xff] %v368
          %v370 = vld [vmem:[%s142 + $0x388] sm:$0xff]
          %371 = vst [vmem:[%s143 + $0x388] sm:$0xff] %v370
          %v372 = vld [vmem:[%s142 + $0x390] sm:$0xff]
          %373 = vst [vmem:[%s143 + $0x390] sm:$0xff] %v372
          %v374 = vld [vmem:[%s142 + $0x398] sm:$0xff]
          %375 = vst [vmem:[%s143 + $0x398] sm:$0xff] %v374
          %v376 = vld [vmem:[%s142 + $0x3a0] sm:$0xff]
          %377 = vst [vmem:[%s143 + $0x3a0] sm:$0xff] %v376
          %v378 = vld [vmem:[%s142 + $0x3a8] sm:$0xff]
          %379 = vst [vmem:[%s143 + $0x3a8] sm:$0xff] %v378
          %v380 = vld [vmem:[%s142 + $0x3b0] sm:$0xff]
          %381 = vst [vmem:[%s143 + $0x3b0] sm:$0xff] %v380
          %v382 = vld [vmem:[%s142 + $0x3b8] sm:$0xff]
          %383 = vst [vmem:[%s143 + $0x3b8] sm:$0xff] %v382
          %v384 = vld [vmem:[%s142 + $0x3c0] sm:$0xff]
          %385 = vst [vmem:[%s143 + $0x3c0] sm:$0xff] %v384
          %v386 = vld [vmem:[%s142 + $0x3c8] sm:$0xff]
          %387 = vst [vmem:[%s143 + $0x3c8] sm:$0xff] %v386
          %v388 = vld [vmem:[%s142 + $0x3d0] sm:$0xff]
          %389 = vst [vmem:[%s143 + $0x3d0] sm:$0xff] %v388
          %v390 = vld [vmem:[%s142 + $0x3d8] sm:$0xff]
          %391 = vst [vmem:[%s143 + $0x3d8] sm:$0xff] %v390
          %v392 = vld [vmem:[%s142 + $0x3e0] sm:$0xff]
          %393 = vst [vmem:[%s143 + $0x3e0] sm:$0xff] %v392
          %v394 = vld [vmem:[%s142 + $0x3e8] sm:$0xff]
          %395 = vst [vmem:[%s143 + $0x3e8] sm:$0xff] %v394
          %v396 = vld [vmem:[%s142 + $0x3f0] sm:$0xff]
          %397 = vst [vmem:[%s143 + $0x3f0] sm:$0xff] %v396
          %v398 = vld [vmem:[%s142 + $0x3f8] sm:$0xff]
          %399 = vst [vmem:[%s143 + $0x3f8] sm:$0xff] %v398
          %v400 = vld [vmem:[%s142 + $0x400] sm:$0xff]
          %401 = vst [vmem:[%s143 + $0x400] sm:$0xff] %v400
          %v402 = vld [vmem:[%s142 + $0x408] sm:$0xff]
          %403 = vst [vmem:[%s143 + $0x408] sm:$0xff] %v402
          %v404 = vld [vmem:[%s142 + $0x410] sm:$0xff]
          %405 = vst [vmem:[%s143 + $0x410] sm:$0xff] %v404
          %v406 = vld [vmem:[%s142 + $0x418] sm:$0xff]
          %407 = vst [vmem:[%s143 + $0x418] sm:$0xff] %v406
          %v408 = vld [vmem:[%s142 + $0x420] sm:$0xff]
          %409 = vst [vmem:[%s143 + $0x420] sm:$0xff] %v408
          %v410 = vld [vmem:[%s142 + $0x428] sm:$0xff]
          %411 = vst [vmem:[%s143 + $0x428] sm:$0xff] %v410
          %v412 = vld [vmem:[%s142 + $0x430] sm:$0xff]
          %413 = vst [vmem:[%s143 + $0x430] sm:$0xff] %v412
          %v414 = vld [vmem:[%s142 + $0x438] sm:$0xff]
          %415 = vst [vmem:[%s143 + $0x438] sm:$0xff] %v414
          %v416 = vld [vmem:[%s142 + $0x440] sm:$0xff]
          %417 = vst [vmem:[%s143 + $0x440] sm:$0xff] %v416
          %v418 = vld [vmem:[%s142 + $0x448] sm:$0xff]
          %419 = vst [vmem:[%s143 + $0x448] sm:$0xff] %v418
          %v420 = vld [vmem:[%s142 + $0x450] sm:$0xff]
          %421 = vst [vmem:[%s143 + $0x450] sm:$0xff] %v420
          %v422 = vld [vmem:[%s142 + $0x458] sm:$0xff]
          %423 = vst [vmem:[%s143 + $0x458] sm:$0xff] %v422
          %v424 = vld [vmem:[%s142 + $0x460] sm:$0xff]
          %425 = vst [vmem:[%s143 + $0x460] sm:$0xff] %v424
          %v426 = vld [vmem:[%s142 + $0x468] sm:$0xff]
          %427 = vst [vmem:[%s143 + $0x468] sm:$0xff] %v426
          %v428 = vld [vmem:[%s142 + $0x470] sm:$0xff]
          %429 = vst [vmem:[%s143 + $0x470] sm:$0xff] %v428
          %v430 = vld [vmem:[%s142 + $0x478] sm:$0xff]
          %431 = vst [vmem:[%s143 + $0x478] sm:$0xff] %v430
          %v432 = vld [vmem:[%s142 + $0x480] sm:$0xff]
          %433 = vst [vmem:[%s143 + $0x480] sm:$0xff] %v432
          %v434 = vld [vmem:[%s142 + $0x488] sm:$0xff]
          %435 = vst [vmem:[%s143 + $0x488] sm:$0xff] %v434
          %v436 = vld [vmem:[%s142 + $0x490] sm:$0xff]
          %437 = vst [vmem:[%s143 + $0x490] sm:$0xff] %v436
          %v438 = vld [vmem:[%s142 + $0x498] sm:$0xff]
          %439 = vst [vmem:[%s143 + $0x498] sm:$0xff] %v438
          %v440 = vld [vmem:[%s142 + $0x4a0] sm:$0xff]
          %441 = vst [vmem:[%s143 + $0x4a0] sm:$0xff] %v440
          %v442 = vld [vmem:[%s142 + $0x4a8] sm:$0xff]
          %443 = vst [vmem:[%s143 + $0x4a8] sm:$0xff] %v442
          %v444 = vld [vmem:[%s142 + $0x4b0] sm:$0xff]
          %445 = vst [vmem:[%s143 + $0x4b0] sm:$0xff] %v444
          %v446 = vld [vmem:[%s142 + $0x4b8] sm:$0xff]
          %447 = vst [vmem:[%s143 + $0x4b8] sm:$0xff] %v446
          %v448 = vld [vmem:[%s142 + $0x4c0] sm:$0xff]
          %449 = vst [vmem:[%s143 + $0x4c0] sm:$0xff] %v448
          %v450 = vld [vmem:[%s142 + $0x4c8] sm:$0xff]
          %451 = vst [vmem:[%s143 + $0x4c8] sm:$0xff] %v450
          %v452 = vld [vmem:[%s142 + $0x4d0] sm:$0xff]
          %453 = vst [vmem:[%s143 + $0x4d0] sm:$0xff] %v452
          %v454 = vld [vmem:[%s142 + $0x4d8] sm:$0xff]
          %455 = vst [vmem:[%s143 + $0x4d8] sm:$0xff] %v454
          %v456 = vld [vmem:[%s142 + $0x4e0] sm:$0xff]
          %457 = vst [vmem:[%s143 + $0x4e0] sm:$0xff] %v456
          %v458 = vld [vmem:[%s142 + $0x4e8] sm:$0xff]
          %459 = vst [vmem:[%s143 + $0x4e8] sm:$0xff] %v458
          %v460 = vld [vmem:[%s142 + $0x4f0] sm:$0xff]
          %461 = vst [vmem:[%s143 + $0x4f0] sm:$0xff] %v460
          %v462 = vld [vmem:[%s142 + $0x4f8] sm:$0xff]
          %463 = vst [vmem:[%s143 + $0x4f8] sm:$0xff] %v462
          %v464 = vld [vmem:[%s142 + $0x500] sm:$0xff]
          %465 = vst [vmem:[%s143 + $0x500] sm:$0xff] %v464
          %v466 = vld [vmem:[%s142 + $0x508] sm:$0xff]
          %467 = vst [vmem:[%s143 + $0x508] sm:$0xff] %v466
          %v468 = vld [vmem:[%s142 + $0x510] sm:$0xff]
          %469 = vst [vmem:[%s143 + $0x510] sm:$0xff] %v468
          %v470 = vld [vmem:[%s142 + $0x518] sm:$0xff]
          %471 = vst [vmem:[%s143 + $0x518] sm:$0xff] %v470
          %v472 = vld [vmem:[%s142 + $0x520] sm:$0xff]
          %473 = vst [vmem:[%s143 + $0x520] sm:$0xff] %v472
          %v474 = vld [vmem:[%s142 + $0x528] sm:$0xff]
          %475 = vst [vmem:[%s143 + $0x528] sm:$0xff] %v474
          %v476 = vld [vmem:[%s142 + $0x530] sm:$0xff]
          %477 = vst [vmem:[%s143 + $0x530] sm:$0xff] %v476
          %v478 = vld [vmem:[%s142 + $0x538] sm:$0xff]
          %479 = vst [vmem:[%s143 + $0x538] sm:$0xff] %v478
          %v480 = vld [vmem:[%s142 + $0x540] sm:$0xff]
          %481 = vst [vmem:[%s143 + $0x540] sm:$0xff] %v480
          %v482 = vld [vmem:[%s142 + $0x548] sm:$0xff]
          %483 = vst [vmem:[%s143 + $0x548] sm:$0xff] %v482
          %v484 = vld [vmem:[%s142 + $0x550] sm:$0xff]
          %485 = vst [vmem:[%s143 + $0x550] sm:$0xff] %v484
          %v486 = vld [vmem:[%s142 + $0x558] sm:$0xff]
          %487 = vst [vmem:[%s143 + $0x558] sm:$0xff] %v486
          %v488 = vld [vmem:[%s142 + $0x560] sm:$0xff]
          %489 = vst [vmem:[%s143 + $0x560] sm:$0xff] %v488
          %v490 = vld [vmem:[%s142 + $0x568] sm:$0xff]
          %491 = vst [vmem:[%s143 + $0x568] sm:$0xff] %v490
          %v492 = vld [vmem:[%s142 + $0x570] sm:$0xff]
          %493 = vst [vmem:[%s143 + $0x570] sm:$0xff] %v492
          %v494 = vld [vmem:[%s142 + $0x578] sm:$0xff]
          %495 = vst [vmem:[%s143 + $0x578] sm:$0xff] %v494
          %v496 = vld [vmem:[%s142 + $0x580] sm:$0xff]
          %497 = vst [vmem:[%s143 + $0x580] sm:$0xff] %v496
          %v498 = vld [vmem:[%s142 + $0x588] sm:$0xff]
          %499 = vst [vmem:[%s143 + $0x588] sm:$0xff] %v498
          %v500 = vld [vmem:[%s142 + $0x590] sm:$0xff]
          %501 = vst [vmem:[%s143 + $0x590] sm:$0xff] %v500
          %v502 = vld [vmem:[%s142 + $0x598] sm:$0xff]
          %503 = vst [vmem:[%s143 + $0x598] sm:$0xff] %v502
          %v504 = vld [vmem:[%s142 + $0x5a0] sm:$0xff]
          %505 = vst [vmem:[%s143 + $0x5a0] sm:$0xff] %v504
          %v506 = vld [vmem:[%s142 + $0x5a8] sm:$0xff]
          %507 = vst [vmem:[%s143 + $0x5a8] sm:$0xff] %v506
          %v508 = vld [vmem:[%s142 + $0x5b0] sm:$0xff]
          %509 = vst [vmem:[%s143 + $0x5b0] sm:$0xff] %v508
          %v510 = vld [vmem:[%s142 + $0x5b8] sm:$0xff]
          %511 = vst [vmem:[%s143 + $0x5b8] sm:$0xff] %v510
          %v512 = vld [vmem:[%s142 + $0x5c0] sm:$0xff]
          %513 = vst [vmem:[%s143 + $0x5c0] sm:$0xff] %v512
          %v514 = vld [vmem:[%s142 + $0x5c8] sm:$0xff]
          %515 = vst [vmem:[%s143 + $0x5c8] sm:$0xff] %v514
          %v516 = vld [vmem:[%s142 + $0x5d0] sm:$0xff]
          %517 = vst [vmem:[%s143 + $0x5d0] sm:$0xff] %v516
          %v518 = vld [vmem:[%s142 + $0x5d8] sm:$0xff]
          %519 = vst [vmem:[%s143 + $0x5d8] sm:$0xff] %v518
          %v520 = vld [vmem:[%s142 + $0x5e0] sm:$0xff]
          %521 = vst [vmem:[%s143 + $0x5e0] sm:$0xff] %v520
          %v522 = vld [vmem:[%s142 + $0x5e8] sm:$0xff]
          %523 = vst [vmem:[%s143 + $0x5e8] sm:$0xff] %v522
          %v524 = vld [vmem:[%s142 + $0x5f0] sm:$0xff]
          %525 = vst [vmem:[%s143 + $0x5f0] sm:$0xff] %v524
          %v526 = vld [vmem:[%s142 + $0x5f8] sm:$0xff]
          %527 = vst [vmem:[%s143 + $0x5f8] sm:$0xff] %v526
          %v528 = vld [vmem:[%s142 + $0x600] sm:$0xff]
          %529 = vst [vmem:[%s143 + $0x600] sm:$0xff] %v528
          %v530 = vld [vmem:[%s142 + $0x608] sm:$0xff]
          %531 = vst [vmem:[%s143 + $0x608] sm:$0xff] %v530
          %v532 = vld [vmem:[%s142 + $0x610] sm:$0xff]
          %533 = vst [vmem:[%s143 + $0x610] sm:$0xff] %v532
          %v534 = vld [vmem:[%s142 + $0x618] sm:$0xff]
          %535 = vst [vmem:[%s143 + $0x618] sm:$0xff] %v534
          %v536 = vld [vmem:[%s142 + $0x620] sm:$0xff]
          %537 = vst [vmem:[%s143 + $0x620] sm:$0xff] %v536
          %v538 = vld [vmem:[%s142 + $0x628] sm:$0xff]
          %539 = vst [vmem:[%s143 + $0x628] sm:$0xff] %v538
          %v540 = vld [vmem:[%s142 + $0x630] sm:$0xff]
          %541 = vst [vmem:[%s143 + $0x630] sm:$0xff] %v540
          %v542 = vld [vmem:[%s142 + $0x638] sm:$0xff]
          %543 = vst [vmem:[%s143 + $0x638] sm:$0xff] %v542
          %v544 = vld [vmem:[%s142 + $0x640] sm:$0xff]
          %545 = vst [vmem:[%s143 + $0x640] sm:$0xff] %v544
          %v546 = vld [vmem:[%s142 + $0x648] sm:$0xff]
          %547 = vst [vmem:[%s143 + $0x648] sm:$0xff] %v546
          %v548 = vld [vmem:[%s142 + $0x650] sm:$0xff]
          %549 = vst [vmem:[%s143 + $0x650] sm:$0xff] %v548
          %v550 = vld [vmem:[%s142 + $0x658] sm:$0xff]
          %551 = vst [vmem:[%s143 + $0x658] sm:$0xff] %v550
          %v552 = vld [vmem:[%s142 + $0x660] sm:$0xff]
          %553 = vst [vmem:[%s143 + $0x660] sm:$0xff] %v552
          %v554 = vld [vmem:[%s142 + $0x668] sm:$0xff]
          %555 = vst [vmem:[%s143 + $0x668] sm:$0xff] %v554
          %v556 = vld [vmem:[%s142 + $0x670] sm:$0xff]
          %557 = vst [vmem:[%s143 + $0x670] sm:$0xff] %v556
          %v558 = vld [vmem:[%s142 + $0x678] sm:$0xff]
          %559 = vst [vmem:[%s143 + $0x678] sm:$0xff] %v558
          %v560 = vld [vmem:[%s142 + $0x680] sm:$0xff]
          %561 = vst [vmem:[%s143 + $0x680] sm:$0xff] %v560
          %v562 = vld [vmem:[%s142 + $0x688] sm:$0xff]
          %563 = vst [vmem:[%s143 + $0x688] sm:$0xff] %v562
          %v564 = vld [vmem:[%s142 + $0x690] sm:$0xff]
          %565 = vst [vmem:[%s143 + $0x690] sm:$0xff] %v564
          %v566 = vld [vmem:[%s142 + $0x698] sm:$0xff]
          %567 = vst [vmem:[%s143 + $0x698] sm:$0xff] %v566
          %v568 = vld [vmem:[%s142 + $0x6a0] sm:$0xff]
          %569 = vst [vmem:[%s143 + $0x6a0] sm:$0xff] %v568
          %v570 = vld [vmem:[%s142 + $0x6a8] sm:$0xff]
          %571 = vst [vmem:[%s143 + $0x6a8] sm:$0xff] %v570
          %v572 = vld [vmem:[%s142 + $0x6b0] sm:$0xff]
          %573 = vst [vmem:[%s143 + $0x6b0] sm:$0xff] %v572
          %v574 = vld [vmem:[%s142 + $0x6b8] sm:$0xff]
          %575 = vst [vmem:[%s143 + $0x6b8] sm:$0xff] %v574
          %v576 = vld [vmem:[%s142 + $0x6c0] sm:$0xff]
          %577 = vst [vmem:[%s143 + $0x6c0] sm:$0xff] %v576
          %v578 = vld [vmem:[%s142 + $0x6c8] sm:$0xff]
          %579 = vst [vmem:[%s143 + $0x6c8] sm:$0xff] %v578
          %v580 = vld [vmem:[%s142 + $0x6d0] sm:$0xff]
          %581 = vst [vmem:[%s143 + $0x6d0] sm:$0xff] %v580
          %v582 = vld [vmem:[%s142 + $0x6d8] sm:$0xff]
          %583 = vst [vmem:[%s143 + $0x6d8] sm:$0xff] %v582
          %v584 = vld [vmem:[%s142 + $0x6e0] sm:$0xff]
          %585 = vst [vmem:[%s143 + $0x6e0] sm:$0xff] %v584
          %v586 = vld [vmem:[%s142 + $0x6e8] sm:$0xff]
          %587 = vst [vmem:[%s143 + $0x6e8] sm:$0xff] %v586
          %v588 = vld [vmem:[%s142 + $0x6f0] sm:$0xff]
          %589 = vst [vmem:[%s143 + $0x6f0] sm:$0xff] %v588
          %v590 = vld [vmem:[%s142 + $0x6f8] sm:$0xff]
          %591 = vst [vmem:[%s143 + $0x6f8] sm:$0xff] %v590
          %v592 = vld [vmem:[%s142 + $0x700] sm:$0xff]
          %593 = vst [vmem:[%s143 + $0x700] sm:$0xff] %v592
          %v594 = vld [vmem:[%s142 + $0x708] sm:$0xff]
          %595 = vst [vmem:[%s143 + $0x708] sm:$0xff] %v594
          %v596 = vld [vmem:[%s142 + $0x710] sm:$0xff]
          %597 = vst [vmem:[%s143 + $0x710] sm:$0xff] %v596
          %v598 = vld [vmem:[%s142 + $0x718] sm:$0xff]
          %599 = vst [vmem:[%s143 + $0x718] sm:$0xff] %v598
          %v600 = vld [vmem:[%s142 + $0x720] sm:$0xff]
          %601 = vst [vmem:[%s143 + $0x720] sm:$0xff] %v600
          %v602 = vld [vmem:[%s142 + $0x728] sm:$0xff]
          %603 = vst [vmem:[%s143 + $0x728] sm:$0xff] %v602
          %v604 = vld [vmem:[%s142 + $0x730] sm:$0xff]
          %605 = vst [vmem:[%s143 + $0x730] sm:$0xff] %v604
          %v606 = vld [vmem:[%s142 + $0x738] sm:$0xff]
          %607 = vst [vmem:[%s143 + $0x738] sm:$0xff] %v606
          %v608 = vld [vmem:[%s142 + $0x740] sm:$0xff]
          %609 = vst [vmem:[%s143 + $0x740] sm:$0xff] %v608
          %v610 = vld [vmem:[%s142 + $0x748] sm:$0xff]
          %611 = vst [vmem:[%s143 + $0x748] sm:$0xff] %v610
          %v612 = vld [vmem:[%s142 + $0x750] sm:$0xff]
          %613 = vst [vmem:[%s143 + $0x750] sm:$0xff] %v612
          %v614 = vld [vmem:[%s142 + $0x758] sm:$0xff]
          %615 = vst [vmem:[%s143 + $0x758] sm:$0xff] %v614
          %v616 = vld [vmem:[%s142 + $0x760] sm:$0xff]
          %617 = vst [vmem:[%s143 + $0x760] sm:$0xff] %v616
          %v618 = vld [vmem:[%s142 + $0x768] sm:$0xff]
          %619 = vst [vmem:[%s143 + $0x768] sm:$0xff] %v618
          %v620 = vld [vmem:[%s142 + $0x770] sm:$0xff]
          %621 = vst [vmem:[%s143 + $0x770] sm:$0xff] %v620
          %v622 = vld [vmem:[%s142 + $0x778] sm:$0xff]
          %623 = vst [vmem:[%s143 + $0x778] sm:$0xff] %v622
        $region99: #{encoder2_forward.1} parent=93 // loop_footer
          %s141 = sadd.s32 1, %s137
        $region100: #{encoder2_forward.1} parent=93 // loop_footer_branch
          %136 = sbr.rel target = $region96
        $region101: #{encoder2_forward.1} parent=93 // loop_exit
          _
      $region94: #{encoder2_forward.1} parent=78 // pred_fallthru
        _
      %p624 = pneg %p132
      // Predicated region
      $region102: #{encoder2_forward.1} parent=78 // pred_check
        _
      $region103: #{encoder2_forward.1} parent=78 // pred_check_branch
        %626 = sbr.rel (%p132) target = $region105
      $region104: #{encoder2_forward.1} parent=78 // pred_region
        %s627 = sand.u32 1920, 7
      $region105: #{encoder2_forward.1} parent=78 // pred_fallthru
        _
    $region79: #{encoder2_forward.1} parent=36 // pred_fallthru
      _
    // Predicated region
    $region80: #{encoder2_forward.1} parent=36 // pred_check
      %p116 = pneg %p112
    $region81: #{encoder2_forward.1} parent=36 // pred_check_branch
      %118 = sbr.rel (%p116) target = $region83
    $region82: #{encoder2_forward.1} parent=36 // pred_region
      %s119 = sshll.u32 1, 1920
      %s120 = ssub.s32 %s119, 1
      loop: start=0, step=1, limit=1
      $region84: #{encoder2_forward.1} parent=82 // loop_pre_header
        _
      $region85: #{encoder2_forward.1} parent=82 // loop_header
        %s122 = sphi 0, %s126
        %p123 = scmp.ge.s32.totalorder %s122, 1
        %s127 = sphi %s3, %s3
        %s128 = sphi [#allocation4], [#allocation4]
      $region86: #{encoder2_forward.1} parent=82 // loop_header_branch
        %125 = sbr.rel (%p123) target = $region90
      $region87: #{encoder2_forward.1} parent=82 // loop_body
        %v129 = vld [vmem:[%s127] sm:%s120]
        %130 = vst [vmem:[%s128] sm:%s120] %v129
      $region88: #{encoder2_forward.1} parent=82 // loop_footer
        %s126 = sadd.s32 1, %s122
      $region89: #{encoder2_forward.1} parent=82 // loop_footer_branch
        %121 = sbr.rel target = $region85
      $region90: #{encoder2_forward.1} parent=82 // loop_exit
        _
    $region83: #{encoder2_forward.1} parent=36 // pred_fallthru
      _
    // Predicated region
    $region106: #{encoder2_forward.1} parent=36 // pred_check
      _
    $region107: #{encoder2_forward.1} parent=36 // pred_check_branch
      %630 = sbr.rel (0) target = $region109
    $region108: #{encoder2_forward.1} parent=36 // pred_region
      %631 = vsyncadd %s110, 30720
    $region109: #{encoder2_forward.1} parent=36 // pred_fallthru
      _
    %s632 = scalar_lea.sflag [#allocation9], 3
    %p634 = scmp.lt.u32.totalorder 800, 8
    %p635 = pneg %p634
    // Predicated region
    $region110: #{encoder2_forward.1} parent=36 // pred_check
      _
    $region111: #{encoder2_forward.1} parent=36 // pred_check_branch
      %637 = sbr.rel (%p634) target = $region113
    $region112: #{encoder2_forward.1} parent=36 // pred_region
      %s653 = sand.u32 800, 7
      %p654 = scmp.eq.s32.totalorder %s653, 0
      // Predicated region
      $region125: #{encoder2_forward.1} parent=112 // pred_check
        %p655 = pneg %p654
      $region126: #{encoder2_forward.1} parent=112 // pred_check_branch
        %657 = sbr.rel (%p655) target = $region128
      $region127: #{encoder2_forward.1} parent=112 // pred_region
        loop: start=0, step=1, limit=1
        $region129: #{encoder2_forward.1} parent=127 // loop_pre_header
          _
        $region130: #{encoder2_forward.1} parent=127 // loop_header
          %s659 = sphi 0, %s663
          %p660 = scmp.ge.s32.totalorder %s659, 1
          %s664 = sphi %s4, %s4
          %s665 = sphi [#allocation5], [#allocation5]
        $region131: #{encoder2_forward.1} parent=127 // loop_header_branch
          %662 = sbr.rel (%p660) target = $region135
        $region132: #{encoder2_forward.1} parent=127 // loop_body
          %v666 = vld [vmem:[%s664] sm:$0xff]
          %667 = vst [vmem:[%s665] sm:$0xff] %v666
          %v668 = vld [vmem:[%s664 + $0x8] sm:$0xff]
          %669 = vst [vmem:[%s665 + $0x8] sm:$0xff] %v668
          %v670 = vld [vmem:[%s664 + $0x10] sm:$0xff]
          %671 = vst [vmem:[%s665 + $0x10] sm:$0xff] %v670
          %v672 = vld [vmem:[%s664 + $0x18] sm:$0xff]
          %673 = vst [vmem:[%s665 + $0x18] sm:$0xff] %v672
          %v674 = vld [vmem:[%s664 + $0x20] sm:$0xff]
          %675 = vst [vmem:[%s665 + $0x20] sm:$0xff] %v674
          %v676 = vld [vmem:[%s664 + $0x28] sm:$0xff]
          %677 = vst [vmem:[%s665 + $0x28] sm:$0xff] %v676
          %v678 = vld [vmem:[%s664 + $0x30] sm:$0xff]
          %679 = vst [vmem:[%s665 + $0x30] sm:$0xff] %v678
          %v680 = vld [vmem:[%s664 + $0x38] sm:$0xff]
          %681 = vst [vmem:[%s665 + $0x38] sm:$0xff] %v680
          %v682 = vld [vmem:[%s664 + $0x40] sm:$0xff]
          %683 = vst [vmem:[%s665 + $0x40] sm:$0xff] %v682
          %v684 = vld [vmem:[%s664 + $0x48] sm:$0xff]
          %685 = vst [vmem:[%s665 + $0x48] sm:$0xff] %v684
          %v686 = vld [vmem:[%s664 + $0x50] sm:$0xff]
          %687 = vst [vmem:[%s665 + $0x50] sm:$0xff] %v686
          %v688 = vld [vmem:[%s664 + $0x58] sm:$0xff]
          %689 = vst [vmem:[%s665 + $0x58] sm:$0xff] %v688
          %v690 = vld [vmem:[%s664 + $0x60] sm:$0xff]
          %691 = vst [vmem:[%s665 + $0x60] sm:$0xff] %v690
          %v692 = vld [vmem:[%s664 + $0x68] sm:$0xff]
          %693 = vst [vmem:[%s665 + $0x68] sm:$0xff] %v692
          %v694 = vld [vmem:[%s664 + $0x70] sm:$0xff]
          %695 = vst [vmem:[%s665 + $0x70] sm:$0xff] %v694
          %v696 = vld [vmem:[%s664 + $0x78] sm:$0xff]
          %697 = vst [vmem:[%s665 + $0x78] sm:$0xff] %v696
          %v698 = vld [vmem:[%s664 + $0x80] sm:$0xff]
          %699 = vst [vmem:[%s665 + $0x80] sm:$0xff] %v698
          %v700 = vld [vmem:[%s664 + $0x88] sm:$0xff]
          %701 = vst [vmem:[%s665 + $0x88] sm:$0xff] %v700
          %v702 = vld [vmem:[%s664 + $0x90] sm:$0xff]
          %703 = vst [vmem:[%s665 + $0x90] sm:$0xff] %v702
          %v704 = vld [vmem:[%s664 + $0x98] sm:$0xff]
          %705 = vst [vmem:[%s665 + $0x98] sm:$0xff] %v704
          %v706 = vld [vmem:[%s664 + $0xa0] sm:$0xff]
          %707 = vst [vmem:[%s665 + $0xa0] sm:$0xff] %v706
          %v708 = vld [vmem:[%s664 + $0xa8] sm:$0xff]
          %709 = vst [vmem:[%s665 + $0xa8] sm:$0xff] %v708
          %v710 = vld [vmem:[%s664 + $0xb0] sm:$0xff]
          %711 = vst [vmem:[%s665 + $0xb0] sm:$0xff] %v710
          %v712 = vld [vmem:[%s664 + $0xb8] sm:$0xff]
          %713 = vst [vmem:[%s665 + $0xb8] sm:$0xff] %v712
          %v714 = vld [vmem:[%s664 + $0xc0] sm:$0xff]
          %715 = vst [vmem:[%s665 + $0xc0] sm:$0xff] %v714
          %v716 = vld [vmem:[%s664 + $0xc8] sm:$0xff]
          %717 = vst [vmem:[%s665 + $0xc8] sm:$0xff] %v716
          %v718 = vld [vmem:[%s664 + $0xd0] sm:$0xff]
          %719 = vst [vmem:[%s665 + $0xd0] sm:$0xff] %v718
          %v720 = vld [vmem:[%s664 + $0xd8] sm:$0xff]
          %721 = vst [vmem:[%s665 + $0xd8] sm:$0xff] %v720
          %v722 = vld [vmem:[%s664 + $0xe0] sm:$0xff]
          %723 = vst [vmem:[%s665 + $0xe0] sm:$0xff] %v722
          %v724 = vld [vmem:[%s664 + $0xe8] sm:$0xff]
          %725 = vst [vmem:[%s665 + $0xe8] sm:$0xff] %v724
          %v726 = vld [vmem:[%s664 + $0xf0] sm:$0xff]
          %727 = vst [vmem:[%s665 + $0xf0] sm:$0xff] %v726
          %v728 = vld [vmem:[%s664 + $0xf8] sm:$0xff]
          %729 = vst [vmem:[%s665 + $0xf8] sm:$0xff] %v728
          %v730 = vld [vmem:[%s664 + $0x100] sm:$0xff]
          %731 = vst [vmem:[%s665 + $0x100] sm:$0xff] %v730
          %v732 = vld [vmem:[%s664 + $0x108] sm:$0xff]
          %733 = vst [vmem:[%s665 + $0x108] sm:$0xff] %v732
          %v734 = vld [vmem:[%s664 + $0x110] sm:$0xff]
          %735 = vst [vmem:[%s665 + $0x110] sm:$0xff] %v734
          %v736 = vld [vmem:[%s664 + $0x118] sm:$0xff]
          %737 = vst [vmem:[%s665 + $0x118] sm:$0xff] %v736
          %v738 = vld [vmem:[%s664 + $0x120] sm:$0xff]
          %739 = vst [vmem:[%s665 + $0x120] sm:$0xff] %v738
          %v740 = vld [vmem:[%s664 + $0x128] sm:$0xff]
          %741 = vst [vmem:[%s665 + $0x128] sm:$0xff] %v740
          %v742 = vld [vmem:[%s664 + $0x130] sm:$0xff]
          %743 = vst [vmem:[%s665 + $0x130] sm:$0xff] %v742
          %v744 = vld [vmem:[%s664 + $0x138] sm:$0xff]
          %745 = vst [vmem:[%s665 + $0x138] sm:$0xff] %v744
          %v746 = vld [vmem:[%s664 + $0x140] sm:$0xff]
          %747 = vst [vmem:[%s665 + $0x140] sm:$0xff] %v746
          %v748 = vld [vmem:[%s664 + $0x148] sm:$0xff]
          %749 = vst [vmem:[%s665 + $0x148] sm:$0xff] %v748
          %v750 = vld [vmem:[%s664 + $0x150] sm:$0xff]
          %751 = vst [vmem:[%s665 + $0x150] sm:$0xff] %v750
          %v752 = vld [vmem:[%s664 + $0x158] sm:$0xff]
          %753 = vst [vmem:[%s665 + $0x158] sm:$0xff] %v752
          %v754 = vld [vmem:[%s664 + $0x160] sm:$0xff]
          %755 = vst [vmem:[%s665 + $0x160] sm:$0xff] %v754
          %v756 = vld [vmem:[%s664 + $0x168] sm:$0xff]
          %757 = vst [vmem:[%s665 + $0x168] sm:$0xff] %v756
          %v758 = vld [vmem:[%s664 + $0x170] sm:$0xff]
          %759 = vst [vmem:[%s665 + $0x170] sm:$0xff] %v758
          %v760 = vld [vmem:[%s664 + $0x178] sm:$0xff]
          %761 = vst [vmem:[%s665 + $0x178] sm:$0xff] %v760
          %v762 = vld [vmem:[%s664 + $0x180] sm:$0xff]
          %763 = vst [vmem:[%s665 + $0x180] sm:$0xff] %v762
          %v764 = vld [vmem:[%s664 + $0x188] sm:$0xff]
          %765 = vst [vmem:[%s665 + $0x188] sm:$0xff] %v764
          %v766 = vld [vmem:[%s664 + $0x190] sm:$0xff]
          %767 = vst [vmem:[%s665 + $0x190] sm:$0xff] %v766
          %v768 = vld [vmem:[%s664 + $0x198] sm:$0xff]
          %769 = vst [vmem:[%s665 + $0x198] sm:$0xff] %v768
          %v770 = vld [vmem:[%s664 + $0x1a0] sm:$0xff]
          %771 = vst [vmem:[%s665 + $0x1a0] sm:$0xff] %v770
          %v772 = vld [vmem:[%s664 + $0x1a8] sm:$0xff]
          %773 = vst [vmem:[%s665 + $0x1a8] sm:$0xff] %v772
          %v774 = vld [vmem:[%s664 + $0x1b0] sm:$0xff]
          %775 = vst [vmem:[%s665 + $0x1b0] sm:$0xff] %v774
          %v776 = vld [vmem:[%s664 + $0x1b8] sm:$0xff]
          %777 = vst [vmem:[%s665 + $0x1b8] sm:$0xff] %v776
          %v778 = vld [vmem:[%s664 + $0x1c0] sm:$0xff]
          %779 = vst [vmem:[%s665 + $0x1c0] sm:$0xff] %v778
          %v780 = vld [vmem:[%s664 + $0x1c8] sm:$0xff]
          %781 = vst [vmem:[%s665 + $0x1c8] sm:$0xff] %v780
          %v782 = vld [vmem:[%s664 + $0x1d0] sm:$0xff]
          %783 = vst [vmem:[%s665 + $0x1d0] sm:$0xff] %v782
          %v784 = vld [vmem:[%s664 + $0x1d8] sm:$0xff]
          %785 = vst [vmem:[%s665 + $0x1d8] sm:$0xff] %v784
          %v786 = vld [vmem:[%s664 + $0x1e0] sm:$0xff]
          %787 = vst [vmem:[%s665 + $0x1e0] sm:$0xff] %v786
          %v788 = vld [vmem:[%s664 + $0x1e8] sm:$0xff]
          %789 = vst [vmem:[%s665 + $0x1e8] sm:$0xff] %v788
          %v790 = vld [vmem:[%s664 + $0x1f0] sm:$0xff]
          %791 = vst [vmem:[%s665 + $0x1f0] sm:$0xff] %v790
          %v792 = vld [vmem:[%s664 + $0x1f8] sm:$0xff]
          %793 = vst [vmem:[%s665 + $0x1f8] sm:$0xff] %v792
          %v794 = vld [vmem:[%s664 + $0x200] sm:$0xff]
          %795 = vst [vmem:[%s665 + $0x200] sm:$0xff] %v794
          %v796 = vld [vmem:[%s664 + $0x208] sm:$0xff]
          %797 = vst [vmem:[%s665 + $0x208] sm:$0xff] %v796
          %v798 = vld [vmem:[%s664 + $0x210] sm:$0xff]
          %799 = vst [vmem:[%s665 + $0x210] sm:$0xff] %v798
          %v800 = vld [vmem:[%s664 + $0x218] sm:$0xff]
          %801 = vst [vmem:[%s665 + $0x218] sm:$0xff] %v800
          %v802 = vld [vmem:[%s664 + $0x220] sm:$0xff]
          %803 = vst [vmem:[%s665 + $0x220] sm:$0xff] %v802
          %v804 = vld [vmem:[%s664 + $0x228] sm:$0xff]
          %805 = vst [vmem:[%s665 + $0x228] sm:$0xff] %v804
          %v806 = vld [vmem:[%s664 + $0x230] sm:$0xff]
          %807 = vst [vmem:[%s665 + $0x230] sm:$0xff] %v806
          %v808 = vld [vmem:[%s664 + $0x238] sm:$0xff]
          %809 = vst [vmem:[%s665 + $0x238] sm:$0xff] %v808
          %v810 = vld [vmem:[%s664 + $0x240] sm:$0xff]
          %811 = vst [vmem:[%s665 + $0x240] sm:$0xff] %v810
          %v812 = vld [vmem:[%s664 + $0x248] sm:$0xff]
          %813 = vst [vmem:[%s665 + $0x248] sm:$0xff] %v812
          %v814 = vld [vmem:[%s664 + $0x250] sm:$0xff]
          %815 = vst [vmem:[%s665 + $0x250] sm:$0xff] %v814
          %v816 = vld [vmem:[%s664 + $0x258] sm:$0xff]
          %817 = vst [vmem:[%s665 + $0x258] sm:$0xff] %v816
          %v818 = vld [vmem:[%s664 + $0x260] sm:$0xff]
          %819 = vst [vmem:[%s665 + $0x260] sm:$0xff] %v818
          %v820 = vld [vmem:[%s664 + $0x268] sm:$0xff]
          %821 = vst [vmem:[%s665 + $0x268] sm:$0xff] %v820
          %v822 = vld [vmem:[%s664 + $0x270] sm:$0xff]
          %823 = vst [vmem:[%s665 + $0x270] sm:$0xff] %v822
          %v824 = vld [vmem:[%s664 + $0x278] sm:$0xff]
          %825 = vst [vmem:[%s665 + $0x278] sm:$0xff] %v824
          %v826 = vld [vmem:[%s664 + $0x280] sm:$0xff]
          %827 = vst [vmem:[%s665 + $0x280] sm:$0xff] %v826
          %v828 = vld [vmem:[%s664 + $0x288] sm:$0xff]
          %829 = vst [vmem:[%s665 + $0x288] sm:$0xff] %v828
          %v830 = vld [vmem:[%s664 + $0x290] sm:$0xff]
          %831 = vst [vmem:[%s665 + $0x290] sm:$0xff] %v830
          %v832 = vld [vmem:[%s664 + $0x298] sm:$0xff]
          %833 = vst [vmem:[%s665 + $0x298] sm:$0xff] %v832
          %v834 = vld [vmem:[%s664 + $0x2a0] sm:$0xff]
          %835 = vst [vmem:[%s665 + $0x2a0] sm:$0xff] %v834
          %v836 = vld [vmem:[%s664 + $0x2a8] sm:$0xff]
          %837 = vst [vmem:[%s665 + $0x2a8] sm:$0xff] %v836
          %v838 = vld [vmem:[%s664 + $0x2b0] sm:$0xff]
          %839 = vst [vmem:[%s665 + $0x2b0] sm:$0xff] %v838
          %v840 = vld [vmem:[%s664 + $0x2b8] sm:$0xff]
          %841 = vst [vmem:[%s665 + $0x2b8] sm:$0xff] %v840
          %v842 = vld [vmem:[%s664 + $0x2c0] sm:$0xff]
          %843 = vst [vmem:[%s665 + $0x2c0] sm:$0xff] %v842
          %v844 = vld [vmem:[%s664 + $0x2c8] sm:$0xff]
          %845 = vst [vmem:[%s665 + $0x2c8] sm:$0xff] %v844
          %v846 = vld [vmem:[%s664 + $0x2d0] sm:$0xff]
          %847 = vst [vmem:[%s665 + $0x2d0] sm:$0xff] %v846
          %v848 = vld [vmem:[%s664 + $0x2d8] sm:$0xff]
          %849 = vst [vmem:[%s665 + $0x2d8] sm:$0xff] %v848
          %v850 = vld [vmem:[%s664 + $0x2e0] sm:$0xff]
          %851 = vst [vmem:[%s665 + $0x2e0] sm:$0xff] %v850
          %v852 = vld [vmem:[%s664 + $0x2e8] sm:$0xff]
          %853 = vst [vmem:[%s665 + $0x2e8] sm:$0xff] %v852
          %v854 = vld [vmem:[%s664 + $0x2f0] sm:$0xff]
          %855 = vst [vmem:[%s665 + $0x2f0] sm:$0xff] %v854
          %v856 = vld [vmem:[%s664 + $0x2f8] sm:$0xff]
          %857 = vst [vmem:[%s665 + $0x2f8] sm:$0xff] %v856
          %v858 = vld [vmem:[%s664 + $0x300] sm:$0xff]
          %859 = vst [vmem:[%s665 + $0x300] sm:$0xff] %v858
          %v860 = vld [vmem:[%s664 + $0x308] sm:$0xff]
          %861 = vst [vmem:[%s665 + $0x308] sm:$0xff] %v860
          %v862 = vld [vmem:[%s664 + $0x310] sm:$0xff]
          %863 = vst [vmem:[%s665 + $0x310] sm:$0xff] %v862
          %v864 = vld [vmem:[%s664 + $0x318] sm:$0xff]
          %865 = vst [vmem:[%s665 + $0x318] sm:$0xff] %v864
        $region133: #{encoder2_forward.1} parent=127 // loop_footer
          %s663 = sadd.s32 1, %s659
        $region134: #{encoder2_forward.1} parent=127 // loop_footer_branch
          %658 = sbr.rel target = $region130
        $region135: #{encoder2_forward.1} parent=127 // loop_exit
          _
      $region128: #{encoder2_forward.1} parent=112 // pred_fallthru
        _
      %p866 = pneg %p654
      // Predicated region
      $region136: #{encoder2_forward.1} parent=112 // pred_check
        _
      $region137: #{encoder2_forward.1} parent=112 // pred_check_branch
        %868 = sbr.rel (%p654) target = $region139
      $region138: #{encoder2_forward.1} parent=112 // pred_region
        %s869 = sand.u32 800, 7
      $region139: #{encoder2_forward.1} parent=112 // pred_fallthru
        _
    $region113: #{encoder2_forward.1} parent=36 // pred_fallthru
      _
    // Predicated region
    $region114: #{encoder2_forward.1} parent=36 // pred_check
      %p638 = pneg %p634
    $region115: #{encoder2_forward.1} parent=36 // pred_check_branch
      %640 = sbr.rel (%p638) target = $region117
    $region116: #{encoder2_forward.1} parent=36 // pred_region
      %s641 = sshll.u32 1, 800
      %s642 = ssub.s32 %s641, 1
      loop: start=0, step=1, limit=1
      $region118: #{encoder2_forward.1} parent=116 // loop_pre_header
        _
      $region119: #{encoder2_forward.1} parent=116 // loop_header
        %s644 = sphi 0, %s648
        %p645 = scmp.ge.s32.totalorder %s644, 1
        %s649 = sphi %s4, %s4
        %s650 = sphi [#allocation5], [#allocation5]
      $region120: #{encoder2_forward.1} parent=116 // loop_header_branch
        %647 = sbr.rel (%p645) target = $region124
      $region121: #{encoder2_forward.1} parent=116 // loop_body
        %v651 = vld [vmem:[%s649] sm:%s642]
        %652 = vst [vmem:[%s650] sm:%s642] %v651
      $region122: #{encoder2_forward.1} parent=116 // loop_footer
        %s648 = sadd.s32 1, %s644
      $region123: #{encoder2_forward.1} parent=116 // loop_footer_branch
        %643 = sbr.rel target = $region119
      $region124: #{encoder2_forward.1} parent=116 // loop_exit
        _
    $region117: #{encoder2_forward.1} parent=36 // pred_fallthru
      _
    // Predicated region
    $region140: #{encoder2_forward.1} parent=36 // pred_check
      _
    $region141: #{encoder2_forward.1} parent=36 // pred_check_branch
      %872 = sbr.rel (0) target = $region143
    $region142: #{encoder2_forward.1} parent=36 // pred_region
      %873 = vsyncadd %s632, 12800
    $region143: #{encoder2_forward.1} parent=36 // pred_fallthru
      _
    %s874 = scalar_lea.sflag [#allocation9], 4
    %p876 = scmp.lt.u32.totalorder 2400, 8
    %p877 = pneg %p876
    // Predicated region
    $region144: #{encoder2_forward.1} parent=36 // pred_check
      _
    $region145: #{encoder2_forward.1} parent=36 // pred_check_branch
      %879 = sbr.rel (%p876) target = $region147
    $region146: #{encoder2_forward.1} parent=36 // pred_region
      %s895 = sand.u32 2400, 7
      %p896 = scmp.eq.s32.totalorder %s895, 0
      // Predicated region
      $region159: #{encoder2_forward.1} parent=146 // pred_check
        %p897 = pneg %p896
      $region160: #{encoder2_forward.1} parent=146 // pred_check_branch
        %899 = sbr.rel (%p897) target = $region162
      $region161: #{encoder2_forward.1} parent=146 // pred_region
        loop: start=0, step=1, limit=1
        $region163: #{encoder2_forward.1} parent=161 // loop_pre_header
          _
        $region164: #{encoder2_forward.1} parent=161 // loop_header
          %s901 = sphi 0, %s905
          %p902 = scmp.ge.s32.totalorder %s901, 1
          %s906 = sphi %s5, %s5
          %s907 = sphi [#allocation6], [#allocation6]
        $region165: #{encoder2_forward.1} parent=161 // loop_header_branch
          %904 = sbr.rel (%p902) target = $region169
        $region166: #{encoder2_forward.1} parent=161 // loop_body
          %v908 = vld [vmem:[%s906] sm:$0xff]
          %909 = vst [vmem:[%s907] sm:$0xff] %v908
          %v910 = vld [vmem:[%s906 + $0x8] sm:$0xff]
          %911 = vst [vmem:[%s907 + $0x8] sm:$0xff] %v910
          %v912 = vld [vmem:[%s906 + $0x10] sm:$0xff]
          %913 = vst [vmem:[%s907 + $0x10] sm:$0xff] %v912
          %v914 = vld [vmem:[%s906 + $0x18] sm:$0xff]
          %915 = vst [vmem:[%s907 + $0x18] sm:$0xff] %v914
          %v916 = vld [vmem:[%s906 + $0x20] sm:$0xff]
          %917 = vst [vmem:[%s907 + $0x20] sm:$0xff] %v916
          %v918 = vld [vmem:[%s906 + $0x28] sm:$0xff]
          %919 = vst [vmem:[%s907 + $0x28] sm:$0xff] %v918
          %v920 = vld [vmem:[%s906 + $0x30] sm:$0xff]
          %921 = vst [vmem:[%s907 + $0x30] sm:$0xff] %v920
          %v922 = vld [vmem:[%s906 + $0x38] sm:$0xff]
          %923 = vst [vmem:[%s907 + $0x38] sm:$0xff] %v922
          %v924 = vld [vmem:[%s906 + $0x40] sm:$0xff]
          %925 = vst [vmem:[%s907 + $0x40] sm:$0xff] %v924
          %v926 = vld [vmem:[%s906 + $0x48] sm:$0xff]
          %927 = vst [vmem:[%s907 + $0x48] sm:$0xff] %v926
          %v928 = vld [vmem:[%s906 + $0x50] sm:$0xff]
          %929 = vst [vmem:[%s907 + $0x50] sm:$0xff] %v928
          %v930 = vld [vmem:[%s906 + $0x58] sm:$0xff]
          %931 = vst [vmem:[%s907 + $0x58] sm:$0xff] %v930
          %v932 = vld [vmem:[%s906 + $0x60] sm:$0xff]
          %933 = vst [vmem:[%s907 + $0x60] sm:$0xff] %v932
          %v934 = vld [vmem:[%s906 + $0x68] sm:$0xff]
          %935 = vst [vmem:[%s907 + $0x68] sm:$0xff] %v934
          %v936 = vld [vmem:[%s906 + $0x70] sm:$0xff]
          %937 = vst [vmem:[%s907 + $0x70] sm:$0xff] %v936
          %v938 = vld [vmem:[%s906 + $0x78] sm:$0xff]
          %939 = vst [vmem:[%s907 + $0x78] sm:$0xff] %v938
          %v940 = vld [vmem:[%s906 + $0x80] sm:$0xff]
          %941 = vst [vmem:[%s907 + $0x80] sm:$0xff] %v940
          %v942 = vld [vmem:[%s906 + $0x88] sm:$0xff]
          %943 = vst [vmem:[%s907 + $0x88] sm:$0xff] %v942
          %v944 = vld [vmem:[%s906 + $0x90] sm:$0xff]
          %945 = vst [vmem:[%s907 + $0x90] sm:$0xff] %v944
          %v946 = vld [vmem:[%s906 + $0x98] sm:$0xff]
          %947 = vst [vmem:[%s907 + $0x98] sm:$0xff] %v946
          %v948 = vld [vmem:[%s906 + $0xa0] sm:$0xff]
          %949 = vst [vmem:[%s907 + $0xa0] sm:$0xff] %v948
          %v950 = vld [vmem:[%s906 + $0xa8] sm:$0xff]
          %951 = vst [vmem:[%s907 + $0xa8] sm:$0xff] %v950
          %v952 = vld [vmem:[%s906 + $0xb0] sm:$0xff]
          %953 = vst [vmem:[%s907 + $0xb0] sm:$0xff] %v952
          %v954 = vld [vmem:[%s906 + $0xb8] sm:$0xff]
          %955 = vst [vmem:[%s907 + $0xb8] sm:$0xff] %v954
          %v956 = vld [vmem:[%s906 + $0xc0] sm:$0xff]
          %957 = vst [vmem:[%s907 + $0xc0] sm:$0xff] %v956
          %v958 = vld [vmem:[%s906 + $0xc8] sm:$0xff]
          %959 = vst [vmem:[%s907 + $0xc8] sm:$0xff] %v958
          %v960 = vld [vmem:[%s906 + $0xd0] sm:$0xff]
          %961 = vst [vmem:[%s907 + $0xd0] sm:$0xff] %v960
          %v962 = vld [vmem:[%s906 + $0xd8] sm:$0xff]
          %963 = vst [vmem:[%s907 + $0xd8] sm:$0xff] %v962
          %v964 = vld [vmem:[%s906 + $0xe0] sm:$0xff]
          %965 = vst [vmem:[%s907 + $0xe0] sm:$0xff] %v964
          %v966 = vld [vmem:[%s906 + $0xe8] sm:$0xff]
          %967 = vst [vmem:[%s907 + $0xe8] sm:$0xff] %v966
          %v968 = vld [vmem:[%s906 + $0xf0] sm:$0xff]
          %969 = vst [vmem:[%s907 + $0xf0] sm:$0xff] %v968
          %v970 = vld [vmem:[%s906 + $0xf8] sm:$0xff]
          %971 = vst [vmem:[%s907 + $0xf8] sm:$0xff] %v970
          %v972 = vld [vmem:[%s906 + $0x100] sm:$0xff]
          %973 = vst [vmem:[%s907 + $0x100] sm:$0xff] %v972
          %v974 = vld [vmem:[%s906 + $0x108] sm:$0xff]
          %975 = vst [vmem:[%s907 + $0x108] sm:$0xff] %v974
          %v976 = vld [vmem:[%s906 + $0x110] sm:$0xff]
          %977 = vst [vmem:[%s907 + $0x110] sm:$0xff] %v976
          %v978 = vld [vmem:[%s906 + $0x118] sm:$0xff]
          %979 = vst [vmem:[%s907 + $0x118] sm:$0xff] %v978
          %v980 = vld [vmem:[%s906 + $0x120] sm:$0xff]
          %981 = vst [vmem:[%s907 + $0x120] sm:$0xff] %v980
          %v982 = vld [vmem:[%s906 + $0x128] sm:$0xff]
          %983 = vst [vmem:[%s907 + $0x128] sm:$0xff] %v982
          %v984 = vld [vmem:[%s906 + $0x130] sm:$0xff]
          %985 = vst [vmem:[%s907 + $0x130] sm:$0xff] %v984
          %v986 = vld [vmem:[%s906 + $0x138] sm:$0xff]
          %987 = vst [vmem:[%s907 + $0x138] sm:$0xff] %v986
          %v988 = vld [vmem:[%s906 + $0x140] sm:$0xff]
          %989 = vst [vmem:[%s907 + $0x140] sm:$0xff] %v988
          %v990 = vld [vmem:[%s906 + $0x148] sm:$0xff]
          %991 = vst [vmem:[%s907 + $0x148] sm:$0xff] %v990
          %v992 = vld [vmem:[%s906 + $0x150] sm:$0xff]
          %993 = vst [vmem:[%s907 + $0x150] sm:$0xff] %v992
          %v994 = vld [vmem:[%s906 + $0x158] sm:$0xff]
          %995 = vst [vmem:[%s907 + $0x158] sm:$0xff] %v994
          %v996 = vld [vmem:[%s906 + $0x160] sm:$0xff]
          %997 = vst [vmem:[%s907 + $0x160] sm:$0xff] %v996
          %v998 = vld [vmem:[%s906 + $0x168] sm:$0xff]
          %999 = vst [vmem:[%s907 + $0x168] sm:$0xff] %v998
          %v1000 = vld [vmem:[%s906 + $0x170] sm:$0xff]
          %1001 = vst [vmem:[%s907 + $0x170] sm:$0xff] %v1000
          %v1002 = vld [vmem:[%s906 + $0x178] sm:$0xff]
          %1003 = vst [vmem:[%s907 + $0x178] sm:$0xff] %v1002
          %v1004 = vld [vmem:[%s906 + $0x180] sm:$0xff]
          %1005 = vst [vmem:[%s907 + $0x180] sm:$0xff] %v1004
          %v1006 = vld [vmem:[%s906 + $0x188] sm:$0xff]
          %1007 = vst [vmem:[%s907 + $0x188] sm:$0xff] %v1006
          %v1008 = vld [vmem:[%s906 + $0x190] sm:$0xff]
          %1009 = vst [vmem:[%s907 + $0x190] sm:$0xff] %v1008
          %v1010 = vld [vmem:[%s906 + $0x198] sm:$0xff]
          %1011 = vst [vmem:[%s907 + $0x198] sm:$0xff] %v1010
          %v1012 = vld [vmem:[%s906 + $0x1a0] sm:$0xff]
          %1013 = vst [vmem:[%s907 + $0x1a0] sm:$0xff] %v1012
          %v1014 = vld [vmem:[%s906 + $0x1a8] sm:$0xff]
          %1015 = vst [vmem:[%s907 + $0x1a8] sm:$0xff] %v1014
          %v1016 = vld [vmem:[%s906 + $0x1b0] sm:$0xff]
          %1017 = vst [vmem:[%s907 + $0x1b0] sm:$0xff] %v1016
          %v1018 = vld [vmem:[%s906 + $0x1b8] sm:$0xff]
          %1019 = vst [vmem:[%s907 + $0x1b8] sm:$0xff] %v1018
          %v1020 = vld [vmem:[%s906 + $0x1c0] sm:$0xff]
          %1021 = vst [vmem:[%s907 + $0x1c0] sm:$0xff] %v1020
          %v1022 = vld [vmem:[%s906 + $0x1c8] sm:$0xff]
          %1023 = vst [vmem:[%s907 + $0x1c8] sm:$0xff] %v1022
          %v1024 = vld [vmem:[%s906 + $0x1d0] sm:$0xff]
          %1025 = vst [vmem:[%s907 + $0x1d0] sm:$0xff] %v1024
          %v1026 = vld [vmem:[%s906 + $0x1d8] sm:$0xff]
          %1027 = vst [vmem:[%s907 + $0x1d8] sm:$0xff] %v1026
          %v1028 = vld [vmem:[%s906 + $0x1e0] sm:$0xff]
          %1029 = vst [vmem:[%s907 + $0x1e0] sm:$0xff] %v1028
          %v1030 = vld [vmem:[%s906 + $0x1e8] sm:$0xff]
          %1031 = vst [vmem:[%s907 + $0x1e8] sm:$0xff] %v1030
          %v1032 = vld [vmem:[%s906 + $0x1f0] sm:$0xff]
          %1033 = vst [vmem:[%s907 + $0x1f0] sm:$0xff] %v1032
          %v1034 = vld [vmem:[%s906 + $0x1f8] sm:$0xff]
          %1035 = vst [vmem:[%s907 + $0x1f8] sm:$0xff] %v1034
          %v1036 = vld [vmem:[%s906 + $0x200] sm:$0xff]
          %1037 = vst [vmem:[%s907 + $0x200] sm:$0xff] %v1036
          %v1038 = vld [vmem:[%s906 + $0x208] sm:$0xff]
          %1039 = vst [vmem:[%s907 + $0x208] sm:$0xff] %v1038
          %v1040 = vld [vmem:[%s906 + $0x210] sm:$0xff]
          %1041 = vst [vmem:[%s907 + $0x210] sm:$0xff] %v1040
          %v1042 = vld [vmem:[%s906 + $0x218] sm:$0xff]
          %1043 = vst [vmem:[%s907 + $0x218] sm:$0xff] %v1042
          %v1044 = vld [vmem:[%s906 + $0x220] sm:$0xff]
          %1045 = vst [vmem:[%s907 + $0x220] sm:$0xff] %v1044
          %v1046 = vld [vmem:[%s906 + $0x228] sm:$0xff]
          %1047 = vst [vmem:[%s907 + $0x228] sm:$0xff] %v1046
          %v1048 = vld [vmem:[%s906 + $0x230] sm:$0xff]
          %1049 = vst [vmem:[%s907 + $0x230] sm:$0xff] %v1048
          %v1050 = vld [vmem:[%s906 + $0x238] sm:$0xff]
          %1051 = vst [vmem:[%s907 + $0x238] sm:$0xff] %v1050
          %v1052 = vld [vmem:[%s906 + $0x240] sm:$0xff]
          %1053 = vst [vmem:[%s907 + $0x240] sm:$0xff] %v1052
          %v1054 = vld [vmem:[%s906 + $0x248] sm:$0xff]
          %1055 = vst [vmem:[%s907 + $0x248] sm:$0xff] %v1054
          %v1056 = vld [vmem:[%s906 + $0x250] sm:$0xff]
          %1057 = vst [vmem:[%s907 + $0x250] sm:$0xff] %v1056
          %v1058 = vld [vmem:[%s906 + $0x258] sm:$0xff]
          %1059 = vst [vmem:[%s907 + $0x258] sm:$0xff] %v1058
          %v1060 = vld [vmem:[%s906 + $0x260] sm:$0xff]
          %1061 = vst [vmem:[%s907 + $0x260] sm:$0xff] %v1060
          %v1062 = vld [vmem:[%s906 + $0x268] sm:$0xff]
          %1063 = vst [vmem:[%s907 + $0x268] sm:$0xff] %v1062
          %v1064 = vld [vmem:[%s906 + $0x270] sm:$0xff]
          %1065 = vst [vmem:[%s907 + $0x270] sm:$0xff] %v1064
          %v1066 = vld [vmem:[%s906 + $0x278] sm:$0xff]
          %1067 = vst [vmem:[%s907 + $0x278] sm:$0xff] %v1066
          %v1068 = vld [vmem:[%s906 + $0x280] sm:$0xff]
          %1069 = vst [vmem:[%s907 + $0x280] sm:$0xff] %v1068
          %v1070 = vld [vmem:[%s906 + $0x288] sm:$0xff]
          %1071 = vst [vmem:[%s907 + $0x288] sm:$0xff] %v1070
          %v1072 = vld [vmem:[%s906 + $0x290] sm:$0xff]
          %1073 = vst [vmem:[%s907 + $0x290] sm:$0xff] %v1072
          %v1074 = vld [vmem:[%s906 + $0x298] sm:$0xff]
          %1075 = vst [vmem:[%s907 + $0x298] sm:$0xff] %v1074
          %v1076 = vld [vmem:[%s906 + $0x2a0] sm:$0xff]
          %1077 = vst [vmem:[%s907 + $0x2a0] sm:$0xff] %v1076
          %v1078 = vld [vmem:[%s906 + $0x2a8] sm:$0xff]
          %1079 = vst [vmem:[%s907 + $0x2a8] sm:$0xff] %v1078
          %v1080 = vld [vmem:[%s906 + $0x2b0] sm:$0xff]
          %1081 = vst [vmem:[%s907 + $0x2b0] sm:$0xff] %v1080
          %v1082 = vld [vmem:[%s906 + $0x2b8] sm:$0xff]
          %1083 = vst [vmem:[%s907 + $0x2b8] sm:$0xff] %v1082
          %v1084 = vld [vmem:[%s906 + $0x2c0] sm:$0xff]
          %1085 = vst [vmem:[%s907 + $0x2c0] sm:$0xff] %v1084
          %v1086 = vld [vmem:[%s906 + $0x2c8] sm:$0xff]
          %1087 = vst [vmem:[%s907 + $0x2c8] sm:$0xff] %v1086
          %v1088 = vld [vmem:[%s906 + $0x2d0] sm:$0xff]
          %1089 = vst [vmem:[%s907 + $0x2d0] sm:$0xff] %v1088
          %v1090 = vld [vmem:[%s906 + $0x2d8] sm:$0xff]
          %1091 = vst [vmem:[%s907 + $0x2d8] sm:$0xff] %v1090
          %v1092 = vld [vmem:[%s906 + $0x2e0] sm:$0xff]
          %1093 = vst [vmem:[%s907 + $0x2e0] sm:$0xff] %v1092
          %v1094 = vld [vmem:[%s906 + $0x2e8] sm:$0xff]
          %1095 = vst [vmem:[%s907 + $0x2e8] sm:$0xff] %v1094
          %v1096 = vld [vmem:[%s906 + $0x2f0] sm:$0xff]
          %1097 = vst [vmem:[%s907 + $0x2f0] sm:$0xff] %v1096
          %v1098 = vld [vmem:[%s906 + $0x2f8] sm:$0xff]
          %1099 = vst [vmem:[%s907 + $0x2f8] sm:$0xff] %v1098
          %v1100 = vld [vmem:[%s906 + $0x300] sm:$0xff]
          %1101 = vst [vmem:[%s907 + $0x300] sm:$0xff] %v1100
          %v1102 = vld [vmem:[%s906 + $0x308] sm:$0xff]
          %1103 = vst [vmem:[%s907 + $0x308] sm:$0xff] %v1102
          %v1104 = vld [vmem:[%s906 + $0x310] sm:$0xff]
          %1105 = vst [vmem:[%s907 + $0x310] sm:$0xff] %v1104
          %v1106 = vld [vmem:[%s906 + $0x318] sm:$0xff]
          %1107 = vst [vmem:[%s907 + $0x318] sm:$0xff] %v1106
          %v1108 = vld [vmem:[%s906 + $0x320] sm:$0xff]
          %1109 = vst [vmem:[%s907 + $0x320] sm:$0xff] %v1108
          %v1110 = vld [vmem:[%s906 + $0x328] sm:$0xff]
          %1111 = vst [vmem:[%s907 + $0x328] sm:$0xff] %v1110
          %v1112 = vld [vmem:[%s906 + $0x330] sm:$0xff]
          %1113 = vst [vmem:[%s907 + $0x330] sm:$0xff] %v1112
          %v1114 = vld [vmem:[%s906 + $0x338] sm:$0xff]
          %1115 = vst [vmem:[%s907 + $0x338] sm:$0xff] %v1114
          %v1116 = vld [vmem:[%s906 + $0x340] sm:$0xff]
          %1117 = vst [vmem:[%s907 + $0x340] sm:$0xff] %v1116
          %v1118 = vld [vmem:[%s906 + $0x348] sm:$0xff]
          %1119 = vst [vmem:[%s907 + $0x348] sm:$0xff] %v1118
          %v1120 = vld [vmem:[%s906 + $0x350] sm:$0xff]
          %1121 = vst [vmem:[%s907 + $0x350] sm:$0xff] %v1120
          %v1122 = vld [vmem:[%s906 + $0x358] sm:$0xff]
          %1123 = vst [vmem:[%s907 + $0x358] sm:$0xff] %v1122
          %v1124 = vld [vmem:[%s906 + $0x360] sm:$0xff]
          %1125 = vst [vmem:[%s907 + $0x360] sm:$0xff] %v1124
          %v1126 = vld [vmem:[%s906 + $0x368] sm:$0xff]
          %1127 = vst [vmem:[%s907 + $0x368] sm:$0xff] %v1126
          %v1128 = vld [vmem:[%s906 + $0x370] sm:$0xff]
          %1129 = vst [vmem:[%s907 + $0x370] sm:$0xff] %v1128
          %v1130 = vld [vmem:[%s906 + $0x378] sm:$0xff]
          %1131 = vst [vmem:[%s907 + $0x378] sm:$0xff] %v1130
          %v1132 = vld [vmem:[%s906 + $0x380] sm:$0xff]
          %1133 = vst [vmem:[%s907 + $0x380] sm:$0xff] %v1132
          %v1134 = vld [vmem:[%s906 + $0x388] sm:$0xff]
          %1135 = vst [vmem:[%s907 + $0x388] sm:$0xff] %v1134
          %v1136 = vld [vmem:[%s906 + $0x390] sm:$0xff]
          %1137 = vst [vmem:[%s907 + $0x390] sm:$0xff] %v1136
          %v1138 = vld [vmem:[%s906 + $0x398] sm:$0xff]
          %1139 = vst [vmem:[%s907 + $0x398] sm:$0xff] %v1138
          %v1140 = vld [vmem:[%s906 + $0x3a0] sm:$0xff]
          %1141 = vst [vmem:[%s907 + $0x3a0] sm:$0xff] %v1140
          %v1142 = vld [vmem:[%s906 + $0x3a8] sm:$0xff]
          %1143 = vst [vmem:[%s907 + $0x3a8] sm:$0xff] %v1142
          %v1144 = vld [vmem:[%s906 + $0x3b0] sm:$0xff]
          %1145 = vst [vmem:[%s907 + $0x3b0] sm:$0xff] %v1144
          %v1146 = vld [vmem:[%s906 + $0x3b8] sm:$0xff]
          %1147 = vst [vmem:[%s907 + $0x3b8] sm:$0xff] %v1146
          %v1148 = vld [vmem:[%s906 + $0x3c0] sm:$0xff]
          %1149 = vst [vmem:[%s907 + $0x3c0] sm:$0xff] %v1148
          %v1150 = vld [vmem:[%s906 + $0x3c8] sm:$0xff]
          %1151 = vst [vmem:[%s907 + $0x3c8] sm:$0xff] %v1150
          %v1152 = vld [vmem:[%s906 + $0x3d0] sm:$0xff]
          %1153 = vst [vmem:[%s907 + $0x3d0] sm:$0xff] %v1152
          %v1154 = vld [vmem:[%s906 + $0x3d8] sm:$0xff]
          %1155 = vst [vmem:[%s907 + $0x3d8] sm:$0xff] %v1154
          %v1156 = vld [vmem:[%s906 + $0x3e0] sm:$0xff]
          %1157 = vst [vmem:[%s907 + $0x3e0] sm:$0xff] %v1156
          %v1158 = vld [vmem:[%s906 + $0x3e8] sm:$0xff]
          %1159 = vst [vmem:[%s907 + $0x3e8] sm:$0xff] %v1158
          %v1160 = vld [vmem:[%s906 + $0x3f0] sm:$0xff]
          %1161 = vst [vmem:[%s907 + $0x3f0] sm:$0xff] %v1160
          %v1162 = vld [vmem:[%s906 + $0x3f8] sm:$0xff]
          %1163 = vst [vmem:[%s907 + $0x3f8] sm:$0xff] %v1162
          %v1164 = vld [vmem:[%s906 + $0x400] sm:$0xff]
          %1165 = vst [vmem:[%s907 + $0x400] sm:$0xff] %v1164
          %v1166 = vld [vmem:[%s906 + $0x408] sm:$0xff]
          %1167 = vst [vmem:[%s907 + $0x408] sm:$0xff] %v1166
          %v1168 = vld [vmem:[%s906 + $0x410] sm:$0xff]
          %1169 = vst [vmem:[%s907 + $0x410] sm:$0xff] %v1168
          %v1170 = vld [vmem:[%s906 + $0x418] sm:$0xff]
          %1171 = vst [vmem:[%s907 + $0x418] sm:$0xff] %v1170
          %v1172 = vld [vmem:[%s906 + $0x420] sm:$0xff]
          %1173 = vst [vmem:[%s907 + $0x420] sm:$0xff] %v1172
          %v1174 = vld [vmem:[%s906 + $0x428] sm:$0xff]
          %1175 = vst [vmem:[%s907 + $0x428] sm:$0xff] %v1174
          %v1176 = vld [vmem:[%s906 + $0x430] sm:$0xff]
          %1177 = vst [vmem:[%s907 + $0x430] sm:$0xff] %v1176
          %v1178 = vld [vmem:[%s906 + $0x438] sm:$0xff]
          %1179 = vst [vmem:[%s907 + $0x438] sm:$0xff] %v1178
          %v1180 = vld [vmem:[%s906 + $0x440] sm:$0xff]
          %1181 = vst [vmem:[%s907 + $0x440] sm:$0xff] %v1180
          %v1182 = vld [vmem:[%s906 + $0x448] sm:$0xff]
          %1183 = vst [vmem:[%s907 + $0x448] sm:$0xff] %v1182
          %v1184 = vld [vmem:[%s906 + $0x450] sm:$0xff]
          %1185 = vst [vmem:[%s907 + $0x450] sm:$0xff] %v1184
          %v1186 = vld [vmem:[%s906 + $0x458] sm:$0xff]
          %1187 = vst [vmem:[%s907 + $0x458] sm:$0xff] %v1186
          %v1188 = vld [vmem:[%s906 + $0x460] sm:$0xff]
          %1189 = vst [vmem:[%s907 + $0x460] sm:$0xff] %v1188
          %v1190 = vld [vmem:[%s906 + $0x468] sm:$0xff]
          %1191 = vst [vmem:[%s907 + $0x468] sm:$0xff] %v1190
          %v1192 = vld [vmem:[%s906 + $0x470] sm:$0xff]
          %1193 = vst [vmem:[%s907 + $0x470] sm:$0xff] %v1192
          %v1194 = vld [vmem:[%s906 + $0x478] sm:$0xff]
          %1195 = vst [vmem:[%s907 + $0x478] sm:$0xff] %v1194
          %v1196 = vld [vmem:[%s906 + $0x480] sm:$0xff]
          %1197 = vst [vmem:[%s907 + $0x480] sm:$0xff] %v1196
          %v1198 = vld [vmem:[%s906 + $0x488] sm:$0xff]
          %1199 = vst [vmem:[%s907 + $0x488] sm:$0xff] %v1198
          %v1200 = vld [vmem:[%s906 + $0x490] sm:$0xff]
          %1201 = vst [vmem:[%s907 + $0x490] sm:$0xff] %v1200
          %v1202 = vld [vmem:[%s906 + $0x498] sm:$0xff]
          %1203 = vst [vmem:[%s907 + $0x498] sm:$0xff] %v1202
          %v1204 = vld [vmem:[%s906 + $0x4a0] sm:$0xff]
          %1205 = vst [vmem:[%s907 + $0x4a0] sm:$0xff] %v1204
          %v1206 = vld [vmem:[%s906 + $0x4a8] sm:$0xff]
          %1207 = vst [vmem:[%s907 + $0x4a8] sm:$0xff] %v1206
          %v1208 = vld [vmem:[%s906 + $0x4b0] sm:$0xff]
          %1209 = vst [vmem:[%s907 + $0x4b0] sm:$0xff] %v1208
          %v1210 = vld [vmem:[%s906 + $0x4b8] sm:$0xff]
          %1211 = vst [vmem:[%s907 + $0x4b8] sm:$0xff] %v1210
          %v1212 = vld [vmem:[%s906 + $0x4c0] sm:$0xff]
          %1213 = vst [vmem:[%s907 + $0x4c0] sm:$0xff] %v1212
          %v1214 = vld [vmem:[%s906 + $0x4c8] sm:$0xff]
          %1215 = vst [vmem:[%s907 + $0x4c8] sm:$0xff] %v1214
          %v1216 = vld [vmem:[%s906 + $0x4d0] sm:$0xff]
          %1217 = vst [vmem:[%s907 + $0x4d0] sm:$0xff] %v1216
          %v1218 = vld [vmem:[%s906 + $0x4d8] sm:$0xff]
          %1219 = vst [vmem:[%s907 + $0x4d8] sm:$0xff] %v1218
          %v1220 = vld [vmem:[%s906 + $0x4e0] sm:$0xff]
          %1221 = vst [vmem:[%s907 + $0x4e0] sm:$0xff] %v1220
          %v1222 = vld [vmem:[%s906 + $0x4e8] sm:$0xff]
          %1223 = vst [vmem:[%s907 + $0x4e8] sm:$0xff] %v1222
          %v1224 = vld [vmem:[%s906 + $0x4f0] sm:$0xff]
          %1225 = vst [vmem:[%s907 + $0x4f0] sm:$0xff] %v1224
          %v1226 = vld [vmem:[%s906 + $0x4f8] sm:$0xff]
          %1227 = vst [vmem:[%s907 + $0x4f8] sm:$0xff] %v1226
          %v1228 = vld [vmem:[%s906 + $0x500] sm:$0xff]
          %1229 = vst [vmem:[%s907 + $0x500] sm:$0xff] %v1228
          %v1230 = vld [vmem:[%s906 + $0x508] sm:$0xff]
          %1231 = vst [vmem:[%s907 + $0x508] sm:$0xff] %v1230
          %v1232 = vld [vmem:[%s906 + $0x510] sm:$0xff]
          %1233 = vst [vmem:[%s907 + $0x510] sm:$0xff] %v1232
          %v1234 = vld [vmem:[%s906 + $0x518] sm:$0xff]
          %1235 = vst [vmem:[%s907 + $0x518] sm:$0xff] %v1234
          %v1236 = vld [vmem:[%s906 + $0x520] sm:$0xff]
          %1237 = vst [vmem:[%s907 + $0x520] sm:$0xff] %v1236
          %v1238 = vld [vmem:[%s906 + $0x528] sm:$0xff]
          %1239 = vst [vmem:[%s907 + $0x528] sm:$0xff] %v1238
          %v1240 = vld [vmem:[%s906 + $0x530] sm:$0xff]
          %1241 = vst [vmem:[%s907 + $0x530] sm:$0xff] %v1240
          %v1242 = vld [vmem:[%s906 + $0x538] sm:$0xff]
          %1243 = vst [vmem:[%s907 + $0x538] sm:$0xff] %v1242
          %v1244 = vld [vmem:[%s906 + $0x540] sm:$0xff]
          %1245 = vst [vmem:[%s907 + $0x540] sm:$0xff] %v1244
          %v1246 = vld [vmem:[%s906 + $0x548] sm:$0xff]
          %1247 = vst [vmem:[%s907 + $0x548] sm:$0xff] %v1246
          %v1248 = vld [vmem:[%s906 + $0x550] sm:$0xff]
          %1249 = vst [vmem:[%s907 + $0x550] sm:$0xff] %v1248
          %v1250 = vld [vmem:[%s906 + $0x558] sm:$0xff]
          %1251 = vst [vmem:[%s907 + $0x558] sm:$0xff] %v1250
          %v1252 = vld [vmem:[%s906 + $0x560] sm:$0xff]
          %1253 = vst [vmem:[%s907 + $0x560] sm:$0xff] %v1252
          %v1254 = vld [vmem:[%s906 + $0x568] sm:$0xff]
          %1255 = vst [vmem:[%s907 + $0x568] sm:$0xff] %v1254
          %v1256 = vld [vmem:[%s906 + $0x570] sm:$0xff]
          %1257 = vst [vmem:[%s907 + $0x570] sm:$0xff] %v1256
          %v1258 = vld [vmem:[%s906 + $0x578] sm:$0xff]
          %1259 = vst [vmem:[%s907 + $0x578] sm:$0xff] %v1258
          %v1260 = vld [vmem:[%s906 + $0x580] sm:$0xff]
          %1261 = vst [vmem:[%s907 + $0x580] sm:$0xff] %v1260
          %v1262 = vld [vmem:[%s906 + $0x588] sm:$0xff]
          %1263 = vst [vmem:[%s907 + $0x588] sm:$0xff] %v1262
          %v1264 = vld [vmem:[%s906 + $0x590] sm:$0xff]
          %1265 = vst [vmem:[%s907 + $0x590] sm:$0xff] %v1264
          %v1266 = vld [vmem:[%s906 + $0x598] sm:$0xff]
          %1267 = vst [vmem:[%s907 + $0x598] sm:$0xff] %v1266
          %v1268 = vld [vmem:[%s906 + $0x5a0] sm:$0xff]
          %1269 = vst [vmem:[%s907 + $0x5a0] sm:$0xff] %v1268
          %v1270 = vld [vmem:[%s906 + $0x5a8] sm:$0xff]
          %1271 = vst [vmem:[%s907 + $0x5a8] sm:$0xff] %v1270
          %v1272 = vld [vmem:[%s906 + $0x5b0] sm:$0xff]
          %1273 = vst [vmem:[%s907 + $0x5b0] sm:$0xff] %v1272
          %v1274 = vld [vmem:[%s906 + $0x5b8] sm:$0xff]
          %1275 = vst [vmem:[%s907 + $0x5b8] sm:$0xff] %v1274
          %v1276 = vld [vmem:[%s906 + $0x5c0] sm:$0xff]
          %1277 = vst [vmem:[%s907 + $0x5c0] sm:$0xff] %v1276
          %v1278 = vld [vmem:[%s906 + $0x5c8] sm:$0xff]
          %1279 = vst [vmem:[%s907 + $0x5c8] sm:$0xff] %v1278
          %v1280 = vld [vmem:[%s906 + $0x5d0] sm:$0xff]
          %1281 = vst [vmem:[%s907 + $0x5d0] sm:$0xff] %v1280
          %v1282 = vld [vmem:[%s906 + $0x5d8] sm:$0xff]
          %1283 = vst [vmem:[%s907 + $0x5d8] sm:$0xff] %v1282
          %v1284 = vld [vmem:[%s906 + $0x5e0] sm:$0xff]
          %1285 = vst [vmem:[%s907 + $0x5e0] sm:$0xff] %v1284
          %v1286 = vld [vmem:[%s906 + $0x5e8] sm:$0xff]
          %1287 = vst [vmem:[%s907 + $0x5e8] sm:$0xff] %v1286
          %v1288 = vld [vmem:[%s906 + $0x5f0] sm:$0xff]
          %1289 = vst [vmem:[%s907 + $0x5f0] sm:$0xff] %v1288
          %v1290 = vld [vmem:[%s906 + $0x5f8] sm:$0xff]
          %1291 = vst [vmem:[%s907 + $0x5f8] sm:$0xff] %v1290
          %v1292 = vld [vmem:[%s906 + $0x600] sm:$0xff]
          %1293 = vst [vmem:[%s907 + $0x600] sm:$0xff] %v1292
          %v1294 = vld [vmem:[%s906 + $0x608] sm:$0xff]
          %1295 = vst [vmem:[%s907 + $0x608] sm:$0xff] %v1294
          %v1296 = vld [vmem:[%s906 + $0x610] sm:$0xff]
          %1297 = vst [vmem:[%s907 + $0x610] sm:$0xff] %v1296
          %v1298 = vld [vmem:[%s906 + $0x618] sm:$0xff]
          %1299 = vst [vmem:[%s907 + $0x618] sm:$0xff] %v1298
          %v1300 = vld [vmem:[%s906 + $0x620] sm:$0xff]
          %1301 = vst [vmem:[%s907 + $0x620] sm:$0xff] %v1300
          %v1302 = vld [vmem:[%s906 + $0x628] sm:$0xff]
          %1303 = vst [vmem:[%s907 + $0x628] sm:$0xff] %v1302
          %v1304 = vld [vmem:[%s906 + $0x630] sm:$0xff]
          %1305 = vst [vmem:[%s907 + $0x630] sm:$0xff] %v1304
          %v1306 = vld [vmem:[%s906 + $0x638] sm:$0xff]
          %1307 = vst [vmem:[%s907 + $0x638] sm:$0xff] %v1306
          %v1308 = vld [vmem:[%s906 + $0x640] sm:$0xff]
          %1309 = vst [vmem:[%s907 + $0x640] sm:$0xff] %v1308
          %v1310 = vld [vmem:[%s906 + $0x648] sm:$0xff]
          %1311 = vst [vmem:[%s907 + $0x648] sm:$0xff] %v1310
          %v1312 = vld [vmem:[%s906 + $0x650] sm:$0xff]
          %1313 = vst [vmem:[%s907 + $0x650] sm:$0xff] %v1312
          %v1314 = vld [vmem:[%s906 + $0x658] sm:$0xff]
          %1315 = vst [vmem:[%s907 + $0x658] sm:$0xff] %v1314
          %v1316 = vld [vmem:[%s906 + $0x660] sm:$0xff]
          %1317 = vst [vmem:[%s907 + $0x660] sm:$0xff] %v1316
          %v1318 = vld [vmem:[%s906 + $0x668] sm:$0xff]
          %1319 = vst [vmem:[%s907 + $0x668] sm:$0xff] %v1318
          %v1320 = vld [vmem:[%s906 + $0x670] sm:$0xff]
          %1321 = vst [vmem:[%s907 + $0x670] sm:$0xff] %v1320
          %v1322 = vld [vmem:[%s906 + $0x678] sm:$0xff]
          %1323 = vst [vmem:[%s907 + $0x678] sm:$0xff] %v1322
          %v1324 = vld [vmem:[%s906 + $0x680] sm:$0xff]
          %1325 = vst [vmem:[%s907 + $0x680] sm:$0xff] %v1324
          %v1326 = vld [vmem:[%s906 + $0x688] sm:$0xff]
          %1327 = vst [vmem:[%s907 + $0x688] sm:$0xff] %v1326
          %v1328 = vld [vmem:[%s906 + $0x690] sm:$0xff]
          %1329 = vst [vmem:[%s907 + $0x690] sm:$0xff] %v1328
          %v1330 = vld [vmem:[%s906 + $0x698] sm:$0xff]
          %1331 = vst [vmem:[%s907 + $0x698] sm:$0xff] %v1330
          %v1332 = vld [vmem:[%s906 + $0x6a0] sm:$0xff]
          %1333 = vst [vmem:[%s907 + $0x6a0] sm:$0xff] %v1332
          %v1334 = vld [vmem:[%s906 + $0x6a8] sm:$0xff]
          %1335 = vst [vmem:[%s907 + $0x6a8] sm:$0xff] %v1334
          %v1336 = vld [vmem:[%s906 + $0x6b0] sm:$0xff]
          %1337 = vst [vmem:[%s907 + $0x6b0] sm:$0xff] %v1336
          %v1338 = vld [vmem:[%s906 + $0x6b8] sm:$0xff]
          %1339 = vst [vmem:[%s907 + $0x6b8] sm:$0xff] %v1338
          %v1340 = vld [vmem:[%s906 + $0x6c0] sm:$0xff]
          %1341 = vst [vmem:[%s907 + $0x6c0] sm:$0xff] %v1340
          %v1342 = vld [vmem:[%s906 + $0x6c8] sm:$0xff]
          %1343 = vst [vmem:[%s907 + $0x6c8] sm:$0xff] %v1342
          %v1344 = vld [vmem:[%s906 + $0x6d0] sm:$0xff]
          %1345 = vst [vmem:[%s907 + $0x6d0] sm:$0xff] %v1344
          %v1346 = vld [vmem:[%s906 + $0x6d8] sm:$0xff]
          %1347 = vst [vmem:[%s907 + $0x6d8] sm:$0xff] %v1346
          %v1348 = vld [vmem:[%s906 + $0x6e0] sm:$0xff]
          %1349 = vst [vmem:[%s907 + $0x6e0] sm:$0xff] %v1348
          %v1350 = vld [vmem:[%s906 + $0x6e8] sm:$0xff]
          %1351 = vst [vmem:[%s907 + $0x6e8] sm:$0xff] %v1350
          %v1352 = vld [vmem:[%s906 + $0x6f0] sm:$0xff]
          %1353 = vst [vmem:[%s907 + $0x6f0] sm:$0xff] %v1352
          %v1354 = vld [vmem:[%s906 + $0x6f8] sm:$0xff]
          %1355 = vst [vmem:[%s907 + $0x6f8] sm:$0xff] %v1354
          %v1356 = vld [vmem:[%s906 + $0x700] sm:$0xff]
          %1357 = vst [vmem:[%s907 + $0x700] sm:$0xff] %v1356
          %v1358 = vld [vmem:[%s906 + $0x708] sm:$0xff]
          %1359 = vst [vmem:[%s907 + $0x708] sm:$0xff] %v1358
          %v1360 = vld [vmem:[%s906 + $0x710] sm:$0xff]
          %1361 = vst [vmem:[%s907 + $0x710] sm:$0xff] %v1360
          %v1362 = vld [vmem:[%s906 + $0x718] sm:$0xff]
          %1363 = vst [vmem:[%s907 + $0x718] sm:$0xff] %v1362
          %v1364 = vld [vmem:[%s906 + $0x720] sm:$0xff]
          %1365 = vst [vmem:[%s907 + $0x720] sm:$0xff] %v1364
          %v1366 = vld [vmem:[%s906 + $0x728] sm:$0xff]
          %1367 = vst [vmem:[%s907 + $0x728] sm:$0xff] %v1366
          %v1368 = vld [vmem:[%s906 + $0x730] sm:$0xff]
          %1369 = vst [vmem:[%s907 + $0x730] sm:$0xff] %v1368
          %v1370 = vld [vmem:[%s906 + $0x738] sm:$0xff]
          %1371 = vst [vmem:[%s907 + $0x738] sm:$0xff] %v1370
          %v1372 = vld [vmem:[%s906 + $0x740] sm:$0xff]
          %1373 = vst [vmem:[%s907 + $0x740] sm:$0xff] %v1372
          %v1374 = vld [vmem:[%s906 + $0x748] sm:$0xff]
          %1375 = vst [vmem:[%s907 + $0x748] sm:$0xff] %v1374
          %v1376 = vld [vmem:[%s906 + $0x750] sm:$0xff]
          %1377 = vst [vmem:[%s907 + $0x750] sm:$0xff] %v1376
          %v1378 = vld [vmem:[%s906 + $0x758] sm:$0xff]
          %1379 = vst [vmem:[%s907 + $0x758] sm:$0xff] %v1378
          %v1380 = vld [vmem:[%s906 + $0x760] sm:$0xff]
          %1381 = vst [vmem:[%s907 + $0x760] sm:$0xff] %v1380
          %v1382 = vld [vmem:[%s906 + $0x768] sm:$0xff]
          %1383 = vst [vmem:[%s907 + $0x768] sm:$0xff] %v1382
          %v1384 = vld [vmem:[%s906 + $0x770] sm:$0xff]
          %1385 = vst [vmem:[%s907 + $0x770] sm:$0xff] %v1384
          %v1386 = vld [vmem:[%s906 + $0x778] sm:$0xff]
          %1387 = vst [vmem:[%s907 + $0x778] sm:$0xff] %v1386
          %v1388 = vld [vmem:[%s906 + $0x780] sm:$0xff]
          %1389 = vst [vmem:[%s907 + $0x780] sm:$0xff] %v1388
          %v1390 = vld [vmem:[%s906 + $0x788] sm:$0xff]
          %1391 = vst [vmem:[%s907 + $0x788] sm:$0xff] %v1390
          %v1392 = vld [vmem:[%s906 + $0x790] sm:$0xff]
          %1393 = vst [vmem:[%s907 + $0x790] sm:$0xff] %v1392
          %v1394 = vld [vmem:[%s906 + $0x798] sm:$0xff]
          %1395 = vst [vmem:[%s907 + $0x798] sm:$0xff] %v1394
          %v1396 = vld [vmem:[%s906 + $0x7a0] sm:$0xff]
          %1397 = vst [vmem:[%s907 + $0x7a0] sm:$0xff] %v1396
          %v1398 = vld [vmem:[%s906 + $0x7a8] sm:$0xff]
          %1399 = vst [vmem:[%s907 + $0x7a8] sm:$0xff] %v1398
          %v1400 = vld [vmem:[%s906 + $0x7b0] sm:$0xff]
          %1401 = vst [vmem:[%s907 + $0x7b0] sm:$0xff] %v1400
          %v1402 = vld [vmem:[%s906 + $0x7b8] sm:$0xff]
          %1403 = vst [vmem:[%s907 + $0x7b8] sm:$0xff] %v1402
          %v1404 = vld [vmem:[%s906 + $0x7c0] sm:$0xff]
          %1405 = vst [vmem:[%s907 + $0x7c0] sm:$0xff] %v1404
          %v1406 = vld [vmem:[%s906 + $0x7c8] sm:$0xff]
          %1407 = vst [vmem:[%s907 + $0x7c8] sm:$0xff] %v1406
          %v1408 = vld [vmem:[%s906 + $0x7d0] sm:$0xff]
          %1409 = vst [vmem:[%s907 + $0x7d0] sm:$0xff] %v1408
          %v1410 = vld [vmem:[%s906 + $0x7d8] sm:$0xff]
          %1411 = vst [vmem:[%s907 + $0x7d8] sm:$0xff] %v1410
          %v1412 = vld [vmem:[%s906 + $0x7e0] sm:$0xff]
          %1413 = vst [vmem:[%s907 + $0x7e0] sm:$0xff] %v1412
          %v1414 = vld [vmem:[%s906 + $0x7e8] sm:$0xff]
          %1415 = vst [vmem:[%s907 + $0x7e8] sm:$0xff] %v1414
          %v1416 = vld [vmem:[%s906 + $0x7f0] sm:$0xff]
          %1417 = vst [vmem:[%s907 + $0x7f0] sm:$0xff] %v1416
          %v1418 = vld [vmem:[%s906 + $0x7f8] sm:$0xff]
          %1419 = vst [vmem:[%s907 + $0x7f8] sm:$0xff] %v1418
          %v1420 = vld [vmem:[%s906 + $0x800] sm:$0xff]
          %1421 = vst [vmem:[%s907 + $0x800] sm:$0xff] %v1420
          %v1422 = vld [vmem:[%s906 + $0x808] sm:$0xff]
          %1423 = vst [vmem:[%s907 + $0x808] sm:$0xff] %v1422
          %v1424 = vld [vmem:[%s906 + $0x810] sm:$0xff]
          %1425 = vst [vmem:[%s907 + $0x810] sm:$0xff] %v1424
          %v1426 = vld [vmem:[%s906 + $0x818] sm:$0xff]
          %1427 = vst [vmem:[%s907 + $0x818] sm:$0xff] %v1426
          %v1428 = vld [vmem:[%s906 + $0x820] sm:$0xff]
          %1429 = vst [vmem:[%s907 + $0x820] sm:$0xff] %v1428
          %v1430 = vld [vmem:[%s906 + $0x828] sm:$0xff]
          %1431 = vst [vmem:[%s907 + $0x828] sm:$0xff] %v1430
          %v1432 = vld [vmem:[%s906 + $0x830] sm:$0xff]
          %1433 = vst [vmem:[%s907 + $0x830] sm:$0xff] %v1432
          %v1434 = vld [vmem:[%s906 + $0x838] sm:$0xff]
          %1435 = vst [vmem:[%s907 + $0x838] sm:$0xff] %v1434
          %v1436 = vld [vmem:[%s906 + $0x840] sm:$0xff]
          %1437 = vst [vmem:[%s907 + $0x840] sm:$0xff] %v1436
          %v1438 = vld [vmem:[%s906 + $0x848] sm:$0xff]
          %1439 = vst [vmem:[%s907 + $0x848] sm:$0xff] %v1438
          %v1440 = vld [vmem:[%s906 + $0x850] sm:$0xff]
          %1441 = vst [vmem:[%s907 + $0x850] sm:$0xff] %v1440
          %v1442 = vld [vmem:[%s906 + $0x858] sm:$0xff]
          %1443 = vst [vmem:[%s907 + $0x858] sm:$0xff] %v1442
          %v1444 = vld [vmem:[%s906 + $0x860] sm:$0xff]
          %1445 = vst [vmem:[%s907 + $0x860] sm:$0xff] %v1444
          %v1446 = vld [vmem:[%s906 + $0x868] sm:$0xff]
          %1447 = vst [vmem:[%s907 + $0x868] sm:$0xff] %v1446
          %v1448 = vld [vmem:[%s906 + $0x870] sm:$0xff]
          %1449 = vst [vmem:[%s907 + $0x870] sm:$0xff] %v1448
          %v1450 = vld [vmem:[%s906 + $0x878] sm:$0xff]
          %1451 = vst [vmem:[%s907 + $0x878] sm:$0xff] %v1450
          %v1452 = vld [vmem:[%s906 + $0x880] sm:$0xff]
          %1453 = vst [vmem:[%s907 + $0x880] sm:$0xff] %v1452
          %v1454 = vld [vmem:[%s906 + $0x888] sm:$0xff]
          %1455 = vst [vmem:[%s907 + $0x888] sm:$0xff] %v1454
          %v1456 = vld [vmem:[%s906 + $0x890] sm:$0xff]
          %1457 = vst [vmem:[%s907 + $0x890] sm:$0xff] %v1456
          %v1458 = vld [vmem:[%s906 + $0x898] sm:$0xff]
          %1459 = vst [vmem:[%s907 + $0x898] sm:$0xff] %v1458
          %v1460 = vld [vmem:[%s906 + $0x8a0] sm:$0xff]
          %1461 = vst [vmem:[%s907 + $0x8a0] sm:$0xff] %v1460
          %v1462 = vld [vmem:[%s906 + $0x8a8] sm:$0xff]
          %1463 = vst [vmem:[%s907 + $0x8a8] sm:$0xff] %v1462
          %v1464 = vld [vmem:[%s906 + $0x8b0] sm:$0xff]
          %1465 = vst [vmem:[%s907 + $0x8b0] sm:$0xff] %v1464
          %v1466 = vld [vmem:[%s906 + $0x8b8] sm:$0xff]
          %1467 = vst [vmem:[%s907 + $0x8b8] sm:$0xff] %v1466
          %v1468 = vld [vmem:[%s906 + $0x8c0] sm:$0xff]
          %1469 = vst [vmem:[%s907 + $0x8c0] sm:$0xff] %v1468
          %v1470 = vld [vmem:[%s906 + $0x8c8] sm:$0xff]
          %1471 = vst [vmem:[%s907 + $0x8c8] sm:$0xff] %v1470
          %v1472 = vld [vmem:[%s906 + $0x8d0] sm:$0xff]
          %1473 = vst [vmem:[%s907 + $0x8d0] sm:$0xff] %v1472
          %v1474 = vld [vmem:[%s906 + $0x8d8] sm:$0xff]
          %1475 = vst [vmem:[%s907 + $0x8d8] sm:$0xff] %v1474
          %v1476 = vld [vmem:[%s906 + $0x8e0] sm:$0xff]
          %1477 = vst [vmem:[%s907 + $0x8e0] sm:$0xff] %v1476
          %v1478 = vld [vmem:[%s906 + $0x8e8] sm:$0xff]
          %1479 = vst [vmem:[%s907 + $0x8e8] sm:$0xff] %v1478
          %v1480 = vld [vmem:[%s906 + $0x8f0] sm:$0xff]
          %1481 = vst [vmem:[%s907 + $0x8f0] sm:$0xff] %v1480
          %v1482 = vld [vmem:[%s906 + $0x8f8] sm:$0xff]
          %1483 = vst [vmem:[%s907 + $0x8f8] sm:$0xff] %v1482
          %v1484 = vld [vmem:[%s906 + $0x900] sm:$0xff]
          %1485 = vst [vmem:[%s907 + $0x900] sm:$0xff] %v1484
          %v1486 = vld [vmem:[%s906 + $0x908] sm:$0xff]
          %1487 = vst [vmem:[%s907 + $0x908] sm:$0xff] %v1486
          %v1488 = vld [vmem:[%s906 + $0x910] sm:$0xff]
          %1489 = vst [vmem:[%s907 + $0x910] sm:$0xff] %v1488
          %v1490 = vld [vmem:[%s906 + $0x918] sm:$0xff]
          %1491 = vst [vmem:[%s907 + $0x918] sm:$0xff] %v1490
          %v1492 = vld [vmem:[%s906 + $0x920] sm:$0xff]
          %1493 = vst [vmem:[%s907 + $0x920] sm:$0xff] %v1492
          %v1494 = vld [vmem:[%s906 + $0x928] sm:$0xff]
          %1495 = vst [vmem:[%s907 + $0x928] sm:$0xff] %v1494
          %v1496 = vld [vmem:[%s906 + $0x930] sm:$0xff]
          %1497 = vst [vmem:[%s907 + $0x930] sm:$0xff] %v1496
          %v1498 = vld [vmem:[%s906 + $0x938] sm:$0xff]
          %1499 = vst [vmem:[%s907 + $0x938] sm:$0xff] %v1498
          %v1500 = vld [vmem:[%s906 + $0x940] sm:$0xff]
          %1501 = vst [vmem:[%s907 + $0x940] sm:$0xff] %v1500
          %v1502 = vld [vmem:[%s906 + $0x948] sm:$0xff]
          %1503 = vst [vmem:[%s907 + $0x948] sm:$0xff] %v1502
          %v1504 = vld [vmem:[%s906 + $0x950] sm:$0xff]
          %1505 = vst [vmem:[%s907 + $0x950] sm:$0xff] %v1504
          %v1506 = vld [vmem:[%s906 + $0x958] sm:$0xff]
          %1507 = vst [vmem:[%s907 + $0x958] sm:$0xff] %v1506
        $region167: #{encoder2_forward.1} parent=161 // loop_footer
          %s905 = sadd.s32 1, %s901
        $region168: #{encoder2_forward.1} parent=161 // loop_footer_branch
          %900 = sbr.rel target = $region164
        $region169: #{encoder2_forward.1} parent=161 // loop_exit
          _
      $region162: #{encoder2_forward.1} parent=146 // pred_fallthru
        _
      %p1508 = pneg %p896
      // Predicated region
      $region170: #{encoder2_forward.1} parent=146 // pred_check
        _
      $region171: #{encoder2_forward.1} parent=146 // pred_check_branch
        %1510 = sbr.rel (%p896) target = $region173
      $region172: #{encoder2_forward.1} parent=146 // pred_region
        %s1511 = sand.u32 2400, 7
      $region173: #{encoder2_forward.1} parent=146 // pred_fallthru
        _
    $region147: #{encoder2_forward.1} parent=36 // pred_fallthru
      _
    // Predicated region
    $region148: #{encoder2_forward.1} parent=36 // pred_check
      %p880 = pneg %p876
    $region149: #{encoder2_forward.1} parent=36 // pred_check_branch
      %882 = sbr.rel (%p880) target = $region151
    $region150: #{encoder2_forward.1} parent=36 // pred_region
      %s883 = sshll.u32 1, 2400
      %s884 = ssub.s32 %s883, 1
      loop: start=0, step=1, limit=1
      $region152: #{encoder2_forward.1} parent=150 // loop_pre_header
        _
      $region153: #{encoder2_forward.1} parent=150 // loop_header
        %s886 = sphi 0, %s890
        %p887 = scmp.ge.s32.totalorder %s886, 1
        %s891 = sphi %s5, %s5
        %s892 = sphi [#allocation6], [#allocation6]
      $region154: #{encoder2_forward.1} parent=150 // loop_header_branch
        %889 = sbr.rel (%p887) target = $region158
      $region155: #{encoder2_forward.1} parent=150 // loop_body
        %v893 = vld [vmem:[%s891] sm:%s884]
        %894 = vst [vmem:[%s892] sm:%s884] %v893
      $region156: #{encoder2_forward.1} parent=150 // loop_footer
        %s890 = sadd.s32 1, %s886
      $region157: #{encoder2_forward.1} parent=150 // loop_footer_branch
        %885 = sbr.rel target = $region153
      $region158: #{encoder2_forward.1} parent=150 // loop_exit
        _
    $region151: #{encoder2_forward.1} parent=36 // pred_fallthru
      _
    // Predicated region
    $region174: #{encoder2_forward.1} parent=36 // pred_check
      _
    $region175: #{encoder2_forward.1} parent=36 // pred_check_branch
      %1514 = sbr.rel (0) target = $region177
    $region176: #{encoder2_forward.1} parent=36 // pred_region
      %1515 = vsyncadd %s874, 38400
    $region177: #{encoder2_forward.1} parent=36 // pred_fallthru
      _
    %s1516 = scalar_lea.sflag [#allocation9], 5
    %p1518 = scmp.lt.u32.totalorder 1920, 8
    %p1519 = pneg %p1518
    // Predicated region
    $region178: #{encoder2_forward.1} parent=36 // pred_check
      _
    $region179: #{encoder2_forward.1} parent=36 // pred_check_branch
      %1521 = sbr.rel (%p1518) target = $region181
    $region180: #{encoder2_forward.1} parent=36 // pred_region
      %s1537 = sand.u32 1920, 7
      %p1538 = scmp.eq.s32.totalorder %s1537, 0
      // Predicated region
      $region193: #{encoder2_forward.1} parent=180 // pred_check
        %p1539 = pneg %p1538
      $region194: #{encoder2_forward.1} parent=180 // pred_check_branch
        %1541 = sbr.rel (%p1539) target = $region196
      $region195: #{encoder2_forward.1} parent=180 // pred_region
        loop: start=0, step=1, limit=1
        $region197: #{encoder2_forward.1} parent=195 // loop_pre_header
          _
        $region198: #{encoder2_forward.1} parent=195 // loop_header
          %s1543 = sphi 0, %s1547
          %p1544 = scmp.ge.s32.totalorder %s1543, 1
          %s1548 = sphi %s6, %s6
          %s1549 = sphi [#allocation7], [#allocation7]
        $region199: #{encoder2_forward.1} parent=195 // loop_header_branch
          %1546 = sbr.rel (%p1544) target = $region203
        $region200: #{encoder2_forward.1} parent=195 // loop_body
          %v1550 = vld [vmem:[%s1548] sm:$0xff]
          %1551 = vst [vmem:[%s1549] sm:$0xff] %v1550
          %v1552 = vld [vmem:[%s1548 + $0x8] sm:$0xff]
          %1553 = vst [vmem:[%s1549 + $0x8] sm:$0xff] %v1552
          %v1554 = vld [vmem:[%s1548 + $0x10] sm:$0xff]
          %1555 = vst [vmem:[%s1549 + $0x10] sm:$0xff] %v1554
          %v1556 = vld [vmem:[%s1548 + $0x18] sm:$0xff]
          %1557 = vst [vmem:[%s1549 + $0x18] sm:$0xff] %v1556
          %v1558 = vld [vmem:[%s1548 + $0x20] sm:$0xff]
          %1559 = vst [vmem:[%s1549 + $0x20] sm:$0xff] %v1558
          %v1560 = vld [vmem:[%s1548 + $0x28] sm:$0xff]
          %1561 = vst [vmem:[%s1549 + $0x28] sm:$0xff] %v1560
          %v1562 = vld [vmem:[%s1548 + $0x30] sm:$0xff]
          %1563 = vst [vmem:[%s1549 + $0x30] sm:$0xff] %v1562
          %v1564 = vld [vmem:[%s1548 + $0x38] sm:$0xff]
          %1565 = vst [vmem:[%s1549 + $0x38] sm:$0xff] %v1564
          %v1566 = vld [vmem:[%s1548 + $0x40] sm:$0xff]
          %1567 = vst [vmem:[%s1549 + $0x40] sm:$0xff] %v1566
          %v1568 = vld [vmem:[%s1548 + $0x48] sm:$0xff]
          %1569 = vst [vmem:[%s1549 + $0x48] sm:$0xff] %v1568
          %v1570 = vld [vmem:[%s1548 + $0x50] sm:$0xff]
          %1571 = vst [vmem:[%s1549 + $0x50] sm:$0xff] %v1570
          %v1572 = vld [vmem:[%s1548 + $0x58] sm:$0xff]
          %1573 = vst [vmem:[%s1549 + $0x58] sm:$0xff] %v1572
          %v1574 = vld [vmem:[%s1548 + $0x60] sm:$0xff]
          %1575 = vst [vmem:[%s1549 + $0x60] sm:$0xff] %v1574
          %v1576 = vld [vmem:[%s1548 + $0x68] sm:$0xff]
          %1577 = vst [vmem:[%s1549 + $0x68] sm:$0xff] %v1576
          %v1578 = vld [vmem:[%s1548 + $0x70] sm:$0xff]
          %1579 = vst [vmem:[%s1549 + $0x70] sm:$0xff] %v1578
          %v1580 = vld [vmem:[%s1548 + $0x78] sm:$0xff]
          %1581 = vst [vmem:[%s1549 + $0x78] sm:$0xff] %v1580
          %v1582 = vld [vmem:[%s1548 + $0x80] sm:$0xff]
          %1583 = vst [vmem:[%s1549 + $0x80] sm:$0xff] %v1582
          %v1584 = vld [vmem:[%s1548 + $0x88] sm:$0xff]
          %1585 = vst [vmem:[%s1549 + $0x88] sm:$0xff] %v1584
          %v1586 = vld [vmem:[%s1548 + $0x90] sm:$0xff]
          %1587 = vst [vmem:[%s1549 + $0x90] sm:$0xff] %v1586
          %v1588 = vld [vmem:[%s1548 + $0x98] sm:$0xff]
          %1589 = vst [vmem:[%s1549 + $0x98] sm:$0xff] %v1588
          %v1590 = vld [vmem:[%s1548 + $0xa0] sm:$0xff]
          %1591 = vst [vmem:[%s1549 + $0xa0] sm:$0xff] %v1590
          %v1592 = vld [vmem:[%s1548 + $0xa8] sm:$0xff]
          %1593 = vst [vmem:[%s1549 + $0xa8] sm:$0xff] %v1592
          %v1594 = vld [vmem:[%s1548 + $0xb0] sm:$0xff]
          %1595 = vst [vmem:[%s1549 + $0xb0] sm:$0xff] %v1594
          %v1596 = vld [vmem:[%s1548 + $0xb8] sm:$0xff]
          %1597 = vst [vmem:[%s1549 + $0xb8] sm:$0xff] %v1596
          %v1598 = vld [vmem:[%s1548 + $0xc0] sm:$0xff]
          %1599 = vst [vmem:[%s1549 + $0xc0] sm:$0xff] %v1598
          %v1600 = vld [vmem:[%s1548 + $0xc8] sm:$0xff]
          %1601 = vst [vmem:[%s1549 + $0xc8] sm:$0xff] %v1600
          %v1602 = vld [vmem:[%s1548 + $0xd0] sm:$0xff]
          %1603 = vst [vmem:[%s1549 + $0xd0] sm:$0xff] %v1602
          %v1604 = vld [vmem:[%s1548 + $0xd8] sm:$0xff]
          %1605 = vst [vmem:[%s1549 + $0xd8] sm:$0xff] %v1604
          %v1606 = vld [vmem:[%s1548 + $0xe0] sm:$0xff]
          %1607 = vst [vmem:[%s1549 + $0xe0] sm:$0xff] %v1606
          %v1608 = vld [vmem:[%s1548 + $0xe8] sm:$0xff]
          %1609 = vst [vmem:[%s1549 + $0xe8] sm:$0xff] %v1608
          %v1610 = vld [vmem:[%s1548 + $0xf0] sm:$0xff]
          %1611 = vst [vmem:[%s1549 + $0xf0] sm:$0xff] %v1610
          %v1612 = vld [vmem:[%s1548 + $0xf8] sm:$0xff]
          %1613 = vst [vmem:[%s1549 + $0xf8] sm:$0xff] %v1612
          %v1614 = vld [vmem:[%s1548 + $0x100] sm:$0xff]
          %1615 = vst [vmem:[%s1549 + $0x100] sm:$0xff] %v1614
          %v1616 = vld [vmem:[%s1548 + $0x108] sm:$0xff]
          %1617 = vst [vmem:[%s1549 + $0x108] sm:$0xff] %v1616
          %v1618 = vld [vmem:[%s1548 + $0x110] sm:$0xff]
          %1619 = vst [vmem:[%s1549 + $0x110] sm:$0xff] %v1618
          %v1620 = vld [vmem:[%s1548 + $0x118] sm:$0xff]
          %1621 = vst [vmem:[%s1549 + $0x118] sm:$0xff] %v1620
          %v1622 = vld [vmem:[%s1548 + $0x120] sm:$0xff]
          %1623 = vst [vmem:[%s1549 + $0x120] sm:$0xff] %v1622
          %v1624 = vld [vmem:[%s1548 + $0x128] sm:$0xff]
          %1625 = vst [vmem:[%s1549 + $0x128] sm:$0xff] %v1624
          %v1626 = vld [vmem:[%s1548 + $0x130] sm:$0xff]
          %1627 = vst [vmem:[%s1549 + $0x130] sm:$0xff] %v1626
          %v1628 = vld [vmem:[%s1548 + $0x138] sm:$0xff]
          %1629 = vst [vmem:[%s1549 + $0x138] sm:$0xff] %v1628
          %v1630 = vld [vmem:[%s1548 + $0x140] sm:$0xff]
          %1631 = vst [vmem:[%s1549 + $0x140] sm:$0xff] %v1630
          %v1632 = vld [vmem:[%s1548 + $0x148] sm:$0xff]
          %1633 = vst [vmem:[%s1549 + $0x148] sm:$0xff] %v1632
          %v1634 = vld [vmem:[%s1548 + $0x150] sm:$0xff]
          %1635 = vst [vmem:[%s1549 + $0x150] sm:$0xff] %v1634
          %v1636 = vld [vmem:[%s1548 + $0x158] sm:$0xff]
          %1637 = vst [vmem:[%s1549 + $0x158] sm:$0xff] %v1636
          %v1638 = vld [vmem:[%s1548 + $0x160] sm:$0xff]
          %1639 = vst [vmem:[%s1549 + $0x160] sm:$0xff] %v1638
          %v1640 = vld [vmem:[%s1548 + $0x168] sm:$0xff]
          %1641 = vst [vmem:[%s1549 + $0x168] sm:$0xff] %v1640
          %v1642 = vld [vmem:[%s1548 + $0x170] sm:$0xff]
          %1643 = vst [vmem:[%s1549 + $0x170] sm:$0xff] %v1642
          %v1644 = vld [vmem:[%s1548 + $0x178] sm:$0xff]
          %1645 = vst [vmem:[%s1549 + $0x178] sm:$0xff] %v1644
          %v1646 = vld [vmem:[%s1548 + $0x180] sm:$0xff]
          %1647 = vst [vmem:[%s1549 + $0x180] sm:$0xff] %v1646
          %v1648 = vld [vmem:[%s1548 + $0x188] sm:$0xff]
          %1649 = vst [vmem:[%s1549 + $0x188] sm:$0xff] %v1648
          %v1650 = vld [vmem:[%s1548 + $0x190] sm:$0xff]
          %1651 = vst [vmem:[%s1549 + $0x190] sm:$0xff] %v1650
          %v1652 = vld [vmem:[%s1548 + $0x198] sm:$0xff]
          %1653 = vst [vmem:[%s1549 + $0x198] sm:$0xff] %v1652
          %v1654 = vld [vmem:[%s1548 + $0x1a0] sm:$0xff]
          %1655 = vst [vmem:[%s1549 + $0x1a0] sm:$0xff] %v1654
          %v1656 = vld [vmem:[%s1548 + $0x1a8] sm:$0xff]
          %1657 = vst [vmem:[%s1549 + $0x1a8] sm:$0xff] %v1656
          %v1658 = vld [vmem:[%s1548 + $0x1b0] sm:$0xff]
          %1659 = vst [vmem:[%s1549 + $0x1b0] sm:$0xff] %v1658
          %v1660 = vld [vmem:[%s1548 + $0x1b8] sm:$0xff]
          %1661 = vst [vmem:[%s1549 + $0x1b8] sm:$0xff] %v1660
          %v1662 = vld [vmem:[%s1548 + $0x1c0] sm:$0xff]
          %1663 = vst [vmem:[%s1549 + $0x1c0] sm:$0xff] %v1662
          %v1664 = vld [vmem:[%s1548 + $0x1c8] sm:$0xff]
          %1665 = vst [vmem:[%s1549 + $0x1c8] sm:$0xff] %v1664
          %v1666 = vld [vmem:[%s1548 + $0x1d0] sm:$0xff]
          %1667 = vst [vmem:[%s1549 + $0x1d0] sm:$0xff] %v1666
          %v1668 = vld [vmem:[%s1548 + $0x1d8] sm:$0xff]
          %1669 = vst [vmem:[%s1549 + $0x1d8] sm:$0xff] %v1668
          %v1670 = vld [vmem:[%s1548 + $0x1e0] sm:$0xff]
          %1671 = vst [vmem:[%s1549 + $0x1e0] sm:$0xff] %v1670
          %v1672 = vld [vmem:[%s1548 + $0x1e8] sm:$0xff]
          %1673 = vst [vmem:[%s1549 + $0x1e8] sm:$0xff] %v1672
          %v1674 = vld [vmem:[%s1548 + $0x1f0] sm:$0xff]
          %1675 = vst [vmem:[%s1549 + $0x1f0] sm:$0xff] %v1674
          %v1676 = vld [vmem:[%s1548 + $0x1f8] sm:$0xff]
          %1677 = vst [vmem:[%s1549 + $0x1f8] sm:$0xff] %v1676
          %v1678 = vld [vmem:[%s1548 + $0x200] sm:$0xff]
          %1679 = vst [vmem:[%s1549 + $0x200] sm:$0xff] %v1678
          %v1680 = vld [vmem:[%s1548 + $0x208] sm:$0xff]
          %1681 = vst [vmem:[%s1549 + $0x208] sm:$0xff] %v1680
          %v1682 = vld [vmem:[%s1548 + $0x210] sm:$0xff]
          %1683 = vst [vmem:[%s1549 + $0x210] sm:$0xff] %v1682
          %v1684 = vld [vmem:[%s1548 + $0x218] sm:$0xff]
          %1685 = vst [vmem:[%s1549 + $0x218] sm:$0xff] %v1684
          %v1686 = vld [vmem:[%s1548 + $0x220] sm:$0xff]
          %1687 = vst [vmem:[%s1549 + $0x220] sm:$0xff] %v1686
          %v1688 = vld [vmem:[%s1548 + $0x228] sm:$0xff]
          %1689 = vst [vmem:[%s1549 + $0x228] sm:$0xff] %v1688
          %v1690 = vld [vmem:[%s1548 + $0x230] sm:$0xff]
          %1691 = vst [vmem:[%s1549 + $0x230] sm:$0xff] %v1690
          %v1692 = vld [vmem:[%s1548 + $0x238] sm:$0xff]
          %1693 = vst [vmem:[%s1549 + $0x238] sm:$0xff] %v1692
          %v1694 = vld [vmem:[%s1548 + $0x240] sm:$0xff]
          %1695 = vst [vmem:[%s1549 + $0x240] sm:$0xff] %v1694
          %v1696 = vld [vmem:[%s1548 + $0x248] sm:$0xff]
          %1697 = vst [vmem:[%s1549 + $0x248] sm:$0xff] %v1696
          %v1698 = vld [vmem:[%s1548 + $0x250] sm:$0xff]
          %1699 = vst [vmem:[%s1549 + $0x250] sm:$0xff] %v1698
          %v1700 = vld [vmem:[%s1548 + $0x258] sm:$0xff]
          %1701 = vst [vmem:[%s1549 + $0x258] sm:$0xff] %v1700
          %v1702 = vld [vmem:[%s1548 + $0x260] sm:$0xff]
          %1703 = vst [vmem:[%s1549 + $0x260] sm:$0xff] %v1702
          %v1704 = vld [vmem:[%s1548 + $0x268] sm:$0xff]
          %1705 = vst [vmem:[%s1549 + $0x268] sm:$0xff] %v1704
          %v1706 = vld [vmem:[%s1548 + $0x270] sm:$0xff]
          %1707 = vst [vmem:[%s1549 + $0x270] sm:$0xff] %v1706
          %v1708 = vld [vmem:[%s1548 + $0x278] sm:$0xff]
          %1709 = vst [vmem:[%s1549 + $0x278] sm:$0xff] %v1708
          %v1710 = vld [vmem:[%s1548 + $0x280] sm:$0xff]
          %1711 = vst [vmem:[%s1549 + $0x280] sm:$0xff] %v1710
          %v1712 = vld [vmem:[%s1548 + $0x288] sm:$0xff]
          %1713 = vst [vmem:[%s1549 + $0x288] sm:$0xff] %v1712
          %v1714 = vld [vmem:[%s1548 + $0x290] sm:$0xff]
          %1715 = vst [vmem:[%s1549 + $0x290] sm:$0xff] %v1714
          %v1716 = vld [vmem:[%s1548 + $0x298] sm:$0xff]
          %1717 = vst [vmem:[%s1549 + $0x298] sm:$0xff] %v1716
          %v1718 = vld [vmem:[%s1548 + $0x2a0] sm:$0xff]
          %1719 = vst [vmem:[%s1549 + $0x2a0] sm:$0xff] %v1718
          %v1720 = vld [vmem:[%s1548 + $0x2a8] sm:$0xff]
          %1721 = vst [vmem:[%s1549 + $0x2a8] sm:$0xff] %v1720
          %v1722 = vld [vmem:[%s1548 + $0x2b0] sm:$0xff]
          %1723 = vst [vmem:[%s1549 + $0x2b0] sm:$0xff] %v1722
          %v1724 = vld [vmem:[%s1548 + $0x2b8] sm:$0xff]
          %1725 = vst [vmem:[%s1549 + $0x2b8] sm:$0xff] %v1724
          %v1726 = vld [vmem:[%s1548 + $0x2c0] sm:$0xff]
          %1727 = vst [vmem:[%s1549 + $0x2c0] sm:$0xff] %v1726
          %v1728 = vld [vmem:[%s1548 + $0x2c8] sm:$0xff]
          %1729 = vst [vmem:[%s1549 + $0x2c8] sm:$0xff] %v1728
          %v1730 = vld [vmem:[%s1548 + $0x2d0] sm:$0xff]
          %1731 = vst [vmem:[%s1549 + $0x2d0] sm:$0xff] %v1730
          %v1732 = vld [vmem:[%s1548 + $0x2d8] sm:$0xff]
          %1733 = vst [vmem:[%s1549 + $0x2d8] sm:$0xff] %v1732
          %v1734 = vld [vmem:[%s1548 + $0x2e0] sm:$0xff]
          %1735 = vst [vmem:[%s1549 + $0x2e0] sm:$0xff] %v1734
          %v1736 = vld [vmem:[%s1548 + $0x2e8] sm:$0xff]
          %1737 = vst [vmem:[%s1549 + $0x2e8] sm:$0xff] %v1736
          %v1738 = vld [vmem:[%s1548 + $0x2f0] sm:$0xff]
          %1739 = vst [vmem:[%s1549 + $0x2f0] sm:$0xff] %v1738
          %v1740 = vld [vmem:[%s1548 + $0x2f8] sm:$0xff]
          %1741 = vst [vmem:[%s1549 + $0x2f8] sm:$0xff] %v1740
          %v1742 = vld [vmem:[%s1548 + $0x300] sm:$0xff]
          %1743 = vst [vmem:[%s1549 + $0x300] sm:$0xff] %v1742
          %v1744 = vld [vmem:[%s1548 + $0x308] sm:$0xff]
          %1745 = vst [vmem:[%s1549 + $0x308] sm:$0xff] %v1744
          %v1746 = vld [vmem:[%s1548 + $0x310] sm:$0xff]
          %1747 = vst [vmem:[%s1549 + $0x310] sm:$0xff] %v1746
          %v1748 = vld [vmem:[%s1548 + $0x318] sm:$0xff]
          %1749 = vst [vmem:[%s1549 + $0x318] sm:$0xff] %v1748
          %v1750 = vld [vmem:[%s1548 + $0x320] sm:$0xff]
          %1751 = vst [vmem:[%s1549 + $0x320] sm:$0xff] %v1750
          %v1752 = vld [vmem:[%s1548 + $0x328] sm:$0xff]
          %1753 = vst [vmem:[%s1549 + $0x328] sm:$0xff] %v1752
          %v1754 = vld [vmem:[%s1548 + $0x330] sm:$0xff]
          %1755 = vst [vmem:[%s1549 + $0x330] sm:$0xff] %v1754
          %v1756 = vld [vmem:[%s1548 + $0x338] sm:$0xff]
          %1757 = vst [vmem:[%s1549 + $0x338] sm:$0xff] %v1756
          %v1758 = vld [vmem:[%s1548 + $0x340] sm:$0xff]
          %1759 = vst [vmem:[%s1549 + $0x340] sm:$0xff] %v1758
          %v1760 = vld [vmem:[%s1548 + $0x348] sm:$0xff]
          %1761 = vst [vmem:[%s1549 + $0x348] sm:$0xff] %v1760
          %v1762 = vld [vmem:[%s1548 + $0x350] sm:$0xff]
          %1763 = vst [vmem:[%s1549 + $0x350] sm:$0xff] %v1762
          %v1764 = vld [vmem:[%s1548 + $0x358] sm:$0xff]
          %1765 = vst [vmem:[%s1549 + $0x358] sm:$0xff] %v1764
          %v1766 = vld [vmem:[%s1548 + $0x360] sm:$0xff]
          %1767 = vst [vmem:[%s1549 + $0x360] sm:$0xff] %v1766
          %v1768 = vld [vmem:[%s1548 + $0x368] sm:$0xff]
          %1769 = vst [vmem:[%s1549 + $0x368] sm:$0xff] %v1768
          %v1770 = vld [vmem:[%s1548 + $0x370] sm:$0xff]
          %1771 = vst [vmem:[%s1549 + $0x370] sm:$0xff] %v1770
          %v1772 = vld [vmem:[%s1548 + $0x378] sm:$0xff]
          %1773 = vst [vmem:[%s1549 + $0x378] sm:$0xff] %v1772
          %v1774 = vld [vmem:[%s1548 + $0x380] sm:$0xff]
          %1775 = vst [vmem:[%s1549 + $0x380] sm:$0xff] %v1774
          %v1776 = vld [vmem:[%s1548 + $0x388] sm:$0xff]
          %1777 = vst [vmem:[%s1549 + $0x388] sm:$0xff] %v1776
          %v1778 = vld [vmem:[%s1548 + $0x390] sm:$0xff]
          %1779 = vst [vmem:[%s1549 + $0x390] sm:$0xff] %v1778
          %v1780 = vld [vmem:[%s1548 + $0x398] sm:$0xff]
          %1781 = vst [vmem:[%s1549 + $0x398] sm:$0xff] %v1780
          %v1782 = vld [vmem:[%s1548 + $0x3a0] sm:$0xff]
          %1783 = vst [vmem:[%s1549 + $0x3a0] sm:$0xff] %v1782
          %v1784 = vld [vmem:[%s1548 + $0x3a8] sm:$0xff]
          %1785 = vst [vmem:[%s1549 + $0x3a8] sm:$0xff] %v1784
          %v1786 = vld [vmem:[%s1548 + $0x3b0] sm:$0xff]
          %1787 = vst [vmem:[%s1549 + $0x3b0] sm:$0xff] %v1786
          %v1788 = vld [vmem:[%s1548 + $0x3b8] sm:$0xff]
          %1789 = vst [vmem:[%s1549 + $0x3b8] sm:$0xff] %v1788
          %v1790 = vld [vmem:[%s1548 + $0x3c0] sm:$0xff]
          %1791 = vst [vmem:[%s1549 + $0x3c0] sm:$0xff] %v1790
          %v1792 = vld [vmem:[%s1548 + $0x3c8] sm:$0xff]
          %1793 = vst [vmem:[%s1549 + $0x3c8] sm:$0xff] %v1792
          %v1794 = vld [vmem:[%s1548 + $0x3d0] sm:$0xff]
          %1795 = vst [vmem:[%s1549 + $0x3d0] sm:$0xff] %v1794
          %v1796 = vld [vmem:[%s1548 + $0x3d8] sm:$0xff]
          %1797 = vst [vmem:[%s1549 + $0x3d8] sm:$0xff] %v1796
          %v1798 = vld [vmem:[%s1548 + $0x3e0] sm:$0xff]
          %1799 = vst [vmem:[%s1549 + $0x3e0] sm:$0xff] %v1798
          %v1800 = vld [vmem:[%s1548 + $0x3e8] sm:$0xff]
          %1801 = vst [vmem:[%s1549 + $0x3e8] sm:$0xff] %v1800
          %v1802 = vld [vmem:[%s1548 + $0x3f0] sm:$0xff]
          %1803 = vst [vmem:[%s1549 + $0x3f0] sm:$0xff] %v1802
          %v1804 = vld [vmem:[%s1548 + $0x3f8] sm:$0xff]
          %1805 = vst [vmem:[%s1549 + $0x3f8] sm:$0xff] %v1804
          %v1806 = vld [vmem:[%s1548 + $0x400] sm:$0xff]
          %1807 = vst [vmem:[%s1549 + $0x400] sm:$0xff] %v1806
          %v1808 = vld [vmem:[%s1548 + $0x408] sm:$0xff]
          %1809 = vst [vmem:[%s1549 + $0x408] sm:$0xff] %v1808
          %v1810 = vld [vmem:[%s1548 + $0x410] sm:$0xff]
          %1811 = vst [vmem:[%s1549 + $0x410] sm:$0xff] %v1810
          %v1812 = vld [vmem:[%s1548 + $0x418] sm:$0xff]
          %1813 = vst [vmem:[%s1549 + $0x418] sm:$0xff] %v1812
          %v1814 = vld [vmem:[%s1548 + $0x420] sm:$0xff]
          %1815 = vst [vmem:[%s1549 + $0x420] sm:$0xff] %v1814
          %v1816 = vld [vmem:[%s1548 + $0x428] sm:$0xff]
          %1817 = vst [vmem:[%s1549 + $0x428] sm:$0xff] %v1816
          %v1818 = vld [vmem:[%s1548 + $0x430] sm:$0xff]
          %1819 = vst [vmem:[%s1549 + $0x430] sm:$0xff] %v1818
          %v1820 = vld [vmem:[%s1548 + $0x438] sm:$0xff]
          %1821 = vst [vmem:[%s1549 + $0x438] sm:$0xff] %v1820
          %v1822 = vld [vmem:[%s1548 + $0x440] sm:$0xff]
          %1823 = vst [vmem:[%s1549 + $0x440] sm:$0xff] %v1822
          %v1824 = vld [vmem:[%s1548 + $0x448] sm:$0xff]
          %1825 = vst [vmem:[%s1549 + $0x448] sm:$0xff] %v1824
          %v1826 = vld [vmem:[%s1548 + $0x450] sm:$0xff]
          %1827 = vst [vmem:[%s1549 + $0x450] sm:$0xff] %v1826
          %v1828 = vld [vmem:[%s1548 + $0x458] sm:$0xff]
          %1829 = vst [vmem:[%s1549 + $0x458] sm:$0xff] %v1828
          %v1830 = vld [vmem:[%s1548 + $0x460] sm:$0xff]
          %1831 = vst [vmem:[%s1549 + $0x460] sm:$0xff] %v1830
          %v1832 = vld [vmem:[%s1548 + $0x468] sm:$0xff]
          %1833 = vst [vmem:[%s1549 + $0x468] sm:$0xff] %v1832
          %v1834 = vld [vmem:[%s1548 + $0x470] sm:$0xff]
          %1835 = vst [vmem:[%s1549 + $0x470] sm:$0xff] %v1834
          %v1836 = vld [vmem:[%s1548 + $0x478] sm:$0xff]
          %1837 = vst [vmem:[%s1549 + $0x478] sm:$0xff] %v1836
          %v1838 = vld [vmem:[%s1548 + $0x480] sm:$0xff]
          %1839 = vst [vmem:[%s1549 + $0x480] sm:$0xff] %v1838
          %v1840 = vld [vmem:[%s1548 + $0x488] sm:$0xff]
          %1841 = vst [vmem:[%s1549 + $0x488] sm:$0xff] %v1840
          %v1842 = vld [vmem:[%s1548 + $0x490] sm:$0xff]
          %1843 = vst [vmem:[%s1549 + $0x490] sm:$0xff] %v1842
          %v1844 = vld [vmem:[%s1548 + $0x498] sm:$0xff]
          %1845 = vst [vmem:[%s1549 + $0x498] sm:$0xff] %v1844
          %v1846 = vld [vmem:[%s1548 + $0x4a0] sm:$0xff]
          %1847 = vst [vmem:[%s1549 + $0x4a0] sm:$0xff] %v1846
          %v1848 = vld [vmem:[%s1548 + $0x4a8] sm:$0xff]
          %1849 = vst [vmem:[%s1549 + $0x4a8] sm:$0xff] %v1848
          %v1850 = vld [vmem:[%s1548 + $0x4b0] sm:$0xff]
          %1851 = vst [vmem:[%s1549 + $0x4b0] sm:$0xff] %v1850
          %v1852 = vld [vmem:[%s1548 + $0x4b8] sm:$0xff]
          %1853 = vst [vmem:[%s1549 + $0x4b8] sm:$0xff] %v1852
          %v1854 = vld [vmem:[%s1548 + $0x4c0] sm:$0xff]
          %1855 = vst [vmem:[%s1549 + $0x4c0] sm:$0xff] %v1854
          %v1856 = vld [vmem:[%s1548 + $0x4c8] sm:$0xff]
          %1857 = vst [vmem:[%s1549 + $0x4c8] sm:$0xff] %v1856
          %v1858 = vld [vmem:[%s1548 + $0x4d0] sm:$0xff]
          %1859 = vst [vmem:[%s1549 + $0x4d0] sm:$0xff] %v1858
          %v1860 = vld [vmem:[%s1548 + $0x4d8] sm:$0xff]
          %1861 = vst [vmem:[%s1549 + $0x4d8] sm:$0xff] %v1860
          %v1862 = vld [vmem:[%s1548 + $0x4e0] sm:$0xff]
          %1863 = vst [vmem:[%s1549 + $0x4e0] sm:$0xff] %v1862
          %v1864 = vld [vmem:[%s1548 + $0x4e8] sm:$0xff]
          %1865 = vst [vmem:[%s1549 + $0x4e8] sm:$0xff] %v1864
          %v1866 = vld [vmem:[%s1548 + $0x4f0] sm:$0xff]
          %1867 = vst [vmem:[%s1549 + $0x4f0] sm:$0xff] %v1866
          %v1868 = vld [vmem:[%s1548 + $0x4f8] sm:$0xff]
          %1869 = vst [vmem:[%s1549 + $0x4f8] sm:$0xff] %v1868
          %v1870 = vld [vmem:[%s1548 + $0x500] sm:$0xff]
          %1871 = vst [vmem:[%s1549 + $0x500] sm:$0xff] %v1870
          %v1872 = vld [vmem:[%s1548 + $0x508] sm:$0xff]
          %1873 = vst [vmem:[%s1549 + $0x508] sm:$0xff] %v1872
          %v1874 = vld [vmem:[%s1548 + $0x510] sm:$0xff]
          %1875 = vst [vmem:[%s1549 + $0x510] sm:$0xff] %v1874
          %v1876 = vld [vmem:[%s1548 + $0x518] sm:$0xff]
          %1877 = vst [vmem:[%s1549 + $0x518] sm:$0xff] %v1876
          %v1878 = vld [vmem:[%s1548 + $0x520] sm:$0xff]
          %1879 = vst [vmem:[%s1549 + $0x520] sm:$0xff] %v1878
          %v1880 = vld [vmem:[%s1548 + $0x528] sm:$0xff]
          %1881 = vst [vmem:[%s1549 + $0x528] sm:$0xff] %v1880
          %v1882 = vld [vmem:[%s1548 + $0x530] sm:$0xff]
          %1883 = vst [vmem:[%s1549 + $0x530] sm:$0xff] %v1882
          %v1884 = vld [vmem:[%s1548 + $0x538] sm:$0xff]
          %1885 = vst [vmem:[%s1549 + $0x538] sm:$0xff] %v1884
          %v1886 = vld [vmem:[%s1548 + $0x540] sm:$0xff]
          %1887 = vst [vmem:[%s1549 + $0x540] sm:$0xff] %v1886
          %v1888 = vld [vmem:[%s1548 + $0x548] sm:$0xff]
          %1889 = vst [vmem:[%s1549 + $0x548] sm:$0xff] %v1888
          %v1890 = vld [vmem:[%s1548 + $0x550] sm:$0xff]
          %1891 = vst [vmem:[%s1549 + $0x550] sm:$0xff] %v1890
          %v1892 = vld [vmem:[%s1548 + $0x558] sm:$0xff]
          %1893 = vst [vmem:[%s1549 + $0x558] sm:$0xff] %v1892
          %v1894 = vld [vmem:[%s1548 + $0x560] sm:$0xff]
          %1895 = vst [vmem:[%s1549 + $0x560] sm:$0xff] %v1894
          %v1896 = vld [vmem:[%s1548 + $0x568] sm:$0xff]
          %1897 = vst [vmem:[%s1549 + $0x568] sm:$0xff] %v1896
          %v1898 = vld [vmem:[%s1548 + $0x570] sm:$0xff]
          %1899 = vst [vmem:[%s1549 + $0x570] sm:$0xff] %v1898
          %v1900 = vld [vmem:[%s1548 + $0x578] sm:$0xff]
          %1901 = vst [vmem:[%s1549 + $0x578] sm:$0xff] %v1900
          %v1902 = vld [vmem:[%s1548 + $0x580] sm:$0xff]
          %1903 = vst [vmem:[%s1549 + $0x580] sm:$0xff] %v1902
          %v1904 = vld [vmem:[%s1548 + $0x588] sm:$0xff]
          %1905 = vst [vmem:[%s1549 + $0x588] sm:$0xff] %v1904
          %v1906 = vld [vmem:[%s1548 + $0x590] sm:$0xff]
          %1907 = vst [vmem:[%s1549 + $0x590] sm:$0xff] %v1906
          %v1908 = vld [vmem:[%s1548 + $0x598] sm:$0xff]
          %1909 = vst [vmem:[%s1549 + $0x598] sm:$0xff] %v1908
          %v1910 = vld [vmem:[%s1548 + $0x5a0] sm:$0xff]
          %1911 = vst [vmem:[%s1549 + $0x5a0] sm:$0xff] %v1910
          %v1912 = vld [vmem:[%s1548 + $0x5a8] sm:$0xff]
          %1913 = vst [vmem:[%s1549 + $0x5a8] sm:$0xff] %v1912
          %v1914 = vld [vmem:[%s1548 + $0x5b0] sm:$0xff]
          %1915 = vst [vmem:[%s1549 + $0x5b0] sm:$0xff] %v1914
          %v1916 = vld [vmem:[%s1548 + $0x5b8] sm:$0xff]
          %1917 = vst [vmem:[%s1549 + $0x5b8] sm:$0xff] %v1916
          %v1918 = vld [vmem:[%s1548 + $0x5c0] sm:$0xff]
          %1919 = vst [vmem:[%s1549 + $0x5c0] sm:$0xff] %v1918
          %v1920 = vld [vmem:[%s1548 + $0x5c8] sm:$0xff]
          %1921 = vst [vmem:[%s1549 + $0x5c8] sm:$0xff] %v1920
          %v1922 = vld [vmem:[%s1548 + $0x5d0] sm:$0xff]
          %1923 = vst [vmem:[%s1549 + $0x5d0] sm:$0xff] %v1922
          %v1924 = vld [vmem:[%s1548 + $0x5d8] sm:$0xff]
          %1925 = vst [vmem:[%s1549 + $0x5d8] sm:$0xff] %v1924
          %v1926 = vld [vmem:[%s1548 + $0x5e0] sm:$0xff]
          %1927 = vst [vmem:[%s1549 + $0x5e0] sm:$0xff] %v1926
          %v1928 = vld [vmem:[%s1548 + $0x5e8] sm:$0xff]
          %1929 = vst [vmem:[%s1549 + $0x5e8] sm:$0xff] %v1928
          %v1930 = vld [vmem:[%s1548 + $0x5f0] sm:$0xff]
          %1931 = vst [vmem:[%s1549 + $0x5f0] sm:$0xff] %v1930
          %v1932 = vld [vmem:[%s1548 + $0x5f8] sm:$0xff]
          %1933 = vst [vmem:[%s1549 + $0x5f8] sm:$0xff] %v1932
          %v1934 = vld [vmem:[%s1548 + $0x600] sm:$0xff]
          %1935 = vst [vmem:[%s1549 + $0x600] sm:$0xff] %v1934
          %v1936 = vld [vmem:[%s1548 + $0x608] sm:$0xff]
          %1937 = vst [vmem:[%s1549 + $0x608] sm:$0xff] %v1936
          %v1938 = vld [vmem:[%s1548 + $0x610] sm:$0xff]
          %1939 = vst [vmem:[%s1549 + $0x610] sm:$0xff] %v1938
          %v1940 = vld [vmem:[%s1548 + $0x618] sm:$0xff]
          %1941 = vst [vmem:[%s1549 + $0x618] sm:$0xff] %v1940
          %v1942 = vld [vmem:[%s1548 + $0x620] sm:$0xff]
          %1943 = vst [vmem:[%s1549 + $0x620] sm:$0xff] %v1942
          %v1944 = vld [vmem:[%s1548 + $0x628] sm:$0xff]
          %1945 = vst [vmem:[%s1549 + $0x628] sm:$0xff] %v1944
          %v1946 = vld [vmem:[%s1548 + $0x630] sm:$0xff]
          %1947 = vst [vmem:[%s1549 + $0x630] sm:$0xff] %v1946
          %v1948 = vld [vmem:[%s1548 + $0x638] sm:$0xff]
          %1949 = vst [vmem:[%s1549 + $0x638] sm:$0xff] %v1948
          %v1950 = vld [vmem:[%s1548 + $0x640] sm:$0xff]
          %1951 = vst [vmem:[%s1549 + $0x640] sm:$0xff] %v1950
          %v1952 = vld [vmem:[%s1548 + $0x648] sm:$0xff]
          %1953 = vst [vmem:[%s1549 + $0x648] sm:$0xff] %v1952
          %v1954 = vld [vmem:[%s1548 + $0x650] sm:$0xff]
          %1955 = vst [vmem:[%s1549 + $0x650] sm:$0xff] %v1954
          %v1956 = vld [vmem:[%s1548 + $0x658] sm:$0xff]
          %1957 = vst [vmem:[%s1549 + $0x658] sm:$0xff] %v1956
          %v1958 = vld [vmem:[%s1548 + $0x660] sm:$0xff]
          %1959 = vst [vmem:[%s1549 + $0x660] sm:$0xff] %v1958
          %v1960 = vld [vmem:[%s1548 + $0x668] sm:$0xff]
          %1961 = vst [vmem:[%s1549 + $0x668] sm:$0xff] %v1960
          %v1962 = vld [vmem:[%s1548 + $0x670] sm:$0xff]
          %1963 = vst [vmem:[%s1549 + $0x670] sm:$0xff] %v1962
          %v1964 = vld [vmem:[%s1548 + $0x678] sm:$0xff]
          %1965 = vst [vmem:[%s1549 + $0x678] sm:$0xff] %v1964
          %v1966 = vld [vmem:[%s1548 + $0x680] sm:$0xff]
          %1967 = vst [vmem:[%s1549 + $0x680] sm:$0xff] %v1966
          %v1968 = vld [vmem:[%s1548 + $0x688] sm:$0xff]
          %1969 = vst [vmem:[%s1549 + $0x688] sm:$0xff] %v1968
          %v1970 = vld [vmem:[%s1548 + $0x690] sm:$0xff]
          %1971 = vst [vmem:[%s1549 + $0x690] sm:$0xff] %v1970
          %v1972 = vld [vmem:[%s1548 + $0x698] sm:$0xff]
          %1973 = vst [vmem:[%s1549 + $0x698] sm:$0xff] %v1972
          %v1974 = vld [vmem:[%s1548 + $0x6a0] sm:$0xff]
          %1975 = vst [vmem:[%s1549 + $0x6a0] sm:$0xff] %v1974
          %v1976 = vld [vmem:[%s1548 + $0x6a8] sm:$0xff]
          %1977 = vst [vmem:[%s1549 + $0x6a8] sm:$0xff] %v1976
          %v1978 = vld [vmem:[%s1548 + $0x6b0] sm:$0xff]
          %1979 = vst [vmem:[%s1549 + $0x6b0] sm:$0xff] %v1978
          %v1980 = vld [vmem:[%s1548 + $0x6b8] sm:$0xff]
          %1981 = vst [vmem:[%s1549 + $0x6b8] sm:$0xff] %v1980
          %v1982 = vld [vmem:[%s1548 + $0x6c0] sm:$0xff]
          %1983 = vst [vmem:[%s1549 + $0x6c0] sm:$0xff] %v1982
          %v1984 = vld [vmem:[%s1548 + $0x6c8] sm:$0xff]
          %1985 = vst [vmem:[%s1549 + $0x6c8] sm:$0xff] %v1984
          %v1986 = vld [vmem:[%s1548 + $0x6d0] sm:$0xff]
          %1987 = vst [vmem:[%s1549 + $0x6d0] sm:$0xff] %v1986
          %v1988 = vld [vmem:[%s1548 + $0x6d8] sm:$0xff]
          %1989 = vst [vmem:[%s1549 + $0x6d8] sm:$0xff] %v1988
          %v1990 = vld [vmem:[%s1548 + $0x6e0] sm:$0xff]
          %1991 = vst [vmem:[%s1549 + $0x6e0] sm:$0xff] %v1990
          %v1992 = vld [vmem:[%s1548 + $0x6e8] sm:$0xff]
          %1993 = vst [vmem:[%s1549 + $0x6e8] sm:$0xff] %v1992
          %v1994 = vld [vmem:[%s1548 + $0x6f0] sm:$0xff]
          %1995 = vst [vmem:[%s1549 + $0x6f0] sm:$0xff] %v1994
          %v1996 = vld [vmem:[%s1548 + $0x6f8] sm:$0xff]
          %1997 = vst [vmem:[%s1549 + $0x6f8] sm:$0xff] %v1996
          %v1998 = vld [vmem:[%s1548 + $0x700] sm:$0xff]
          %1999 = vst [vmem:[%s1549 + $0x700] sm:$0xff] %v1998
          %v2000 = vld [vmem:[%s1548 + $0x708] sm:$0xff]
          %2001 = vst [vmem:[%s1549 + $0x708] sm:$0xff] %v2000
          %v2002 = vld [vmem:[%s1548 + $0x710] sm:$0xff]
          %2003 = vst [vmem:[%s1549 + $0x710] sm:$0xff] %v2002
          %v2004 = vld [vmem:[%s1548 + $0x718] sm:$0xff]
          %2005 = vst [vmem:[%s1549 + $0x718] sm:$0xff] %v2004
          %v2006 = vld [vmem:[%s1548 + $0x720] sm:$0xff]
          %2007 = vst [vmem:[%s1549 + $0x720] sm:$0xff] %v2006
          %v2008 = vld [vmem:[%s1548 + $0x728] sm:$0xff]
          %2009 = vst [vmem:[%s1549 + $0x728] sm:$0xff] %v2008
          %v2010 = vld [vmem:[%s1548 + $0x730] sm:$0xff]
          %2011 = vst [vmem:[%s1549 + $0x730] sm:$0xff] %v2010
          %v2012 = vld [vmem:[%s1548 + $0x738] sm:$0xff]
          %2013 = vst [vmem:[%s1549 + $0x738] sm:$0xff] %v2012
          %v2014 = vld [vmem:[%s1548 + $0x740] sm:$0xff]
          %2015 = vst [vmem:[%s1549 + $0x740] sm:$0xff] %v2014
          %v2016 = vld [vmem:[%s1548 + $0x748] sm:$0xff]
          %2017 = vst [vmem:[%s1549 + $0x748] sm:$0xff] %v2016
          %v2018 = vld [vmem:[%s1548 + $0x750] sm:$0xff]
          %2019 = vst [vmem:[%s1549 + $0x750] sm:$0xff] %v2018
          %v2020 = vld [vmem:[%s1548 + $0x758] sm:$0xff]
          %2021 = vst [vmem:[%s1549 + $0x758] sm:$0xff] %v2020
          %v2022 = vld [vmem:[%s1548 + $0x760] sm:$0xff]
          %2023 = vst [vmem:[%s1549 + $0x760] sm:$0xff] %v2022
          %v2024 = vld [vmem:[%s1548 + $0x768] sm:$0xff]
          %2025 = vst [vmem:[%s1549 + $0x768] sm:$0xff] %v2024
          %v2026 = vld [vmem:[%s1548 + $0x770] sm:$0xff]
          %2027 = vst [vmem:[%s1549 + $0x770] sm:$0xff] %v2026
          %v2028 = vld [vmem:[%s1548 + $0x778] sm:$0xff]
          %2029 = vst [vmem:[%s1549 + $0x778] sm:$0xff] %v2028
        $region201: #{encoder2_forward.1} parent=195 // loop_footer
          %s1547 = sadd.s32 1, %s1543
        $region202: #{encoder2_forward.1} parent=195 // loop_footer_branch
          %1542 = sbr.rel target = $region198
        $region203: #{encoder2_forward.1} parent=195 // loop_exit
          _
      $region196: #{encoder2_forward.1} parent=180 // pred_fallthru
        _
      %p2030 = pneg %p1538
      // Predicated region
      $region204: #{encoder2_forward.1} parent=180 // pred_check
        _
      $region205: #{encoder2_forward.1} parent=180 // pred_check_branch
        %2032 = sbr.rel (%p1538) target = $region207
      $region206: #{encoder2_forward.1} parent=180 // pred_region
        %s2033 = sand.u32 1920, 7
      $region207: #{encoder2_forward.1} parent=180 // pred_fallthru
        _
    $region181: #{encoder2_forward.1} parent=36 // pred_fallthru
      _
    // Predicated region
    $region182: #{encoder2_forward.1} parent=36 // pred_check
      %p1522 = pneg %p1518
    $region183: #{encoder2_forward.1} parent=36 // pred_check_branch
      %1524 = sbr.rel (%p1522) target = $region185
    $region184: #{encoder2_forward.1} parent=36 // pred_region
      %s1525 = sshll.u32 1, 1920
      %s1526 = ssub.s32 %s1525, 1
      loop: start=0, step=1, limit=1
      $region186: #{encoder2_forward.1} parent=184 // loop_pre_header
        _
      $region187: #{encoder2_forward.1} parent=184 // loop_header
        %s1528 = sphi 0, %s1532
        %p1529 = scmp.ge.s32.totalorder %s1528, 1
        %s1533 = sphi %s6, %s6
        %s1534 = sphi [#allocation7], [#allocation7]
      $region188: #{encoder2_forward.1} parent=184 // loop_header_branch
        %1531 = sbr.rel (%p1529) target = $region192
      $region189: #{encoder2_forward.1} parent=184 // loop_body
        %v1535 = vld [vmem:[%s1533] sm:%s1526]
        %1536 = vst [vmem:[%s1534] sm:%s1526] %v1535
      $region190: #{encoder2_forward.1} parent=184 // loop_footer
        %s1532 = sadd.s32 1, %s1528
      $region191: #{encoder2_forward.1} parent=184 // loop_footer_branch
        %1527 = sbr.rel target = $region187
      $region192: #{encoder2_forward.1} parent=184 // loop_exit
        _
    $region185: #{encoder2_forward.1} parent=36 // pred_fallthru
      _
    // Predicated region
    $region208: #{encoder2_forward.1} parent=36 // pred_check
      _
    $region209: #{encoder2_forward.1} parent=36 // pred_check_branch
      %2036 = sbr.rel (0) target = $region211
    $region210: #{encoder2_forward.1} parent=36 // pred_region
      %2037 = vsyncadd %s1516, 30720
    $region211: #{encoder2_forward.1} parent=36 // pred_fallthru
      _
    %s2038 = scalar_lea.sflag [#allocation9], 6
    %p2040 = scmp.lt.u32.totalorder 192, 8
    %p2041 = pneg %p2040
    // Predicated region
    $region212: #{encoder2_forward.1} parent=36 // pred_check
      _
    $region213: #{encoder2_forward.1} parent=36 // pred_check_branch
      %2043 = sbr.rel (%p2040) target = $region215
    $region214: #{encoder2_forward.1} parent=36 // pred_region
      %s2059 = sand.u32 192, 7
      %p2060 = scmp.eq.s32.totalorder %s2059, 0
      // Predicated region
      $region227: #{encoder2_forward.1} parent=214 // pred_check
        %p2061 = pneg %p2060
      $region228: #{encoder2_forward.1} parent=214 // pred_check_branch
        %2063 = sbr.rel (%p2061) target = $region230
      $region229: #{encoder2_forward.1} parent=214 // pred_region
        loop: start=0, step=1, limit=1
        $region231: #{encoder2_forward.1} parent=229 // loop_pre_header
          _
        $region232: #{encoder2_forward.1} parent=229 // loop_header
          %s2065 = sphi 0, %s2069
          %p2066 = scmp.ge.s32.totalorder %s2065, 1
          %s2070 = sphi %s7, %s7
          %s2071 = sphi [#allocation8], [#allocation8]
        $region233: #{encoder2_forward.1} parent=229 // loop_header_branch
          %2068 = sbr.rel (%p2066) target = $region237
        $region234: #{encoder2_forward.1} parent=229 // loop_body
          %v2072 = vld [vmem:[%s2070] sm:$0xff]
          %2073 = vst [vmem:[%s2071] sm:$0xff] %v2072
          %v2074 = vld [vmem:[%s2070 + $0x8] sm:$0xff]
          %2075 = vst [vmem:[%s2071 + $0x8] sm:$0xff] %v2074
          %v2076 = vld [vmem:[%s2070 + $0x10] sm:$0xff]
          %2077 = vst [vmem:[%s2071 + $0x10] sm:$0xff] %v2076
          %v2078 = vld [vmem:[%s2070 + $0x18] sm:$0xff]
          %2079 = vst [vmem:[%s2071 + $0x18] sm:$0xff] %v2078
          %v2080 = vld [vmem:[%s2070 + $0x20] sm:$0xff]
          %2081 = vst [vmem:[%s2071 + $0x20] sm:$0xff] %v2080
          %v2082 = vld [vmem:[%s2070 + $0x28] sm:$0xff]
          %2083 = vst [vmem:[%s2071 + $0x28] sm:$0xff] %v2082
          %v2084 = vld [vmem:[%s2070 + $0x30] sm:$0xff]
          %2085 = vst [vmem:[%s2071 + $0x30] sm:$0xff] %v2084
          %v2086 = vld [vmem:[%s2070 + $0x38] sm:$0xff]
          %2087 = vst [vmem:[%s2071 + $0x38] sm:$0xff] %v2086
          %v2088 = vld [vmem:[%s2070 + $0x40] sm:$0xff]
          %2089 = vst [vmem:[%s2071 + $0x40] sm:$0xff] %v2088
          %v2090 = vld [vmem:[%s2070 + $0x48] sm:$0xff]
          %2091 = vst [vmem:[%s2071 + $0x48] sm:$0xff] %v2090
          %v2092 = vld [vmem:[%s2070 + $0x50] sm:$0xff]
          %2093 = vst [vmem:[%s2071 + $0x50] sm:$0xff] %v2092
          %v2094 = vld [vmem:[%s2070 + $0x58] sm:$0xff]
          %2095 = vst [vmem:[%s2071 + $0x58] sm:$0xff] %v2094
          %v2096 = vld [vmem:[%s2070 + $0x60] sm:$0xff]
          %2097 = vst [vmem:[%s2071 + $0x60] sm:$0xff] %v2096
          %v2098 = vld [vmem:[%s2070 + $0x68] sm:$0xff]
          %2099 = vst [vmem:[%s2071 + $0x68] sm:$0xff] %v2098
          %v2100 = vld [vmem:[%s2070 + $0x70] sm:$0xff]
          %2101 = vst [vmem:[%s2071 + $0x70] sm:$0xff] %v2100
          %v2102 = vld [vmem:[%s2070 + $0x78] sm:$0xff]
          %2103 = vst [vmem:[%s2071 + $0x78] sm:$0xff] %v2102
          %v2104 = vld [vmem:[%s2070 + $0x80] sm:$0xff]
          %2105 = vst [vmem:[%s2071 + $0x80] sm:$0xff] %v2104
          %v2106 = vld [vmem:[%s2070 + $0x88] sm:$0xff]
          %2107 = vst [vmem:[%s2071 + $0x88] sm:$0xff] %v2106
          %v2108 = vld [vmem:[%s2070 + $0x90] sm:$0xff]
          %2109 = vst [vmem:[%s2071 + $0x90] sm:$0xff] %v2108
          %v2110 = vld [vmem:[%s2070 + $0x98] sm:$0xff]
          %2111 = vst [vmem:[%s2071 + $0x98] sm:$0xff] %v2110
          %v2112 = vld [vmem:[%s2070 + $0xa0] sm:$0xff]
          %2113 = vst [vmem:[%s2071 + $0xa0] sm:$0xff] %v2112
          %v2114 = vld [vmem:[%s2070 + $0xa8] sm:$0xff]
          %2115 = vst [vmem:[%s2071 + $0xa8] sm:$0xff] %v2114
          %v2116 = vld [vmem:[%s2070 + $0xb0] sm:$0xff]
          %2117 = vst [vmem:[%s2071 + $0xb0] sm:$0xff] %v2116
          %v2118 = vld [vmem:[%s2070 + $0xb8] sm:$0xff]
          %2119 = vst [vmem:[%s2071 + $0xb8] sm:$0xff] %v2118
        $region235: #{encoder2_forward.1} parent=229 // loop_footer
          %s2069 = sadd.s32 1, %s2065
        $region236: #{encoder2_forward.1} parent=229 // loop_footer_branch
          %2064 = sbr.rel target = $region232
        $region237: #{encoder2_forward.1} parent=229 // loop_exit
          _
      $region230: #{encoder2_forward.1} parent=214 // pred_fallthru
        _
      %p2120 = pneg %p2060
      // Predicated region
      $region238: #{encoder2_forward.1} parent=214 // pred_check
        _
      $region239: #{encoder2_forward.1} parent=214 // pred_check_branch
        %2122 = sbr.rel (%p2060) target = $region241
      $region240: #{encoder2_forward.1} parent=214 // pred_region
        %s2123 = sand.u32 192, 7
      $region241: #{encoder2_forward.1} parent=214 // pred_fallthru
        _
    $region215: #{encoder2_forward.1} parent=36 // pred_fallthru
      _
    // Predicated region
    $region216: #{encoder2_forward.1} parent=36 // pred_check
      %p2044 = pneg %p2040
    $region217: #{encoder2_forward.1} parent=36 // pred_check_branch
      %2046 = sbr.rel (%p2044) target = $region219
    $region218: #{encoder2_forward.1} parent=36 // pred_region
      %s2047 = sshll.u32 1, 192
      %s2048 = ssub.s32 %s2047, 1
      loop: start=0, step=1, limit=1
      $region220: #{encoder2_forward.1} parent=218 // loop_pre_header
        _
      $region221: #{encoder2_forward.1} parent=218 // loop_header
        %s2050 = sphi 0, %s2054
        %p2051 = scmp.ge.s32.totalorder %s2050, 1
        %s2055 = sphi %s7, %s7
        %s2056 = sphi [#allocation8], [#allocation8]
      $region222: #{encoder2_forward.1} parent=218 // loop_header_branch
        %2053 = sbr.rel (%p2051) target = $region226
      $region223: #{encoder2_forward.1} parent=218 // loop_body
        %v2057 = vld [vmem:[%s2055] sm:%s2048]
        %2058 = vst [vmem:[%s2056] sm:%s2048] %v2057
      $region224: #{encoder2_forward.1} parent=218 // loop_footer
        %s2054 = sadd.s32 1, %s2050
      $region225: #{encoder2_forward.1} parent=218 // loop_footer_branch
        %2049 = sbr.rel target = $region221
      $region226: #{encoder2_forward.1} parent=218 // loop_exit
        _
    $region219: #{encoder2_forward.1} parent=36 // pred_fallthru
      _
    // Predicated region
    $region242: #{encoder2_forward.1} parent=36 // pred_check
      _
    $region243: #{encoder2_forward.1} parent=36 // pred_check_branch
      %2126 = sbr.rel (0) target = $region245
    $region244: #{encoder2_forward.1} parent=36 // pred_region
      %2127 = vsyncadd %s2038, 3072
    $region245: #{encoder2_forward.1} parent=36 // pred_fallthru
      _
  $region37: #{encoder2_forward.1} parent=0 // pred_fallthru
    _
  %v2128 = vld [vmem:[%s0] sm:$0xff]
  %v2129 = vld [vmem:[%s0 + $0x8] sm:$0xff]
  // Predicated region
  $region246: #{encoder2_forward.1} parent=0 // pred_check
    %p2130 = pneg %p37
  $region247: #{encoder2_forward.1} parent=0 // pred_check_branch
    %2132 = sbr.rel (%p2130) target = $region249
  $region248: #{encoder2_forward.1} parent=0 // pred_region
    %s2133 = smul.u32 2, 16
    %s2134 = smul.u32 %s2133, 2
    %s2135 = sshll.u32 %s2134, 4
    %2136 = dma.done [#allocation9], %s2135
  $region249: #{encoder2_forward.1} parent=0 // pred_fallthru
    _
  %v2137 = vld [vmem:[#allocation2] sm:$0xff]
  %v2138 = vld [vmem:[#allocation2 + $0x8] sm:$0xff]
  %v2139 = vld [vmem:[#allocation2 + $0x10] sm:$0xff]
  %v2140 = vld [vmem:[#allocation2 + $0x18] sm:$0xff]
  %v2141 = vld [vmem:[#allocation2 + $0x20] sm:$0xff]
  %v2142 = vld [vmem:[#allocation2 + $0x28] sm:$0xff]
  %v2143 = vld [vmem:[#allocation2 + $0x30] sm:$0xff]
  %v2144 = vld [vmem:[#allocation2 + $0x38] sm:$0xff]
  %v2145 = vunpack.c.l.s8.bf16 %v2137
  %v2146 = vunpack.c.l.s8.bf16 %v2138
  %v2147 = vunpack.c.h.s8.bf16 %v2137
  %v2148 = vunpack.c.h.s8.bf16 %v2138
  %v2149 = vunpack.c.l.s8.bf16 %v2139
  %v2150 = vunpack.c.l.s8.bf16 %v2140
  %v2151 = vunpack.c.h.s8.bf16 %v2139
  %v2152 = vunpack.c.h.s8.bf16 %v2140
  %v2153 = vunpack.c.l.s8.bf16 %v2141
  %v2154 = vunpack.c.l.s8.bf16 %v2142
  %v2155 = vunpack.c.h.s8.bf16 %v2141
  %v2156 = vunpack.c.h.s8.bf16 %v2142
  %v2157 = vunpack.c.l.s8.bf16 %v2143
  %v2158 = vunpack.c.l.s8.bf16 %v2144
  %v2159 = vunpack.c.h.s8.bf16 %v2143
  %v2160 = vunpack.c.h.s8.bf16 %v2144
  %v2161 = vpack.c.bf16 %v2129, %v2128
  %2162 = vmatprep.subr.bf16.mxu0 %v2160
  %2163 = vmatpush1.bf16.msra.mxu0 %v2159
  %2164 = vmatprep.subr.bf16.mxu0 %v2158
  %2165 = vmatpush1.bf16.msra.mxu0 %v2157
  %2166 = vmatprep.subr.bf16.mxu0 %v2156
  %2167 = vmatpush1.bf16.msra.mxu0 %v2155
  %2168 = vmatprep.subr.bf16.mxu0 %v2154
  %2169 = vmatpush1.bf16.msra.mxu0 %v2153
  %2170 = vmatprep.subr.bf16.mxu0 %v2152
  %2171 = vmatpush1.bf16.msra.mxu0 %v2151
  %2172 = vmatprep.subr.bf16.mxu0 %v2150
  %2173 = vmatpush1.bf16.msra.mxu0 %v2149
  %2174 = vmatprep.subr.bf16.mxu0 %v2148
  %2175 = vmatpush1.bf16.msra.mxu0 %v2147
  %2176 = vmatprep.subr.bf16.mxu0 %v2146
  %2177 = vmatpush1.bf16.msra.mxu0 %v2145
  %2178 = vmatprep.subr.bf16.mxu0 0
  %2179 = vmatpush2.bf16.msra.mxu0 0
  %2180 = vmatprep.subr.bf16.mxu0 0
  %2181 = vmatpush2.bf16.msra.mxu0 0
  %2182 = vmatprep.subr.bf16.mxu0 0
  %2183 = vmatpush2.bf16.msra.mxu0 0
  %2184 = vmatprep.subr.bf16.mxu0 0
  %2185 = vmatpush2.bf16.msra.mxu0 0
  %2186 = vmatprep.subr.bf16.mxu0 0
  %2187 = vmatpush2.bf16.msra.mxu0 0
  %2188 = vmatprep.subr.bf16.mxu0 0
  %2189 = vmatpush2.bf16.msra.mxu0 0
  %2190 = vmatprep.subr.bf16.mxu0 0
  %2191 = vmatpush2.bf16.msra.mxu0 0
  %2192 = vmatprep.subr.bf16.mxu0 0
  %2193 = vmatpush2.bf16.msra.mxu0 0
  %2194 = vmatprep.mubr.bf16.mxu0 0
  %2195 = vmatmul.mubr.bf16.gmra.mxu0 %v2161
  %v2196 = vpop.f32.mrf.mxu0
  %v2197 = vadd.f32 0.0, %v2196
  %v2198 = vpop.f32.mrf.mxu0
  %v2199 = vadd.f32 0.0, %v2198
  %v2200 = vpop.f32.mrf.mxu0
  %v2201 = vadd.f32 0.0, %v2200
  %v2202 = vpop.f32.mrf.mxu0
  %v2203 = vadd.f32 0.0, %v2202
  %2204 = vdwg.mxu0
  %v2205 = vld [vmem:[%s8] ss:$2 sm:$0x3]
  %s2206 = scalar_lea.vmem %s8, 1
  %v2207 = vld [vmem:[%s2206] ss:$2 sm:$0x3]
  %v2209 = vlaneseq
  %v2210 = vshrl.u32 %v2209, 7
  %v2211 = vsub.s32 0, %v2210
  %v2212 = vrot.slane %v2205, %v2211
  %v2213 = vlaneseq
  %v2214 = vshrl.u32 %v2213, 7
  %v2215 = vsub.s32 1, %v2214
  %v2216 = vrot.slane %v2205, %v2215
  %v2219 = vmul.f32 %v2197, %v2212
  %v2220 = vmul.f32 %v2199, %v2216
  %v2221 = vmul.f32 %v2201, %v2212
  %v2222 = vmul.f32 %v2203, %v2216
  %v2224 = vlaneseq
  %v2225 = vshrl.u32 %v2224, 7
  %v2226 = vsub.s32 0, %v2225
  %v2227 = vrot.slane %v2207, %v2226
  %v2228 = vlaneseq
  %v2229 = vshrl.u32 %v2228, 7
  %v2230 = vsub.s32 1, %v2229
  %v2231 = vrot.slane %v2207, %v2230
  %v2234 = vadd.f32 %v2219, %v2227
  %v2235 = vadd.f32 %v2220, %v2231
  %v2236 = vadd.f32 %v2221, %v2227
  %v2237 = vadd.f32 %v2222, %v2231
  %v2238 = vxor.u32 %v2234, 2147483648
  %v2239 = vxor.u32 %v2235, 2147483648
  %v2240 = vxor.u32 %v2236, 2147483648
  %v2241 = vxor.u32 %v2237, 2147483648
  %v2242 = vmul.f32 %v2238, 1.442695
  %v2243 = vpow.pop %v2242
  %v2244 = vmul.f32 %v2239, 1.442695
  %v2245 = vpow.pop %v2244
  %v2246 = vmul.f32 %v2240, 1.442695
  %v2247 = vpow.pop %v2246
  %v2248 = vmul.f32 %v2241, 1.442695
  %v2249 = vpow.pop %v2248
  %v2250 = vadd.f32 %v2243, 1.0
  %v2251 = vadd.f32 %v2245, 1.0
  %v2252 = vadd.f32 %v2247, 1.0
  %v2253 = vadd.f32 %v2249, 1.0
  %v2254 = vrcp.pop %v2250
  %v2255 = vmul.f32 1.0, %v2254
  %v2256 = vrcp.pop %v2251
  %v2257 = vmul.f32 1.0, %v2256
  %v2258 = vrcp.pop %v2252
  %v2259 = vmul.f32 1.0, %v2258
  %v2260 = vrcp.pop %v2253
  %v2261 = vmul.f32 1.0, %v2260
  %v2262 = vmul.f32 %v2234, %v2255
  %v2263 = vmul.f32 %v2235, %v2257
  %v2264 = vmul.f32 %v2236, %v2259
  %v2265 = vmul.f32 %v2237, %v2261
  // Predicated region
  $region250: #{encoder2_forward.1} parent=0 // pred_check
    %p2266 = pneg %p37
  $region251: #{encoder2_forward.1} parent=0 // pred_check_branch
    %2268 = sbr.rel (%p2266) target = $region253
  $region252: #{encoder2_forward.1} parent=0 // pred_region
    %s2269 = scalar_lea.sflag [#allocation9], 1
    %s2270 = smul.u32 2, 96
    %s2271 = smul.u32 %s2270, 4
    %s2272 = sshll.u32 %s2271, 4
    %2273 = dma.done %s2269, %s2272
  $region253: #{encoder2_forward.1} parent=0 // pred_fallthru
    _
  %v2274 = vld [vmem:[#allocation3] sm:$0xff]
  %v2275 = vld [vmem:[#allocation3 + $0x8] sm:$0xff]
  %v2276 = vld [vmem:[#allocation3 + $0x10] sm:$0xff]
  %v2277 = vld [vmem:[#allocation3 + $0x18] sm:$0xff]
  %v2278 = vld [vmem:[#allocation3 + $0x20] sm:$0xff]
  %v2279 = vld [vmem:[#allocation3 + $0x28] sm:$0xff]
  %v2280 = vld [vmem:[#allocation3 + $0x30] sm:$0xff]
  %v2281 = vld [vmem:[#allocation3 + $0x38] sm:$0xff]
  %v2282 = vld [vmem:[#allocation3 + $0x40] sm:$0xff]
  %v2283 = vld [vmem:[#allocation3 + $0x48] sm:$0xff]
  %v2284 = vld [vmem:[#allocation3 + $0x50] sm:$0xff]
  %v2285 = vld [vmem:[#allocation3 + $0x58] sm:$0xff]
  %v2286 = vld [vmem:[#allocation3 + $0x60] sm:$0xff]
  %v2287 = vld [vmem:[#allocation3 + $0x68] sm:$0xff]
  %v2288 = vld [vmem:[#allocation3 + $0x70] sm:$0xff]
  %v2289 = vld [vmem:[#allocation3 + $0x78] sm:$0xff]
  %v2290 = vld [vmem:[#allocation3 + $0x80] sm:$0xff]
  %v2291 = vld [vmem:[#allocation3 + $0x88] sm:$0xff]
  %v2292 = vld [vmem:[#allocation3 + $0x90] sm:$0xff]
  %v2293 = vld [vmem:[#allocation3 + $0x98] sm:$0xff]
  %v2294 = vld [vmem:[#allocation3 + $0xa0] sm:$0xff]
  %v2295 = vld [vmem:[#allocation3 + $0xa8] sm:$0xff]
  %v2296 = vld [vmem:[#allocation3 + $0xb0] sm:$0xff]
  %v2297 = vld [vmem:[#allocation3 + $0xb8] sm:$0xff]
  %v2298 = vld [vmem:[#allocation3 + $0xc0] sm:$0xff]
  %v2299 = vld [vmem:[#allocation3 + $0xc8] sm:$0xff]
  %v2300 = vld [vmem:[#allocation3 + $0xd0] sm:$0xff]
  %v2301 = vld [vmem:[#allocation3 + $0xd8] sm:$0xff]
  %v2302 = vld [vmem:[#allocation3 + $0xe0] sm:$0xff]
  %v2303 = vld [vmem:[#allocation3 + $0xe8] sm:$0xff]
  %v2304 = vld [vmem:[#allocation3 + $0xf0] sm:$0xff]
  %v2305 = vld [vmem:[#allocation3 + $0xf8] sm:$0xff]
  %v2306 = vld [vmem:[#allocation3 + $0x100] sm:$0xff]
  %v2307 = vld [vmem:[#allocation3 + $0x108] sm:$0xff]
  %v2308 = vld [vmem:[#allocation3 + $0x110] sm:$0xff]
  %v2309 = vld [vmem:[#allocation3 + $0x118] sm:$0xff]
  %v2310 = vld [vmem:[#allocation3 + $0x120] sm:$0xff]
  %v2311 = vld [vmem:[#allocation3 + $0x128] sm:$0xff]
  %v2312 = vld [vmem:[#allocation3 + $0x130] sm:$0xff]
  %v2313 = vld [vmem:[#allocation3 + $0x138] sm:$0xff]
  %v2314 = vld [vmem:[#allocation3 + $0x140] sm:$0xff]
  %v2315 = vld [vmem:[#allocation3 + $0x148] sm:$0xff]
  %v2316 = vld [vmem:[#allocation3 + $0x150] sm:$0xff]
  %v2317 = vld [vmem:[#allocation3 + $0x158] sm:$0xff]
  %v2318 = vld [vmem:[#allocation3 + $0x160] sm:$0xff]
  %v2319 = vld [vmem:[#allocation3 + $0x168] sm:$0xff]
  %v2320 = vld [vmem:[#allocation3 + $0x170] sm:$0xff]
  %v2321 = vld [vmem:[#allocation3 + $0x178] sm:$0xff]
  %v2322 = vld [vmem:[#allocation3 + $0x180] sm:$0xff]
  %v2323 = vld [vmem:[#allocation3 + $0x188] sm:$0xff]
  %v2324 = vld [vmem:[#allocation3 + $0x190] sm:$0xff]
  %v2325 = vld [vmem:[#allocation3 + $0x198] sm:$0xff]
  %v2326 = vld [vmem:[#allocation3 + $0x1a0] sm:$0xff]
  %v2327 = vld [vmem:[#allocation3 + $0x1a8] sm:$0xff]
  %v2328 = vld [vmem:[#allocation3 + $0x1b0] sm:$0xff]
  %v2329 = vld [vmem:[#allocation3 + $0x1b8] sm:$0xff]
  %v2330 = vld [vmem:[#allocation3 + $0x1c0] sm:$0xff]
  %v2331 = vld [vmem:[#allocation3 + $0x1c8] sm:$0xff]
  %v2332 = vld [vmem:[#allocation3 + $0x1d0] sm:$0xff]
  %v2333 = vld [vmem:[#allocation3 + $0x1d8] sm:$0xff]
  %v2334 = vld [vmem:[#allocation3 + $0x1e0] sm:$0xff]
  %v2335 = vld [vmem:[#allocation3 + $0x1e8] sm:$0xff]
  %v2336 = vld [vmem:[#allocation3 + $0x1f0] sm:$0xff]
  %v2337 = vld [vmem:[#allocation3 + $0x1f8] sm:$0xff]
  %v2338 = vld [vmem:[#allocation3 + $0x200] sm:$0xff]
  %v2339 = vld [vmem:[#allocation3 + $0x208] sm:$0xff]
  %v2340 = vld [vmem:[#allocation3 + $0x210] sm:$0xff]
  %v2341 = vld [vmem:[#allocation3 + $0x218] sm:$0xff]
  %v2342 = vld [vmem:[#allocation3 + $0x220] sm:$0xff]
  %v2343 = vld [vmem:[#allocation3 + $0x228] sm:$0xff]
  %v2344 = vld [vmem:[#allocation3 + $0x230] sm:$0xff]
  %v2345 = vld [vmem:[#allocation3 + $0x238] sm:$0xff]
  %v2346 = vld [vmem:[#allocation3 + $0x240] sm:$0xff]
  %v2347 = vld [vmem:[#allocation3 + $0x248] sm:$0xff]
  %v2348 = vld [vmem:[#allocation3 + $0x250] sm:$0xff]
  %v2349 = vld [vmem:[#allocation3 + $0x258] sm:$0xff]
  %v2350 = vld [vmem:[#allocation3 + $0x260] sm:$0xff]
  %v2351 = vld [vmem:[#allocation3 + $0x268] sm:$0xff]
  %v2352 = vld [vmem:[#allocation3 + $0x270] sm:$0xff]
  %v2353 = vld [vmem:[#allocation3 + $0x278] sm:$0xff]
  %v2354 = vld [vmem:[#allocation3 + $0x280] sm:$0xff]
  %v2355 = vld [vmem:[#allocation3 + $0x288] sm:$0xff]
  %v2356 = vld [vmem:[#allocation3 + $0x290] sm:$0xff]
  %v2357 = vld [vmem:[#allocation3 + $0x298] sm:$0xff]
  %v2358 = vld [vmem:[#allocation3 + $0x2a0] sm:$0xff]
  %v2359 = vld [vmem:[#allocation3 + $0x2a8] sm:$0xff]
  %v2360 = vld [vmem:[#allocation3 + $0x2b0] sm:$0xff]
  %v2361 = vld [vmem:[#allocation3 + $0x2b8] sm:$0xff]
  %v2362 = vld [vmem:[#allocation3 + $0x2c0] sm:$0xff]
  %v2363 = vld [vmem:[#allocation3 + $0x2c8] sm:$0xff]
  %v2364 = vld [vmem:[#allocation3 + $0x2d0] sm:$0xff]
  %v2365 = vld [vmem:[#allocation3 + $0x2d8] sm:$0xff]
  %v2366 = vld [vmem:[#allocation3 + $0x2e0] sm:$0xff]
  %v2367 = vld [vmem:[#allocation3 + $0x2e8] sm:$0xff]
  %v2368 = vld [vmem:[#allocation3 + $0x2f0] sm:$0xff]
  %v2369 = vld [vmem:[#allocation3 + $0x2f8] sm:$0xff]
  %v2370 = vunpack.c.l.s8.bf16 %v2274
  %v2371 = vunpack.c.l.s8.bf16 %v2275
  %v2372 = vunpack.c.l.s8.bf16 %v2276
  %v2373 = vunpack.c.l.s8.bf16 %v2277
  %v2374 = vunpack.c.h.s8.bf16 %v2274
  %v2375 = vunpack.c.h.s8.bf16 %v2275
  %v2376 = vunpack.c.h.s8.bf16 %v2276
  %v2377 = vunpack.c.h.s8.bf16 %v2277
  %v2378 = vunpack.c.l.s8.bf16 %v2278
  %v2379 = vunpack.c.l.s8.bf16 %v2279
  %v2380 = vunpack.c.l.s8.bf16 %v2280
  %v2381 = vunpack.c.l.s8.bf16 %v2281
  %v2382 = vunpack.c.h.s8.bf16 %v2278
  %v2383 = vunpack.c.h.s8.bf16 %v2279
  %v2384 = vunpack.c.h.s8.bf16 %v2280
  %v2385 = vunpack.c.h.s8.bf16 %v2281
  %v2386 = vunpack.c.l.s8.bf16 %v2282
  %v2387 = vunpack.c.l.s8.bf16 %v2283
  %v2388 = vunpack.c.l.s8.bf16 %v2284
  %v2389 = vunpack.c.l.s8.bf16 %v2285
  %v2390 = vunpack.c.h.s8.bf16 %v2282
  %v2391 = vunpack.c.h.s8.bf16 %v2283
  %v2392 = vunpack.c.h.s8.bf16 %v2284
  %v2393 = vunpack.c.h.s8.bf16 %v2285
  %v2394 = vunpack.c.l.s8.bf16 %v2286
  %v2395 = vunpack.c.l.s8.bf16 %v2287
  %v2396 = vunpack.c.l.s8.bf16 %v2288
  %v2397 = vunpack.c.l.s8.bf16 %v2289
  %v2398 = vunpack.c.h.s8.bf16 %v2286
  %v2399 = vunpack.c.h.s8.bf16 %v2287
  %v2400 = vunpack.c.h.s8.bf16 %v2288
  %v2401 = vunpack.c.h.s8.bf16 %v2289
  %v2402 = vunpack.c.l.s8.bf16 %v2290
  %v2403 = vunpack.c.l.s8.bf16 %v2291
  %v2404 = vunpack.c.l.s8.bf16 %v2292
  %v2405 = vunpack.c.l.s8.bf16 %v2293
  %v2406 = vunpack.c.h.s8.bf16 %v2290
  %v2407 = vunpack.c.h.s8.bf16 %v2291
  %v2408 = vunpack.c.h.s8.bf16 %v2292
  %v2409 = vunpack.c.h.s8.bf16 %v2293
  %v2410 = vunpack.c.l.s8.bf16 %v2294
  %v2411 = vunpack.c.l.s8.bf16 %v2295
  %v2412 = vunpack.c.l.s8.bf16 %v2296
  %v2413 = vunpack.c.l.s8.bf16 %v2297
  %v2414 = vunpack.c.h.s8.bf16 %v2294
  %v2415 = vunpack.c.h.s8.bf16 %v2295
  %v2416 = vunpack.c.h.s8.bf16 %v2296
  %v2417 = vunpack.c.h.s8.bf16 %v2297
  %v2418 = vunpack.c.l.s8.bf16 %v2298
  %v2419 = vunpack.c.l.s8.bf16 %v2299
  %v2420 = vunpack.c.l.s8.bf16 %v2300
  %v2421 = vunpack.c.l.s8.bf16 %v2301
  %v2422 = vunpack.c.h.s8.bf16 %v2298
  %v2423 = vunpack.c.h.s8.bf16 %v2299
  %v2424 = vunpack.c.h.s8.bf16 %v2300
  %v2425 = vunpack.c.h.s8.bf16 %v2301
  %v2426 = vunpack.c.l.s8.bf16 %v2302
  %v2427 = vunpack.c.l.s8.bf16 %v2303
  %v2428 = vunpack.c.l.s8.bf16 %v2304
  %v2429 = vunpack.c.l.s8.bf16 %v2305
  %v2430 = vunpack.c.h.s8.bf16 %v2302
  %v2431 = vunpack.c.h.s8.bf16 %v2303
  %v2432 = vunpack.c.h.s8.bf16 %v2304
  %v2433 = vunpack.c.h.s8.bf16 %v2305
  %v2434 = vunpack.c.l.s8.bf16 %v2306
  %v2435 = vunpack.c.l.s8.bf16 %v2307
  %v2436 = vunpack.c.l.s8.bf16 %v2308
  %v2437 = vunpack.c.l.s8.bf16 %v2309
  %v2438 = vunpack.c.h.s8.bf16 %v2306
  %v2439 = vunpack.c.h.s8.bf16 %v2307
  %v2440 = vunpack.c.h.s8.bf16 %v2308
  %v2441 = vunpack.c.h.s8.bf16 %v2309
  %v2442 = vunpack.c.l.s8.bf16 %v2310
  %v2443 = vunpack.c.l.s8.bf16 %v2311
  %v2444 = vunpack.c.l.s8.bf16 %v2312
  %v2445 = vunpack.c.l.s8.bf16 %v2313
  %v2446 = vunpack.c.h.s8.bf16 %v2310
  %v2447 = vunpack.c.h.s8.bf16 %v2311
  %v2448 = vunpack.c.h.s8.bf16 %v2312
  %v2449 = vunpack.c.h.s8.bf16 %v2313
  %v2450 = vunpack.c.l.s8.bf16 %v2314
  %v2451 = vunpack.c.l.s8.bf16 %v2315
  %v2452 = vunpack.c.l.s8.bf16 %v2316
  %v2453 = vunpack.c.l.s8.bf16 %v2317
  %v2454 = vunpack.c.h.s8.bf16 %v2314
  %v2455 = vunpack.c.h.s8.bf16 %v2315
  %v2456 = vunpack.c.h.s8.bf16 %v2316
  %v2457 = vunpack.c.h.s8.bf16 %v2317
  %v2458 = vunpack.c.l.s8.bf16 %v2318
  %v2459 = vunpack.c.l.s8.bf16 %v2319
  %v2460 = vunpack.c.l.s8.bf16 %v2320
  %v2461 = vunpack.c.l.s8.bf16 %v2321
  %v2462 = vunpack.c.h.s8.bf16 %v2318
  %v2463 = vunpack.c.h.s8.bf16 %v2319
  %v2464 = vunpack.c.h.s8.bf16 %v2320
  %v2465 = vunpack.c.h.s8.bf16 %v2321
  %v2466 = vunpack.c.l.s8.bf16 %v2322
  %v2467 = vunpack.c.l.s8.bf16 %v2323
  %v2468 = vunpack.c.l.s8.bf16 %v2324
  %v2469 = vunpack.c.l.s8.bf16 %v2325
  %v2470 = vunpack.c.h.s8.bf16 %v2322
  %v2471 = vunpack.c.h.s8.bf16 %v2323
  %v2472 = vunpack.c.h.s8.bf16 %v2324
  %v2473 = vunpack.c.h.s8.bf16 %v2325
  %v2474 = vunpack.c.l.s8.bf16 %v2326
  %v2475 = vunpack.c.l.s8.bf16 %v2327
  %v2476 = vunpack.c.l.s8.bf16 %v2328
  %v2477 = vunpack.c.l.s8.bf16 %v2329
  %v2478 = vunpack.c.h.s8.bf16 %v2326
  %v2479 = vunpack.c.h.s8.bf16 %v2327
  %v2480 = vunpack.c.h.s8.bf16 %v2328
  %v2481 = vunpack.c.h.s8.bf16 %v2329
  %v2482 = vunpack.c.l.s8.bf16 %v2330
  %v2483 = vunpack.c.l.s8.bf16 %v2331
  %v2484 = vunpack.c.l.s8.bf16 %v2332
  %v2485 = vunpack.c.l.s8.bf16 %v2333
  %v2486 = vunpack.c.h.s8.bf16 %v2330
  %v2487 = vunpack.c.h.s8.bf16 %v2331
  %v2488 = vunpack.c.h.s8.bf16 %v2332
  %v2489 = vunpack.c.h.s8.bf16 %v2333
  %v2490 = vunpack.c.l.s8.bf16 %v2334
  %v2491 = vunpack.c.l.s8.bf16 %v2335
  %v2492 = vunpack.c.l.s8.bf16 %v2336
  %v2493 = vunpack.c.l.s8.bf16 %v2337
  %v2494 = vunpack.c.h.s8.bf16 %v2334
  %v2495 = vunpack.c.h.s8.bf16 %v2335
  %v2496 = vunpack.c.h.s8.bf16 %v2336
  %v2497 = vunpack.c.h.s8.bf16 %v2337
  %v2498 = vunpack.c.l.s8.bf16 %v2338
  %v2499 = vunpack.c.l.s8.bf16 %v2339
  %v2500 = vunpack.c.l.s8.bf16 %v2340
  %v2501 = vunpack.c.l.s8.bf16 %v2341
  %v2502 = vunpack.c.h.s8.bf16 %v2338
  %v2503 = vunpack.c.h.s8.bf16 %v2339
  %v2504 = vunpack.c.h.s8.bf16 %v2340
  %v2505 = vunpack.c.h.s8.bf16 %v2341
  %v2506 = vunpack.c.l.s8.bf16 %v2342
  %v2507 = vunpack.c.l.s8.bf16 %v2343
  %v2508 = vunpack.c.l.s8.bf16 %v2344
  %v2509 = vunpack.c.l.s8.bf16 %v2345
  %v2510 = vunpack.c.h.s8.bf16 %v2342
  %v2511 = vunpack.c.h.s8.bf16 %v2343
  %v2512 = vunpack.c.h.s8.bf16 %v2344
  %v2513 = vunpack.c.h.s8.bf16 %v2345
  %v2514 = vunpack.c.l.s8.bf16 %v2346
  %v2515 = vunpack.c.l.s8.bf16 %v2347
  %v2516 = vunpack.c.l.s8.bf16 %v2348
  %v2517 = vunpack.c.l.s8.bf16 %v2349
  %v2518 = vunpack.c.h.s8.bf16 %v2346
  %v2519 = vunpack.c.h.s8.bf16 %v2347
  %v2520 = vunpack.c.h.s8.bf16 %v2348
  %v2521 = vunpack.c.h.s8.bf16 %v2349
  %v2522 = vunpack.c.l.s8.bf16 %v2350
  %v2523 = vunpack.c.l.s8.bf16 %v2351
  %v2524 = vunpack.c.l.s8.bf16 %v2352
  %v2525 = vunpack.c.l.s8.bf16 %v2353
  %v2526 = vunpack.c.h.s8.bf16 %v2350
  %v2527 = vunpack.c.h.s8.bf16 %v2351
  %v2528 = vunpack.c.h.s8.bf16 %v2352
  %v2529 = vunpack.c.h.s8.bf16 %v2353
  %v2530 = vunpack.c.l.s8.bf16 %v2354
  %v2531 = vunpack.c.l.s8.bf16 %v2355
  %v2532 = vunpack.c.l.s8.bf16 %v2356
  %v2533 = vunpack.c.l.s8.bf16 %v2357
  %v2534 = vunpack.c.h.s8.bf16 %v2354
  %v2535 = vunpack.c.h.s8.bf16 %v2355
  %v2536 = vunpack.c.h.s8.bf16 %v2356
  %v2537 = vunpack.c.h.s8.bf16 %v2357
  %v2538 = vunpack.c.l.s8.bf16 %v2358
  %v2539 = vunpack.c.l.s8.bf16 %v2359
  %v2540 = vunpack.c.l.s8.bf16 %v2360
  %v2541 = vunpack.c.l.s8.bf16 %v2361
  %v2542 = vunpack.c.h.s8.bf16 %v2358
  %v2543 = vunpack.c.h.s8.bf16 %v2359
  %v2544 = vunpack.c.h.s8.bf16 %v2360
  %v2545 = vunpack.c.h.s8.bf16 %v2361
  %v2546 = vunpack.c.l.s8.bf16 %v2362
  %v2547 = vunpack.c.l.s8.bf16 %v2363
  %v2548 = vunpack.c.l.s8.bf16 %v2364
  %v2549 = vunpack.c.l.s8.bf16 %v2365
  %v2550 = vunpack.c.h.s8.bf16 %v2362
  %v2551 = vunpack.c.h.s8.bf16 %v2363
  %v2552 = vunpack.c.h.s8.bf16 %v2364
  %v2553 = vunpack.c.h.s8.bf16 %v2365
  %v2554 = vunpack.c.l.s8.bf16 %v2366
  %v2555 = vunpack.c.l.s8.bf16 %v2367
  %v2556 = vunpack.c.l.s8.bf16 %v2368
  %v2557 = vunpack.c.l.s8.bf16 %v2369
  %v2558 = vunpack.c.h.s8.bf16 %v2366
  %v2559 = vunpack.c.h.s8.bf16 %v2367
  %v2560 = vunpack.c.h.s8.bf16 %v2368
  %v2561 = vunpack.c.h.s8.bf16 %v2369
  %vm2566 = vcmask 1046528
  %v2567 = vrot.slane %v2262, 1
  %v2568 = vrot.slane %v2264, 1
  %v2569 = vsel %vm2566, %v2567, %v2568
  %v2570 = vrot.slane %v2263, 1
  %v2571 = vrot.slane %v2265, 1
  %v2572 = vsel %vm2566, %v2570, %v2571
  %v2579 = vsel %vm2566, %v2568, %v2567
  %v2580 = vsel %vm2566, %v2571, %v2570
  %vm2581 = vcmask 1045504
  %v2582 = vrot.slane %v2262, 2
  %v2583 = vrot.slane %v2264, 2
  %v2584 = vsel %vm2581, %v2582, %v2583
  %v2585 = vrot.slane %v2263, 2
  %v2586 = vrot.slane %v2265, 2
  %v2587 = vsel %vm2581, %v2585, %v2586
  %v2594 = vsel %vm2581, %v2583, %v2582
  %v2595 = vsel %vm2581, %v2586, %v2585
  %v2596 = vpack.c.bf16 %v2264, %v2262
  %v2597 = vpack.c.bf16 %v2265, %v2263
  %v2598 = vpack.c.bf16 %v2579, %v2569
  %v2599 = vpack.c.bf16 %v2580, %v2572
  %v2600 = vpack.c.bf16 %v2594, %v2584
  %v2601 = vpack.c.bf16 %v2595, %v2587
  %2602 = vmatprep.subr.bf16.mxu0 %v2399
  %2603 = vmatpush1.bf16.msra.mxu0 %v2398
  %2604 = vmatprep.subr.bf16.mxu0 %v2395
  %2605 = vmatpush1.bf16.msra.mxu0 %v2394
  %2606 = vmatprep.subr.bf16.mxu0 %v2391
  %2607 = vmatpush1.bf16.msra.mxu0 %v2390
  %2608 = vmatprep.subr.bf16.mxu0 %v2387
  %2609 = vmatpush1.bf16.msra.mxu0 %v2386
  %2610 = vmatprep.subr.bf16.mxu0 %v2383
  %2611 = vmatpush1.bf16.msra.mxu0 %v2382
  %2612 = vmatprep.subr.bf16.mxu0 %v2379
  %2613 = vmatpush1.bf16.msra.mxu0 %v2378
  %2614 = vmatprep.subr.bf16.mxu0 %v2375
  %2615 = vmatpush1.bf16.msra.mxu0 %v2374
  %2616 = vmatprep.subr.bf16.mxu0 %v2371
  %2617 = vmatpush1.bf16.msra.mxu0 %v2370
  %2618 = vmatprep.subr.bf16.mxu0 %v2431
  %2619 = vmatpush2.bf16.msra.mxu0 %v2430
  %2620 = vmatprep.subr.bf16.mxu0 %v2427
  %2621 = vmatpush2.bf16.msra.mxu0 %v2426
  %2622 = vmatprep.subr.bf16.mxu0 %v2423
  %2623 = vmatpush2.bf16.msra.mxu0 %v2422
  %2624 = vmatprep.subr.bf16.mxu0 %v2419
  %2625 = vmatpush2.bf16.msra.mxu0 %v2418
  %2626 = vmatprep.subr.bf16.mxu0 %v2415
  %2627 = vmatpush2.bf16.msra.mxu0 %v2414
  %2628 = vmatprep.subr.bf16.mxu0 %v2411
  %2629 = vmatpush2.bf16.msra.mxu0 %v2410
  %2630 = vmatprep.subr.bf16.mxu0 %v2407
  %2631 = vmatpush2.bf16.msra.mxu0 %v2406
  %2632 = vmatprep.subr.bf16.mxu0 %v2403
  %2633 = vmatpush2.bf16.msra.mxu0 %v2402
  %2634 = vmatprep.mubr.bf16.mxu0 %v2597
  %2635 = vmatmul.mubr.bf16.gmra.mxu0 %v2596
  %v2636 = vpop.f32.mrf.mxu0
  %v2637 = vadd.f32 0.0, %v2636
  %v2638 = vpop.f32.mrf.mxu0
  %v2639 = vadd.f32 0.0, %v2638
  %v2640 = vpop.f32.mrf.mxu0
  %v2641 = vadd.f32 0.0, %v2640
  %v2642 = vpop.f32.mrf.mxu0
  %v2643 = vadd.f32 0.0, %v2642
  %2644 = vdwg.mxu0
  %2645 = vmatprep.subr.bf16.mxu0 %v2463
  %2646 = vmatpush1.bf16.msra.mxu0 %v2462
  %2647 = vmatprep.subr.bf16.mxu0 %v2459
  %2648 = vmatpush1.bf16.msra.mxu0 %v2458
  %2649 = vmatprep.subr.bf16.mxu0 %v2455
  %2650 = vmatpush1.bf16.msra.mxu0 %v2454
  %2651 = vmatprep.subr.bf16.mxu0 %v2451
  %2652 = vmatpush1.bf16.msra.mxu0 %v2450
  %2653 = vmatprep.subr.bf16.mxu0 %v2447
  %2654 = vmatpush1.bf16.msra.mxu0 %v2446
  %2655 = vmatprep.subr.bf16.mxu0 %v2443
  %2656 = vmatpush1.bf16.msra.mxu0 %v2442
  %2657 = vmatprep.subr.bf16.mxu0 %v2439
  %2658 = vmatpush1.bf16.msra.mxu0 %v2438
  %2659 = vmatprep.subr.bf16.mxu0 %v2435
  %2660 = vmatpush1.bf16.msra.mxu0 %v2434
  %2661 = vmatprep.subr.bf16.mxu0 %v2495
  %2662 = vmatpush2.bf16.msra.mxu0 %v2494
  %2663 = vmatprep.subr.bf16.mxu0 %v2491
  %2664 = vmatpush2.bf16.msra.mxu0 %v2490
  %2665 = vmatprep.subr.bf16.mxu0 %v2487
  %2666 = vmatpush2.bf16.msra.mxu0 %v2486
  %2667 = vmatprep.subr.bf16.mxu0 %v2483
  %2668 = vmatpush2.bf16.msra.mxu0 %v2482
  %2669 = vmatprep.subr.bf16.mxu0 %v2479
  %2670 = vmatpush2.bf16.msra.mxu0 %v2478
  %2671 = vmatprep.subr.bf16.mxu0 %v2475
  %2672 = vmatpush2.bf16.msra.mxu0 %v2474
  %2673 = vmatprep.subr.bf16.mxu0 %v2471
  %2674 = vmatpush2.bf16.msra.mxu0 %v2470
  %2675 = vmatprep.subr.bf16.mxu0 %v2467
  %2676 = vmatpush2.bf16.msra.mxu0 %v2466
  %2677 = vmatprep.mubr.bf16.mxu0 %v2599
  %2678 = vmatmul.mubr.bf16.gmra.mxu0 %v2598
  %v2679 = vpop.f32.mrf.mxu0
  %v2680 = vadd.f32 %v2637, %v2679
  %v2681 = vpop.f32.mrf.mxu0
  %v2682 = vadd.f32 %v2639, %v2681
  %v2683 = vpop.f32.mrf.mxu0
  %v2684 = vadd.f32 %v2641, %v2683
  %v2685 = vpop.f32.mrf.mxu0
  %v2686 = vadd.f32 %v2643, %v2685
  %2687 = vdwg.mxu0
  %2688 = vmatprep.subr.bf16.mxu0 %v2527
  %2689 = vmatpush1.bf16.msra.mxu0 %v2526
  %2690 = vmatprep.subr.bf16.mxu0 %v2523
  %2691 = vmatpush1.bf16.msra.mxu0 %v2522
  %2692 = vmatprep.subr.bf16.mxu0 %v2519
  %2693 = vmatpush1.bf16.msra.mxu0 %v2518
  %2694 = vmatprep.subr.bf16.mxu0 %v2515
  %2695 = vmatpush1.bf16.msra.mxu0 %v2514
  %2696 = vmatprep.subr.bf16.mxu0 %v2511
  %2697 = vmatpush1.bf16.msra.mxu0 %v2510
  %2698 = vmatprep.subr.bf16.mxu0 %v2507
  %2699 = vmatpush1.bf16.msra.mxu0 %v2506
  %2700 = vmatprep.subr.bf16.mxu0 %v2503
  %2701 = vmatpush1.bf16.msra.mxu0 %v2502
  %2702 = vmatprep.subr.bf16.mxu0 %v2499
  %2703 = vmatpush1.bf16.msra.mxu0 %v2498
  %2704 = vmatprep.subr.bf16.mxu0 %v2559
  %2705 = vmatpush2.bf16.msra.mxu0 %v2558
  %2706 = vmatprep.subr.bf16.mxu0 %v2555
  %2707 = vmatpush2.bf16.msra.mxu0 %v2554
  %2708 = vmatprep.subr.bf16.mxu0 %v2551
  %2709 = vmatpush2.bf16.msra.mxu0 %v2550
  %2710 = vmatprep.subr.bf16.mxu0 %v2547
  %2711 = vmatpush2.bf16.msra.mxu0 %v2546
  %2712 = vmatprep.subr.bf16.mxu0 %v2543
  %2713 = vmatpush2.bf16.msra.mxu0 %v2542
  %2714 = vmatprep.subr.bf16.mxu0 %v2539
  %2715 = vmatpush2.bf16.msra.mxu0 %v2538
  %2716 = vmatprep.subr.bf16.mxu0 %v2535
  %2717 = vmatpush2.bf16.msra.mxu0 %v2534
  %2718 = vmatprep.subr.bf16.mxu0 %v2531
  %2719 = vmatpush2.bf16.msra.mxu0 %v2530
  %2720 = vmatprep.mubr.bf16.mxu0 %v2601
  %2721 = vmatmul.mubr.bf16.gmra.mxu0 %v2600
  %v2722 = vpop.f32.mrf.mxu0
  %v2723 = vadd.f32 %v2680, %v2722
  %v2724 = vpop.f32.mrf.mxu0
  %v2725 = vadd.f32 %v2682, %v2724
  %v2726 = vpop.f32.mrf.mxu0
  %v2727 = vadd.f32 %v2684, %v2726
  %v2728 = vpop.f32.mrf.mxu0
  %v2729 = vadd.f32 %v2686, %v2728
  %2730 = vdwg.mxu0
  %2731 = vmatprep.subr.bf16.mxu0 %v2401
  %2732 = vmatpush1.bf16.msra.mxu0 %v2400
  %2733 = vmatprep.subr.bf16.mxu0 %v2397
  %2734 = vmatpush1.bf16.msra.mxu0 %v2396
  %2735 = vmatprep.subr.bf16.mxu0 %v2393
  %2736 = vmatpush1.bf16.msra.mxu0 %v2392
  %2737 = vmatprep.subr.bf16.mxu0 %v2389
  %2738 = vmatpush1.bf16.msra.mxu0 %v2388
  %2739 = vmatprep.subr.bf16.mxu0 %v2385
  %2740 = vmatpush1.bf16.msra.mxu0 %v2384
  %2741 = vmatprep.subr.bf16.mxu0 %v2381
  %2742 = vmatpush1.bf16.msra.mxu0 %v2380
  %2743 = vmatprep.subr.bf16.mxu0 %v2377
  %2744 = vmatpush1.bf16.msra.mxu0 %v2376
  %2745 = vmatprep.subr.bf16.mxu0 %v2373
  %2746 = vmatpush1.bf16.msra.mxu0 %v2372
  %2747 = vmatprep.subr.bf16.mxu0 %v2433
  %2748 = vmatpush2.bf16.msra.mxu0 %v2432
  %2749 = vmatprep.subr.bf16.mxu0 %v2429
  %2750 = vmatpush2.bf16.msra.mxu0 %v2428
  %2751 = vmatprep.subr.bf16.mxu0 %v2425
  %2752 = vmatpush2.bf16.msra.mxu0 %v2424
  %2753 = vmatprep.subr.bf16.mxu0 %v2421
  %2754 = vmatpush2.bf16.msra.mxu0 %v2420
  %2755 = vmatprep.subr.bf16.mxu0 %v2417
  %2756 = vmatpush2.bf16.msra.mxu0 %v2416
  %2757 = vmatprep.subr.bf16.mxu0 %v2413
  %2758 = vmatpush2.bf16.msra.mxu0 %v2412
  %2759 = vmatprep.subr.bf16.mxu0 %v2409
  %2760 = vmatpush2.bf16.msra.mxu0 %v2408
  %2761 = vmatprep.subr.bf16.mxu0 %v2405
  %2762 = vmatpush2.bf16.msra.mxu0 %v2404
  %2763 = vmatprep.mubr.bf16.mxu0 %v2597
  %2764 = vmatmul.mubr.bf16.gmra.mxu0 %v2596
  %v2765 = vpop.f32.mrf.mxu0
  %v2766 = vadd.f32 0.0, %v2765
  %v2767 = vpop.f32.mrf.mxu0
  %v2768 = vadd.f32 0.0, %v2767
  %v2769 = vpop.f32.mrf.mxu0
  %v2770 = vadd.f32 0.0, %v2769
  %v2771 = vpop.f32.mrf.mxu0
  %v2772 = vadd.f32 0.0, %v2771
  %2773 = vdwg.mxu0
  %2774 = vmatprep.subr.bf16.mxu0 %v2465
  %2775 = vmatpush1.bf16.msra.mxu0 %v2464
  %2776 = vmatprep.subr.bf16.mxu0 %v2461
  %2777 = vmatpush1.bf16.msra.mxu0 %v2460
  %2778 = vmatprep.subr.bf16.mxu0 %v2457
  %2779 = vmatpush1.bf16.msra.mxu0 %v2456
  %2780 = vmatprep.subr.bf16.mxu0 %v2453
  %2781 = vmatpush1.bf16.msra.mxu0 %v2452
  %2782 = vmatprep.subr.bf16.mxu0 %v2449
  %2783 = vmatpush1.bf16.msra.mxu0 %v2448
  %2784 = vmatprep.subr.bf16.mxu0 %v2445
  %2785 = vmatpush1.bf16.msra.mxu0 %v2444
  %2786 = vmatprep.subr.bf16.mxu0 %v2441
  %2787 = vmatpush1.bf16.msra.mxu0 %v2440
  %2788 = vmatprep.subr.bf16.mxu0 %v2437
  %2789 = vmatpush1.bf16.msra.mxu0 %v2436
  %2790 = vmatprep.subr.bf16.mxu0 %v2497
  %2791 = vmatpush2.bf16.msra.mxu0 %v2496
  %2792 = vmatprep.subr.bf16.mxu0 %v2493
  %2793 = vmatpush2.bf16.msra.mxu0 %v2492
  %2794 = vmatprep.subr.bf16.mxu0 %v2489
  %2795 = vmatpush2.bf16.msra.mxu0 %v2488
  %2796 = vmatprep.subr.bf16.mxu0 %v2485
  %2797 = vmatpush2.bf16.msra.mxu0 %v2484
  %2798 = vmatprep.subr.bf16.mxu0 %v2481
  %2799 = vmatpush2.bf16.msra.mxu0 %v2480
  %2800 = vmatprep.subr.bf16.mxu0 %v2477
  %2801 = vmatpush2.bf16.msra.mxu0 %v2476
  %2802 = vmatprep.subr.bf16.mxu0 %v2473
  %2803 = vmatpush2.bf16.msra.mxu0 %v2472
  %2804 = vmatprep.subr.bf16.mxu0 %v2469
  %2805 = vmatpush2.bf16.msra.mxu0 %v2468
  %2806 = vmatprep.mubr.bf16.mxu0 %v2599
  %2807 = vmatmul.mubr.bf16.gmra.mxu0 %v2598
  %v2808 = vpop.f32.mrf.mxu0
  %v2809 = vadd.f32 %v2766, %v2808
  %v2810 = vpop.f32.mrf.mxu0
  %v2811 = vadd.f32 %v2768, %v2810
  %v2812 = vpop.f32.mrf.mxu0
  %v2813 = vadd.f32 %v2770, %v2812
  %v2814 = vpop.f32.mrf.mxu0
  %v2815 = vadd.f32 %v2772, %v2814
  %2816 = vdwg.mxu0
  %2817 = vmatprep.subr.bf16.mxu0 %v2529
  %2818 = vmatpush1.bf16.msra.mxu0 %v2528
  %2819 = vmatprep.subr.bf16.mxu0 %v2525
  %2820 = vmatpush1.bf16.msra.mxu0 %v2524
  %2821 = vmatprep.subr.bf16.mxu0 %v2521
  %2822 = vmatpush1.bf16.msra.mxu0 %v2520
  %2823 = vmatprep.subr.bf16.mxu0 %v2517
  %2824 = vmatpush1.bf16.msra.mxu0 %v2516
  %2825 = vmatprep.subr.bf16.mxu0 %v2513
  %2826 = vmatpush1.bf16.msra.mxu0 %v2512
  %2827 = vmatprep.subr.bf16.mxu0 %v2509
  %2828 = vmatpush1.bf16.msra.mxu0 %v2508
  %2829 = vmatprep.subr.bf16.mxu0 %v2505
  %2830 = vmatpush1.bf16.msra.mxu0 %v2504
  %2831 = vmatprep.subr.bf16.mxu0 %v2501
  %2832 = vmatpush1.bf16.msra.mxu0 %v2500
  %2833 = vmatprep.subr.bf16.mxu0 %v2561
  %2834 = vmatpush2.bf16.msra.mxu0 %v2560
  %2835 = vmatprep.subr.bf16.mxu0 %v2557
  %2836 = vmatpush2.bf16.msra.mxu0 %v2556
  %2837 = vmatprep.subr.bf16.mxu0 %v2553
  %2838 = vmatpush2.bf16.msra.mxu0 %v2552
  %2839 = vmatprep.subr.bf16.mxu0 %v2549
  %2840 = vmatpush2.bf16.msra.mxu0 %v2548
  %2841 = vmatprep.subr.bf16.mxu0 %v2545
  %2842 = vmatpush2.bf16.msra.mxu0 %v2544
  %2843 = vmatprep.subr.bf16.mxu0 %v2541
  %2844 = vmatpush2.bf16.msra.mxu0 %v2540
  %2845 = vmatprep.subr.bf16.mxu0 %v2537
  %2846 = vmatpush2.bf16.msra.mxu0 %v2536
  %2847 = vmatprep.subr.bf16.mxu0 %v2533
  %2848 = vmatpush2.bf16.msra.mxu0 %v2532
  %2849 = vmatprep.mubr.bf16.mxu0 %v2601
  %2850 = vmatmul.mubr.bf16.gmra.mxu0 %v2600
  %v2851 = vpop.f32.mrf.mxu0
  %v2852 = vadd.f32 %v2809, %v2851
  %v2853 = vpop.f32.mrf.mxu0
  %v2854 = vadd.f32 %v2811, %v2853
  %v2855 = vpop.f32.mrf.mxu0
  %v2856 = vadd.f32 %v2813, %v2855
  %v2857 = vpop.f32.mrf.mxu0
  %v2858 = vadd.f32 %v2815, %v2857
  %2859 = vdwg.mxu0
  %v2860 = vld [vmem:[%s9] ss:$2 sm:$0xf]
  %s2861 = scalar_lea.vmem %s9, 1
  %v2862 = vld [vmem:[%s2861] ss:$2 sm:$0xf]
  %v2864 = vlaneseq
  %v2865 = vshrl.u32 %v2864, 7
  %v2866 = vsub.s32 0, %v2865
  %v2867 = vrot.slane %v2860, %v2866
  %v2868 = vlaneseq
  %v2869 = vshrl.u32 %v2868, 7
  %v2870 = vsub.s32 1, %v2869
  %v2871 = vrot.slane %v2860, %v2870
  %v2872 = vlaneseq
  %v2873 = vshrl.u32 %v2872, 7
  %v2874 = vsub.s32 2, %v2873
  %v2875 = vrot.slane %v2860, %v2874
  %v2876 = vlaneseq
  %v2877 = vshrl.u32 %v2876, 7
  %v2878 = vsub.s32 3, %v2877
  %v2879 = vrot.slane %v2860, %v2878
  %v2884 = vmul.f32 %v2723, %v2867
  %v2885 = vmul.f32 %v2725, %v2871
  %v2886 = vmul.f32 %v2852, %v2875
  %v2887 = vmul.f32 %v2854, %v2879
  %v2888 = vmul.f32 %v2727, %v2867
  %v2889 = vmul.f32 %v2729, %v2871
  %v2890 = vmul.f32 %v2856, %v2875
  %v2891 = vmul.f32 %v2858, %v2879
  %v2893 = vlaneseq
  %v2894 = vshrl.u32 %v2893, 7
  %v2895 = vsub.s32 0, %v2894
  %v2896 = vrot.slane %v2862, %v2895
  %v2897 = vlaneseq
  %v2898 = vshrl.u32 %v2897, 7
  %v2899 = vsub.s32 1, %v2898
  %v2900 = vrot.slane %v2862, %v2899
  %v2901 = vlaneseq
  %v2902 = vshrl.u32 %v2901, 7
  %v2903 = vsub.s32 2, %v2902
  %v2904 = vrot.slane %v2862, %v2903
  %v2905 = vlaneseq
  %v2906 = vshrl.u32 %v2905, 7
  %v2907 = vsub.s32 3, %v2906
  %v2908 = vrot.slane %v2862, %v2907
  %v2913 = vadd.f32 %v2884, %v2896
  %v2914 = vadd.f32 %v2885, %v2900
  %v2915 = vadd.f32 %v2886, %v2904
  %v2916 = vadd.f32 %v2887, %v2908
  %v2917 = vadd.f32 %v2888, %v2896
  %v2918 = vadd.f32 %v2889, %v2900
  %v2919 = vadd.f32 %v2890, %v2904
  %v2920 = vadd.f32 %v2891, %v2908
  %v2921 = vxor.u32 %v2913, 2147483648
  %v2922 = vxor.u32 %v2914, 2147483648
  %v2923 = vxor.u32 %v2915, 2147483648
  %v2924 = vxor.u32 %v2916, 2147483648
  %v2925 = vxor.u32 %v2917, 2147483648
  %v2926 = vxor.u32 %v2918, 2147483648
  %v2927 = vxor.u32 %v2919, 2147483648
  %v2928 = vxor.u32 %v2920, 2147483648
  %v2929 = vmul.f32 %v2921, 1.442695
  %v2930 = vpow.pop %v2929
  %v2931 = vmul.f32 %v2922, 1.442695
  %v2932 = vpow.pop %v2931
  %v2933 = vmul.f32 %v2923, 1.442695
  %v2934 = vpow.pop %v2933
  %v2935 = vmul.f32 %v2924, 1.442695
  %v2936 = vpow.pop %v2935
  %v2937 = vmul.f32 %v2925, 1.442695
  %v2938 = vpow.pop %v2937
  %v2939 = vmul.f32 %v2926, 1.442695
  %v2940 = vpow.pop %v2939
  %v2941 = vmul.f32 %v2927, 1.442695
  %v2942 = vpow.pop %v2941
  %v2943 = vmul.f32 %v2928, 1.442695
  %v2944 = vpow.pop %v2943
  %v2945 = vadd.f32 %v2930, 1.0
  %v2946 = vadd.f32 %v2932, 1.0
  %v2947 = vadd.f32 %v2934, 1.0
  %v2948 = vadd.f32 %v2936, 1.0
  %v2949 = vadd.f32 %v2938, 1.0
  %v2950 = vadd.f32 %v2940, 1.0
  %v2951 = vadd.f32 %v2942, 1.0
  %v2952 = vadd.f32 %v2944, 1.0
  %v2953 = vrcp.pop %v2945
  %v2954 = vmul.f32 1.0, %v2953
  %v2955 = vrcp.pop %v2946
  %v2956 = vmul.f32 1.0, %v2955
  %v2957 = vrcp.pop %v2947
  %v2958 = vmul.f32 1.0, %v2957
  %v2959 = vrcp.pop %v2948
  %v2960 = vmul.f32 1.0, %v2959
  %v2961 = vrcp.pop %v2949
  %v2962 = vmul.f32 1.0, %v2961
  %v2963 = vrcp.pop %v2950
  %v2964 = vmul.f32 1.0, %v2963
  %v2965 = vrcp.pop %v2951
  %v2966 = vmul.f32 1.0, %v2965
  %v2967 = vrcp.pop %v2952
  %v2968 = vmul.f32 1.0, %v2967
  %v2969 = vmul.f32 %v2913, %v2954
  %v2970 = vmul.f32 %v2914, %v2956
  %v2971 = vmul.f32 %v2915, %v2958
  %v2972 = vmul.f32 %v2916, %v2960
  %v2973 = vmul.f32 %v2917, %v2962
  %v2974 = vmul.f32 %v2918, %v2964
  %v2975 = vmul.f32 %v2919, %v2966
  %v2976 = vmul.f32 %v2920, %v2968
  // Predicated region
  $region254: #{encoder2_forward.1} parent=0 // pred_check
    %p2977 = pneg %p37
  $region255: #{encoder2_forward.1} parent=0 // pred_check_branch
    %2979 = sbr.rel (%p2977) target = $region257
  $region256: #{encoder2_forward.1} parent=0 // pred_region
    %s2980 = scalar_lea.sflag [#allocation9], 2
    %s2981 = smul.u32 2, 192
    %s2982 = smul.u32 %s2981, 5
    %s2983 = sshll.u32 %s2982, 4
    %2984 = dma.done %s2980, %s2983
  $region257: #{encoder2_forward.1} parent=0 // pred_fallthru
    _
  %v2985 = vld [vmem:[#allocation4] sm:$0xff]
  %v2986 = vld [vmem:[#allocation4 + $0x8] sm:$0xff]
  %v2987 = vld [vmem:[#allocation4 + $0x10] sm:$0xff]
  %v2988 = vld [vmem:[#allocation4 + $0x18] sm:$0xff]
  %v2989 = vld [vmem:[#allocation4 + $0x20] sm:$0xff]
  %v2990 = vld [vmem:[#allocation4 + $0x28] sm:$0xff]
  %v2991 = vld [vmem:[#allocation4 + $0x30] sm:$0xff]
  %v2992 = vld [vmem:[#allocation4 + $0x38] sm:$0xff]
  %v2993 = vld [vmem:[#allocation4 + $0x40] sm:$0xff]
  %v2994 = vld [vmem:[#allocation4 + $0x48] sm:$0xff]
  %v2995 = vld [vmem:[#allocation4 + $0x50] sm:$0xff]
  %v2996 = vld [vmem:[#allocation4 + $0x58] sm:$0xff]
  %v2997 = vld [vmem:[#allocation4 + $0x60] sm:$0xff]
  %v2998 = vld [vmem:[#allocation4 + $0x68] sm:$0xff]
  %v2999 = vld [vmem:[#allocation4 + $0x70] sm:$0xff]
  %v3000 = vld [vmem:[#allocation4 + $0x78] sm:$0xff]
  %v3001 = vld [vmem:[#allocation4 + $0x80] sm:$0xff]
  %v3002 = vld [vmem:[#allocation4 + $0x88] sm:$0xff]
  %v3003 = vld [vmem:[#allocation4 + $0x90] sm:$0xff]
  %v3004 = vld [vmem:[#allocation4 + $0x98] sm:$0xff]
  %v3005 = vld [vmem:[#allocation4 + $0xa0] sm:$0xff]
  %v3006 = vld [vmem:[#allocation4 + $0xa8] sm:$0xff]
  %v3007 = vld [vmem:[#allocation4 + $0xb0] sm:$0xff]
  %v3008 = vld [vmem:[#allocation4 + $0xb8] sm:$0xff]
  %v3009 = vld [vmem:[#allocation4 + $0xc0] sm:$0xff]
  %v3010 = vld [vmem:[#allocation4 + $0xc8] sm:$0xff]
  %v3011 = vld [vmem:[#allocation4 + $0xd0] sm:$0xff]
  %v3012 = vld [vmem:[#allocation4 + $0xd8] sm:$0xff]
  %v3013 = vld [vmem:[#allocation4 + $0xe0] sm:$0xff]
  %v3014 = vld [vmem:[#allocation4 + $0xe8] sm:$0xff]
  %v3015 = vld [vmem:[#allocation4 + $0xf0] sm:$0xff]
  %v3016 = vld [vmem:[#allocation4 + $0xf8] sm:$0xff]
  %v3017 = vld [vmem:[#allocation4 + $0x100] sm:$0xff]
  %v3018 = vld [vmem:[#allocation4 + $0x108] sm:$0xff]
  %v3019 = vld [vmem:[#allocation4 + $0x110] sm:$0xff]
  %v3020 = vld [vmem:[#allocation4 + $0x118] sm:$0xff]
  %v3021 = vld [vmem:[#allocation4 + $0x120] sm:$0xff]
  %v3022 = vld [vmem:[#allocation4 + $0x128] sm:$0xff]
  %v3023 = vld [vmem:[#allocation4 + $0x130] sm:$0xff]
  %v3024 = vld [vmem:[#allocation4 + $0x138] sm:$0xff]
  %v3025 = vld [vmem:[#allocation4 + $0x140] sm:$0xff]
  %v3026 = vld [vmem:[#allocation4 + $0x148] sm:$0xff]
  %v3027 = vld [vmem:[#allocation4 + $0x150] sm:$0xff]
  %v3028 = vld [vmem:[#allocation4 + $0x158] sm:$0xff]
  %v3029 = vld [vmem:[#allocation4 + $0x160] sm:$0xff]
  %v3030 = vld [vmem:[#allocation4 + $0x168] sm:$0xff]
  %v3031 = vld [vmem:[#allocation4 + $0x170] sm:$0xff]
  %v3032 = vld [vmem:[#allocation4 + $0x178] sm:$0xff]
  %v3033 = vld [vmem:[#allocation4 + $0x180] sm:$0xff]
  %v3034 = vld [vmem:[#allocation4 + $0x188] sm:$0xff]
  %v3035 = vld [vmem:[#allocation4 + $0x190] sm:$0xff]
  %v3036 = vld [vmem:[#allocation4 + $0x198] sm:$0xff]
  %v3037 = vld [vmem:[#allocation4 + $0x1a0] sm:$0xff]
  %v3038 = vld [vmem:[#allocation4 + $0x1a8] sm:$0xff]
  %v3039 = vld [vmem:[#allocation4 + $0x1b0] sm:$0xff]
  %v3040 = vld [vmem:[#allocation4 + $0x1b8] sm:$0xff]
  %v3041 = vld [vmem:[#allocation4 + $0x1c0] sm:$0xff]
  %v3042 = vld [vmem:[#allocation4 + $0x1c8] sm:$0xff]
  %v3043 = vld [vmem:[#allocation4 + $0x1d0] sm:$0xff]
  %v3044 = vld [vmem:[#allocation4 + $0x1d8] sm:$0xff]
  %v3045 = vld [vmem:[#allocation4 + $0x1e0] sm:$0xff]
  %v3046 = vld [vmem:[#allocation4 + $0x1e8] sm:$0xff]
  %v3047 = vld [vmem:[#allocation4 + $0x1f0] sm:$0xff]
  %v3048 = vld [vmem:[#allocation4 + $0x1f8] sm:$0xff]
  %v3049 = vld [vmem:[#allocation4 + $0x200] sm:$0xff]
  %v3050 = vld [vmem:[#allocation4 + $0x208] sm:$0xff]
  %v3051 = vld [vmem:[#allocation4 + $0x210] sm:$0xff]
  %v3052 = vld [vmem:[#allocation4 + $0x218] sm:$0xff]
  %v3053 = vld [vmem:[#allocation4 + $0x220] sm:$0xff]
  %v3054 = vld [vmem:[#allocation4 + $0x228] sm:$0xff]
  %v3055 = vld [vmem:[#allocation4 + $0x230] sm:$0xff]
  %v3056 = vld [vmem:[#allocation4 + $0x238] sm:$0xff]
  %v3057 = vld [vmem:[#allocation4 + $0x240] sm:$0xff]
  %v3058 = vld [vmem:[#allocation4 + $0x248] sm:$0xff]
  %v3059 = vld [vmem:[#allocation4 + $0x250] sm:$0xff]
  %v3060 = vld [vmem:[#allocation4 + $0x258] sm:$0xff]
  %v3061 = vld [vmem:[#allocation4 + $0x260] sm:$0xff]
  %v3062 = vld [vmem:[#allocation4 + $0x268] sm:$0xff]
  %v3063 = vld [vmem:[#allocation4 + $0x270] sm:$0xff]
  %v3064 = vld [vmem:[#allocation4 + $0x278] sm:$0xff]
  %v3065 = vld [vmem:[#allocation4 + $0x280] sm:$0xff]
  %v3066 = vld [vmem:[#allocation4 + $0x288] sm:$0xff]
  %v3067 = vld [vmem:[#allocation4 + $0x290] sm:$0xff]
  %v3068 = vld [vmem:[#allocation4 + $0x298] sm:$0xff]
  %v3069 = vld [vmem:[#allocation4 + $0x2a0] sm:$0xff]
  %v3070 = vld [vmem:[#allocation4 + $0x2a8] sm:$0xff]
  %v3071 = vld [vmem:[#allocation4 + $0x2b0] sm:$0xff]
  %v3072 = vld [vmem:[#allocation4 + $0x2b8] sm:$0xff]
  %v3073 = vld [vmem:[#allocation4 + $0x2c0] sm:$0xff]
  %v3074 = vld [vmem:[#allocation4 + $0x2c8] sm:$0xff]
  %v3075 = vld [vmem:[#allocation4 + $0x2d0] sm:$0xff]
  %v3076 = vld [vmem:[#allocation4 + $0x2d8] sm:$0xff]
  %v3077 = vld [vmem:[#allocation4 + $0x2e0] sm:$0xff]
  %v3078 = vld [vmem:[#allocation4 + $0x2e8] sm:$0xff]
  %v3079 = vld [vmem:[#allocation4 + $0x2f0] sm:$0xff]
  %v3080 = vld [vmem:[#allocation4 + $0x2f8] sm:$0xff]
  %v3081 = vld [vmem:[#allocation4 + $0x300] sm:$0xff]
  %v3082 = vld [vmem:[#allocation4 + $0x308] sm:$0xff]
  %v3083 = vld [vmem:[#allocation4 + $0x310] sm:$0xff]
  %v3084 = vld [vmem:[#allocation4 + $0x318] sm:$0xff]
  %v3085 = vld [vmem:[#allocation4 + $0x320] sm:$0xff]
  %v3086 = vld [vmem:[#allocation4 + $0x328] sm:$0xff]
  %v3087 = vld [vmem:[#allocation4 + $0x330] sm:$0xff]
  %v3088 = vld [vmem:[#allocation4 + $0x338] sm:$0xff]
  %v3089 = vld [vmem:[#allocation4 + $0x340] sm:$0xff]
  %v3090 = vld [vmem:[#allocation4 + $0x348] sm:$0xff]
  %v3091 = vld [vmem:[#allocation4 + $0x350] sm:$0xff]
  %v3092 = vld [vmem:[#allocation4 + $0x358] sm:$0xff]
  %v3093 = vld [vmem:[#allocation4 + $0x360] sm:$0xff]
  %v3094 = vld [vmem:[#allocation4 + $0x368] sm:$0xff]
  %v3095 = vld [vmem:[#allocation4 + $0x370] sm:$0xff]
  %v3096 = vld [vmem:[#allocation4 + $0x378] sm:$0xff]
  %v3097 = vld [vmem:[#allocation4 + $0x380] sm:$0xff]
  %v3098 = vld [vmem:[#allocation4 + $0x388] sm:$0xff]
  %v3099 = vld [vmem:[#allocation4 + $0x390] sm:$0xff]
  %v3100 = vld [vmem:[#allocation4 + $0x398] sm:$0xff]
  %v3101 = vld [vmem:[#allocation4 + $0x3a0] sm:$0xff]
  %v3102 = vld [vmem:[#allocation4 + $0x3a8] sm:$0xff]
  %v3103 = vld [vmem:[#allocation4 + $0x3b0] sm:$0xff]
  %v3104 = vld [vmem:[#allocation4 + $0x3b8] sm:$0xff]
  %v3105 = vld [vmem:[#allocation4 + $0x3c0] sm:$0xff]
  %v3106 = vld [vmem:[#allocation4 + $0x3c8] sm:$0xff]
  %v3107 = vld [vmem:[#allocation4 + $0x3d0] sm:$0xff]
  %v3108 = vld [vmem:[#allocation4 + $0x3d8] sm:$0xff]
  %v3109 = vld [vmem:[#allocation4 + $0x3e0] sm:$0xff]
  %v3110 = vld [vmem:[#allocation4 + $0x3e8] sm:$0xff]
  %v3111 = vld [vmem:[#allocation4 + $0x3f0] sm:$0xff]
  %v3112 = vld [vmem:[#allocation4 + $0x3f8] sm:$0xff]
  %v3113 = vld [vmem:[#allocation4 + $0x400] sm:$0xff]
  %v3114 = vld [vmem:[#allocation4 + $0x408] sm:$0xff]
  %v3115 = vld [vmem:[#allocation4 + $0x410] sm:$0xff]
  %v3116 = vld [vmem:[#allocation4 + $0x418] sm:$0xff]
  %v3117 = vld [vmem:[#allocation4 + $0x420] sm:$0xff]
  %v3118 = vld [vmem:[#allocation4 + $0x428] sm:$0xff]
  %v3119 = vld [vmem:[#allocation4 + $0x430] sm:$0xff]
  %v3120 = vld [vmem:[#allocation4 + $0x438] sm:$0xff]
  %v3121 = vld [vmem:[#allocation4 + $0x440] sm:$0xff]
  %v3122 = vld [vmem:[#allocation4 + $0x448] sm:$0xff]
  %v3123 = vld [vmem:[#allocation4 + $0x450] sm:$0xff]
  %v3124 = vld [vmem:[#allocation4 + $0x458] sm:$0xff]
  %v3125 = vld [vmem:[#allocation4 + $0x460] sm:$0xff]
  %v3126 = vld [vmem:[#allocation4 + $0x468] sm:$0xff]
  %v3127 = vld [vmem:[#allocation4 + $0x470] sm:$0xff]
  %v3128 = vld [vmem:[#allocation4 + $0x478] sm:$0xff]
  %v3129 = vld [vmem:[#allocation4 + $0x480] sm:$0xff]
  %v3130 = vld [vmem:[#allocation4 + $0x488] sm:$0xff]
  %v3131 = vld [vmem:[#allocation4 + $0x490] sm:$0xff]
  %v3132 = vld [vmem:[#allocation4 + $0x498] sm:$0xff]
  %v3133 = vld [vmem:[#allocation4 + $0x4a0] sm:$0xff]
  %v3134 = vld [vmem:[#allocation4 + $0x4a8] sm:$0xff]
  %v3135 = vld [vmem:[#allocation4 + $0x4b0] sm:$0xff]
  %v3136 = vld [vmem:[#allocation4 + $0x4b8] sm:$0xff]
  %v3137 = vld [vmem:[#allocation4 + $0x4c0] sm:$0xff]
  %v3138 = vld [vmem:[#allocation4 + $0x4c8] sm:$0xff]
  %v3139 = vld [vmem:[#allocation4 + $0x4d0] sm:$0xff]
  %v3140 = vld [vmem:[#allocation4 + $0x4d8] sm:$0xff]
  %v3141 = vld [vmem:[#allocation4 + $0x4e0] sm:$0xff]
  %v3142 = vld [vmem:[#allocation4 + $0x4e8] sm:$0xff]
  %v3143 = vld [vmem:[#allocation4 + $0x4f0] sm:$0xff]
  %v3144 = vld [vmem:[#allocation4 + $0x4f8] sm:$0xff]
  %v3145 = vld [vmem:[#allocation4 + $0x500] sm:$0xff]
  %v3146 = vld [vmem:[#allocation4 + $0x508] sm:$0xff]
  %v3147 = vld [vmem:[#allocation4 + $0x510] sm:$0xff]
  %v3148 = vld [vmem:[#allocation4 + $0x518] sm:$0xff]
  %v3149 = vld [vmem:[#allocation4 + $0x520] sm:$0xff]
  %v3150 = vld [vmem:[#allocation4 + $0x528] sm:$0xff]
  %v3151 = vld [vmem:[#allocation4 + $0x530] sm:$0xff]
  %v3152 = vld [vmem:[#allocation4 + $0x538] sm:$0xff]
  %v3153 = vld [vmem:[#allocation4 + $0x540] sm:$0xff]
  %v3154 = vld [vmem:[#allocation4 + $0x548] sm:$0xff]
  %v3155 = vld [vmem:[#allocation4 + $0x550] sm:$0xff]
  %v3156 = vld [vmem:[#allocation4 + $0x558] sm:$0xff]
  %v3157 = vld [vmem:[#allocation4 + $0x560] sm:$0xff]
  %v3158 = vld [vmem:[#allocation4 + $0x568] sm:$0xff]
  %v3159 = vld [vmem:[#allocation4 + $0x570] sm:$0xff]
  %v3160 = vld [vmem:[#allocation4 + $0x578] sm:$0xff]
  %v3161 = vld [vmem:[#allocation4 + $0x580] sm:$0xff]
  %v3162 = vld [vmem:[#allocation4 + $0x588] sm:$0xff]
  %v3163 = vld [vmem:[#allocation4 + $0x590] sm:$0xff]
  %v3164 = vld [vmem:[#allocation4 + $0x598] sm:$0xff]
  %v3165 = vld [vmem:[#allocation4 + $0x5a0] sm:$0xff]
  %v3166 = vld [vmem:[#allocation4 + $0x5a8] sm:$0xff]
  %v3167 = vld [vmem:[#allocation4 + $0x5b0] sm:$0xff]
  %v3168 = vld [vmem:[#allocation4 + $0x5b8] sm:$0xff]
  %v3169 = vld [vmem:[#allocation4 + $0x5c0] sm:$0xff]
  %v3170 = vld [vmem:[#allocation4 + $0x5c8] sm:$0xff]
  %v3171 = vld [vmem:[#allocation4 + $0x5d0] sm:$0xff]
  %v3172 = vld [vmem:[#allocation4 + $0x5d8] sm:$0xff]
  %v3173 = vld [vmem:[#allocation4 + $0x5e0] sm:$0xff]
  %v3174 = vld [vmem:[#allocation4 + $0x5e8] sm:$0xff]
  %v3175 = vld [vmem:[#allocation4 + $0x5f0] sm:$0xff]
  %v3176 = vld [vmem:[#allocation4 + $0x5f8] sm:$0xff]
  %v3177 = vld [vmem:[#allocation4 + $0x600] sm:$0xff]
  %v3178 = vld [vmem:[#allocation4 + $0x608] sm:$0xff]
  %v3179 = vld [vmem:[#allocation4 + $0x610] sm:$0xff]
  %v3180 = vld [vmem:[#allocation4 + $0x618] sm:$0xff]
  %v3181 = vld [vmem:[#allocation4 + $0x620] sm:$0xff]
  %v3182 = vld [vmem:[#allocation4 + $0x628] sm:$0xff]
  %v3183 = vld [vmem:[#allocation4 + $0x630] sm:$0xff]
  %v3184 = vld [vmem:[#allocation4 + $0x638] sm:$0xff]
  %v3185 = vld [vmem:[#allocation4 + $0x640] sm:$0xff]
  %v3186 = vld [vmem:[#allocation4 + $0x648] sm:$0xff]
  %v3187 = vld [vmem:[#allocation4 + $0x650] sm:$0xff]
  %v3188 = vld [vmem:[#allocation4 + $0x658] sm:$0xff]
  %v3189 = vld [vmem:[#allocation4 + $0x660] sm:$0xff]
  %v3190 = vld [vmem:[#allocation4 + $0x668] sm:$0xff]
  %v3191 = vld [vmem:[#allocation4 + $0x670] sm:$0xff]
  %v3192 = vld [vmem:[#allocation4 + $0x678] sm:$0xff]
  %v3193 = vld [vmem:[#allocation4 + $0x680] sm:$0xff]
  %v3194 = vld [vmem:[#allocation4 + $0x688] sm:$0xff]
  %v3195 = vld [vmem:[#allocation4 + $0x690] sm:$0xff]
  %v3196 = vld [vmem:[#allocation4 + $0x698] sm:$0xff]
  %v3197 = vld [vmem:[#allocation4 + $0x6a0] sm:$0xff]
  %v3198 = vld [vmem:[#allocation4 + $0x6a8] sm:$0xff]
  %v3199 = vld [vmem:[#allocation4 + $0x6b0] sm:$0xff]
  %v3200 = vld [vmem:[#allocation4 + $0x6b8] sm:$0xff]
  %v3201 = vld [vmem:[#allocation4 + $0x6c0] sm:$0xff]
  %v3202 = vld [vmem:[#allocation4 + $0x6c8] sm:$0xff]
  %v3203 = vld [vmem:[#allocation4 + $0x6d0] sm:$0xff]
  %v3204 = vld [vmem:[#allocation4 + $0x6d8] sm:$0xff]
  %v3205 = vld [vmem:[#allocation4 + $0x6e0] sm:$0xff]
  %v3206 = vld [vmem:[#allocation4 + $0x6e8] sm:$0xff]
  %v3207 = vld [vmem:[#allocation4 + $0x6f0] sm:$0xff]
  %v3208 = vld [vmem:[#allocation4 + $0x6f8] sm:$0xff]
  %v3209 = vld [vmem:[#allocation4 + $0x700] sm:$0xff]
  %v3210 = vld [vmem:[#allocation4 + $0x708] sm:$0xff]
  %v3211 = vld [vmem:[#allocation4 + $0x710] sm:$0xff]
  %v3212 = vld [vmem:[#allocation4 + $0x718] sm:$0xff]
  %v3213 = vld [vmem:[#allocation4 + $0x720] sm:$0xff]
  %v3214 = vld [vmem:[#allocation4 + $0x728] sm:$0xff]
  %v3215 = vld [vmem:[#allocation4 + $0x730] sm:$0xff]
  %v3216 = vld [vmem:[#allocation4 + $0x738] sm:$0xff]
  %v3217 = vld [vmem:[#allocation4 + $0x740] sm:$0xff]
  %v3218 = vld [vmem:[#allocation4 + $0x748] sm:$0xff]
  %v3219 = vld [vmem:[#allocation4 + $0x750] sm:$0xff]
  %v3220 = vld [vmem:[#allocation4 + $0x758] sm:$0xff]
  %v3221 = vld [vmem:[#allocation4 + $0x760] sm:$0xff]
  %v3222 = vld [vmem:[#allocation4 + $0x768] sm:$0xff]
  %v3223 = vld [vmem:[#allocation4 + $0x770] sm:$0xff]
  %v3224 = vld [vmem:[#allocation4 + $0x778] sm:$0xff]
  %v3225 = vunpack.c.l.s8.bf16 %v2985
  %v3226 = vunpack.c.l.s8.bf16 %v2986
  %v3227 = vunpack.c.l.s8.bf16 %v2987
  %v3228 = vunpack.c.l.s8.bf16 %v2988
  %v3229 = vunpack.c.l.s8.bf16 %v2989
  %v3230 = vunpack.c.h.s8.bf16 %v2985
  %v3231 = vunpack.c.h.s8.bf16 %v2986
  %v3232 = vunpack.c.h.s8.bf16 %v2987
  %v3233 = vunpack.c.h.s8.bf16 %v2988
  %v3234 = vunpack.c.h.s8.bf16 %v2989
  %v3235 = vunpack.c.l.s8.bf16 %v2990
  %v3236 = vunpack.c.l.s8.bf16 %v2991
  %v3237 = vunpack.c.l.s8.bf16 %v2992
  %v3238 = vunpack.c.l.s8.bf16 %v2993
  %v3239 = vunpack.c.l.s8.bf16 %v2994
  %v3240 = vunpack.c.h.s8.bf16 %v2990
  %v3241 = vunpack.c.h.s8.bf16 %v2991
  %v3242 = vunpack.c.h.s8.bf16 %v2992
  %v3243 = vunpack.c.h.s8.bf16 %v2993
  %v3244 = vunpack.c.h.s8.bf16 %v2994
  %v3245 = vunpack.c.l.s8.bf16 %v2995
  %v3246 = vunpack.c.l.s8.bf16 %v2996
  %v3247 = vunpack.c.l.s8.bf16 %v2997
  %v3248 = vunpack.c.l.s8.bf16 %v2998
  %v3249 = vunpack.c.l.s8.bf16 %v2999
  %v3250 = vunpack.c.h.s8.bf16 %v2995
  %v3251 = vunpack.c.h.s8.bf16 %v2996
  %v3252 = vunpack.c.h.s8.bf16 %v2997
  %v3253 = vunpack.c.h.s8.bf16 %v2998
  %v3254 = vunpack.c.h.s8.bf16 %v2999
  %v3255 = vunpack.c.l.s8.bf16 %v3000
  %v3256 = vunpack.c.l.s8.bf16 %v3001
  %v3257 = vunpack.c.l.s8.bf16 %v3002
  %v3258 = vunpack.c.l.s8.bf16 %v3003
  %v3259 = vunpack.c.l.s8.bf16 %v3004
  %v3260 = vunpack.c.h.s8.bf16 %v3000
  %v3261 = vunpack.c.h.s8.bf16 %v3001
  %v3262 = vunpack.c.h.s8.bf16 %v3002
  %v3263 = vunpack.c.h.s8.bf16 %v3003
  %v3264 = vunpack.c.h.s8.bf16 %v3004
  %v3265 = vunpack.c.l.s8.bf16 %v3005
  %v3266 = vunpack.c.l.s8.bf16 %v3006
  %v3267 = vunpack.c.l.s8.bf16 %v3007
  %v3268 = vunpack.c.l.s8.bf16 %v3008
  %v3269 = vunpack.c.l.s8.bf16 %v3009
  %v3270 = vunpack.c.h.s8.bf16 %v3005
  %v3271 = vunpack.c.h.s8.bf16 %v3006
  %v3272 = vunpack.c.h.s8.bf16 %v3007
  %v3273 = vunpack.c.h.s8.bf16 %v3008
  %v3274 = vunpack.c.h.s8.bf16 %v3009
  %v3275 = vunpack.c.l.s8.bf16 %v3010
  %v3276 = vunpack.c.l.s8.bf16 %v3011
  %v3277 = vunpack.c.l.s8.bf16 %v3012
  %v3278 = vunpack.c.l.s8.bf16 %v3013
  %v3279 = vunpack.c.l.s8.bf16 %v3014
  %v3280 = vunpack.c.h.s8.bf16 %v3010
  %v3281 = vunpack.c.h.s8.bf16 %v3011
  %v3282 = vunpack.c.h.s8.bf16 %v3012
  %v3283 = vunpack.c.h.s8.bf16 %v3013
  %v3284 = vunpack.c.h.s8.bf16 %v3014
  %v3285 = vunpack.c.l.s8.bf16 %v3015
  %v3286 = vunpack.c.l.s8.bf16 %v3016
  %v3287 = vunpack.c.l.s8.bf16 %v3017
  %v3288 = vunpack.c.l.s8.bf16 %v3018
  %v3289 = vunpack.c.l.s8.bf16 %v3019
  %v3290 = vunpack.c.h.s8.bf16 %v3015
  %v3291 = vunpack.c.h.s8.bf16 %v3016
  %v3292 = vunpack.c.h.s8.bf16 %v3017
  %v3293 = vunpack.c.h.s8.bf16 %v3018
  %v3294 = vunpack.c.h.s8.bf16 %v3019
  %v3295 = vunpack.c.l.s8.bf16 %v3020
  %v3296 = vunpack.c.l.s8.bf16 %v3021
  %v3297 = vunpack.c.l.s8.bf16 %v3022
  %v3298 = vunpack.c.l.s8.bf16 %v3023
  %v3299 = vunpack.c.l.s8.bf16 %v3024
  %v3300 = vunpack.c.h.s8.bf16 %v3020
  %v3301 = vunpack.c.h.s8.bf16 %v3021
  %v3302 = vunpack.c.h.s8.bf16 %v3022
  %v3303 = vunpack.c.h.s8.bf16 %v3023
  %v3304 = vunpack.c.h.s8.bf16 %v3024
  %v3305 = vunpack.c.l.s8.bf16 %v3025
  %v3306 = vunpack.c.l.s8.bf16 %v3026
  %v3307 = vunpack.c.l.s8.bf16 %v3027
  %v3308 = vunpack.c.l.s8.bf16 %v3028
  %v3309 = vunpack.c.l.s8.bf16 %v3029
  %v3310 = vunpack.c.h.s8.bf16 %v3025
  %v3311 = vunpack.c.h.s8.bf16 %v3026
  %v3312 = vunpack.c.h.s8.bf16 %v3027
  %v3313 = vunpack.c.h.s8.bf16 %v3028
  %v3314 = vunpack.c.h.s8.bf16 %v3029
  %v3315 = vunpack.c.l.s8.bf16 %v3030
  %v3316 = vunpack.c.l.s8.bf16 %v3031
  %v3317 = vunpack.c.l.s8.bf16 %v3032
  %v3318 = vunpack.c.l.s8.bf16 %v3033
  %v3319 = vunpack.c.l.s8.bf16 %v3034
  %v3320 = vunpack.c.h.s8.bf16 %v3030
  %v3321 = vunpack.c.h.s8.bf16 %v3031
  %v3322 = vunpack.c.h.s8.bf16 %v3032
  %v3323 = vunpack.c.h.s8.bf16 %v3033
  %v3324 = vunpack.c.h.s8.bf16 %v3034
  %v3325 = vunpack.c.l.s8.bf16 %v3035
  %v3326 = vunpack.c.l.s8.bf16 %v3036
  %v3327 = vunpack.c.l.s8.bf16 %v3037
  %v3328 = vunpack.c.l.s8.bf16 %v3038
  %v3329 = vunpack.c.l.s8.bf16 %v3039
  %v3330 = vunpack.c.h.s8.bf16 %v3035
  %v3331 = vunpack.c.h.s8.bf16 %v3036
  %v3332 = vunpack.c.h.s8.bf16 %v3037
  %v3333 = vunpack.c.h.s8.bf16 %v3038
  %v3334 = vunpack.c.h.s8.bf16 %v3039
  %v3335 = vunpack.c.l.s8.bf16 %v3040
  %v3336 = vunpack.c.l.s8.bf16 %v3041
  %v3337 = vunpack.c.l.s8.bf16 %v3042
  %v3338 = vunpack.c.l.s8.bf16 %v3043
  %v3339 = vunpack.c.l.s8.bf16 %v3044
  %v3340 = vunpack.c.h.s8.bf16 %v3040
  %v3341 = vunpack.c.h.s8.bf16 %v3041
  %v3342 = vunpack.c.h.s8.bf16 %v3042
  %v3343 = vunpack.c.h.s8.bf16 %v3043
  %v3344 = vunpack.c.h.s8.bf16 %v3044
  %v3345 = vunpack.c.l.s8.bf16 %v3045
  %v3346 = vunpack.c.l.s8.bf16 %v3046
  %v3347 = vunpack.c.l.s8.bf16 %v3047
  %v3348 = vunpack.c.l.s8.bf16 %v3048
  %v3349 = vunpack.c.l.s8.bf16 %v3049
  %v3350 = vunpack.c.h.s8.bf16 %v3045
  %v3351 = vunpack.c.h.s8.bf16 %v3046
  %v3352 = vunpack.c.h.s8.bf16 %v3047
  %v3353 = vunpack.c.h.s8.bf16 %v3048
  %v3354 = vunpack.c.h.s8.bf16 %v3049
  %v3355 = vunpack.c.l.s8.bf16 %v3050
  %v3356 = vunpack.c.l.s8.bf16 %v3051
  %v3357 = vunpack.c.l.s8.bf16 %v3052
  %v3358 = vunpack.c.l.s8.bf16 %v3053
  %v3359 = vunpack.c.l.s8.bf16 %v3054
  %v3360 = vunpack.c.h.s8.bf16 %v3050
  %v3361 = vunpack.c.h.s8.bf16 %v3051
  %v3362 = vunpack.c.h.s8.bf16 %v3052
  %v3363 = vunpack.c.h.s8.bf16 %v3053
  %v3364 = vunpack.c.h.s8.bf16 %v3054
  %v3365 = vunpack.c.l.s8.bf16 %v3055
  %v3366 = vunpack.c.l.s8.bf16 %v3056
  %v3367 = vunpack.c.l.s8.bf16 %v3057
  %v3368 = vunpack.c.l.s8.bf16 %v3058
  %v3369 = vunpack.c.l.s8.bf16 %v3059
  %v3370 = vunpack.c.h.s8.bf16 %v3055
  %v3371 = vunpack.c.h.s8.bf16 %v3056
  %v3372 = vunpack.c.h.s8.bf16 %v3057
  %v3373 = vunpack.c.h.s8.bf16 %v3058
  %v3374 = vunpack.c.h.s8.bf16 %v3059
  %v3375 = vunpack.c.l.s8.bf16 %v3060
  %v3376 = vunpack.c.l.s8.bf16 %v3061
  %v3377 = vunpack.c.l.s8.bf16 %v3062
  %v3378 = vunpack.c.l.s8.bf16 %v3063
  %v3379 = vunpack.c.l.s8.bf16 %v3064
  %v3380 = vunpack.c.h.s8.bf16 %v3060
  %v3381 = vunpack.c.h.s8.bf16 %v3061
  %v3382 = vunpack.c.h.s8.bf16 %v3062
  %v3383 = vunpack.c.h.s8.bf16 %v3063
  %v3384 = vunpack.c.h.s8.bf16 %v3064
  %v3385 = vunpack.c.l.s8.bf16 %v3065
  %v3386 = vunpack.c.l.s8.bf16 %v3066
  %v3387 = vunpack.c.l.s8.bf16 %v3067
  %v3388 = vunpack.c.l.s8.bf16 %v3068
  %v3389 = vunpack.c.l.s8.bf16 %v3069
  %v3390 = vunpack.c.h.s8.bf16 %v3065
  %v3391 = vunpack.c.h.s8.bf16 %v3066
  %v3392 = vunpack.c.h.s8.bf16 %v3067
  %v3393 = vunpack.c.h.s8.bf16 %v3068
  %v3394 = vunpack.c.h.s8.bf16 %v3069
  %v3395 = vunpack.c.l.s8.bf16 %v3070
  %v3396 = vunpack.c.l.s8.bf16 %v3071
  %v3397 = vunpack.c.l.s8.bf16 %v3072
  %v3398 = vunpack.c.l.s8.bf16 %v3073
  %v3399 = vunpack.c.l.s8.bf16 %v3074
  %v3400 = vunpack.c.h.s8.bf16 %v3070
  %v3401 = vunpack.c.h.s8.bf16 %v3071
  %v3402 = vunpack.c.h.s8.bf16 %v3072
  %v3403 = vunpack.c.h.s8.bf16 %v3073
  %v3404 = vunpack.c.h.s8.bf16 %v3074
  %v3405 = vunpack.c.l.s8.bf16 %v3075
  %v3406 = vunpack.c.l.s8.bf16 %v3076
  %v3407 = vunpack.c.l.s8.bf16 %v3077
  %v3408 = vunpack.c.l.s8.bf16 %v3078
  %v3409 = vunpack.c.l.s8.bf16 %v3079
  %v3410 = vunpack.c.h.s8.bf16 %v3075
  %v3411 = vunpack.c.h.s8.bf16 %v3076
  %v3412 = vunpack.c.h.s8.bf16 %v3077
  %v3413 = vunpack.c.h.s8.bf16 %v3078
  %v3414 = vunpack.c.h.s8.bf16 %v3079
  %v3415 = vunpack.c.l.s8.bf16 %v3080
  %v3416 = vunpack.c.l.s8.bf16 %v3081
  %v3417 = vunpack.c.l.s8.bf16 %v3082
  %v3418 = vunpack.c.l.s8.bf16 %v3083
  %v3419 = vunpack.c.l.s8.bf16 %v3084
  %v3420 = vunpack.c.h.s8.bf16 %v3080
  %v3421 = vunpack.c.h.s8.bf16 %v3081
  %v3422 = vunpack.c.h.s8.bf16 %v3082
  %v3423 = vunpack.c.h.s8.bf16 %v3083
  %v3424 = vunpack.c.h.s8.bf16 %v3084
  %v3425 = vunpack.c.l.s8.bf16 %v3085
  %v3426 = vunpack.c.l.s8.bf16 %v3086
  %v3427 = vunpack.c.l.s8.bf16 %v3087
  %v3428 = vunpack.c.l.s8.bf16 %v3088
  %v3429 = vunpack.c.l.s8.bf16 %v3089
  %v3430 = vunpack.c.h.s8.bf16 %v3085
  %v3431 = vunpack.c.h.s8.bf16 %v3086
  %v3432 = vunpack.c.h.s8.bf16 %v3087
  %v3433 = vunpack.c.h.s8.bf16 %v3088
  %v3434 = vunpack.c.h.s8.bf16 %v3089
  %v3435 = vunpack.c.l.s8.bf16 %v3090
  %v3436 = vunpack.c.l.s8.bf16 %v3091
  %v3437 = vunpack.c.l.s8.bf16 %v3092
  %v3438 = vunpack.c.l.s8.bf16 %v3093
  %v3439 = vunpack.c.l.s8.bf16 %v3094
  %v3440 = vunpack.c.h.s8.bf16 %v3090
  %v3441 = vunpack.c.h.s8.bf16 %v3091
  %v3442 = vunpack.c.h.s8.bf16 %v3092
  %v3443 = vunpack.c.h.s8.bf16 %v3093
  %v3444 = vunpack.c.h.s8.bf16 %v3094
  %v3445 = vunpack.c.l.s8.bf16 %v3095
  %v3446 = vunpack.c.l.s8.bf16 %v3096
  %v3447 = vunpack.c.l.s8.bf16 %v3097
  %v3448 = vunpack.c.l.s8.bf16 %v3098
  %v3449 = vunpack.c.l.s8.bf16 %v3099
  %v3450 = vunpack.c.h.s8.bf16 %v3095
  %v3451 = vunpack.c.h.s8.bf16 %v3096
  %v3452 = vunpack.c.h.s8.bf16 %v3097
  %v3453 = vunpack.c.h.s8.bf16 %v3098
  %v3454 = vunpack.c.h.s8.bf16 %v3099
  %v3455 = vunpack.c.l.s8.bf16 %v3100
  %v3456 = vunpack.c.l.s8.bf16 %v3101
  %v3457 = vunpack.c.l.s8.bf16 %v3102
  %v3458 = vunpack.c.l.s8.bf16 %v3103
  %v3459 = vunpack.c.l.s8.bf16 %v3104
  %v3460 = vunpack.c.h.s8.bf16 %v3100
  %v3461 = vunpack.c.h.s8.bf16 %v3101
  %v3462 = vunpack.c.h.s8.bf16 %v3102
  %v3463 = vunpack.c.h.s8.bf16 %v3103
  %v3464 = vunpack.c.h.s8.bf16 %v3104
  %v3465 = vunpack.c.l.s8.bf16 %v3105
  %v3466 = vunpack.c.l.s8.bf16 %v3106
  %v3467 = vunpack.c.l.s8.bf16 %v3107
  %v3468 = vunpack.c.l.s8.bf16 %v3108
  %v3469 = vunpack.c.l.s8.bf16 %v3109
  %v3470 = vunpack.c.h.s8.bf16 %v3105
  %v3471 = vunpack.c.h.s8.bf16 %v3106
  %v3472 = vunpack.c.h.s8.bf16 %v3107
  %v3473 = vunpack.c.h.s8.bf16 %v3108
  %v3474 = vunpack.c.h.s8.bf16 %v3109
  %v3475 = vunpack.c.l.s8.bf16 %v3110
  %v3476 = vunpack.c.l.s8.bf16 %v3111
  %v3477 = vunpack.c.l.s8.bf16 %v3112
  %v3478 = vunpack.c.l.s8.bf16 %v3113
  %v3479 = vunpack.c.l.s8.bf16 %v3114
  %v3480 = vunpack.c.h.s8.bf16 %v3110
  %v3481 = vunpack.c.h.s8.bf16 %v3111
  %v3482 = vunpack.c.h.s8.bf16 %v3112
  %v3483 = vunpack.c.h.s8.bf16 %v3113
  %v3484 = vunpack.c.h.s8.bf16 %v3114
  %v3485 = vunpack.c.l.s8.bf16 %v3115
  %v3486 = vunpack.c.l.s8.bf16 %v3116
  %v3487 = vunpack.c.l.s8.bf16 %v3117
  %v3488 = vunpack.c.l.s8.bf16 %v3118
  %v3489 = vunpack.c.l.s8.bf16 %v3119
  %v3490 = vunpack.c.h.s8.bf16 %v3115
  %v3491 = vunpack.c.h.s8.bf16 %v3116
  %v3492 = vunpack.c.h.s8.bf16 %v3117
  %v3493 = vunpack.c.h.s8.bf16 %v3118
  %v3494 = vunpack.c.h.s8.bf16 %v3119
  %v3495 = vunpack.c.l.s8.bf16 %v3120
  %v3496 = vunpack.c.l.s8.bf16 %v3121
  %v3497 = vunpack.c.l.s8.bf16 %v3122
  %v3498 = vunpack.c.l.s8.bf16 %v3123
  %v3499 = vunpack.c.l.s8.bf16 %v3124
  %v3500 = vunpack.c.h.s8.bf16 %v3120
  %v3501 = vunpack.c.h.s8.bf16 %v3121
  %v3502 = vunpack.c.h.s8.bf16 %v3122
  %v3503 = vunpack.c.h.s8.bf16 %v3123
  %v3504 = vunpack.c.h.s8.bf16 %v3124
  %v3505 = vunpack.c.l.s8.bf16 %v3125
  %v3506 = vunpack.c.l.s8.bf16 %v3126
  %v3507 = vunpack.c.l.s8.bf16 %v3127
  %v3508 = vunpack.c.l.s8.bf16 %v3128
  %v3509 = vunpack.c.l.s8.bf16 %v3129
  %v3510 = vunpack.c.h.s8.bf16 %v3125
  %v3511 = vunpack.c.h.s8.bf16 %v3126
  %v3512 = vunpack.c.h.s8.bf16 %v3127
  %v3513 = vunpack.c.h.s8.bf16 %v3128
  %v3514 = vunpack.c.h.s8.bf16 %v3129
  %v3515 = vunpack.c.l.s8.bf16 %v3130
  %v3516 = vunpack.c.l.s8.bf16 %v3131
  %v3517 = vunpack.c.l.s8.bf16 %v3132
  %v3518 = vunpack.c.l.s8.bf16 %v3133
  %v3519 = vunpack.c.l.s8.bf16 %v3134
  %v3520 = vunpack.c.h.s8.bf16 %v3130
  %v3521 = vunpack.c.h.s8.bf16 %v3131
  %v3522 = vunpack.c.h.s8.bf16 %v3132
  %v3523 = vunpack.c.h.s8.bf16 %v3133
  %v3524 = vunpack.c.h.s8.bf16 %v3134
  %v3525 = vunpack.c.l.s8.bf16 %v3135
  %v3526 = vunpack.c.l.s8.bf16 %v3136
  %v3527 = vunpack.c.l.s8.bf16 %v3137
  %v3528 = vunpack.c.l.s8.bf16 %v3138
  %v3529 = vunpack.c.l.s8.bf16 %v3139
  %v3530 = vunpack.c.h.s8.bf16 %v3135
  %v3531 = vunpack.c.h.s8.bf16 %v3136
  %v3532 = vunpack.c.h.s8.bf16 %v3137
  %v3533 = vunpack.c.h.s8.bf16 %v3138
  %v3534 = vunpack.c.h.s8.bf16 %v3139
  %v3535 = vunpack.c.l.s8.bf16 %v3140
  %v3536 = vunpack.c.l.s8.bf16 %v3141
  %v3537 = vunpack.c.l.s8.bf16 %v3142
  %v3538 = vunpack.c.l.s8.bf16 %v3143
  %v3539 = vunpack.c.l.s8.bf16 %v3144
  %v3540 = vunpack.c.h.s8.bf16 %v3140
  %v3541 = vunpack.c.h.s8.bf16 %v3141
  %v3542 = vunpack.c.h.s8.bf16 %v3142
  %v3543 = vunpack.c.h.s8.bf16 %v3143
  %v3544 = vunpack.c.h.s8.bf16 %v3144
  %v3545 = vunpack.c.l.s8.bf16 %v3145
  %v3546 = vunpack.c.l.s8.bf16 %v3146
  %v3547 = vunpack.c.l.s8.bf16 %v3147
  %v3548 = vunpack.c.l.s8.bf16 %v3148
  %v3549 = vunpack.c.l.s8.bf16 %v3149
  %v3550 = vunpack.c.h.s8.bf16 %v3145
  %v3551 = vunpack.c.h.s8.bf16 %v3146
  %v3552 = vunpack.c.h.s8.bf16 %v3147
  %v3553 = vunpack.c.h.s8.bf16 %v3148
  %v3554 = vunpack.c.h.s8.bf16 %v3149
  %v3555 = vunpack.c.l.s8.bf16 %v3150
  %v3556 = vunpack.c.l.s8.bf16 %v3151
  %v3557 = vunpack.c.l.s8.bf16 %v3152
  %v3558 = vunpack.c.l.s8.bf16 %v3153
  %v3559 = vunpack.c.l.s8.bf16 %v3154
  %v3560 = vunpack.c.h.s8.bf16 %v3150
  %v3561 = vunpack.c.h.s8.bf16 %v3151
  %v3562 = vunpack.c.h.s8.bf16 %v3152
  %v3563 = vunpack.c.h.s8.bf16 %v3153
  %v3564 = vunpack.c.h.s8.bf16 %v3154
  %v3565 = vunpack.c.l.s8.bf16 %v3155
  %v3566 = vunpack.c.l.s8.bf16 %v3156
  %v3567 = vunpack.c.l.s8.bf16 %v3157
  %v3568 = vunpack.c.l.s8.bf16 %v3158
  %v3569 = vunpack.c.l.s8.bf16 %v3159
  %v3570 = vunpack.c.h.s8.bf16 %v3155
  %v3571 = vunpack.c.h.s8.bf16 %v3156
  %v3572 = vunpack.c.h.s8.bf16 %v3157
  %v3573 = vunpack.c.h.s8.bf16 %v3158
  %v3574 = vunpack.c.h.s8.bf16 %v3159
  %v3575 = vunpack.c.l.s8.bf16 %v3160
  %v3576 = vunpack.c.l.s8.bf16 %v3161
  %v3577 = vunpack.c.l.s8.bf16 %v3162
  %v3578 = vunpack.c.l.s8.bf16 %v3163
  %v3579 = vunpack.c.l.s8.bf16 %v3164
  %v3580 = vunpack.c.h.s8.bf16 %v3160
  %v3581 = vunpack.c.h.s8.bf16 %v3161
  %v3582 = vunpack.c.h.s8.bf16 %v3162
  %v3583 = vunpack.c.h.s8.bf16 %v3163
  %v3584 = vunpack.c.h.s8.bf16 %v3164
  %v3585 = vunpack.c.l.s8.bf16 %v3165
  %v3586 = vunpack.c.l.s8.bf16 %v3166
  %v3587 = vunpack.c.l.s8.bf16 %v3167
  %v3588 = vunpack.c.l.s8.bf16 %v3168
  %v3589 = vunpack.c.l.s8.bf16 %v3169
  %v3590 = vunpack.c.h.s8.bf16 %v3165
  %v3591 = vunpack.c.h.s8.bf16 %v3166
  %v3592 = vunpack.c.h.s8.bf16 %v3167
  %v3593 = vunpack.c.h.s8.bf16 %v3168
  %v3594 = vunpack.c.h.s8.bf16 %v3169
  %v3595 = vunpack.c.l.s8.bf16 %v3170
  %v3596 = vunpack.c.l.s8.bf16 %v3171
  %v3597 = vunpack.c.l.s8.bf16 %v3172
  %v3598 = vunpack.c.l.s8.bf16 %v3173
  %v3599 = vunpack.c.l.s8.bf16 %v3174
  %v3600 = vunpack.c.h.s8.bf16 %v3170
  %v3601 = vunpack.c.h.s8.bf16 %v3171
  %v3602 = vunpack.c.h.s8.bf16 %v3172
  %v3603 = vunpack.c.h.s8.bf16 %v3173
  %v3604 = vunpack.c.h.s8.bf16 %v3174
  %v3605 = vunpack.c.l.s8.bf16 %v3175
  %v3606 = vunpack.c.l.s8.bf16 %v3176
  %v3607 = vunpack.c.l.s8.bf16 %v3177
  %v3608 = vunpack.c.l.s8.bf16 %v3178
  %v3609 = vunpack.c.l.s8.bf16 %v3179
  %v3610 = vunpack.c.h.s8.bf16 %v3175
  %v3611 = vunpack.c.h.s8.bf16 %v3176
  %v3612 = vunpack.c.h.s8.bf16 %v3177
  %v3613 = vunpack.c.h.s8.bf16 %v3178
  %v3614 = vunpack.c.h.s8.bf16 %v3179
  %v3615 = vunpack.c.l.s8.bf16 %v3180
  %v3616 = vunpack.c.l.s8.bf16 %v3181
  %v3617 = vunpack.c.l.s8.bf16 %v3182
  %v3618 = vunpack.c.l.s8.bf16 %v3183
  %v3619 = vunpack.c.l.s8.bf16 %v3184
  %v3620 = vunpack.c.h.s8.bf16 %v3180
  %v3621 = vunpack.c.h.s8.bf16 %v3181
  %v3622 = vunpack.c.h.s8.bf16 %v3182
  %v3623 = vunpack.c.h.s8.bf16 %v3183
  %v3624 = vunpack.c.h.s8.bf16 %v3184
  %v3625 = vunpack.c.l.s8.bf16 %v3185
  %v3626 = vunpack.c.l.s8.bf16 %v3186
  %v3627 = vunpack.c.l.s8.bf16 %v3187
  %v3628 = vunpack.c.l.s8.bf16 %v3188
  %v3629 = vunpack.c.l.s8.bf16 %v3189
  %v3630 = vunpack.c.h.s8.bf16 %v3185
  %v3631 = vunpack.c.h.s8.bf16 %v3186
  %v3632 = vunpack.c.h.s8.bf16 %v3187
  %v3633 = vunpack.c.h.s8.bf16 %v3188
  %v3634 = vunpack.c.h.s8.bf16 %v3189
  %v3635 = vunpack.c.l.s8.bf16 %v3190
  %v3636 = vunpack.c.l.s8.bf16 %v3191
  %v3637 = vunpack.c.l.s8.bf16 %v3192
  %v3638 = vunpack.c.l.s8.bf16 %v3193
  %v3639 = vunpack.c.l.s8.bf16 %v3194
  %v3640 = vunpack.c.h.s8.bf16 %v3190
  %v3641 = vunpack.c.h.s8.bf16 %v3191
  %v3642 = vunpack.c.h.s8.bf16 %v3192
  %v3643 = vunpack.c.h.s8.bf16 %v3193
  %v3644 = vunpack.c.h.s8.bf16 %v3194
  %v3645 = vunpack.c.l.s8.bf16 %v3195
  %v3646 = vunpack.c.l.s8.bf16 %v3196
  %v3647 = vunpack.c.l.s8.bf16 %v3197
  %v3648 = vunpack.c.l.s8.bf16 %v3198
  %v3649 = vunpack.c.l.s8.bf16 %v3199
  %v3650 = vunpack.c.h.s8.bf16 %v3195
  %v3651 = vunpack.c.h.s8.bf16 %v3196
  %v3652 = vunpack.c.h.s8.bf16 %v3197
  %v3653 = vunpack.c.h.s8.bf16 %v3198
  %v3654 = vunpack.c.h.s8.bf16 %v3199
  %v3655 = vunpack.c.l.s8.bf16 %v3200
  %v3656 = vunpack.c.l.s8.bf16 %v3201
  %v3657 = vunpack.c.l.s8.bf16 %v3202
  %v3658 = vunpack.c.l.s8.bf16 %v3203
  %v3659 = vunpack.c.l.s8.bf16 %v3204
  %v3660 = vunpack.c.h.s8.bf16 %v3200
  %v3661 = vunpack.c.h.s8.bf16 %v3201
  %v3662 = vunpack.c.h.s8.bf16 %v3202
  %v3663 = vunpack.c.h.s8.bf16 %v3203
  %v3664 = vunpack.c.h.s8.bf16 %v3204
  %v3665 = vunpack.c.l.s8.bf16 %v3205
  %v3666 = vunpack.c.l.s8.bf16 %v3206
  %v3667 = vunpack.c.l.s8.bf16 %v3207
  %v3668 = vunpack.c.l.s8.bf16 %v3208
  %v3669 = vunpack.c.l.s8.bf16 %v3209
  %v3670 = vunpack.c.h.s8.bf16 %v3205
  %v3671 = vunpack.c.h.s8.bf16 %v3206
  %v3672 = vunpack.c.h.s8.bf16 %v3207
  %v3673 = vunpack.c.h.s8.bf16 %v3208
  %v3674 = vunpack.c.h.s8.bf16 %v3209
  %v3675 = vunpack.c.l.s8.bf16 %v3210
  %v3676 = vunpack.c.l.s8.bf16 %v3211
  %v3677 = vunpack.c.l.s8.bf16 %v3212
  %v3678 = vunpack.c.l.s8.bf16 %v3213
  %v3679 = vunpack.c.l.s8.bf16 %v3214
  %v3680 = vunpack.c.h.s8.bf16 %v3210
  %v3681 = vunpack.c.h.s8.bf16 %v3211
  %v3682 = vunpack.c.h.s8.bf16 %v3212
  %v3683 = vunpack.c.h.s8.bf16 %v3213
  %v3684 = vunpack.c.h.s8.bf16 %v3214
  %v3685 = vunpack.c.l.s8.bf16 %v3215
  %v3686 = vunpack.c.l.s8.bf16 %v3216
  %v3687 = vunpack.c.l.s8.bf16 %v3217
  %v3688 = vunpack.c.l.s8.bf16 %v3218
  %v3689 = vunpack.c.l.s8.bf16 %v3219
  %v3690 = vunpack.c.h.s8.bf16 %v3215
  %v3691 = vunpack.c.h.s8.bf16 %v3216
  %v3692 = vunpack.c.h.s8.bf16 %v3217
  %v3693 = vunpack.c.h.s8.bf16 %v3218
  %v3694 = vunpack.c.h.s8.bf16 %v3219
  %v3695 = vunpack.c.l.s8.bf16 %v3220
  %v3696 = vunpack.c.l.s8.bf16 %v3221
  %v3697 = vunpack.c.l.s8.bf16 %v3222
  %v3698 = vunpack.c.l.s8.bf16 %v3223
  %v3699 = vunpack.c.l.s8.bf16 %v3224
  %v3700 = vunpack.c.h.s8.bf16 %v3220
  %v3701 = vunpack.c.h.s8.bf16 %v3221
  %v3702 = vunpack.c.h.s8.bf16 %v3222
  %v3703 = vunpack.c.h.s8.bf16 %v3223
  %v3704 = vunpack.c.h.s8.bf16 %v3224
  %v3713 = vrot.slane %v2969, 1
  %v3714 = vrot.slane %v2973, 1
  %v3715 = vsel %vm2566, %v3713, %v3714
  %v3716 = vrot.slane %v2970, 1
  %v3717 = vrot.slane %v2974, 1
  %v3718 = vsel %vm2566, %v3716, %v3717
  %v3719 = vrot.slane %v2971, 1
  %v3720 = vrot.slane %v2975, 1
  %v3721 = vsel %vm2566, %v3719, %v3720
  %v3722 = vrot.slane %v2972, 1
  %v3723 = vrot.slane %v2976, 1
  %v3724 = vsel %vm2566, %v3722, %v3723
  %v3737 = vsel %vm2566, %v3714, %v3713
  %v3738 = vsel %vm2566, %v3717, %v3716
  %v3739 = vsel %vm2566, %v3720, %v3719
  %v3740 = vsel %vm2566, %v3723, %v3722
  %v3741 = vrot.slane %v2969, 2
  %v3742 = vrot.slane %v2973, 2
  %v3743 = vsel %vm2581, %v3741, %v3742
  %v3744 = vrot.slane %v2970, 2
  %v3745 = vrot.slane %v2974, 2
  %v3746 = vsel %vm2581, %v3744, %v3745
  %v3747 = vrot.slane %v2971, 2
  %v3748 = vrot.slane %v2975, 2
  %v3749 = vsel %vm2581, %v3747, %v3748
  %v3750 = vrot.slane %v2972, 2
  %v3751 = vrot.slane %v2976, 2
  %v3752 = vsel %vm2581, %v3750, %v3751
  %v3765 = vsel %vm2581, %v3742, %v3741
  %v3766 = vsel %vm2581, %v3745, %v3744
  %v3767 = vsel %vm2581, %v3748, %v3747
  %v3768 = vsel %vm2581, %v3751, %v3750
  %v3769 = vpack.c.bf16 %v2973, %v2969
  %v3770 = vpack.c.bf16 %v2974, %v2970
  %v3771 = vpack.c.bf16 %v2975, %v2971
  %v3772 = vpack.c.bf16 %v2976, %v2972
  %v3773 = vpack.c.bf16 %v3737, %v3715
  %v3774 = vpack.c.bf16 %v3738, %v3718
  %v3775 = vpack.c.bf16 %v3739, %v3721
  %v3776 = vpack.c.bf16 %v3740, %v3724
  %v3777 = vpack.c.bf16 %v3765, %v3743
  %v3778 = vpack.c.bf16 %v3766, %v3746
  %v3779 = vpack.c.bf16 %v3767, %v3749
  %v3780 = vpack.c.bf16 %v3768, %v3752
  %3781 = vmatprep.subr.bf16.mxu0 %v3261
  %3782 = vmatpush1.bf16.msra.mxu0 %v3260
  %3783 = vmatprep.subr.bf16.mxu0 %v3256
  %3784 = vmatpush1.bf16.msra.mxu0 %v3255
  %3785 = vmatprep.subr.bf16.mxu0 %v3251
  %3786 = vmatpush1.bf16.msra.mxu0 %v3250
  %3787 = vmatprep.subr.bf16.mxu0 %v3246
  %3788 = vmatpush1.bf16.msra.mxu0 %v3245
  %3789 = vmatprep.subr.bf16.mxu0 %v3241
  %3790 = vmatpush1.bf16.msra.mxu0 %v3240
  %3791 = vmatprep.subr.bf16.mxu0 %v3236
  %3792 = vmatpush1.bf16.msra.mxu0 %v3235
  %3793 = vmatprep.subr.bf16.mxu0 %v3231
  %3794 = vmatpush1.bf16.msra.mxu0 %v3230
  %3795 = vmatprep.subr.bf16.mxu0 %v3226
  %3796 = vmatpush1.bf16.msra.mxu0 %v3225
  %3797 = vmatprep.subr.bf16.mxu0 %v3301
  %3798 = vmatpush2.bf16.msra.mxu0 %v3300
  %3799 = vmatprep.subr.bf16.mxu0 %v3296
  %3800 = vmatpush2.bf16.msra.mxu0 %v3295
  %3801 = vmatprep.subr.bf16.mxu0 %v3291
  %3802 = vmatpush2.bf16.msra.mxu0 %v3290
  %3803 = vmatprep.subr.bf16.mxu0 %v3286
  %3804 = vmatpush2.bf16.msra.mxu0 %v3285
  %3805 = vmatprep.subr.bf16.mxu0 %v3281
  %3806 = vmatpush2.bf16.msra.mxu0 %v3280
  %3807 = vmatprep.subr.bf16.mxu0 %v3276
  %3808 = vmatpush2.bf16.msra.mxu0 %v3275
  %3809 = vmatprep.subr.bf16.mxu0 %v3271
  %3810 = vmatpush2.bf16.msra.mxu0 %v3270
  %3811 = vmatprep.subr.bf16.mxu0 %v3266
  %3812 = vmatpush2.bf16.msra.mxu0 %v3265
  %3813 = vmatprep.mubr.bf16.mxu0 %v3770
  %3814 = vmatmul.mubr.bf16.gmra.mxu0 %v3769
  %v3815 = vpop.f32.mrf.mxu0
  %v3816 = vadd.f32 0.0, %v3815
  %v3817 = vpop.f32.mrf.mxu0
  %v3818 = vadd.f32 0.0, %v3817
  %v3819 = vpop.f32.mrf.mxu0
  %v3820 = vadd.f32 0.0, %v3819
  %v3821 = vpop.f32.mrf.mxu0
  %v3822 = vadd.f32 0.0, %v3821
  %3823 = vdwg.mxu0
  %3824 = vmatprep.subr.bf16.mxu0 %v3341
  %3825 = vmatpush1.bf16.msra.mxu0 %v3340
  %3826 = vmatprep.subr.bf16.mxu0 %v3336
  %3827 = vmatpush1.bf16.msra.mxu0 %v3335
  %3828 = vmatprep.subr.bf16.mxu0 %v3331
  %3829 = vmatpush1.bf16.msra.mxu0 %v3330
  %3830 = vmatprep.subr.bf16.mxu0 %v3326
  %3831 = vmatpush1.bf16.msra.mxu0 %v3325
  %3832 = vmatprep.subr.bf16.mxu0 %v3321
  %3833 = vmatpush1.bf16.msra.mxu0 %v3320
  %3834 = vmatprep.subr.bf16.mxu0 %v3316
  %3835 = vmatpush1.bf16.msra.mxu0 %v3315
  %3836 = vmatprep.subr.bf16.mxu0 %v3311
  %3837 = vmatpush1.bf16.msra.mxu0 %v3310
  %3838 = vmatprep.subr.bf16.mxu0 %v3306
  %3839 = vmatpush1.bf16.msra.mxu0 %v3305
  %3840 = vmatprep.subr.bf16.mxu0 %v3381
  %3841 = vmatpush2.bf16.msra.mxu0 %v3380
  %3842 = vmatprep.subr.bf16.mxu0 %v3376
  %3843 = vmatpush2.bf16.msra.mxu0 %v3375
  %3844 = vmatprep.subr.bf16.mxu0 %v3371
  %3845 = vmatpush2.bf16.msra.mxu0 %v3370
  %3846 = vmatprep.subr.bf16.mxu0 %v3366
  %3847 = vmatpush2.bf16.msra.mxu0 %v3365
  %3848 = vmatprep.subr.bf16.mxu0 %v3361
  %3849 = vmatpush2.bf16.msra.mxu0 %v3360
  %3850 = vmatprep.subr.bf16.mxu0 %v3356
  %3851 = vmatpush2.bf16.msra.mxu0 %v3355
  %3852 = vmatprep.subr.bf16.mxu0 %v3351
  %3853 = vmatpush2.bf16.msra.mxu0 %v3350
  %3854 = vmatprep.subr.bf16.mxu0 %v3346
  %3855 = vmatpush2.bf16.msra.mxu0 %v3345
  %3856 = vmatprep.mubr.bf16.mxu0 %v3772
  %3857 = vmatmul.mubr.bf16.gmra.mxu0 %v3771
  %v3858 = vpop.f32.mrf.mxu0
  %v3859 = vadd.f32 %v3816, %v3858
  %v3860 = vpop.f32.mrf.mxu0
  %v3861 = vadd.f32 %v3818, %v3860
  %v3862 = vpop.f32.mrf.mxu0
  %v3863 = vadd.f32 %v3820, %v3862
  %v3864 = vpop.f32.mrf.mxu0
  %v3865 = vadd.f32 %v3822, %v3864
  %3866 = vdwg.mxu0
  %3867 = vmatprep.subr.bf16.mxu0 %v3421
  %3868 = vmatpush1.bf16.msra.mxu0 %v3420
  %3869 = vmatprep.subr.bf16.mxu0 %v3416
  %3870 = vmatpush1.bf16.msra.mxu0 %v3415
  %3871 = vmatprep.subr.bf16.mxu0 %v3411
  %3872 = vmatpush1.bf16.msra.mxu0 %v3410
  %3873 = vmatprep.subr.bf16.mxu0 %v3406
  %3874 = vmatpush1.bf16.msra.mxu0 %v3405
  %3875 = vmatprep.subr.bf16.mxu0 %v3401
  %3876 = vmatpush1.bf16.msra.mxu0 %v3400
  %3877 = vmatprep.subr.bf16.mxu0 %v3396
  %3878 = vmatpush1.bf16.msra.mxu0 %v3395
  %3879 = vmatprep.subr.bf16.mxu0 %v3391
  %3880 = vmatpush1.bf16.msra.mxu0 %v3390
  %3881 = vmatprep.subr.bf16.mxu0 %v3386
  %3882 = vmatpush1.bf16.msra.mxu0 %v3385
  %3883 = vmatprep.subr.bf16.mxu0 %v3461
  %3884 = vmatpush2.bf16.msra.mxu0 %v3460
  %3885 = vmatprep.subr.bf16.mxu0 %v3456
  %3886 = vmatpush2.bf16.msra.mxu0 %v3455
  %3887 = vmatprep.subr.bf16.mxu0 %v3451
  %3888 = vmatpush2.bf16.msra.mxu0 %v3450
  %3889 = vmatprep.subr.bf16.mxu0 %v3446
  %3890 = vmatpush2.bf16.msra.mxu0 %v3445
  %3891 = vmatprep.subr.bf16.mxu0 %v3441
  %3892 = vmatpush2.bf16.msra.mxu0 %v3440
  %3893 = vmatprep.subr.bf16.mxu0 %v3436
  %3894 = vmatpush2.bf16.msra.mxu0 %v3435
  %3895 = vmatprep.subr.bf16.mxu0 %v3431
  %3896 = vmatpush2.bf16.msra.mxu0 %v3430
  %3897 = vmatprep.subr.bf16.mxu0 %v3426
  %3898 = vmatpush2.bf16.msra.mxu0 %v3425
  %3899 = vmatprep.mubr.bf16.mxu0 %v3774
  %3900 = vmatmul.mubr.bf16.gmra.mxu0 %v3773
  %v3901 = vpop.f32.mrf.mxu0
  %v3902 = vadd.f32 %v3859, %v3901
  %v3903 = vpop.f32.mrf.mxu0
  %v3904 = vadd.f32 %v3861, %v3903
  %v3905 = vpop.f32.mrf.mxu0
  %v3906 = vadd.f32 %v3863, %v3905
  %v3907 = vpop.f32.mrf.mxu0
  %v3908 = vadd.f32 %v3865, %v3907
  %3909 = vdwg.mxu0
  %3910 = vmatprep.subr.bf16.mxu0 %v3501
  %3911 = vmatpush1.bf16.msra.mxu0 %v3500
  %3912 = vmatprep.subr.bf16.mxu0 %v3496
  %3913 = vmatpush1.bf16.msra.mxu0 %v3495
  %3914 = vmatprep.subr.bf16.mxu0 %v3491
  %3915 = vmatpush1.bf16.msra.mxu0 %v3490
  %3916 = vmatprep.subr.bf16.mxu0 %v3486
  %3917 = vmatpush1.bf16.msra.mxu0 %v3485
  %3918 = vmatprep.subr.bf16.mxu0 %v3481
  %3919 = vmatpush1.bf16.msra.mxu0 %v3480
  %3920 = vmatprep.subr.bf16.mxu0 %v3476
  %3921 = vmatpush1.bf16.msra.mxu0 %v3475
  %3922 = vmatprep.subr.bf16.mxu0 %v3471
  %3923 = vmatpush1.bf16.msra.mxu0 %v3470
  %3924 = vmatprep.subr.bf16.mxu0 %v3466
  %3925 = vmatpush1.bf16.msra.mxu0 %v3465
  %3926 = vmatprep.subr.bf16.mxu0 %v3541
  %3927 = vmatpush2.bf16.msra.mxu0 %v3540
  %3928 = vmatprep.subr.bf16.mxu0 %v3536
  %3929 = vmatpush2.bf16.msra.mxu0 %v3535
  %3930 = vmatprep.subr.bf16.mxu0 %v3531
  %3931 = vmatpush2.bf16.msra.mxu0 %v3530
  %3932 = vmatprep.subr.bf16.mxu0 %v3526
  %3933 = vmatpush2.bf16.msra.mxu0 %v3525
  %3934 = vmatprep.subr.bf16.mxu0 %v3521
  %3935 = vmatpush2.bf16.msra.mxu0 %v3520
  %3936 = vmatprep.subr.bf16.mxu0 %v3516
  %3937 = vmatpush2.bf16.msra.mxu0 %v3515
  %3938 = vmatprep.subr.bf16.mxu0 %v3511
  %3939 = vmatpush2.bf16.msra.mxu0 %v3510
  %3940 = vmatprep.subr.bf16.mxu0 %v3506
  %3941 = vmatpush2.bf16.msra.mxu0 %v3505
  %3942 = vmatprep.mubr.bf16.mxu0 %v3776
  %3943 = vmatmul.mubr.bf16.gmra.mxu0 %v3775
  %v3944 = vpop.f32.mrf.mxu0
  %v3945 = vadd.f32 %v3902, %v3944
  %v3946 = vpop.f32.mrf.mxu0
  %v3947 = vadd.f32 %v3904, %v3946
  %v3948 = vpop.f32.mrf.mxu0
  %v3949 = vadd.f32 %v3906, %v3948
  %v3950 = vpop.f32.mrf.mxu0
  %v3951 = vadd.f32 %v3908, %v3950
  %3952 = vdwg.mxu0
  %3953 = vmatprep.subr.bf16.mxu0 %v3581
  %3954 = vmatpush1.bf16.msra.mxu0 %v3580
  %3955 = vmatprep.subr.bf16.mxu0 %v3576
  %3956 = vmatpush1.bf16.msra.mxu0 %v3575
  %3957 = vmatprep.subr.bf16.mxu0 %v3571
  %3958 = vmatpush1.bf16.msra.mxu0 %v3570
  %3959 = vmatprep.subr.bf16.mxu0 %v3566
  %3960 = vmatpush1.bf16.msra.mxu0 %v3565
  %3961 = vmatprep.subr.bf16.mxu0 %v3561
  %3962 = vmatpush1.bf16.msra.mxu0 %v3560
  %3963 = vmatprep.subr.bf16.mxu0 %v3556
  %3964 = vmatpush1.bf16.msra.mxu0 %v3555
  %3965 = vmatprep.subr.bf16.mxu0 %v3551
  %3966 = vmatpush1.bf16.msra.mxu0 %v3550
  %3967 = vmatprep.subr.bf16.mxu0 %v3546
  %3968 = vmatpush1.bf16.msra.mxu0 %v3545
  %3969 = vmatprep.subr.bf16.mxu0 %v3621
  %3970 = vmatpush2.bf16.msra.mxu0 %v3620
  %3971 = vmatprep.subr.bf16.mxu0 %v3616
  %3972 = vmatpush2.bf16.msra.mxu0 %v3615
  %3973 = vmatprep.subr.bf16.mxu0 %v3611
  %3974 = vmatpush2.bf16.msra.mxu0 %v3610
  %3975 = vmatprep.subr.bf16.mxu0 %v3606
  %3976 = vmatpush2.bf16.msra.mxu0 %v3605
  %3977 = vmatprep.subr.bf16.mxu0 %v3601
  %3978 = vmatpush2.bf16.msra.mxu0 %v3600
  %3979 = vmatprep.subr.bf16.mxu0 %v3596
  %3980 = vmatpush2.bf16.msra.mxu0 %v3595
  %3981 = vmatprep.subr.bf16.mxu0 %v3591
  %3982 = vmatpush2.bf16.msra.mxu0 %v3590
  %3983 = vmatprep.subr.bf16.mxu0 %v3586
  %3984 = vmatpush2.bf16.msra.mxu0 %v3585
  %3985 = vmatprep.mubr.bf16.mxu0 %v3778
  %3986 = vmatmul.mubr.bf16.gmra.mxu0 %v3777
  %v3987 = vpop.f32.mrf.mxu0
  %v3988 = vadd.f32 %v3945, %v3987
  %v3989 = vpop.f32.mrf.mxu0
  %v3990 = vadd.f32 %v3947, %v3989
  %v3991 = vpop.f32.mrf.mxu0
  %v3992 = vadd.f32 %v3949, %v3991
  %v3993 = vpop.f32.mrf.mxu0
  %v3994 = vadd.f32 %v3951, %v3993
  %3995 = vdwg.mxu0
  %3996 = vmatprep.subr.bf16.mxu0 %v3661
  %3997 = vmatpush1.bf16.msra.mxu0 %v3660
  %3998 = vmatprep.subr.bf16.mxu0 %v3656
  %3999 = vmatpush1.bf16.msra.mxu0 %v3655
  %4000 = vmatprep.subr.bf16.mxu0 %v3651
  %4001 = vmatpush1.bf16.msra.mxu0 %v3650
  %4002 = vmatprep.subr.bf16.mxu0 %v3646
  %4003 = vmatpush1.bf16.msra.mxu0 %v3645
  %4004 = vmatprep.subr.bf16.mxu0 %v3641
  %4005 = vmatpush1.bf16.msra.mxu0 %v3640
  %4006 = vmatprep.subr.bf16.mxu0 %v3636
  %4007 = vmatpush1.bf16.msra.mxu0 %v3635
  %4008 = vmatprep.subr.bf16.mxu0 %v3631
  %4009 = vmatpush1.bf16.msra.mxu0 %v3630
  %4010 = vmatprep.subr.bf16.mxu0 %v3626
  %4011 = vmatpush1.bf16.msra.mxu0 %v3625
  %4012 = vmatprep.subr.bf16.mxu0 %v3701
  %4013 = vmatpush2.bf16.msra.mxu0 %v3700
  %4014 = vmatprep.subr.bf16.mxu0 %v3696
  %4015 = vmatpush2.bf16.msra.mxu0 %v3695
  %4016 = vmatprep.subr.bf16.mxu0 %v3691
  %4017 = vmatpush2.bf16.msra.mxu0 %v3690
  %4018 = vmatprep.subr.bf16.mxu0 %v3686
  %4019 = vmatpush2.bf16.msra.mxu0 %v3685
  %4020 = vmatprep.subr.bf16.mxu0 %v3681
  %4021 = vmatpush2.bf16.msra.mxu0 %v3680
  %4022 = vmatprep.subr.bf16.mxu0 %v3676
  %4023 = vmatpush2.bf16.msra.mxu0 %v3675
  %4024 = vmatprep.subr.bf16.mxu0 %v3671
  %4025 = vmatpush2.bf16.msra.mxu0 %v3670
  %4026 = vmatprep.subr.bf16.mxu0 %v3666
  %4027 = vmatpush2.bf16.msra.mxu0 %v3665
  %4028 = vmatprep.mubr.bf16.mxu0 %v3780
  %4029 = vmatmul.mubr.bf16.gmra.mxu0 %v3779
  %v4030 = vpop.f32.mrf.mxu0
  %v4031 = vadd.f32 %v3988, %v4030
  %v4032 = vpop.f32.mrf.mxu0
  %v4033 = vadd.f32 %v3990, %v4032
  %v4034 = vpop.f32.mrf.mxu0
  %v4035 = vadd.f32 %v3992, %v4034
  %v4036 = vpop.f32.mrf.mxu0
  %v4037 = vadd.f32 %v3994, %v4036
  %4038 = vdwg.mxu0
  %4039 = vmatprep.subr.bf16.mxu0 %v3263
  %4040 = vmatpush1.bf16.msra.mxu0 %v3262
  %4041 = vmatprep.subr.bf16.mxu0 %v3258
  %4042 = vmatpush1.bf16.msra.mxu0 %v3257
  %4043 = vmatprep.subr.bf16.mxu0 %v3253
  %4044 = vmatpush1.bf16.msra.mxu0 %v3252
  %4045 = vmatprep.subr.bf16.mxu0 %v3248
  %4046 = vmatpush1.bf16.msra.mxu0 %v3247
  %4047 = vmatprep.subr.bf16.mxu0 %v3243
  %4048 = vmatpush1.bf16.msra.mxu0 %v3242
  %4049 = vmatprep.subr.bf16.mxu0 %v3238
  %4050 = vmatpush1.bf16.msra.mxu0 %v3237
  %4051 = vmatprep.subr.bf16.mxu0 %v3233
  %4052 = vmatpush1.bf16.msra.mxu0 %v3232
  %4053 = vmatprep.subr.bf16.mxu0 %v3228
  %4054 = vmatpush1.bf16.msra.mxu0 %v3227
  %4055 = vmatprep.subr.bf16.mxu0 %v3303
  %4056 = vmatpush2.bf16.msra.mxu0 %v3302
  %4057 = vmatprep.subr.bf16.mxu0 %v3298
  %4058 = vmatpush2.bf16.msra.mxu0 %v3297
  %4059 = vmatprep.subr.bf16.mxu0 %v3293
  %4060 = vmatpush2.bf16.msra.mxu0 %v3292
  %4061 = vmatprep.subr.bf16.mxu0 %v3288
  %4062 = vmatpush2.bf16.msra.mxu0 %v3287
  %4063 = vmatprep.subr.bf16.mxu0 %v3283
  %4064 = vmatpush2.bf16.msra.mxu0 %v3282
  %4065 = vmatprep.subr.bf16.mxu0 %v3278
  %4066 = vmatpush2.bf16.msra.mxu0 %v3277
  %4067 = vmatprep.subr.bf16.mxu0 %v3273
  %4068 = vmatpush2.bf16.msra.mxu0 %v3272
  %4069 = vmatprep.subr.bf16.mxu0 %v3268
  %4070 = vmatpush2.bf16.msra.mxu0 %v3267
  %4071 = vmatprep.mubr.bf16.mxu0 %v3770
  %4072 = vmatmul.mubr.bf16.gmra.mxu0 %v3769
  %v4073 = vpop.f32.mrf.mxu0
  %v4074 = vadd.f32 0.0, %v4073
  %v4075 = vpop.f32.mrf.mxu0
  %v4076 = vadd.f32 0.0, %v4075
  %v4077 = vpop.f32.mrf.mxu0
  %v4078 = vadd.f32 0.0, %v4077
  %v4079 = vpop.f32.mrf.mxu0
  %v4080 = vadd.f32 0.0, %v4079
  %4081 = vdwg.mxu0
  %4082 = vmatprep.subr.bf16.mxu0 %v3343
  %4083 = vmatpush1.bf16.msra.mxu0 %v3342
  %4084 = vmatprep.subr.bf16.mxu0 %v3338
  %4085 = vmatpush1.bf16.msra.mxu0 %v3337
  %4086 = vmatprep.subr.bf16.mxu0 %v3333
  %4087 = vmatpush1.bf16.msra.mxu0 %v3332
  %4088 = vmatprep.subr.bf16.mxu0 %v3328
  %4089 = vmatpush1.bf16.msra.mxu0 %v3327
  %4090 = vmatprep.subr.bf16.mxu0 %v3323
  %4091 = vmatpush1.bf16.msra.mxu0 %v3322
  %4092 = vmatprep.subr.bf16.mxu0 %v3318
  %4093 = vmatpush1.bf16.msra.mxu0 %v3317
  %4094 = vmatprep.subr.bf16.mxu0 %v3313
  %4095 = vmatpush1.bf16.msra.mxu0 %v3312
  %4096 = vmatprep.subr.bf16.mxu0 %v3308
  %4097 = vmatpush1.bf16.msra.mxu0 %v3307
  %4098 = vmatprep.subr.bf16.mxu0 %v3383
  %4099 = vmatpush2.bf16.msra.mxu0 %v3382
  %4100 = vmatprep.subr.bf16.mxu0 %v3378
  %4101 = vmatpush2.bf16.msra.mxu0 %v3377
  %4102 = vmatprep.subr.bf16.mxu0 %v3373
  %4103 = vmatpush2.bf16.msra.mxu0 %v3372
  %4104 = vmatprep.subr.bf16.mxu0 %v3368
  %4105 = vmatpush2.bf16.msra.mxu0 %v3367
  %4106 = vmatprep.subr.bf16.mxu0 %v3363
  %4107 = vmatpush2.bf16.msra.mxu0 %v3362
  %4108 = vmatprep.subr.bf16.mxu0 %v3358
  %4109 = vmatpush2.bf16.msra.mxu0 %v3357
  %4110 = vmatprep.subr.bf16.mxu0 %v3353
  %4111 = vmatpush2.bf16.msra.mxu0 %v3352
  %4112 = vmatprep.subr.bf16.mxu0 %v3348
  %4113 = vmatpush2.bf16.msra.mxu0 %v3347
  %4114 = vmatprep.mubr.bf16.mxu0 %v3772
  %4115 = vmatmul.mubr.bf16.gmra.mxu0 %v3771
  %v4116 = vpop.f32.mrf.mxu0
  %v4117 = vadd.f32 %v4074, %v4116
  %v4118 = vpop.f32.mrf.mxu0
  %v4119 = vadd.f32 %v4076, %v4118
  %v4120 = vpop.f32.mrf.mxu0
  %v4121 = vadd.f32 %v4078, %v4120
  %v4122 = vpop.f32.mrf.mxu0
  %v4123 = vadd.f32 %v4080, %v4122
  %4124 = vdwg.mxu0
  %4125 = vmatprep.subr.bf16.mxu0 %v3423
  %4126 = vmatpush1.bf16.msra.mxu0 %v3422
  %4127 = vmatprep.subr.bf16.mxu0 %v3418
  %4128 = vmatpush1.bf16.msra.mxu0 %v3417
  %4129 = vmatprep.subr.bf16.mxu0 %v3413
  %4130 = vmatpush1.bf16.msra.mxu0 %v3412
  %4131 = vmatprep.subr.bf16.mxu0 %v3408
  %4132 = vmatpush1.bf16.msra.mxu0 %v3407
  %4133 = vmatprep.subr.bf16.mxu0 %v3403
  %4134 = vmatpush1.bf16.msra.mxu0 %v3402
  %4135 = vmatprep.subr.bf16.mxu0 %v3398
  %4136 = vmatpush1.bf16.msra.mxu0 %v3397
  %4137 = vmatprep.subr.bf16.mxu0 %v3393
  %4138 = vmatpush1.bf16.msra.mxu0 %v3392
  %4139 = vmatprep.subr.bf16.mxu0 %v3388
  %4140 = vmatpush1.bf16.msra.mxu0 %v3387
  %4141 = vmatprep.subr.bf16.mxu0 %v3463
  %4142 = vmatpush2.bf16.msra.mxu0 %v3462
  %4143 = vmatprep.subr.bf16.mxu0 %v3458
  %4144 = vmatpush2.bf16.msra.mxu0 %v3457
  %4145 = vmatprep.subr.bf16.mxu0 %v3453
  %4146 = vmatpush2.bf16.msra.mxu0 %v3452
  %4147 = vmatprep.subr.bf16.mxu0 %v3448
  %4148 = vmatpush2.bf16.msra.mxu0 %v3447
  %4149 = vmatprep.subr.bf16.mxu0 %v3443
  %4150 = vmatpush2.bf16.msra.mxu0 %v3442
  %4151 = vmatprep.subr.bf16.mxu0 %v3438
  %4152 = vmatpush2.bf16.msra.mxu0 %v3437
  %4153 = vmatprep.subr.bf16.mxu0 %v3433
  %4154 = vmatpush2.bf16.msra.mxu0 %v3432
  %4155 = vmatprep.subr.bf16.mxu0 %v3428
  %4156 = vmatpush2.bf16.msra.mxu0 %v3427
  %4157 = vmatprep.mubr.bf16.mxu0 %v3774
  %4158 = vmatmul.mubr.bf16.gmra.mxu0 %v3773
  %v4159 = vpop.f32.mrf.mxu0
  %v4160 = vadd.f32 %v4117, %v4159
  %v4161 = vpop.f32.mrf.mxu0
  %v4162 = vadd.f32 %v4119, %v4161
  %v4163 = vpop.f32.mrf.mxu0
  %v4164 = vadd.f32 %v4121, %v4163
  %v4165 = vpop.f32.mrf.mxu0
  %v4166 = vadd.f32 %v4123, %v4165
  %4167 = vdwg.mxu0
  %4168 = vmatprep.subr.bf16.mxu0 %v3503
  %4169 = vmatpush1.bf16.msra.mxu0 %v3502
  %4170 = vmatprep.subr.bf16.mxu0 %v3498
  %4171 = vmatpush1.bf16.msra.mxu0 %v3497
  %4172 = vmatprep.subr.bf16.mxu0 %v3493
  %4173 = vmatpush1.bf16.msra.mxu0 %v3492
  %4174 = vmatprep.subr.bf16.mxu0 %v3488
  %4175 = vmatpush1.bf16.msra.mxu0 %v3487
  %4176 = vmatprep.subr.bf16.mxu0 %v3483
  %4177 = vmatpush1.bf16.msra.mxu0 %v3482
  %4178 = vmatprep.subr.bf16.mxu0 %v3478
  %4179 = vmatpush1.bf16.msra.mxu0 %v3477
  %4180 = vmatprep.subr.bf16.mxu0 %v3473
  %4181 = vmatpush1.bf16.msra.mxu0 %v3472
  %4182 = vmatprep.subr.bf16.mxu0 %v3468
  %4183 = vmatpush1.bf16.msra.mxu0 %v3467
  %4184 = vmatprep.subr.bf16.mxu0 %v3543
  %4185 = vmatpush2.bf16.msra.mxu0 %v3542
  %4186 = vmatprep.subr.bf16.mxu0 %v3538
  %4187 = vmatpush2.bf16.msra.mxu0 %v3537
  %4188 = vmatprep.subr.bf16.mxu0 %v3533
  %4189 = vmatpush2.bf16.msra.mxu0 %v3532
  %4190 = vmatprep.subr.bf16.mxu0 %v3528
  %4191 = vmatpush2.bf16.msra.mxu0 %v3527
  %4192 = vmatprep.subr.bf16.mxu0 %v3523
  %4193 = vmatpush2.bf16.msra.mxu0 %v3522
  %4194 = vmatprep.subr.bf16.mxu0 %v3518
  %4195 = vmatpush2.bf16.msra.mxu0 %v3517
  %4196 = vmatprep.subr.bf16.mxu0 %v3513
  %4197 = vmatpush2.bf16.msra.mxu0 %v3512
  %4198 = vmatprep.subr.bf16.mxu0 %v3508
  %4199 = vmatpush2.bf16.msra.mxu0 %v3507
  %4200 = vmatprep.mubr.bf16.mxu0 %v3776
  %4201 = vmatmul.mubr.bf16.gmra.mxu0 %v3775
  %v4202 = vpop.f32.mrf.mxu0
  %v4203 = vadd.f32 %v4160, %v4202
  %v4204 = vpop.f32.mrf.mxu0
  %v4205 = vadd.f32 %v4162, %v4204
  %v4206 = vpop.f32.mrf.mxu0
  %v4207 = vadd.f32 %v4164, %v4206
  %v4208 = vpop.f32.mrf.mxu0
  %v4209 = vadd.f32 %v4166, %v4208
  %4210 = vdwg.mxu0
  %4211 = vmatprep.subr.bf16.mxu0 %v3583
  %4212 = vmatpush1.bf16.msra.mxu0 %v3582
  %4213 = vmatprep.subr.bf16.mxu0 %v3578
  %4214 = vmatpush1.bf16.msra.mxu0 %v3577
  %4215 = vmatprep.subr.bf16.mxu0 %v3573
  %4216 = vmatpush1.bf16.msra.mxu0 %v3572
  %4217 = vmatprep.subr.bf16.mxu0 %v3568
  %4218 = vmatpush1.bf16.msra.mxu0 %v3567
  %4219 = vmatprep.subr.bf16.mxu0 %v3563
  %4220 = vmatpush1.bf16.msra.mxu0 %v3562
  %4221 = vmatprep.subr.bf16.mxu0 %v3558
  %4222 = vmatpush1.bf16.msra.mxu0 %v3557
  %4223 = vmatprep.subr.bf16.mxu0 %v3553
  %4224 = vmatpush1.bf16.msra.mxu0 %v3552
  %4225 = vmatprep.subr.bf16.mxu0 %v3548
  %4226 = vmatpush1.bf16.msra.mxu0 %v3547
  %4227 = vmatprep.subr.bf16.mxu0 %v3623
  %4228 = vmatpush2.bf16.msra.mxu0 %v3622
  %4229 = vmatprep.subr.bf16.mxu0 %v3618
  %4230 = vmatpush2.bf16.msra.mxu0 %v3617
  %4231 = vmatprep.subr.bf16.mxu0 %v3613
  %4232 = vmatpush2.bf16.msra.mxu0 %v3612
  %4233 = vmatprep.subr.bf16.mxu0 %v3608
  %4234 = vmatpush2.bf16.msra.mxu0 %v3607
  %4235 = vmatprep.subr.bf16.mxu0 %v3603
  %4236 = vmatpush2.bf16.msra.mxu0 %v3602
  %4237 = vmatprep.subr.bf16.mxu0 %v3598
  %4238 = vmatpush2.bf16.msra.mxu0 %v3597
  %4239 = vmatprep.subr.bf16.mxu0 %v3593
  %4240 = vmatpush2.bf16.msra.mxu0 %v3592
  %4241 = vmatprep.subr.bf16.mxu0 %v3588
  %4242 = vmatpush2.bf16.msra.mxu0 %v3587
  %4243 = vmatprep.mubr.bf16.mxu0 %v3778
  %4244 = vmatmul.mubr.bf16.gmra.mxu0 %v3777
  %v4245 = vpop.f32.mrf.mxu0
  %v4246 = vadd.f32 %v4203, %v4245
  %v4247 = vpop.f32.mrf.mxu0
  %v4248 = vadd.f32 %v4205, %v4247
  %v4249 = vpop.f32.mrf.mxu0
  %v4250 = vadd.f32 %v4207, %v4249
  %v4251 = vpop.f32.mrf.mxu0
  %v4252 = vadd.f32 %v4209, %v4251
  %4253 = vdwg.mxu0
  %4254 = vmatprep.subr.bf16.mxu0 %v3663
  %4255 = vmatpush1.bf16.msra.mxu0 %v3662
  %4256 = vmatprep.subr.bf16.mxu0 %v3658
  %4257 = vmatpush1.bf16.msra.mxu0 %v3657
  %4258 = vmatprep.subr.bf16.mxu0 %v3653
  %4259 = vmatpush1.bf16.msra.mxu0 %v3652
  %4260 = vmatprep.subr.bf16.mxu0 %v3648
  %4261 = vmatpush1.bf16.msra.mxu0 %v3647
  %4262 = vmatprep.subr.bf16.mxu0 %v3643
  %4263 = vmatpush1.bf16.msra.mxu0 %v3642
  %4264 = vmatprep.subr.bf16.mxu0 %v3638
  %4265 = vmatpush1.bf16.msra.mxu0 %v3637
  %4266 = vmatprep.subr.bf16.mxu0 %v3633
  %4267 = vmatpush1.bf16.msra.mxu0 %v3632
  %4268 = vmatprep.subr.bf16.mxu0 %v3628
  %4269 = vmatpush1.bf16.msra.mxu0 %v3627
  %4270 = vmatprep.subr.bf16.mxu0 %v3703
  %4271 = vmatpush2.bf16.msra.mxu0 %v3702
  %4272 = vmatprep.subr.bf16.mxu0 %v3698
  %4273 = vmatpush2.bf16.msra.mxu0 %v3697
  %4274 = vmatprep.subr.bf16.mxu0 %v3693
  %4275 = vmatpush2.bf16.msra.mxu0 %v3692
  %4276 = vmatprep.subr.bf16.mxu0 %v3688
  %4277 = vmatpush2.bf16.msra.mxu0 %v3687
  %4278 = vmatprep.subr.bf16.mxu0 %v3683
  %4279 = vmatpush2.bf16.msra.mxu0 %v3682
  %4280 = vmatprep.subr.bf16.mxu0 %v3678
  %4281 = vmatpush2.bf16.msra.mxu0 %v3677
  %4282 = vmatprep.subr.bf16.mxu0 %v3673
  %4283 = vmatpush2.bf16.msra.mxu0 %v3672
  %4284 = vmatprep.subr.bf16.mxu0 %v3668
  %4285 = vmatpush2.bf16.msra.mxu0 %v3667
  %4286 = vmatprep.mubr.bf16.mxu0 %v3780
  %4287 = vmatmul.mubr.bf16.gmra.mxu0 %v3779
  %v4288 = vpop.f32.mrf.mxu0
  %v4289 = vadd.f32 %v4246, %v4288
  %v4290 = vpop.f32.mrf.mxu0
  %v4291 = vadd.f32 %v4248, %v4290
  %v4292 = vpop.f32.mrf.mxu0
  %v4293 = vadd.f32 %v4250, %v4292
  %v4294 = vpop.f32.mrf.mxu0
  %v4295 = vadd.f32 %v4252, %v4294
  %4296 = vdwg.mxu0
  %4297 = vmatprep.subr.bf16.mxu0 0
  %4298 = vmatpush1.bf16.msra.mxu0 %v3264
  %4299 = vmatprep.subr.bf16.mxu0 0
  %4300 = vmatpush1.bf16.msra.mxu0 %v3259
  %4301 = vmatprep.subr.bf16.mxu0 0
  %4302 = vmatpush1.bf16.msra.mxu0 %v3254
  %4303 = vmatprep.subr.bf16.mxu0 0
  %4304 = vmatpush1.bf16.msra.mxu0 %v3249
  %4305 = vmatprep.subr.bf16.mxu0 0
  %4306 = vmatpush1.bf16.msra.mxu0 %v3244
  %4307 = vmatprep.subr.bf16.mxu0 0
  %4308 = vmatpush1.bf16.msra.mxu0 %v3239
  %4309 = vmatprep.subr.bf16.mxu0 0
  %4310 = vmatpush1.bf16.msra.mxu0 %v3234
  %4311 = vmatprep.subr.bf16.mxu0 0
  %4312 = vmatpush1.bf16.msra.mxu0 %v3229
  %4313 = vmatprep.subr.bf16.mxu0 0
  %4314 = vmatpush2.bf16.msra.mxu0 %v3304
  %4315 = vmatprep.subr.bf16.mxu0 0
  %4316 = vmatpush2.bf16.msra.mxu0 %v3299
  %4317 = vmatprep.subr.bf16.mxu0 0
  %4318 = vmatpush2.bf16.msra.mxu0 %v3294
  %4319 = vmatprep.subr.bf16.mxu0 0
  %4320 = vmatpush2.bf16.msra.mxu0 %v3289
  %4321 = vmatprep.subr.bf16.mxu0 0
  %4322 = vmatpush2.bf16.msra.mxu0 %v3284
  %4323 = vmatprep.subr.bf16.mxu0 0
  %4324 = vmatpush2.bf16.msra.mxu0 %v3279
  %4325 = vmatprep.subr.bf16.mxu0 0
  %4326 = vmatpush2.bf16.msra.mxu0 %v3274
  %4327 = vmatprep.subr.bf16.mxu0 0
  %4328 = vmatpush2.bf16.msra.mxu0 %v3269
  %4329 = vmatprep.mubr.bf16.mxu0 %v3770
  %4330 = vmatmul.mubr.bf16.gmra.mxu0 %v3769
  %v4331 = vpop.f32.mrf.mxu0
  %v4332 = vadd.f32 0.0, %v4331
  %v4333 = vpop.f32.mrf.mxu0
  %v4334 = vpop.f32.mrf.mxu0
  %v4335 = vadd.f32 0.0, %v4334
  %v4336 = vpop.f32.mrf.mxu0
  %4337 = vdwg.mxu0
  %4338 = vmatprep.subr.bf16.mxu0 0
  %4339 = vmatpush1.bf16.msra.mxu0 %v3344
  %4340 = vmatprep.subr.bf16.mxu0 0
  %4341 = vmatpush1.bf16.msra.mxu0 %v3339
  %4342 = vmatprep.subr.bf16.mxu0 0
  %4343 = vmatpush1.bf16.msra.mxu0 %v3334
  %4344 = vmatprep.subr.bf16.mxu0 0
  %4345 = vmatpush1.bf16.msra.mxu0 %v3329
  %4346 = vmatprep.subr.bf16.mxu0 0
  %4347 = vmatpush1.bf16.msra.mxu0 %v3324
  %4348 = vmatprep.subr.bf16.mxu0 0
  %4349 = vmatpush1.bf16.msra.mxu0 %v3319
  %4350 = vmatprep.subr.bf16.mxu0 0
  %4351 = vmatpush1.bf16.msra.mxu0 %v3314
  %4352 = vmatprep.subr.bf16.mxu0 0
  %4353 = vmatpush1.bf16.msra.mxu0 %v3309
  %4354 = vmatprep.subr.bf16.mxu0 0
  %4355 = vmatpush2.bf16.msra.mxu0 %v3384
  %4356 = vmatprep.subr.bf16.mxu0 0
  %4357 = vmatpush2.bf16.msra.mxu0 %v3379
  %4358 = vmatprep.subr.bf16.mxu0 0
  %4359 = vmatpush2.bf16.msra.mxu0 %v3374
  %4360 = vmatprep.subr.bf16.mxu0 0
  %4361 = vmatpush2.bf16.msra.mxu0 %v3369
  %4362 = vmatprep.subr.bf16.mxu0 0
  %4363 = vmatpush2.bf16.msra.mxu0 %v3364
  %4364 = vmatprep.subr.bf16.mxu0 0
  %4365 = vmatpush2.bf16.msra.mxu0 %v3359
  %4366 = vmatprep.subr.bf16.mxu0 0
  %4367 = vmatpush2.bf16.msra.mxu0 %v3354
  %4368 = vmatprep.subr.bf16.mxu0 0
  %4369 = vmatpush2.bf16.msra.mxu0 %v3349
  %4370 = vmatprep.mubr.bf16.mxu0 %v3772
  %4371 = vmatmul.mubr.bf16.gmra.mxu0 %v3771
  %v4372 = vpop.f32.mrf.mxu0
  %v4373 = vadd.f32 %v4332, %v4372
  %v4374 = vpop.f32.mrf.mxu0
  %v4375 = vpop.f32.mrf.mxu0
  %v4376 = vadd.f32 %v4335, %v4375
  %v4377 = vpop.f32.mrf.mxu0
  %4378 = vdwg.mxu0
  %4379 = vmatprep.subr.bf16.mxu0 0
  %4380 = vmatpush1.bf16.msra.mxu0 %v3424
  %4381 = vmatprep.subr.bf16.mxu0 0
  %4382 = vmatpush1.bf16.msra.mxu0 %v3419
  %4383 = vmatprep.subr.bf16.mxu0 0
  %4384 = vmatpush1.bf16.msra.mxu0 %v3414
  %4385 = vmatprep.subr.bf16.mxu0 0
  %4386 = vmatpush1.bf16.msra.mxu0 %v3409
  %4387 = vmatprep.subr.bf16.mxu0 0
  %4388 = vmatpush1.bf16.msra.mxu0 %v3404
  %4389 = vmatprep.subr.bf16.mxu0 0
  %4390 = vmatpush1.bf16.msra.mxu0 %v3399
  %4391 = vmatprep.subr.bf16.mxu0 0
  %4392 = vmatpush1.bf16.msra.mxu0 %v3394
  %4393 = vmatprep.subr.bf16.mxu0 0
  %4394 = vmatpush1.bf16.msra.mxu0 %v3389
  %4395 = vmatprep.subr.bf16.mxu0 0
  %4396 = vmatpush2.bf16.msra.mxu0 %v3464
  %4397 = vmatprep.subr.bf16.mxu0 0
  %4398 = vmatpush2.bf16.msra.mxu0 %v3459
  %4399 = vmatprep.subr.bf16.mxu0 0
  %4400 = vmatpush2.bf16.msra.mxu0 %v3454
  %4401 = vmatprep.subr.bf16.mxu0 0
  %4402 = vmatpush2.bf16.msra.mxu0 %v3449
  %4403 = vmatprep.subr.bf16.mxu0 0
  %4404 = vmatpush2.bf16.msra.mxu0 %v3444
  %4405 = vmatprep.subr.bf16.mxu0 0
  %4406 = vmatpush2.bf16.msra.mxu0 %v3439
  %4407 = vmatprep.subr.bf16.mxu0 0
  %4408 = vmatpush2.bf16.msra.mxu0 %v3434
  %4409 = vmatprep.subr.bf16.mxu0 0
  %4410 = vmatpush2.bf16.msra.mxu0 %v3429
  %4411 = vmatprep.mubr.bf16.mxu0 %v3774
  %4412 = vmatmul.mubr.bf16.gmra.mxu0 %v3773
  %v4413 = vpop.f32.mrf.mxu0
  %v4414 = vadd.f32 %v4373, %v4413
  %v4415 = vpop.f32.mrf.mxu0
  %v4416 = vpop.f32.mrf.mxu0
  %v4417 = vadd.f32 %v4376, %v4416
  %v4418 = vpop.f32.mrf.mxu0
  %4419 = vdwg.mxu0
  %4420 = vmatprep.subr.bf16.mxu0 0
  %4421 = vmatpush1.bf16.msra.mxu0 %v3504
  %4422 = vmatprep.subr.bf16.mxu0 0
  %4423 = vmatpush1.bf16.msra.mxu0 %v3499
  %4424 = vmatprep.subr.bf16.mxu0 0
  %4425 = vmatpush1.bf16.msra.mxu0 %v3494
  %4426 = vmatprep.subr.bf16.mxu0 0
  %4427 = vmatpush1.bf16.msra.mxu0 %v3489
  %4428 = vmatprep.subr.bf16.mxu0 0
  %4429 = vmatpush1.bf16.msra.mxu0 %v3484
  %4430 = vmatprep.subr.bf16.mxu0 0
  %4431 = vmatpush1.bf16.msra.mxu0 %v3479
  %4432 = vmatprep.subr.bf16.mxu0 0
  %4433 = vmatpush1.bf16.msra.mxu0 %v3474
  %4434 = vmatprep.subr.bf16.mxu0 0
  %4435 = vmatpush1.bf16.msra.mxu0 %v3469
  %4436 = vmatprep.subr.bf16.mxu0 0
  %4437 = vmatpush2.bf16.msra.mxu0 %v3544
  %4438 = vmatprep.subr.bf16.mxu0 0
  %4439 = vmatpush2.bf16.msra.mxu0 %v3539
  %4440 = vmatprep.subr.bf16.mxu0 0
  %4441 = vmatpush2.bf16.msra.mxu0 %v3534
  %4442 = vmatprep.subr.bf16.mxu0 0
  %4443 = vmatpush2.bf16.msra.mxu0 %v3529
  %4444 = vmatprep.subr.bf16.mxu0 0
  %4445 = vmatpush2.bf16.msra.mxu0 %v3524
  %4446 = vmatprep.subr.bf16.mxu0 0
  %4447 = vmatpush2.bf16.msra.mxu0 %v3519
  %4448 = vmatprep.subr.bf16.mxu0 0
  %4449 = vmatpush2.bf16.msra.mxu0 %v3514
  %4450 = vmatprep.subr.bf16.mxu0 0
  %4451 = vmatpush2.bf16.msra.mxu0 %v3509
  %4452 = vmatprep.mubr.bf16.mxu0 %v3776
  %4453 = vmatmul.mubr.bf16.gmra.mxu0 %v3775
  %v4454 = vpop.f32.mrf.mxu0
  %v4455 = vadd.f32 %v4414, %v4454
  %v4456 = vpop.f32.mrf.mxu0
  %v4457 = vpop.f32.mrf.mxu0
  %v4458 = vadd.f32 %v4417, %v4457
  %v4459 = vpop.f32.mrf.mxu0
  %4460 = vdwg.mxu0
  %4461 = vmatprep.subr.bf16.mxu0 0
  %4462 = vmatpush1.bf16.msra.mxu0 %v3584
  %4463 = vmatprep.subr.bf16.mxu0 0
  %4464 = vmatpush1.bf16.msra.mxu0 %v3579
  %4465 = vmatprep.subr.bf16.mxu0 0
  %4466 = vmatpush1.bf16.msra.mxu0 %v3574
  %4467 = vmatprep.subr.bf16.mxu0 0
  %4468 = vmatpush1.bf16.msra.mxu0 %v3569
  %4469 = vmatprep.subr.bf16.mxu0 0
  %4470 = vmatpush1.bf16.msra.mxu0 %v3564
  %4471 = vmatprep.subr.bf16.mxu0 0
  %4472 = vmatpush1.bf16.msra.mxu0 %v3559
  %4473 = vmatprep.subr.bf16.mxu0 0
  %4474 = vmatpush1.bf16.msra.mxu0 %v3554
  %4475 = vmatprep.subr.bf16.mxu0 0
  %4476 = vmatpush1.bf16.msra.mxu0 %v3549
  %4477 = vmatprep.subr.bf16.mxu0 0
  %4478 = vmatpush2.bf16.msra.mxu0 %v3624
  %4479 = vmatprep.subr.bf16.mxu0 0
  %4480 = vmatpush2.bf16.msra.mxu0 %v3619
  %4481 = vmatprep.subr.bf16.mxu0 0
  %4482 = vmatpush2.bf16.msra.mxu0 %v3614
  %4483 = vmatprep.subr.bf16.mxu0 0
  %4484 = vmatpush2.bf16.msra.mxu0 %v3609
  %4485 = vmatprep.subr.bf16.mxu0 0
  %4486 = vmatpush2.bf16.msra.mxu0 %v3604
  %4487 = vmatprep.subr.bf16.mxu0 0
  %4488 = vmatpush2.bf16.msra.mxu0 %v3599
  %4489 = vmatprep.subr.bf16.mxu0 0
  %4490 = vmatpush2.bf16.msra.mxu0 %v3594
  %4491 = vmatprep.subr.bf16.mxu0 0
  %4492 = vmatpush2.bf16.msra.mxu0 %v3589
  %4493 = vmatprep.mubr.bf16.mxu0 %v3778
  %4494 = vmatmul.mubr.bf16.gmra.mxu0 %v3777
  %v4495 = vpop.f32.mrf.mxu0
  %v4496 = vadd.f32 %v4455, %v4495
  %v4497 = vpop.f32.mrf.mxu0
  %v4498 = vpop.f32.mrf.mxu0
  %v4499 = vadd.f32 %v4458, %v4498
  %v4500 = vpop.f32.mrf.mxu0
  %4501 = vdwg.mxu0
  %4502 = vmatprep.subr.bf16.mxu0 0
  %4503 = vmatpush1.bf16.msra.mxu0 %v3664
  %4504 = vmatprep.subr.bf16.mxu0 0
  %4505 = vmatpush1.bf16.msra.mxu0 %v3659
  %4506 = vmatprep.subr.bf16.mxu0 0
  %4507 = vmatpush1.bf16.msra.mxu0 %v3654
  %4508 = vmatprep.subr.bf16.mxu0 0
  %4509 = vmatpush1.bf16.msra.mxu0 %v3649
  %4510 = vmatprep.subr.bf16.mxu0 0
  %4511 = vmatpush1.bf16.msra.mxu0 %v3644
  %4512 = vmatprep.subr.bf16.mxu0 0
  %4513 = vmatpush1.bf16.msra.mxu0 %v3639
  %4514 = vmatprep.subr.bf16.mxu0 0
  %4515 = vmatpush1.bf16.msra.mxu0 %v3634
  %4516 = vmatprep.subr.bf16.mxu0 0
  %4517 = vmatpush1.bf16.msra.mxu0 %v3629
  %4518 = vmatprep.subr.bf16.mxu0 0
  %4519 = vmatpush2.bf16.msra.mxu0 %v3704
  %4520 = vmatprep.subr.bf16.mxu0 0
  %4521 = vmatpush2.bf16.msra.mxu0 %v3699
  %4522 = vmatprep.subr.bf16.mxu0 0
  %4523 = vmatpush2.bf16.msra.mxu0 %v3694
  %4524 = vmatprep.subr.bf16.mxu0 0
  %4525 = vmatpush2.bf16.msra.mxu0 %v3689
  %4526 = vmatprep.subr.bf16.mxu0 0
  %4527 = vmatpush2.bf16.msra.mxu0 %v3684
  %4528 = vmatprep.subr.bf16.mxu0 0
  %4529 = vmatpush2.bf16.msra.mxu0 %v3679
  %4530 = vmatprep.subr.bf16.mxu0 0
  %4531 = vmatpush2.bf16.msra.mxu0 %v3674
  %4532 = vmatprep.subr.bf16.mxu0 0
  %4533 = vmatpush2.bf16.msra.mxu0 %v3669
  %4534 = vmatprep.mubr.bf16.mxu0 %v3780
  %4535 = vmatmul.mubr.bf16.gmra.mxu0 %v3779
  %v4536 = vpop.f32.mrf.mxu0
  %v4537 = vadd.f32 %v4496, %v4536
  %v4538 = vpop.f32.mrf.mxu0
  %v4539 = vpop.f32.mrf.mxu0
  %v4540 = vadd.f32 %v4499, %v4539
  %v4541 = vpop.f32.mrf.mxu0
  %4542 = vdwg.mxu0
  %v4543 = vld [vmem:[%s10] ss:$2 sm:$0x1f]
  %s4544 = scalar_lea.vmem %s10, 1
  %v4545 = vld [vmem:[%s4544] ss:$2 sm:$0x1f]
  %v4547 = vlaneseq
  %v4548 = vshrl.u32 %v4547, 7
  %v4549 = vsub.s32 0, %v4548
  %v4550 = vrot.slane %v4543, %v4549
  %v4551 = vlaneseq
  %v4552 = vshrl.u32 %v4551, 7
  %v4553 = vsub.s32 1, %v4552
  %v4554 = vrot.slane %v4543, %v4553
  %v4555 = vlaneseq
  %v4556 = vshrl.u32 %v4555, 7
  %v4557 = vsub.s32 2, %v4556
  %v4558 = vrot.slane %v4543, %v4557
  %v4559 = vlaneseq
  %v4560 = vshrl.u32 %v4559, 7
  %v4561 = vsub.s32 3, %v4560
  %v4562 = vrot.slane %v4543, %v4561
  %v4563 = vlaneseq
  %v4564 = vshrl.u32 %v4563, 7
  %v4565 = vsub.s32 4, %v4564
  %v4566 = vrot.slane %v4543, %v4565
  %v4572 = vmul.f32 %v4031, %v4550
  %v4573 = vmul.f32 %v4033, %v4554
  %v4574 = vmul.f32 %v4289, %v4558
  %v4575 = vmul.f32 %v4291, %v4562
  %v4576 = vmul.f32 %v4537, %v4566
  %v4577 = vmul.f32 %v4035, %v4550
  %v4578 = vmul.f32 %v4037, %v4554
  %v4579 = vmul.f32 %v4293, %v4558
  %v4580 = vmul.f32 %v4295, %v4562
  %v4581 = vmul.f32 %v4540, %v4566
  %v4583 = vlaneseq
  %v4584 = vshrl.u32 %v4583, 7
  %v4585 = vsub.s32 0, %v4584
  %v4586 = vrot.slane %v4545, %v4585
  %v4587 = vlaneseq
  %v4588 = vshrl.u32 %v4587, 7
  %v4589 = vsub.s32 1, %v4588
  %v4590 = vrot.slane %v4545, %v4589
  %v4591 = vlaneseq
  %v4592 = vshrl.u32 %v4591, 7
  %v4593 = vsub.s32 2, %v4592
  %v4594 = vrot.slane %v4545, %v4593
  %v4595 = vlaneseq
  %v4596 = vshrl.u32 %v4595, 7
  %v4597 = vsub.s32 3, %v4596
  %v4598 = vrot.slane %v4545, %v4597
  %v4599 = vlaneseq
  %v4600 = vshrl.u32 %v4599, 7
  %v4601 = vsub.s32 4, %v4600
  %v4602 = vrot.slane %v4545, %v4601
  %v4608 = vadd.f32 %v4572, %v4586
  %v4609 = vadd.f32 %v4573, %v4590
  %v4610 = vadd.f32 %v4574, %v4594
  %v4611 = vadd.f32 %v4575, %v4598
  %v4612 = vadd.f32 %v4576, %v4602
  %v4613 = vadd.f32 %v4577, %v4586
  %v4614 = vadd.f32 %v4578, %v4590
  %v4615 = vadd.f32 %v4579, %v4594
  %v4616 = vadd.f32 %v4580, %v4598
  %v4617 = vadd.f32 %v4581, %v4602
  %v4618 = vxor.u32 %v4608, 2147483648
  %v4619 = vxor.u32 %v4609, 2147483648
  %v4620 = vxor.u32 %v4610, 2147483648
  %v4621 = vxor.u32 %v4611, 2147483648
  %v4622 = vxor.u32 %v4612, 2147483648
  %v4623 = vxor.u32 %v4613, 2147483648
  %v4624 = vxor.u32 %v4614, 2147483648
  %v4625 = vxor.u32 %v4615, 2147483648
  %v4626 = vxor.u32 %v4616, 2147483648
  %v4627 = vxor.u32 %v4617, 2147483648
  %v4628 = vmul.f32 %v4618, 1.442695
  %v4629 = vpow.pop %v4628
  %v4630 = vmul.f32 %v4619, 1.442695
  %v4631 = vpow.pop %v4630
  %v4632 = vmul.f32 %v4620, 1.442695
  %v4633 = vpow.pop %v4632
  %v4634 = vmul.f32 %v4621, 1.442695
  %v4635 = vpow.pop %v4634
  %v4636 = vmul.f32 %v4622, 1.442695
  %v4637 = vpow.pop %v4636
  %v4638 = vmul.f32 %v4623, 1.442695
  %v4639 = vpow.pop %v4638
  %v4640 = vmul.f32 %v4624, 1.442695
  %v4641 = vpow.pop %v4640
  %v4642 = vmul.f32 %v4625, 1.442695
  %v4643 = vpow.pop %v4642
  %v4644 = vmul.f32 %v4626, 1.442695
  %v4645 = vpow.pop %v4644
  %v4646 = vmul.f32 %v4627, 1.442695
  %v4647 = vpow.pop %v4646
  %v4648 = vadd.f32 %v4629, 1.0
  %v4649 = vadd.f32 %v4631, 1.0
  %v4650 = vadd.f32 %v4633, 1.0
  %v4651 = vadd.f32 %v4635, 1.0
  %v4652 = vadd.f32 %v4637, 1.0
  %v4653 = vadd.f32 %v4639, 1.0
  %v4654 = vadd.f32 %v4641, 1.0
  %v4655 = vadd.f32 %v4643, 1.0
  %v4656 = vadd.f32 %v4645, 1.0
  %v4657 = vadd.f32 %v4647, 1.0
  %v4658 = vrcp.pop %v4648
  %v4659 = vmul.f32 1.0, %v4658
  %v4660 = vrcp.pop %v4649
  %v4661 = vmul.f32 1.0, %v4660
  %v4662 = vrcp.pop %v4650
  %v4663 = vmul.f32 1.0, %v4662
  %v4664 = vrcp.pop %v4651
  %v4665 = vmul.f32 1.0, %v4664
  %v4666 = vrcp.pop %v4652
  %v4667 = vmul.f32 1.0, %v4666
  %v4668 = vrcp.pop %v4653
  %v4669 = vmul.f32 1.0, %v4668
  %v4670 = vrcp.pop %v4654
  %v4671 = vmul.f32 1.0, %v4670
  %v4672 = vrcp.pop %v4655
  %v4673 = vmul.f32 1.0, %v4672
  %v4674 = vrcp.pop %v4656
  %v4675 = vmul.f32 1.0, %v4674
  %v4676 = vrcp.pop %v4657
  %v4677 = vmul.f32 1.0, %v4676
  %v4678 = vmul.f32 %v4608, %v4659
  %v4679 = vmul.f32 %v4609, %v4661
  %v4680 = vmul.f32 %v4610, %v4663
  %v4681 = vmul.f32 %v4611, %v4665
  %v4682 = vmul.f32 %v4612, %v4667
  %v4683 = vmul.f32 %v4613, %v4669
  %v4684 = vmul.f32 %v4614, %v4671
  %v4685 = vmul.f32 %v4615, %v4673
  %v4686 = vmul.f32 %v4616, %v4675
  %v4687 = vmul.f32 %v4617, %v4677
  // Predicated region
  $region258: #{encoder2_forward.1} parent=0 // pred_check
    %p4688 = pneg %p37
  $region259: #{encoder2_forward.1} parent=0 // pred_check_branch
    %4690 = sbr.rel (%p4688) target = $region261
  $region260: #{encoder2_forward.1} parent=0 // pred_region
    %s4691 = scalar_lea.sflag [#allocation9], 3
    %s4692 = smul.u32 2, 80
    %s4693 = smul.u32 %s4692, 5
    %s4694 = sshll.u32 %s4693, 4
    %4695 = dma.done %s4691, %s4694
  $region261: #{encoder2_forward.1} parent=0 // pred_fallthru
    _
  %v4696 = vld [vmem:[#allocation5] sm:$0xff]
  %v4697 = vld [vmem:[#allocation5 + $0x8] sm:$0xff]
  %v4698 = vld [vmem:[#allocation5 + $0x10] sm:$0xff]
  %v4699 = vld [vmem:[#allocation5 + $0x18] sm:$0xff]
  %v4700 = vld [vmem:[#allocation5 + $0x20] sm:$0xff]
  %v4701 = vld [vmem:[#allocation5 + $0x28] sm:$0xff]
  %v4702 = vld [vmem:[#allocation5 + $0x30] sm:$0xff]
  %v4703 = vld [vmem:[#allocation5 + $0x38] sm:$0xff]
  %v4704 = vld [vmem:[#allocation5 + $0x40] sm:$0xff]
  %v4705 = vld [vmem:[#allocation5 + $0x48] sm:$0xff]
  %v4706 = vld [vmem:[#allocation5 + $0x50] sm:$0xff]
  %v4707 = vld [vmem:[#allocation5 + $0x58] sm:$0xff]
  %v4708 = vld [vmem:[#allocation5 + $0x60] sm:$0xff]
  %v4709 = vld [vmem:[#allocation5 + $0x68] sm:$0xff]
  %v4710 = vld [vmem:[#allocation5 + $0x70] sm:$0xff]
  %v4711 = vld [vmem:[#allocation5 + $0x78] sm:$0xff]
  %v4712 = vld [vmem:[#allocation5 + $0x80] sm:$0xff]
  %v4713 = vld [vmem:[#allocation5 + $0x88] sm:$0xff]
  %v4714 = vld [vmem:[#allocation5 + $0x90] sm:$0xff]
  %v4715 = vld [vmem:[#allocation5 + $0x98] sm:$0xff]
  %v4716 = vld [vmem:[#allocation5 + $0xa0] sm:$0xff]
  %v4717 = vld [vmem:[#allocation5 + $0xa8] sm:$0xff]
  %v4718 = vld [vmem:[#allocation5 + $0xb0] sm:$0xff]
  %v4719 = vld [vmem:[#allocation5 + $0xb8] sm:$0xff]
  %v4720 = vld [vmem:[#allocation5 + $0xc0] sm:$0xff]
  %v4721 = vld [vmem:[#allocation5 + $0xc8] sm:$0xff]
  %v4722 = vld [vmem:[#allocation5 + $0xd0] sm:$0xff]
  %v4723 = vld [vmem:[#allocation5 + $0xd8] sm:$0xff]
  %v4724 = vld [vmem:[#allocation5 + $0xe0] sm:$0xff]
  %v4725 = vld [vmem:[#allocation5 + $0xe8] sm:$0xff]
  %v4726 = vld [vmem:[#allocation5 + $0xf0] sm:$0xff]
  %v4727 = vld [vmem:[#allocation5 + $0xf8] sm:$0xff]
  %v4728 = vld [vmem:[#allocation5 + $0x100] sm:$0xff]
  %v4729 = vld [vmem:[#allocation5 + $0x108] sm:$0xff]
  %v4730 = vld [vmem:[#allocation5 + $0x110] sm:$0xff]
  %v4731 = vld [vmem:[#allocation5 + $0x118] sm:$0xff]
  %v4732 = vld [vmem:[#allocation5 + $0x120] sm:$0xff]
  %v4733 = vld [vmem:[#allocation5 + $0x128] sm:$0xff]
  %v4734 = vld [vmem:[#allocation5 + $0x130] sm:$0xff]
  %v4735 = vld [vmem:[#allocation5 + $0x138] sm:$0xff]
  %v4736 = vld [vmem:[#allocation5 + $0x140] sm:$0xff]
  %v4737 = vld [vmem:[#allocation5 + $0x148] sm:$0xff]
  %v4738 = vld [vmem:[#allocation5 + $0x150] sm:$0xff]
  %v4739 = vld [vmem:[#allocation5 + $0x158] sm:$0xff]
  %v4740 = vld [vmem:[#allocation5 + $0x160] sm:$0xff]
  %v4741 = vld [vmem:[#allocation5 + $0x168] sm:$0xff]
  %v4742 = vld [vmem:[#allocation5 + $0x170] sm:$0xff]
  %v4743 = vld [vmem:[#allocation5 + $0x178] sm:$0xff]
  %v4744 = vld [vmem:[#allocation5 + $0x180] sm:$0xff]
  %v4745 = vld [vmem:[#allocation5 + $0x188] sm:$0xff]
  %v4746 = vld [vmem:[#allocation5 + $0x190] sm:$0xff]
  %v4747 = vld [vmem:[#allocation5 + $0x198] sm:$0xff]
  %v4748 = vld [vmem:[#allocation5 + $0x1a0] sm:$0xff]
  %v4749 = vld [vmem:[#allocation5 + $0x1a8] sm:$0xff]
  %v4750 = vld [vmem:[#allocation5 + $0x1b0] sm:$0xff]
  %v4751 = vld [vmem:[#allocation5 + $0x1b8] sm:$0xff]
  %v4752 = vld [vmem:[#allocation5 + $0x1c0] sm:$0xff]
  %v4753 = vld [vmem:[#allocation5 + $0x1c8] sm:$0xff]
  %v4754 = vld [vmem:[#allocation5 + $0x1d0] sm:$0xff]
  %v4755 = vld [vmem:[#allocation5 + $0x1d8] sm:$0xff]
  %v4756 = vld [vmem:[#allocation5 + $0x1e0] sm:$0xff]
  %v4757 = vld [vmem:[#allocation5 + $0x1e8] sm:$0xff]
  %v4758 = vld [vmem:[#allocation5 + $0x1f0] sm:$0xff]
  %v4759 = vld [vmem:[#allocation5 + $0x1f8] sm:$0xff]
  %v4760 = vld [vmem:[#allocation5 + $0x200] sm:$0xff]
  %v4761 = vld [vmem:[#allocation5 + $0x208] sm:$0xff]
  %v4762 = vld [vmem:[#allocation5 + $0x210] sm:$0xff]
  %v4763 = vld [vmem:[#allocation5 + $0x218] sm:$0xff]
  %v4764 = vld [vmem:[#allocation5 + $0x220] sm:$0xff]
  %v4765 = vld [vmem:[#allocation5 + $0x228] sm:$0xff]
  %v4766 = vld [vmem:[#allocation5 + $0x230] sm:$0xff]
  %v4767 = vld [vmem:[#allocation5 + $0x238] sm:$0xff]
  %v4768 = vld [vmem:[#allocation5 + $0x240] sm:$0xff]
  %v4769 = vld [vmem:[#allocation5 + $0x248] sm:$0xff]
  %v4770 = vld [vmem:[#allocation5 + $0x250] sm:$0xff]
  %v4771 = vld [vmem:[#allocation5 + $0x258] sm:$0xff]
  %v4772 = vld [vmem:[#allocation5 + $0x260] sm:$0xff]
  %v4773 = vld [vmem:[#allocation5 + $0x268] sm:$0xff]
  %v4774 = vld [vmem:[#allocation5 + $0x270] sm:$0xff]
  %v4775 = vld [vmem:[#allocation5 + $0x278] sm:$0xff]
  %v4776 = vld [vmem:[#allocation5 + $0x280] sm:$0xff]
  %v4777 = vld [vmem:[#allocation5 + $0x288] sm:$0xff]
  %v4778 = vld [vmem:[#allocation5 + $0x290] sm:$0xff]
  %v4779 = vld [vmem:[#allocation5 + $0x298] sm:$0xff]
  %v4780 = vld [vmem:[#allocation5 + $0x2a0] sm:$0xff]
  %v4781 = vld [vmem:[#allocation5 + $0x2a8] sm:$0xff]
  %v4782 = vld [vmem:[#allocation5 + $0x2b0] sm:$0xff]
  %v4783 = vld [vmem:[#allocation5 + $0x2b8] sm:$0xff]
  %v4784 = vld [vmem:[#allocation5 + $0x2c0] sm:$0xff]
  %v4785 = vld [vmem:[#allocation5 + $0x2c8] sm:$0xff]
  %v4786 = vld [vmem:[#allocation5 + $0x2d0] sm:$0xff]
  %v4787 = vld [vmem:[#allocation5 + $0x2d8] sm:$0xff]
  %v4788 = vld [vmem:[#allocation5 + $0x2e0] sm:$0xff]
  %v4789 = vld [vmem:[#allocation5 + $0x2e8] sm:$0xff]
  %v4790 = vld [vmem:[#allocation5 + $0x2f0] sm:$0xff]
  %v4791 = vld [vmem:[#allocation5 + $0x2f8] sm:$0xff]
  %v4792 = vld [vmem:[#allocation5 + $0x300] sm:$0xff]
  %v4793 = vld [vmem:[#allocation5 + $0x308] sm:$0xff]
  %v4794 = vld [vmem:[#allocation5 + $0x310] sm:$0xff]
  %v4795 = vld [vmem:[#allocation5 + $0x318] sm:$0xff]
  %v4796 = vunpack.c.l.s8.bf16 %v4696
  %v4797 = vunpack.c.l.s8.bf16 %v4697
  %v4798 = vunpack.c.l.s8.bf16 %v4698
  %v4799 = vunpack.c.l.s8.bf16 %v4699
  %v4800 = vunpack.c.l.s8.bf16 %v4700
  %v4801 = vunpack.c.h.s8.bf16 %v4696
  %v4802 = vunpack.c.h.s8.bf16 %v4697
  %v4803 = vunpack.c.h.s8.bf16 %v4698
  %v4804 = vunpack.c.h.s8.bf16 %v4699
  %v4805 = vunpack.c.h.s8.bf16 %v4700
  %v4806 = vunpack.c.l.s8.bf16 %v4701
  %v4807 = vunpack.c.l.s8.bf16 %v4702
  %v4808 = vunpack.c.l.s8.bf16 %v4703
  %v4809 = vunpack.c.l.s8.bf16 %v4704
  %v4810 = vunpack.c.l.s8.bf16 %v4705
  %v4811 = vunpack.c.h.s8.bf16 %v4701
  %v4812 = vunpack.c.h.s8.bf16 %v4702
  %v4813 = vunpack.c.h.s8.bf16 %v4703
  %v4814 = vunpack.c.h.s8.bf16 %v4704
  %v4815 = vunpack.c.h.s8.bf16 %v4705
  %v4816 = vunpack.c.l.s8.bf16 %v4706
  %v4817 = vunpack.c.l.s8.bf16 %v4707
  %v4818 = vunpack.c.l.s8.bf16 %v4708
  %v4819 = vunpack.c.l.s8.bf16 %v4709
  %v4820 = vunpack.c.l.s8.bf16 %v4710
  %v4821 = vunpack.c.h.s8.bf16 %v4706
  %v4822 = vunpack.c.h.s8.bf16 %v4707
  %v4823 = vunpack.c.h.s8.bf16 %v4708
  %v4824 = vunpack.c.h.s8.bf16 %v4709
  %v4825 = vunpack.c.h.s8.bf16 %v4710
  %v4826 = vunpack.c.l.s8.bf16 %v4711
  %v4827 = vunpack.c.l.s8.bf16 %v4712
  %v4828 = vunpack.c.l.s8.bf16 %v4713
  %v4829 = vunpack.c.l.s8.bf16 %v4714
  %v4830 = vunpack.c.l.s8.bf16 %v4715
  %v4831 = vunpack.c.h.s8.bf16 %v4711
  %v4832 = vunpack.c.h.s8.bf16 %v4712
  %v4833 = vunpack.c.h.s8.bf16 %v4713
  %v4834 = vunpack.c.h.s8.bf16 %v4714
  %v4835 = vunpack.c.h.s8.bf16 %v4715
  %v4836 = vunpack.c.l.s8.bf16 %v4716
  %v4837 = vunpack.c.l.s8.bf16 %v4717
  %v4838 = vunpack.c.l.s8.bf16 %v4718
  %v4839 = vunpack.c.l.s8.bf16 %v4719
  %v4840 = vunpack.c.l.s8.bf16 %v4720
  %v4841 = vunpack.c.h.s8.bf16 %v4716
  %v4842 = vunpack.c.h.s8.bf16 %v4717
  %v4843 = vunpack.c.h.s8.bf16 %v4718
  %v4844 = vunpack.c.h.s8.bf16 %v4719
  %v4845 = vunpack.c.h.s8.bf16 %v4720
  %v4846 = vunpack.c.l.s8.bf16 %v4721
  %v4847 = vunpack.c.l.s8.bf16 %v4722
  %v4848 = vunpack.c.l.s8.bf16 %v4723
  %v4849 = vunpack.c.l.s8.bf16 %v4724
  %v4850 = vunpack.c.l.s8.bf16 %v4725
  %v4851 = vunpack.c.h.s8.bf16 %v4721
  %v4852 = vunpack.c.h.s8.bf16 %v4722
  %v4853 = vunpack.c.h.s8.bf16 %v4723
  %v4854 = vunpack.c.h.s8.bf16 %v4724
  %v4855 = vunpack.c.h.s8.bf16 %v4725
  %v4856 = vunpack.c.l.s8.bf16 %v4726
  %v4857 = vunpack.c.l.s8.bf16 %v4727
  %v4858 = vunpack.c.l.s8.bf16 %v4728
  %v4859 = vunpack.c.l.s8.bf16 %v4729
  %v4860 = vunpack.c.l.s8.bf16 %v4730
  %v4861 = vunpack.c.h.s8.bf16 %v4726
  %v4862 = vunpack.c.h.s8.bf16 %v4727
  %v4863 = vunpack.c.h.s8.bf16 %v4728
  %v4864 = vunpack.c.h.s8.bf16 %v4729
  %v4865 = vunpack.c.h.s8.bf16 %v4730
  %v4866 = vunpack.c.l.s8.bf16 %v4731
  %v4867 = vunpack.c.l.s8.bf16 %v4732
  %v4868 = vunpack.c.l.s8.bf16 %v4733
  %v4869 = vunpack.c.l.s8.bf16 %v4734
  %v4870 = vunpack.c.l.s8.bf16 %v4735
  %v4871 = vunpack.c.h.s8.bf16 %v4731
  %v4872 = vunpack.c.h.s8.bf16 %v4732
  %v4873 = vunpack.c.h.s8.bf16 %v4733
  %v4874 = vunpack.c.h.s8.bf16 %v4734
  %v4875 = vunpack.c.h.s8.bf16 %v4735
  %v4876 = vunpack.c.l.s8.bf16 %v4736
  %v4877 = vunpack.c.l.s8.bf16 %v4737
  %v4878 = vunpack.c.l.s8.bf16 %v4738
  %v4879 = vunpack.c.l.s8.bf16 %v4739
  %v4880 = vunpack.c.l.s8.bf16 %v4740
  %v4881 = vunpack.c.h.s8.bf16 %v4736
  %v4882 = vunpack.c.h.s8.bf16 %v4737
  %v4883 = vunpack.c.h.s8.bf16 %v4738
  %v4884 = vunpack.c.h.s8.bf16 %v4739
  %v4885 = vunpack.c.h.s8.bf16 %v4740
  %v4886 = vunpack.c.l.s8.bf16 %v4741
  %v4887 = vunpack.c.l.s8.bf16 %v4742
  %v4888 = vunpack.c.l.s8.bf16 %v4743
  %v4889 = vunpack.c.l.s8.bf16 %v4744
  %v4890 = vunpack.c.l.s8.bf16 %v4745
  %v4891 = vunpack.c.h.s8.bf16 %v4741
  %v4892 = vunpack.c.h.s8.bf16 %v4742
  %v4893 = vunpack.c.h.s8.bf16 %v4743
  %v4894 = vunpack.c.h.s8.bf16 %v4744
  %v4895 = vunpack.c.h.s8.bf16 %v4745
  %v4896 = vunpack.c.l.s8.bf16 %v4746
  %v4897 = vunpack.c.l.s8.bf16 %v4747
  %v4898 = vunpack.c.l.s8.bf16 %v4748
  %v4899 = vunpack.c.l.s8.bf16 %v4749
  %v4900 = vunpack.c.l.s8.bf16 %v4750
  %v4901 = vunpack.c.h.s8.bf16 %v4746
  %v4902 = vunpack.c.h.s8.bf16 %v4747
  %v4903 = vunpack.c.h.s8.bf16 %v4748
  %v4904 = vunpack.c.h.s8.bf16 %v4749
  %v4905 = vunpack.c.h.s8.bf16 %v4750
  %v4906 = vunpack.c.l.s8.bf16 %v4751
  %v4907 = vunpack.c.l.s8.bf16 %v4752
  %v4908 = vunpack.c.l.s8.bf16 %v4753
  %v4909 = vunpack.c.l.s8.bf16 %v4754
  %v4910 = vunpack.c.l.s8.bf16 %v4755
  %v4911 = vunpack.c.h.s8.bf16 %v4751
  %v4912 = vunpack.c.h.s8.bf16 %v4752
  %v4913 = vunpack.c.h.s8.bf16 %v4753
  %v4914 = vunpack.c.h.s8.bf16 %v4754
  %v4915 = vunpack.c.h.s8.bf16 %v4755
  %v4916 = vunpack.c.l.s8.bf16 %v4756
  %v4917 = vunpack.c.l.s8.bf16 %v4757
  %v4918 = vunpack.c.l.s8.bf16 %v4758
  %v4919 = vunpack.c.l.s8.bf16 %v4759
  %v4920 = vunpack.c.l.s8.bf16 %v4760
  %v4921 = vunpack.c.h.s8.bf16 %v4756
  %v4922 = vunpack.c.h.s8.bf16 %v4757
  %v4923 = vunpack.c.h.s8.bf16 %v4758
  %v4924 = vunpack.c.h.s8.bf16 %v4759
  %v4925 = vunpack.c.h.s8.bf16 %v4760
  %v4926 = vunpack.c.l.s8.bf16 %v4761
  %v4927 = vunpack.c.l.s8.bf16 %v4762
  %v4928 = vunpack.c.l.s8.bf16 %v4763
  %v4929 = vunpack.c.l.s8.bf16 %v4764
  %v4930 = vunpack.c.l.s8.bf16 %v4765
  %v4931 = vunpack.c.h.s8.bf16 %v4761
  %v4932 = vunpack.c.h.s8.bf16 %v4762
  %v4933 = vunpack.c.h.s8.bf16 %v4763
  %v4934 = vunpack.c.h.s8.bf16 %v4764
  %v4935 = vunpack.c.h.s8.bf16 %v4765
  %v4936 = vunpack.c.l.s8.bf16 %v4766
  %v4937 = vunpack.c.l.s8.bf16 %v4767
  %v4938 = vunpack.c.l.s8.bf16 %v4768
  %v4939 = vunpack.c.l.s8.bf16 %v4769
  %v4940 = vunpack.c.l.s8.bf16 %v4770
  %v4941 = vunpack.c.h.s8.bf16 %v4766
  %v4942 = vunpack.c.h.s8.bf16 %v4767
  %v4943 = vunpack.c.h.s8.bf16 %v4768
  %v4944 = vunpack.c.h.s8.bf16 %v4769
  %v4945 = vunpack.c.h.s8.bf16 %v4770
  %v4946 = vunpack.c.l.s8.bf16 %v4771
  %v4947 = vunpack.c.l.s8.bf16 %v4772
  %v4948 = vunpack.c.l.s8.bf16 %v4773
  %v4949 = vunpack.c.l.s8.bf16 %v4774
  %v4950 = vunpack.c.l.s8.bf16 %v4775
  %v4951 = vunpack.c.h.s8.bf16 %v4771
  %v4952 = vunpack.c.h.s8.bf16 %v4772
  %v4953 = vunpack.c.h.s8.bf16 %v4773
  %v4954 = vunpack.c.h.s8.bf16 %v4774
  %v4955 = vunpack.c.h.s8.bf16 %v4775
  %v4956 = vunpack.c.l.s8.bf16 %v4776
  %v4957 = vunpack.c.l.s8.bf16 %v4777
  %v4958 = vunpack.c.l.s8.bf16 %v4778
  %v4959 = vunpack.c.l.s8.bf16 %v4779
  %v4960 = vunpack.c.l.s8.bf16 %v4780
  %v4961 = vunpack.c.h.s8.bf16 %v4776
  %v4962 = vunpack.c.h.s8.bf16 %v4777
  %v4963 = vunpack.c.h.s8.bf16 %v4778
  %v4964 = vunpack.c.h.s8.bf16 %v4779
  %v4965 = vunpack.c.h.s8.bf16 %v4780
  %v4966 = vunpack.c.l.s8.bf16 %v4781
  %v4967 = vunpack.c.l.s8.bf16 %v4782
  %v4968 = vunpack.c.l.s8.bf16 %v4783
  %v4969 = vunpack.c.l.s8.bf16 %v4784
  %v4970 = vunpack.c.l.s8.bf16 %v4785
  %v4971 = vunpack.c.h.s8.bf16 %v4781
  %v4972 = vunpack.c.h.s8.bf16 %v4782
  %v4973 = vunpack.c.h.s8.bf16 %v4783
  %v4974 = vunpack.c.h.s8.bf16 %v4784
  %v4975 = vunpack.c.h.s8.bf16 %v4785
  %v4976 = vunpack.c.l.s8.bf16 %v4786
  %v4977 = vunpack.c.l.s8.bf16 %v4787
  %v4978 = vunpack.c.l.s8.bf16 %v4788
  %v4979 = vunpack.c.l.s8.bf16 %v4789
  %v4980 = vunpack.c.l.s8.bf16 %v4790
  %v4981 = vunpack.c.h.s8.bf16 %v4786
  %v4982 = vunpack.c.h.s8.bf16 %v4787
  %v4983 = vunpack.c.h.s8.bf16 %v4788
  %v4984 = vunpack.c.h.s8.bf16 %v4789
  %v4985 = vunpack.c.h.s8.bf16 %v4790
  %v4986 = vunpack.c.l.s8.bf16 %v4791
  %v4987 = vunpack.c.l.s8.bf16 %v4792
  %v4988 = vunpack.c.l.s8.bf16 %v4793
  %v4989 = vunpack.c.l.s8.bf16 %v4794
  %v4990 = vunpack.c.l.s8.bf16 %v4795
  %v4991 = vunpack.c.h.s8.bf16 %v4791
  %v4992 = vunpack.c.h.s8.bf16 %v4792
  %v4993 = vunpack.c.h.s8.bf16 %v4793
  %v4994 = vunpack.c.h.s8.bf16 %v4794
  %v4995 = vunpack.c.h.s8.bf16 %v4795
  %v4996 = vpack.c.bf16 %v4683, %v4678
  %v4997 = vpack.c.bf16 %v4684, %v4679
  %v4998 = vpack.c.bf16 %v4685, %v4680
  %v4999 = vpack.c.bf16 %v4686, %v4681
  %v5000 = vpack.c.bf16 %v4687, %v4682
  %5001 = vmatprep.subr.bf16.mxu0 %v4832
  %5002 = vmatpush1.bf16.msra.mxu0 %v4831
  %5003 = vmatprep.subr.bf16.mxu0 %v4827
  %5004 = vmatpush1.bf16.msra.mxu0 %v4826
  %5005 = vmatprep.subr.bf16.mxu0 %v4822
  %5006 = vmatpush1.bf16.msra.mxu0 %v4821
  %5007 = vmatprep.subr.bf16.mxu0 %v4817
  %5008 = vmatpush1.bf16.msra.mxu0 %v4816
  %5009 = vmatprep.subr.bf16.mxu0 %v4812
  %5010 = vmatpush1.bf16.msra.mxu0 %v4811
  %5011 = vmatprep.subr.bf16.mxu0 %v4807
  %5012 = vmatpush1.bf16.msra.mxu0 %v4806
  %5013 = vmatprep.subr.bf16.mxu0 %v4802
  %5014 = vmatpush1.bf16.msra.mxu0 %v4801
  %5015 = vmatprep.subr.bf16.mxu0 %v4797
  %5016 = vmatpush1.bf16.msra.mxu0 %v4796
  %5017 = vmatprep.subr.bf16.mxu0 %v4872
  %5018 = vmatpush2.bf16.msra.mxu0 %v4871
  %5019 = vmatprep.subr.bf16.mxu0 %v4867
  %5020 = vmatpush2.bf16.msra.mxu0 %v4866
  %5021 = vmatprep.subr.bf16.mxu0 %v4862
  %5022 = vmatpush2.bf16.msra.mxu0 %v4861
  %5023 = vmatprep.subr.bf16.mxu0 %v4857
  %5024 = vmatpush2.bf16.msra.mxu0 %v4856
  %5025 = vmatprep.subr.bf16.mxu0 %v4852
  %5026 = vmatpush2.bf16.msra.mxu0 %v4851
  %5027 = vmatprep.subr.bf16.mxu0 %v4847
  %5028 = vmatpush2.bf16.msra.mxu0 %v4846
  %5029 = vmatprep.subr.bf16.mxu0 %v4842
  %5030 = vmatpush2.bf16.msra.mxu0 %v4841
  %5031 = vmatprep.subr.bf16.mxu0 %v4837
  %5032 = vmatpush2.bf16.msra.mxu0 %v4836
  %5033 = vmatprep.mubr.bf16.mxu0 %v4997
  %5034 = vmatmul.mubr.bf16.gmra.mxu0 %v4996
  %v5035 = vpop.f32.mrf.mxu0
  %v5036 = vadd.f32 0.0, %v5035
  %v5037 = vpop.f32.mrf.mxu0
  %v5038 = vadd.f32 0.0, %v5037
  %v5039 = vpop.f32.mrf.mxu0
  %v5040 = vadd.f32 0.0, %v5039
  %v5041 = vpop.f32.mrf.mxu0
  %v5042 = vadd.f32 0.0, %v5041
  %5043 = vdwg.mxu0
  %5044 = vmatprep.subr.bf16.mxu0 %v4912
  %5045 = vmatpush1.bf16.msra.mxu0 %v4911
  %5046 = vmatprep.subr.bf16.mxu0 %v4907
  %5047 = vmatpush1.bf16.msra.mxu0 %v4906
  %5048 = vmatprep.subr.bf16.mxu0 %v4902
  %5049 = vmatpush1.bf16.msra.mxu0 %v4901
  %5050 = vmatprep.subr.bf16.mxu0 %v4897
  %5051 = vmatpush1.bf16.msra.mxu0 %v4896
  %5052 = vmatprep.subr.bf16.mxu0 %v4892
  %5053 = vmatpush1.bf16.msra.mxu0 %v4891
  %5054 = vmatprep.subr.bf16.mxu0 %v4887
  %5055 = vmatpush1.bf16.msra.mxu0 %v4886
  %5056 = vmatprep.subr.bf16.mxu0 %v4882
  %5057 = vmatpush1.bf16.msra.mxu0 %v4881
  %5058 = vmatprep.subr.bf16.mxu0 %v4877
  %5059 = vmatpush1.bf16.msra.mxu0 %v4876
  %5060 = vmatprep.subr.bf16.mxu0 %v4952
  %5061 = vmatpush2.bf16.msra.mxu0 %v4951
  %5062 = vmatprep.subr.bf16.mxu0 %v4947
  %5063 = vmatpush2.bf16.msra.mxu0 %v4946
  %5064 = vmatprep.subr.bf16.mxu0 %v4942
  %5065 = vmatpush2.bf16.msra.mxu0 %v4941
  %5066 = vmatprep.subr.bf16.mxu0 %v4937
  %5067 = vmatpush2.bf16.msra.mxu0 %v4936
  %5068 = vmatprep.subr.bf16.mxu0 %v4932
  %5069 = vmatpush2.bf16.msra.mxu0 %v4931
  %5070 = vmatprep.subr.bf16.mxu0 %v4927
  %5071 = vmatpush2.bf16.msra.mxu0 %v4926
  %5072 = vmatprep.subr.bf16.mxu0 %v4922
  %5073 = vmatpush2.bf16.msra.mxu0 %v4921
  %5074 = vmatprep.subr.bf16.mxu0 %v4917
  %5075 = vmatpush2.bf16.msra.mxu0 %v4916
  %5076 = vmatprep.mubr.bf16.mxu0 %v4999
  %5077 = vmatmul.mubr.bf16.gmra.mxu0 %v4998
  %v5078 = vpop.f32.mrf.mxu0
  %v5079 = vadd.f32 %v5036, %v5078
  %v5080 = vpop.f32.mrf.mxu0
  %v5081 = vadd.f32 %v5038, %v5080
  %v5082 = vpop.f32.mrf.mxu0
  %v5083 = vadd.f32 %v5040, %v5082
  %v5084 = vpop.f32.mrf.mxu0
  %v5085 = vadd.f32 %v5042, %v5084
  %5086 = vdwg.mxu0
  %5087 = vmatprep.subr.bf16.mxu0 %v4992
  %5088 = vmatpush1.bf16.msra.mxu0 %v4991
  %5089 = vmatprep.subr.bf16.mxu0 %v4987
  %5090 = vmatpush1.bf16.msra.mxu0 %v4986
  %5091 = vmatprep.subr.bf16.mxu0 %v4982
  %5092 = vmatpush1.bf16.msra.mxu0 %v4981
  %5093 = vmatprep.subr.bf16.mxu0 %v4977
  %5094 = vmatpush1.bf16.msra.mxu0 %v4976
  %5095 = vmatprep.subr.bf16.mxu0 %v4972
  %5096 = vmatpush1.bf16.msra.mxu0 %v4971
  %5097 = vmatprep.subr.bf16.mxu0 %v4967
  %5098 = vmatpush1.bf16.msra.mxu0 %v4966
  %5099 = vmatprep.subr.bf16.mxu0 %v4962
  %5100 = vmatpush1.bf16.msra.mxu0 %v4961
  %5101 = vmatprep.subr.bf16.mxu0 %v4957
  %5102 = vmatpush1.bf16.msra.mxu0 %v4956
  %5103 = vmatprep.subr.bf16.mxu0 0
  %5104 = vmatpush2.bf16.msra.mxu0 0
  %5105 = vmatprep.subr.bf16.mxu0 0
  %5106 = vmatpush2.bf16.msra.mxu0 0
  %5107 = vmatprep.subr.bf16.mxu0 0
  %5108 = vmatpush2.bf16.msra.mxu0 0
  %5109 = vmatprep.subr.bf16.mxu0 0
  %5110 = vmatpush2.bf16.msra.mxu0 0
  %5111 = vmatprep.subr.bf16.mxu0 0
  %5112 = vmatpush2.bf16.msra.mxu0 0
  %5113 = vmatprep.subr.bf16.mxu0 0
  %5114 = vmatpush2.bf16.msra.mxu0 0
  %5115 = vmatprep.subr.bf16.mxu0 0
  %5116 = vmatpush2.bf16.msra.mxu0 0
  %5117 = vmatprep.subr.bf16.mxu0 0
  %5118 = vmatpush2.bf16.msra.mxu0 0
  %5119 = vmatprep.mubr.bf16.mxu0 0
  %5120 = vmatmul.mubr.bf16.gmra.mxu0 %v5000
  %v5121 = vpop.f32.mrf.mxu0
  %v5122 = vadd.f32 %v5079, %v5121
  %v5123 = vpop.f32.mrf.mxu0
  %v5124 = vadd.f32 %v5081, %v5123
  %v5125 = vpop.f32.mrf.mxu0
  %v5126 = vadd.f32 %v5083, %v5125
  %v5127 = vpop.f32.mrf.mxu0
  %v5128 = vadd.f32 %v5085, %v5127
  %5129 = vdwg.mxu0
  %5130 = vmatprep.subr.bf16.mxu0 %v4834
  %5131 = vmatpush1.bf16.msra.mxu0 %v4833
  %5132 = vmatprep.subr.bf16.mxu0 %v4829
  %5133 = vmatpush1.bf16.msra.mxu0 %v4828
  %5134 = vmatprep.subr.bf16.mxu0 %v4824
  %5135 = vmatpush1.bf16.msra.mxu0 %v4823
  %5136 = vmatprep.subr.bf16.mxu0 %v4819
  %5137 = vmatpush1.bf16.msra.mxu0 %v4818
  %5138 = vmatprep.subr.bf16.mxu0 %v4814
  %5139 = vmatpush1.bf16.msra.mxu0 %v4813
  %5140 = vmatprep.subr.bf16.mxu0 %v4809
  %5141 = vmatpush1.bf16.msra.mxu0 %v4808
  %5142 = vmatprep.subr.bf16.mxu0 %v4804
  %5143 = vmatpush1.bf16.msra.mxu0 %v4803
  %5144 = vmatprep.subr.bf16.mxu0 %v4799
  %5145 = vmatpush1.bf16.msra.mxu0 %v4798
  %5146 = vmatprep.subr.bf16.mxu0 %v4874
  %5147 = vmatpush2.bf16.msra.mxu0 %v4873
  %5148 = vmatprep.subr.bf16.mxu0 %v4869
  %5149 = vmatpush2.bf16.msra.mxu0 %v4868
  %5150 = vmatprep.subr.bf16.mxu0 %v4864
  %5151 = vmatpush2.bf16.msra.mxu0 %v4863
  %5152 = vmatprep.subr.bf16.mxu0 %v4859
  %5153 = vmatpush2.bf16.msra.mxu0 %v4858
  %5154 = vmatprep.subr.bf16.mxu0 %v4854
  %5155 = vmatpush2.bf16.msra.mxu0 %v4853
  %5156 = vmatprep.subr.bf16.mxu0 %v4849
  %5157 = vmatpush2.bf16.msra.mxu0 %v4848
  %5158 = vmatprep.subr.bf16.mxu0 %v4844
  %5159 = vmatpush2.bf16.msra.mxu0 %v4843
  %5160 = vmatprep.subr.bf16.mxu0 %v4839
  %5161 = vmatpush2.bf16.msra.mxu0 %v4838
  %5162 = vmatprep.mubr.bf16.mxu0 %v4997
  %5163 = vmatmul.mubr.bf16.gmra.mxu0 %v4996
  %v5164 = vpop.f32.mrf.mxu0
  %v5165 = vadd.f32 0.0, %v5164
  %v5166 = vpop.f32.mrf.mxu0
  %v5167 = vadd.f32 0.0, %v5166
  %v5168 = vpop.f32.mrf.mxu0
  %v5169 = vadd.f32 0.0, %v5168
  %v5170 = vpop.f32.mrf.mxu0
  %v5171 = vadd.f32 0.0, %v5170
  %5172 = vdwg.mxu0
  %5173 = vmatprep.subr.bf16.mxu0 %v4914
  %5174 = vmatpush1.bf16.msra.mxu0 %v4913
  %5175 = vmatprep.subr.bf16.mxu0 %v4909
  %5176 = vmatpush1.bf16.msra.mxu0 %v4908
  %5177 = vmatprep.subr.bf16.mxu0 %v4904
  %5178 = vmatpush1.bf16.msra.mxu0 %v4903
  %5179 = vmatprep.subr.bf16.mxu0 %v4899
  %5180 = vmatpush1.bf16.msra.mxu0 %v4898
  %5181 = vmatprep.subr.bf16.mxu0 %v4894
  %5182 = vmatpush1.bf16.msra.mxu0 %v4893
  %5183 = vmatprep.subr.bf16.mxu0 %v4889
  %5184 = vmatpush1.bf16.msra.mxu0 %v4888
  %5185 = vmatprep.subr.bf16.mxu0 %v4884
  %5186 = vmatpush1.bf16.msra.mxu0 %v4883
  %5187 = vmatprep.subr.bf16.mxu0 %v4879
  %5188 = vmatpush1.bf16.msra.mxu0 %v4878
  %5189 = vmatprep.subr.bf16.mxu0 %v4954
  %5190 = vmatpush2.bf16.msra.mxu0 %v4953
  %5191 = vmatprep.subr.bf16.mxu0 %v4949
  %5192 = vmatpush2.bf16.msra.mxu0 %v4948
  %5193 = vmatprep.subr.bf16.mxu0 %v4944
  %5194 = vmatpush2.bf16.msra.mxu0 %v4943
  %5195 = vmatprep.subr.bf16.mxu0 %v4939
  %5196 = vmatpush2.bf16.msra.mxu0 %v4938
  %5197 = vmatprep.subr.bf16.mxu0 %v4934
  %5198 = vmatpush2.bf16.msra.mxu0 %v4933
  %5199 = vmatprep.subr.bf16.mxu0 %v4929
  %5200 = vmatpush2.bf16.msra.mxu0 %v4928
  %5201 = vmatprep.subr.bf16.mxu0 %v4924
  %5202 = vmatpush2.bf16.msra.mxu0 %v4923
  %5203 = vmatprep.subr.bf16.mxu0 %v4919
  %5204 = vmatpush2.bf16.msra.mxu0 %v4918
  %5205 = vmatprep.mubr.bf16.mxu0 %v4999
  %5206 = vmatmul.mubr.bf16.gmra.mxu0 %v4998
  %v5207 = vpop.f32.mrf.mxu0
  %v5208 = vadd.f32 %v5165, %v5207
  %v5209 = vpop.f32.mrf.mxu0
  %v5210 = vadd.f32 %v5167, %v5209
  %v5211 = vpop.f32.mrf.mxu0
  %v5212 = vadd.f32 %v5169, %v5211
  %v5213 = vpop.f32.mrf.mxu0
  %v5214 = vadd.f32 %v5171, %v5213
  %5215 = vdwg.mxu0
  %5216 = vmatprep.subr.bf16.mxu0 %v4994
  %5217 = vmatpush1.bf16.msra.mxu0 %v4993
  %5218 = vmatprep.subr.bf16.mxu0 %v4989
  %5219 = vmatpush1.bf16.msra.mxu0 %v4988
  %5220 = vmatprep.subr.bf16.mxu0 %v4984
  %5221 = vmatpush1.bf16.msra.mxu0 %v4983
  %5222 = vmatprep.subr.bf16.mxu0 %v4979
  %5223 = vmatpush1.bf16.msra.mxu0 %v4978
  %5224 = vmatprep.subr.bf16.mxu0 %v4974
  %5225 = vmatpush1.bf16.msra.mxu0 %v4973
  %5226 = vmatprep.subr.bf16.mxu0 %v4969
  %5227 = vmatpush1.bf16.msra.mxu0 %v4968
  %5228 = vmatprep.subr.bf16.mxu0 %v4964
  %5229 = vmatpush1.bf16.msra.mxu0 %v4963
  %5230 = vmatprep.subr.bf16.mxu0 %v4959
  %5231 = vmatpush1.bf16.msra.mxu0 %v4958
  %5232 = vmatprep.subr.bf16.mxu0 0
  %5233 = vmatpush2.bf16.msra.mxu0 0
  %5234 = vmatprep.subr.bf16.mxu0 0
  %5235 = vmatpush2.bf16.msra.mxu0 0
  %5236 = vmatprep.subr.bf16.mxu0 0
  %5237 = vmatpush2.bf16.msra.mxu0 0
  %5238 = vmatprep.subr.bf16.mxu0 0
  %5239 = vmatpush2.bf16.msra.mxu0 0
  %5240 = vmatprep.subr.bf16.mxu0 0
  %5241 = vmatpush2.bf16.msra.mxu0 0
  %5242 = vmatprep.subr.bf16.mxu0 0
  %5243 = vmatpush2.bf16.msra.mxu0 0
  %5244 = vmatprep.subr.bf16.mxu0 0
  %5245 = vmatpush2.bf16.msra.mxu0 0
  %5246 = vmatprep.subr.bf16.mxu0 0
  %5247 = vmatpush2.bf16.msra.mxu0 0
  %5248 = vmatprep.mubr.bf16.mxu0 0
  %5249 = vmatmul.mubr.bf16.gmra.mxu0 %v5000
  %v5250 = vpop.f32.mrf.mxu0
  %v5251 = vadd.f32 %v5208, %v5250
  %v5252 = vpop.f32.mrf.mxu0
  %v5253 = vadd.f32 %v5210, %v5252
  %v5254 = vpop.f32.mrf.mxu0
  %v5255 = vadd.f32 %v5212, %v5254
  %v5256 = vpop.f32.mrf.mxu0
  %v5257 = vadd.f32 %v5214, %v5256
  %5258 = vdwg.mxu0
  %5259 = vmatprep.subr.bf16.mxu0 0
  %5260 = vmatpush1.bf16.msra.mxu0 %v4835
  %5261 = vmatprep.subr.bf16.mxu0 0
  %5262 = vmatpush1.bf16.msra.mxu0 %v4830
  %5263 = vmatprep.subr.bf16.mxu0 0
  %5264 = vmatpush1.bf16.msra.mxu0 %v4825
  %5265 = vmatprep.subr.bf16.mxu0 0
  %5266 = vmatpush1.bf16.msra.mxu0 %v4820
  %5267 = vmatprep.subr.bf16.mxu0 0
  %5268 = vmatpush1.bf16.msra.mxu0 %v4815
  %5269 = vmatprep.subr.bf16.mxu0 0
  %5270 = vmatpush1.bf16.msra.mxu0 %v4810
  %5271 = vmatprep.subr.bf16.mxu0 0
  %5272 = vmatpush1.bf16.msra.mxu0 %v4805
  %5273 = vmatprep.subr.bf16.mxu0 0
  %5274 = vmatpush1.bf16.msra.mxu0 %v4800
  %5275 = vmatprep.subr.bf16.mxu0 0
  %5276 = vmatpush2.bf16.msra.mxu0 %v4875
  %5277 = vmatprep.subr.bf16.mxu0 0
  %5278 = vmatpush2.bf16.msra.mxu0 %v4870
  %5279 = vmatprep.subr.bf16.mxu0 0
  %5280 = vmatpush2.bf16.msra.mxu0 %v4865
  %5281 = vmatprep.subr.bf16.mxu0 0
  %5282 = vmatpush2.bf16.msra.mxu0 %v4860
  %5283 = vmatprep.subr.bf16.mxu0 0
  %5284 = vmatpush2.bf16.msra.mxu0 %v4855
  %5285 = vmatprep.subr.bf16.mxu0 0
  %5286 = vmatpush2.bf16.msra.mxu0 %v4850
  %5287 = vmatprep.subr.bf16.mxu0 0
  %5288 = vmatpush2.bf16.msra.mxu0 %v4845
  %5289 = vmatprep.subr.bf16.mxu0 0
  %5290 = vmatpush2.bf16.msra.mxu0 %v4840
  %5291 = vmatprep.mubr.bf16.mxu0 %v4997
  %5292 = vmatmul.mubr.bf16.gmra.mxu0 %v4996
  %v5293 = vpop.f32.mrf.mxu0
  %v5294 = vadd.f32 0.0, %v5293
  %v5295 = vpop.f32.mrf.mxu0
  %v5296 = vpop.f32.mrf.mxu0
  %v5297 = vadd.f32 0.0, %v5296
  %v5298 = vpop.f32.mrf.mxu0
  %5299 = vdwg.mxu0
  %5300 = vmatprep.subr.bf16.mxu0 0
  %5301 = vmatpush1.bf16.msra.mxu0 %v4915
  %5302 = vmatprep.subr.bf16.mxu0 0
  %5303 = vmatpush1.bf16.msra.mxu0 %v4910
  %5304 = vmatprep.subr.bf16.mxu0 0
  %5305 = vmatpush1.bf16.msra.mxu0 %v4905
  %5306 = vmatprep.subr.bf16.mxu0 0
  %5307 = vmatpush1.bf16.msra.mxu0 %v4900
  %5308 = vmatprep.subr.bf16.mxu0 0
  %5309 = vmatpush1.bf16.msra.mxu0 %v4895
  %5310 = vmatprep.subr.bf16.mxu0 0
  %5311 = vmatpush1.bf16.msra.mxu0 %v4890
  %5312 = vmatprep.subr.bf16.mxu0 0
  %5313 = vmatpush1.bf16.msra.mxu0 %v4885
  %5314 = vmatprep.subr.bf16.mxu0 0
  %5315 = vmatpush1.bf16.msra.mxu0 %v4880
  %5316 = vmatprep.subr.bf16.mxu0 0
  %5317 = vmatpush2.bf16.msra.mxu0 %v4955
  %5318 = vmatprep.subr.bf16.mxu0 0
  %5319 = vmatpush2.bf16.msra.mxu0 %v4950
  %5320 = vmatprep.subr.bf16.mxu0 0
  %5321 = vmatpush2.bf16.msra.mxu0 %v4945
  %5322 = vmatprep.subr.bf16.mxu0 0
  %5323 = vmatpush2.bf16.msra.mxu0 %v4940
  %5324 = vmatprep.subr.bf16.mxu0 0
  %5325 = vmatpush2.bf16.msra.mxu0 %v4935
  %5326 = vmatprep.subr.bf16.mxu0 0
  %5327 = vmatpush2.bf16.msra.mxu0 %v4930
  %5328 = vmatprep.subr.bf16.mxu0 0
  %5329 = vmatpush2.bf16.msra.mxu0 %v4925
  %5330 = vmatprep.subr.bf16.mxu0 0
  %5331 = vmatpush2.bf16.msra.mxu0 %v4920
  %5332 = vmatprep.mubr.bf16.mxu0 %v4999
  %5333 = vmatmul.mubr.bf16.gmra.mxu0 %v4998
  %v5334 = vpop.f32.mrf.mxu0
  %v5335 = vadd.f32 %v5294, %v5334
  %v5336 = vpop.f32.mrf.mxu0
  %v5337 = vpop.f32.mrf.mxu0
  %v5338 = vadd.f32 %v5297, %v5337
  %v5339 = vpop.f32.mrf.mxu0
  %5340 = vdwg.mxu0
  %5341 = vmatprep.subr.bf16.mxu0 0
  %5342 = vmatpush1.bf16.msra.mxu0 %v4995
  %5343 = vmatprep.subr.bf16.mxu0 0
  %5344 = vmatpush1.bf16.msra.mxu0 %v4990
  %5345 = vmatprep.subr.bf16.mxu0 0
  %5346 = vmatpush1.bf16.msra.mxu0 %v4985
  %5347 = vmatprep.subr.bf16.mxu0 0
  %5348 = vmatpush1.bf16.msra.mxu0 %v4980
  %5349 = vmatprep.subr.bf16.mxu0 0
  %5350 = vmatpush1.bf16.msra.mxu0 %v4975
  %5351 = vmatprep.subr.bf16.mxu0 0
  %5352 = vmatpush1.bf16.msra.mxu0 %v4970
  %5353 = vmatprep.subr.bf16.mxu0 0
  %5354 = vmatpush1.bf16.msra.mxu0 %v4965
  %5355 = vmatprep.subr.bf16.mxu0 0
  %5356 = vmatpush1.bf16.msra.mxu0 %v4960
  %5357 = vmatprep.subr.bf16.mxu0 0
  %5358 = vmatpush2.bf16.msra.mxu0 0
  %5359 = vmatprep.subr.bf16.mxu0 0
  %5360 = vmatpush2.bf16.msra.mxu0 0
  %5361 = vmatprep.subr.bf16.mxu0 0
  %5362 = vmatpush2.bf16.msra.mxu0 0
  %5363 = vmatprep.subr.bf16.mxu0 0
  %5364 = vmatpush2.bf16.msra.mxu0 0
  %5365 = vmatprep.subr.bf16.mxu0 0
  %5366 = vmatpush2.bf16.msra.mxu0 0
  %5367 = vmatprep.subr.bf16.mxu0 0
  %5368 = vmatpush2.bf16.msra.mxu0 0
  %5369 = vmatprep.subr.bf16.mxu0 0
  %5370 = vmatpush2.bf16.msra.mxu0 0
  %5371 = vmatprep.subr.bf16.mxu0 0
  %5372 = vmatpush2.bf16.msra.mxu0 0
  %5373 = vmatprep.mubr.bf16.mxu0 0
  %5374 = vmatmul.mubr.bf16.gmra.mxu0 %v5000
  %v5375 = vpop.f32.mrf.mxu0
  %v5376 = vadd.f32 %v5335, %v5375
  %v5377 = vpop.f32.mrf.mxu0
  %v5378 = vpop.f32.mrf.mxu0
  %v5379 = vadd.f32 %v5338, %v5378
  %v5380 = vpop.f32.mrf.mxu0
  %5381 = vdwg.mxu0
  %v5382 = vld [vmem:[%s11] ss:$2 sm:$0x1f]
  %s5383 = scalar_lea.vmem %s11, 1
  %v5384 = vld [vmem:[%s5383] ss:$2 sm:$0x1f]
  %v5386 = vlaneseq
  %v5387 = vshrl.u32 %v5386, 7
  %v5388 = vsub.s32 0, %v5387
  %v5389 = vrot.slane %v5382, %v5388
  %v5390 = vlaneseq
  %v5391 = vshrl.u32 %v5390, 7
  %v5392 = vsub.s32 1, %v5391
  %v5393 = vrot.slane %v5382, %v5392
  %v5394 = vlaneseq
  %v5395 = vshrl.u32 %v5394, 7
  %v5396 = vsub.s32 2, %v5395
  %v5397 = vrot.slane %v5382, %v5396
  %v5398 = vlaneseq
  %v5399 = vshrl.u32 %v5398, 7
  %v5400 = vsub.s32 3, %v5399
  %v5401 = vrot.slane %v5382, %v5400
  %v5402 = vlaneseq
  %v5403 = vshrl.u32 %v5402, 7
  %v5404 = vsub.s32 4, %v5403
  %v5405 = vrot.slane %v5382, %v5404
  %v5411 = vmul.f32 %v5122, %v5389
  %v5412 = vmul.f32 %v5124, %v5393
  %v5413 = vmul.f32 %v5251, %v5397
  %v5414 = vmul.f32 %v5253, %v5401
  %v5415 = vmul.f32 %v5376, %v5405
  %v5416 = vmul.f32 %v5126, %v5389
  %v5417 = vmul.f32 %v5128, %v5393
  %v5418 = vmul.f32 %v5255, %v5397
  %v5419 = vmul.f32 %v5257, %v5401
  %v5420 = vmul.f32 %v5379, %v5405
  %v5422 = vlaneseq
  %v5423 = vshrl.u32 %v5422, 7
  %v5424 = vsub.s32 0, %v5423
  %v5425 = vrot.slane %v5384, %v5424
  %v5426 = vlaneseq
  %v5427 = vshrl.u32 %v5426, 7
  %v5428 = vsub.s32 1, %v5427
  %v5429 = vrot.slane %v5384, %v5428
  %v5430 = vlaneseq
  %v5431 = vshrl.u32 %v5430, 7
  %v5432 = vsub.s32 2, %v5431
  %v5433 = vrot.slane %v5384, %v5432
  %v5434 = vlaneseq
  %v5435 = vshrl.u32 %v5434, 7
  %v5436 = vsub.s32 3, %v5435
  %v5437 = vrot.slane %v5384, %v5436
  %v5438 = vlaneseq
  %v5439 = vshrl.u32 %v5438, 7
  %v5440 = vsub.s32 4, %v5439
  %v5441 = vrot.slane %v5384, %v5440
  %v5447 = vadd.f32 %v5411, %v5425
  %v5448 = vadd.f32 %v5412, %v5429
  %v5449 = vadd.f32 %v5413, %v5433
  %v5450 = vadd.f32 %v5414, %v5437
  %v5451 = vadd.f32 %v5415, %v5441
  %v5452 = vadd.f32 %v5416, %v5425
  %v5453 = vadd.f32 %v5417, %v5429
  %v5454 = vadd.f32 %v5418, %v5433
  %v5455 = vadd.f32 %v5419, %v5437
  %v5456 = vadd.f32 %v5420, %v5441
  %v5457 = vxor.u32 %v5447, 2147483648
  %v5458 = vxor.u32 %v5448, 2147483648
  %v5459 = vxor.u32 %v5449, 2147483648
  %v5460 = vxor.u32 %v5450, 2147483648
  %v5461 = vxor.u32 %v5451, 2147483648
  %v5462 = vxor.u32 %v5452, 2147483648
  %v5463 = vxor.u32 %v5453, 2147483648
  %v5464 = vxor.u32 %v5454, 2147483648
  %v5465 = vxor.u32 %v5455, 2147483648
  %v5466 = vxor.u32 %v5456, 2147483648
  %v5467 = vmul.f32 %v5457, 1.442695
  %v5468 = vpow.pop %v5467
  %v5469 = vmul.f32 %v5458, 1.442695
  %v5470 = vpow.pop %v5469
  %v5471 = vmul.f32 %v5459, 1.442695
  %v5472 = vpow.pop %v5471
  %v5473 = vmul.f32 %v5460, 1.442695
  %v5474 = vpow.pop %v5473
  %v5475 = vmul.f32 %v5461, 1.442695
  %v5476 = vpow.pop %v5475
  %v5477 = vmul.f32 %v5462, 1.442695
  %v5478 = vpow.pop %v5477
  %v5479 = vmul.f32 %v5463, 1.442695
  %v5480 = vpow.pop %v5479
  %v5481 = vmul.f32 %v5464, 1.442695
  %v5482 = vpow.pop %v5481
  %v5483 = vmul.f32 %v5465, 1.442695
  %v5484 = vpow.pop %v5483
  %v5485 = vmul.f32 %v5466, 1.442695
  %v5486 = vpow.pop %v5485
  %v5487 = vadd.f32 %v5468, 1.0
  %v5488 = vadd.f32 %v5470, 1.0
  %v5489 = vadd.f32 %v5472, 1.0
  %v5490 = vadd.f32 %v5474, 1.0
  %v5491 = vadd.f32 %v5476, 1.0
  %v5492 = vadd.f32 %v5478, 1.0
  %v5493 = vadd.f32 %v5480, 1.0
  %v5494 = vadd.f32 %v5482, 1.0
  %v5495 = vadd.f32 %v5484, 1.0
  %v5496 = vadd.f32 %v5486, 1.0
  %v5497 = vrcp.pop %v5487
  %v5498 = vmul.f32 1.0, %v5497
  %v5499 = vrcp.pop %v5488
  %v5500 = vmul.f32 1.0, %v5499
  %v5501 = vrcp.pop %v5489
  %v5502 = vmul.f32 1.0, %v5501
  %v5503 = vrcp.pop %v5490
  %v5504 = vmul.f32 1.0, %v5503
  %v5505 = vrcp.pop %v5491
  %v5506 = vmul.f32 1.0, %v5505
  %v5507 = vrcp.pop %v5492
  %v5508 = vmul.f32 1.0, %v5507
  %v5509 = vrcp.pop %v5493
  %v5510 = vmul.f32 1.0, %v5509
  %v5511 = vrcp.pop %v5494
  %v5512 = vmul.f32 1.0, %v5511
  %v5513 = vrcp.pop %v5495
  %v5514 = vmul.f32 1.0, %v5513
  %v5515 = vrcp.pop %v5496
  %v5516 = vmul.f32 1.0, %v5515
  %v5517 = vmul.f32 %v5447, %v5498
  %v5518 = vmul.f32 %v5448, %v5500
  %v5519 = vmul.f32 %v5449, %v5502
  %v5520 = vmul.f32 %v5450, %v5504
  %v5521 = vmul.f32 %v5451, %v5506
  %v5522 = vmul.f32 %v5452, %v5508
  %v5523 = vmul.f32 %v5453, %v5510
  %v5524 = vmul.f32 %v5454, %v5512
  %v5525 = vmul.f32 %v5455, %v5514
  %v5526 = vmul.f32 %v5456, %v5516
  // Predicated region
  $region262: #{encoder2_forward.1} parent=0 // pred_check
    %p5527 = pneg %p37
  $region263: #{encoder2_forward.1} parent=0 // pred_check_branch
    %5529 = sbr.rel (%p5527) target = $region265
  $region264: #{encoder2_forward.1} parent=0 // pred_region
    %s5530 = scalar_lea.sflag [#allocation9], 4
    %s5531 = smul.u32 2, 240
    %s5532 = smul.u32 %s5531, 5
    %s5533 = sshll.u32 %s5532, 4
    %5534 = dma.done %s5530, %s5533
  $region265: #{encoder2_forward.1} parent=0 // pred_fallthru
    _
  %v5535 = vld [vmem:[#allocation6] sm:$0xff]
  %v5536 = vld [vmem:[#allocation6 + $0x8] sm:$0xff]
  %v5537 = vld [vmem:[#allocation6 + $0x10] sm:$0xff]
  %v5538 = vld [vmem:[#allocation6 + $0x18] sm:$0xff]
  %v5539 = vld [vmem:[#allocation6 + $0x20] sm:$0xff]
  %v5540 = vld [vmem:[#allocation6 + $0x28] sm:$0xff]
  %v5541 = vld [vmem:[#allocation6 + $0x30] sm:$0xff]
  %v5542 = vld [vmem:[#allocation6 + $0x38] sm:$0xff]
  %v5543 = vld [vmem:[#allocation6 + $0x40] sm:$0xff]
  %v5544 = vld [vmem:[#allocation6 + $0x48] sm:$0xff]
  %v5545 = vld [vmem:[#allocation6 + $0x50] sm:$0xff]
  %v5546 = vld [vmem:[#allocation6 + $0x58] sm:$0xff]
  %v5547 = vld [vmem:[#allocation6 + $0x60] sm:$0xff]
  %v5548 = vld [vmem:[#allocation6 + $0x68] sm:$0xff]
  %v5549 = vld [vmem:[#allocation6 + $0x70] sm:$0xff]
  %v5550 = vld [vmem:[#allocation6 + $0x78] sm:$0xff]
  %v5551 = vld [vmem:[#allocation6 + $0x80] sm:$0xff]
  %v5552 = vld [vmem:[#allocation6 + $0x88] sm:$0xff]
  %v5553 = vld [vmem:[#allocation6 + $0x90] sm:$0xff]
  %v5554 = vld [vmem:[#allocation6 + $0x98] sm:$0xff]
  %v5555 = vld [vmem:[#allocation6 + $0xa0] sm:$0xff]
  %v5556 = vld [vmem:[#allocation6 + $0xa8] sm:$0xff]
  %v5557 = vld [vmem:[#allocation6 + $0xb0] sm:$0xff]
  %v5558 = vld [vmem:[#allocation6 + $0xb8] sm:$0xff]
  %v5559 = vld [vmem:[#allocation6 + $0xc0] sm:$0xff]
  %v5560 = vld [vmem:[#allocation6 + $0xc8] sm:$0xff]
  %v5561 = vld [vmem:[#allocation6 + $0xd0] sm:$0xff]
  %v5562 = vld [vmem:[#allocation6 + $0xd8] sm:$0xff]
  %v5563 = vld [vmem:[#allocation6 + $0xe0] sm:$0xff]
  %v5564 = vld [vmem:[#allocation6 + $0xe8] sm:$0xff]
  %v5565 = vld [vmem:[#allocation6 + $0xf0] sm:$0xff]
  %v5566 = vld [vmem:[#allocation6 + $0xf8] sm:$0xff]
  %v5567 = vld [vmem:[#allocation6 + $0x100] sm:$0xff]
  %v5568 = vld [vmem:[#allocation6 + $0x108] sm:$0xff]
  %v5569 = vld [vmem:[#allocation6 + $0x110] sm:$0xff]
  %v5570 = vld [vmem:[#allocation6 + $0x118] sm:$0xff]
  %v5571 = vld [vmem:[#allocation6 + $0x120] sm:$0xff]
  %v5572 = vld [vmem:[#allocation6 + $0x128] sm:$0xff]
  %v5573 = vld [vmem:[#allocation6 + $0x130] sm:$0xff]
  %v5574 = vld [vmem:[#allocation6 + $0x138] sm:$0xff]
  %v5575 = vld [vmem:[#allocation6 + $0x140] sm:$0xff]
  %v5576 = vld [vmem:[#allocation6 + $0x148] sm:$0xff]
  %v5577 = vld [vmem:[#allocation6 + $0x150] sm:$0xff]
  %v5578 = vld [vmem:[#allocation6 + $0x158] sm:$0xff]
  %v5579 = vld [vmem:[#allocation6 + $0x160] sm:$0xff]
  %v5580 = vld [vmem:[#allocation6 + $0x168] sm:$0xff]
  %v5581 = vld [vmem:[#allocation6 + $0x170] sm:$0xff]
  %v5582 = vld [vmem:[#allocation6 + $0x178] sm:$0xff]
  %v5583 = vld [vmem:[#allocation6 + $0x180] sm:$0xff]
  %v5584 = vld [vmem:[#allocation6 + $0x188] sm:$0xff]
  %v5585 = vld [vmem:[#allocation6 + $0x190] sm:$0xff]
  %v5586 = vld [vmem:[#allocation6 + $0x198] sm:$0xff]
  %v5587 = vld [vmem:[#allocation6 + $0x1a0] sm:$0xff]
  %v5588 = vld [vmem:[#allocation6 + $0x1a8] sm:$0xff]
  %v5589 = vld [vmem:[#allocation6 + $0x1b0] sm:$0xff]
  %v5590 = vld [vmem:[#allocation6 + $0x1b8] sm:$0xff]
  %v5591 = vld [vmem:[#allocation6 + $0x1c0] sm:$0xff]
  %v5592 = vld [vmem:[#allocation6 + $0x1c8] sm:$0xff]
  %v5593 = vld [vmem:[#allocation6 + $0x1d0] sm:$0xff]
  %v5594 = vld [vmem:[#allocation6 + $0x1d8] sm:$0xff]
  %v5595 = vld [vmem:[#allocation6 + $0x1e0] sm:$0xff]
  %v5596 = vld [vmem:[#allocation6 + $0x1e8] sm:$0xff]
  %v5597 = vld [vmem:[#allocation6 + $0x1f0] sm:$0xff]
  %v5598 = vld [vmem:[#allocation6 + $0x1f8] sm:$0xff]
  %v5599 = vld [vmem:[#allocation6 + $0x200] sm:$0xff]
  %v5600 = vld [vmem:[#allocation6 + $0x208] sm:$0xff]
  %v5601 = vld [vmem:[#allocation6 + $0x210] sm:$0xff]
  %v5602 = vld [vmem:[#allocation6 + $0x218] sm:$0xff]
  %v5603 = vld [vmem:[#allocation6 + $0x220] sm:$0xff]
  %v5604 = vld [vmem:[#allocation6 + $0x228] sm:$0xff]
  %v5605 = vld [vmem:[#allocation6 + $0x230] sm:$0xff]
  %v5606 = vld [vmem:[#allocation6 + $0x238] sm:$0xff]
  %v5607 = vld [vmem:[#allocation6 + $0x240] sm:$0xff]
  %v5608 = vld [vmem:[#allocation6 + $0x248] sm:$0xff]
  %v5609 = vld [vmem:[#allocation6 + $0x250] sm:$0xff]
  %v5610 = vld [vmem:[#allocation6 + $0x258] sm:$0xff]
  %v5611 = vld [vmem:[#allocation6 + $0x260] sm:$0xff]
  %v5612 = vld [vmem:[#allocation6 + $0x268] sm:$0xff]
  %v5613 = vld [vmem:[#allocation6 + $0x270] sm:$0xff]
  %v5614 = vld [vmem:[#allocation6 + $0x278] sm:$0xff]
  %v5615 = vld [vmem:[#allocation6 + $0x280] sm:$0xff]
  %v5616 = vld [vmem:[#allocation6 + $0x288] sm:$0xff]
  %v5617 = vld [vmem:[#allocation6 + $0x290] sm:$0xff]
  %v5618 = vld [vmem:[#allocation6 + $0x298] sm:$0xff]
  %v5619 = vld [vmem:[#allocation6 + $0x2a0] sm:$0xff]
  %v5620 = vld [vmem:[#allocation6 + $0x2a8] sm:$0xff]
  %v5621 = vld [vmem:[#allocation6 + $0x2b0] sm:$0xff]
  %v5622 = vld [vmem:[#allocation6 + $0x2b8] sm:$0xff]
  %v5623 = vld [vmem:[#allocation6 + $0x2c0] sm:$0xff]
  %v5624 = vld [vmem:[#allocation6 + $0x2c8] sm:$0xff]
  %v5625 = vld [vmem:[#allocation6 + $0x2d0] sm:$0xff]
  %v5626 = vld [vmem:[#allocation6 + $0x2d8] sm:$0xff]
  %v5627 = vld [vmem:[#allocation6 + $0x2e0] sm:$0xff]
  %v5628 = vld [vmem:[#allocation6 + $0x2e8] sm:$0xff]
  %v5629 = vld [vmem:[#allocation6 + $0x2f0] sm:$0xff]
  %v5630 = vld [vmem:[#allocation6 + $0x2f8] sm:$0xff]
  %v5631 = vld [vmem:[#allocation6 + $0x300] sm:$0xff]
  %v5632 = vld [vmem:[#allocation6 + $0x308] sm:$0xff]
  %v5633 = vld [vmem:[#allocation6 + $0x310] sm:$0xff]
  %v5634 = vld [vmem:[#allocation6 + $0x318] sm:$0xff]
  %v5635 = vld [vmem:[#allocation6 + $0x320] sm:$0xff]
  %v5636 = vld [vmem:[#allocation6 + $0x328] sm:$0xff]
  %v5637 = vld [vmem:[#allocation6 + $0x330] sm:$0xff]
  %v5638 = vld [vmem:[#allocation6 + $0x338] sm:$0xff]
  %v5639 = vld [vmem:[#allocation6 + $0x340] sm:$0xff]
  %v5640 = vld [vmem:[#allocation6 + $0x348] sm:$0xff]
  %v5641 = vld [vmem:[#allocation6 + $0x350] sm:$0xff]
  %v5642 = vld [vmem:[#allocation6 + $0x358] sm:$0xff]
  %v5643 = vld [vmem:[#allocation6 + $0x360] sm:$0xff]
  %v5644 = vld [vmem:[#allocation6 + $0x368] sm:$0xff]
  %v5645 = vld [vmem:[#allocation6 + $0x370] sm:$0xff]
  %v5646 = vld [vmem:[#allocation6 + $0x378] sm:$0xff]
  %v5647 = vld [vmem:[#allocation6 + $0x380] sm:$0xff]
  %v5648 = vld [vmem:[#allocation6 + $0x388] sm:$0xff]
  %v5649 = vld [vmem:[#allocation6 + $0x390] sm:$0xff]
  %v5650 = vld [vmem:[#allocation6 + $0x398] sm:$0xff]
  %v5651 = vld [vmem:[#allocation6 + $0x3a0] sm:$0xff]
  %v5652 = vld [vmem:[#allocation6 + $0x3a8] sm:$0xff]
  %v5653 = vld [vmem:[#allocation6 + $0x3b0] sm:$0xff]
  %v5654 = vld [vmem:[#allocation6 + $0x3b8] sm:$0xff]
  %v5655 = vld [vmem:[#allocation6 + $0x3c0] sm:$0xff]
  %v5656 = vld [vmem:[#allocation6 + $0x3c8] sm:$0xff]
  %v5657 = vld [vmem:[#allocation6 + $0x3d0] sm:$0xff]
  %v5658 = vld [vmem:[#allocation6 + $0x3d8] sm:$0xff]
  %v5659 = vld [vmem:[#allocation6 + $0x3e0] sm:$0xff]
  %v5660 = vld [vmem:[#allocation6 + $0x3e8] sm:$0xff]
  %v5661 = vld [vmem:[#allocation6 + $0x3f0] sm:$0xff]
  %v5662 = vld [vmem:[#allocation6 + $0x3f8] sm:$0xff]
  %v5663 = vld [vmem:[#allocation6 + $0x400] sm:$0xff]
  %v5664 = vld [vmem:[#allocation6 + $0x408] sm:$0xff]
  %v5665 = vld [vmem:[#allocation6 + $0x410] sm:$0xff]
  %v5666 = vld [vmem:[#allocation6 + $0x418] sm:$0xff]
  %v5667 = vld [vmem:[#allocation6 + $0x420] sm:$0xff]
  %v5668 = vld [vmem:[#allocation6 + $0x428] sm:$0xff]
  %v5669 = vld [vmem:[#allocation6 + $0x430] sm:$0xff]
  %v5670 = vld [vmem:[#allocation6 + $0x438] sm:$0xff]
  %v5671 = vld [vmem:[#allocation6 + $0x440] sm:$0xff]
  %v5672 = vld [vmem:[#allocation6 + $0x448] sm:$0xff]
  %v5673 = vld [vmem:[#allocation6 + $0x450] sm:$0xff]
  %v5674 = vld [vmem:[#allocation6 + $0x458] sm:$0xff]
  %v5675 = vld [vmem:[#allocation6 + $0x460] sm:$0xff]
  %v5676 = vld [vmem:[#allocation6 + $0x468] sm:$0xff]
  %v5677 = vld [vmem:[#allocation6 + $0x470] sm:$0xff]
  %v5678 = vld [vmem:[#allocation6 + $0x478] sm:$0xff]
  %v5679 = vld [vmem:[#allocation6 + $0x480] sm:$0xff]
  %v5680 = vld [vmem:[#allocation6 + $0x488] sm:$0xff]
  %v5681 = vld [vmem:[#allocation6 + $0x490] sm:$0xff]
  %v5682 = vld [vmem:[#allocation6 + $0x498] sm:$0xff]
  %v5683 = vld [vmem:[#allocation6 + $0x4a0] sm:$0xff]
  %v5684 = vld [vmem:[#allocation6 + $0x4a8] sm:$0xff]
  %v5685 = vld [vmem:[#allocation6 + $0x4b0] sm:$0xff]
  %v5686 = vld [vmem:[#allocation6 + $0x4b8] sm:$0xff]
  %v5687 = vld [vmem:[#allocation6 + $0x4c0] sm:$0xff]
  %v5688 = vld [vmem:[#allocation6 + $0x4c8] sm:$0xff]
  %v5689 = vld [vmem:[#allocation6 + $0x4d0] sm:$0xff]
  %v5690 = vld [vmem:[#allocation6 + $0x4d8] sm:$0xff]
  %v5691 = vld [vmem:[#allocation6 + $0x4e0] sm:$0xff]
  %v5692 = vld [vmem:[#allocation6 + $0x4e8] sm:$0xff]
  %v5693 = vld [vmem:[#allocation6 + $0x4f0] sm:$0xff]
  %v5694 = vld [vmem:[#allocation6 + $0x4f8] sm:$0xff]
  %v5695 = vld [vmem:[#allocation6 + $0x500] sm:$0xff]
  %v5696 = vld [vmem:[#allocation6 + $0x508] sm:$0xff]
  %v5697 = vld [vmem:[#allocation6 + $0x510] sm:$0xff]
  %v5698 = vld [vmem:[#allocation6 + $0x518] sm:$0xff]
  %v5699 = vld [vmem:[#allocation6 + $0x520] sm:$0xff]
  %v5700 = vld [vmem:[#allocation6 + $0x528] sm:$0xff]
  %v5701 = vld [vmem:[#allocation6 + $0x530] sm:$0xff]
  %v5702 = vld [vmem:[#allocation6 + $0x538] sm:$0xff]
  %v5703 = vld [vmem:[#allocation6 + $0x540] sm:$0xff]
  %v5704 = vld [vmem:[#allocation6 + $0x548] sm:$0xff]
  %v5705 = vld [vmem:[#allocation6 + $0x550] sm:$0xff]
  %v5706 = vld [vmem:[#allocation6 + $0x558] sm:$0xff]
  %v5707 = vld [vmem:[#allocation6 + $0x560] sm:$0xff]
  %v5708 = vld [vmem:[#allocation6 + $0x568] sm:$0xff]
  %v5709 = vld [vmem:[#allocation6 + $0x570] sm:$0xff]
  %v5710 = vld [vmem:[#allocation6 + $0x578] sm:$0xff]
  %v5711 = vld [vmem:[#allocation6 + $0x580] sm:$0xff]
  %v5712 = vld [vmem:[#allocation6 + $0x588] sm:$0xff]
  %v5713 = vld [vmem:[#allocation6 + $0x590] sm:$0xff]
  %v5714 = vld [vmem:[#allocation6 + $0x598] sm:$0xff]
  %v5715 = vld [vmem:[#allocation6 + $0x5a0] sm:$0xff]
  %v5716 = vld [vmem:[#allocation6 + $0x5a8] sm:$0xff]
  %v5717 = vld [vmem:[#allocation6 + $0x5b0] sm:$0xff]
  %v5718 = vld [vmem:[#allocation6 + $0x5b8] sm:$0xff]
  %v5719 = vld [vmem:[#allocation6 + $0x5c0] sm:$0xff]
  %v5720 = vld [vmem:[#allocation6 + $0x5c8] sm:$0xff]
  %v5721 = vld [vmem:[#allocation6 + $0x5d0] sm:$0xff]
  %v5722 = vld [vmem:[#allocation6 + $0x5d8] sm:$0xff]
  %v5723 = vld [vmem:[#allocation6 + $0x5e0] sm:$0xff]
  %v5724 = vld [vmem:[#allocation6 + $0x5e8] sm:$0xff]
  %v5725 = vld [vmem:[#allocation6 + $0x5f0] sm:$0xff]
  %v5726 = vld [vmem:[#allocation6 + $0x5f8] sm:$0xff]
  %v5727 = vld [vmem:[#allocation6 + $0x600] sm:$0xff]
  %v5728 = vld [vmem:[#allocation6 + $0x608] sm:$0xff]
  %v5729 = vld [vmem:[#allocation6 + $0x610] sm:$0xff]
  %v5730 = vld [vmem:[#allocation6 + $0x618] sm:$0xff]
  %v5731 = vld [vmem:[#allocation6 + $0x620] sm:$0xff]
  %v5732 = vld [vmem:[#allocation6 + $0x628] sm:$0xff]
  %v5733 = vld [vmem:[#allocation6 + $0x630] sm:$0xff]
  %v5734 = vld [vmem:[#allocation6 + $0x638] sm:$0xff]
  %v5735 = vld [vmem:[#allocation6 + $0x640] sm:$0xff]
  %v5736 = vld [vmem:[#allocation6 + $0x648] sm:$0xff]
  %v5737 = vld [vmem:[#allocation6 + $0x650] sm:$0xff]
  %v5738 = vld [vmem:[#allocation6 + $0x658] sm:$0xff]
  %v5739 = vld [vmem:[#allocation6 + $0x660] sm:$0xff]
  %v5740 = vld [vmem:[#allocation6 + $0x668] sm:$0xff]
  %v5741 = vld [vmem:[#allocation6 + $0x670] sm:$0xff]
  %v5742 = vld [vmem:[#allocation6 + $0x678] sm:$0xff]
  %v5743 = vld [vmem:[#allocation6 + $0x680] sm:$0xff]
  %v5744 = vld [vmem:[#allocation6 + $0x688] sm:$0xff]
  %v5745 = vld [vmem:[#allocation6 + $0x690] sm:$0xff]
  %v5746 = vld [vmem:[#allocation6 + $0x698] sm:$0xff]
  %v5747 = vld [vmem:[#allocation6 + $0x6a0] sm:$0xff]
  %v5748 = vld [vmem:[#allocation6 + $0x6a8] sm:$0xff]
  %v5749 = vld [vmem:[#allocation6 + $0x6b0] sm:$0xff]
  %v5750 = vld [vmem:[#allocation6 + $0x6b8] sm:$0xff]
  %v5751 = vld [vmem:[#allocation6 + $0x6c0] sm:$0xff]
  %v5752 = vld [vmem:[#allocation6 + $0x6c8] sm:$0xff]
  %v5753 = vld [vmem:[#allocation6 + $0x6d0] sm:$0xff]
  %v5754 = vld [vmem:[#allocation6 + $0x6d8] sm:$0xff]
  %v5755 = vld [vmem:[#allocation6 + $0x6e0] sm:$0xff]
  %v5756 = vld [vmem:[#allocation6 + $0x6e8] sm:$0xff]
  %v5757 = vld [vmem:[#allocation6 + $0x6f0] sm:$0xff]
  %v5758 = vld [vmem:[#allocation6 + $0x6f8] sm:$0xff]
  %v5759 = vld [vmem:[#allocation6 + $0x700] sm:$0xff]
  %v5760 = vld [vmem:[#allocation6 + $0x708] sm:$0xff]
  %v5761 = vld [vmem:[#allocation6 + $0x710] sm:$0xff]
  %v5762 = vld [vmem:[#allocation6 + $0x718] sm:$0xff]
  %v5763 = vld [vmem:[#allocation6 + $0x720] sm:$0xff]
  %v5764 = vld [vmem:[#allocation6 + $0x728] sm:$0xff]
  %v5765 = vld [vmem:[#allocation6 + $0x730] sm:$0xff]
  %v5766 = vld [vmem:[#allocation6 + $0x738] sm:$0xff]
  %v5767 = vld [vmem:[#allocation6 + $0x740] sm:$0xff]
  %v5768 = vld [vmem:[#allocation6 + $0x748] sm:$0xff]
  %v5769 = vld [vmem:[#allocation6 + $0x750] sm:$0xff]
  %v5770 = vld [vmem:[#allocation6 + $0x758] sm:$0xff]
  %v5771 = vld [vmem:[#allocation6 + $0x760] sm:$0xff]
  %v5772 = vld [vmem:[#allocation6 + $0x768] sm:$0xff]
  %v5773 = vld [vmem:[#allocation6 + $0x770] sm:$0xff]
  %v5774 = vld [vmem:[#allocation6 + $0x778] sm:$0xff]
  %v5775 = vld [vmem:[#allocation6 + $0x780] sm:$0xff]
  %v5776 = vld [vmem:[#allocation6 + $0x788] sm:$0xff]
  %v5777 = vld [vmem:[#allocation6 + $0x790] sm:$0xff]
  %v5778 = vld [vmem:[#allocation6 + $0x798] sm:$0xff]
  %v5779 = vld [vmem:[#allocation6 + $0x7a0] sm:$0xff]
  %v5780 = vld [vmem:[#allocation6 + $0x7a8] sm:$0xff]
  %v5781 = vld [vmem:[#allocation6 + $0x7b0] sm:$0xff]
  %v5782 = vld [vmem:[#allocation6 + $0x7b8] sm:$0xff]
  %v5783 = vld [vmem:[#allocation6 + $0x7c0] sm:$0xff]
  %v5784 = vld [vmem:[#allocation6 + $0x7c8] sm:$0xff]
  %v5785 = vld [vmem:[#allocation6 + $0x7d0] sm:$0xff]
  %v5786 = vld [vmem:[#allocation6 + $0x7d8] sm:$0xff]
  %v5787 = vld [vmem:[#allocation6 + $0x7e0] sm:$0xff]
  %v5788 = vld [vmem:[#allocation6 + $0x7e8] sm:$0xff]
  %v5789 = vld [vmem:[#allocation6 + $0x7f0] sm:$0xff]
  %v5790 = vld [vmem:[#allocation6 + $0x7f8] sm:$0xff]
  %v5791 = vld [vmem:[#allocation6 + $0x800] sm:$0xff]
  %v5792 = vld [vmem:[#allocation6 + $0x808] sm:$0xff]
  %v5793 = vld [vmem:[#allocation6 + $0x810] sm:$0xff]
  %v5794 = vld [vmem:[#allocation6 + $0x818] sm:$0xff]
  %v5795 = vld [vmem:[#allocation6 + $0x820] sm:$0xff]
  %v5796 = vld [vmem:[#allocation6 + $0x828] sm:$0xff]
  %v5797 = vld [vmem:[#allocation6 + $0x830] sm:$0xff]
  %v5798 = vld [vmem:[#allocation6 + $0x838] sm:$0xff]
  %v5799 = vld [vmem:[#allocation6 + $0x840] sm:$0xff]
  %v5800 = vld [vmem:[#allocation6 + $0x848] sm:$0xff]
  %v5801 = vld [vmem:[#allocation6 + $0x850] sm:$0xff]
  %v5802 = vld [vmem:[#allocation6 + $0x858] sm:$0xff]
  %v5803 = vld [vmem:[#allocation6 + $0x860] sm:$0xff]
  %v5804 = vld [vmem:[#allocation6 + $0x868] sm:$0xff]
  %v5805 = vld [vmem:[#allocation6 + $0x870] sm:$0xff]
  %v5806 = vld [vmem:[#allocation6 + $0x878] sm:$0xff]
  %v5807 = vld [vmem:[#allocation6 + $0x880] sm:$0xff]
  %v5808 = vld [vmem:[#allocation6 + $0x888] sm:$0xff]
  %v5809 = vld [vmem:[#allocation6 + $0x890] sm:$0xff]
  %v5810 = vld [vmem:[#allocation6 + $0x898] sm:$0xff]
  %v5811 = vld [vmem:[#allocation6 + $0x8a0] sm:$0xff]
  %v5812 = vld [vmem:[#allocation6 + $0x8a8] sm:$0xff]
  %v5813 = vld [vmem:[#allocation6 + $0x8b0] sm:$0xff]
  %v5814 = vld [vmem:[#allocation6 + $0x8b8] sm:$0xff]
  %v5815 = vld [vmem:[#allocation6 + $0x8c0] sm:$0xff]
  %v5816 = vld [vmem:[#allocation6 + $0x8c8] sm:$0xff]
  %v5817 = vld [vmem:[#allocation6 + $0x8d0] sm:$0xff]
  %v5818 = vld [vmem:[#allocation6 + $0x8d8] sm:$0xff]
  %v5819 = vld [vmem:[#allocation6 + $0x8e0] sm:$0xff]
  %v5820 = vld [vmem:[#allocation6 + $0x8e8] sm:$0xff]
  %v5821 = vld [vmem:[#allocation6 + $0x8f0] sm:$0xff]
  %v5822 = vld [vmem:[#allocation6 + $0x8f8] sm:$0xff]
  %v5823 = vld [vmem:[#allocation6 + $0x900] sm:$0xff]
  %v5824 = vld [vmem:[#allocation6 + $0x908] sm:$0xff]
  %v5825 = vld [vmem:[#allocation6 + $0x910] sm:$0xff]
  %v5826 = vld [vmem:[#allocation6 + $0x918] sm:$0xff]
  %v5827 = vld [vmem:[#allocation6 + $0x920] sm:$0xff]
  %v5828 = vld [vmem:[#allocation6 + $0x928] sm:$0xff]
  %v5829 = vld [vmem:[#allocation6 + $0x930] sm:$0xff]
  %v5830 = vld [vmem:[#allocation6 + $0x938] sm:$0xff]
  %v5831 = vld [vmem:[#allocation6 + $0x940] sm:$0xff]
  %v5832 = vld [vmem:[#allocation6 + $0x948] sm:$0xff]
  %v5833 = vld [vmem:[#allocation6 + $0x950] sm:$0xff]
  %v5834 = vld [vmem:[#allocation6 + $0x958] sm:$0xff]
  %v5835 = vunpack.c.l.s8.bf16 %v5535
  %v5836 = vunpack.c.l.s8.bf16 %v5536
  %v5837 = vunpack.c.l.s8.bf16 %v5537
  %v5838 = vunpack.c.l.s8.bf16 %v5538
  %v5839 = vunpack.c.l.s8.bf16 %v5539
  %v5840 = vunpack.c.h.s8.bf16 %v5535
  %v5841 = vunpack.c.h.s8.bf16 %v5536
  %v5842 = vunpack.c.h.s8.bf16 %v5537
  %v5843 = vunpack.c.h.s8.bf16 %v5538
  %v5844 = vunpack.c.h.s8.bf16 %v5539
  %v5845 = vunpack.c.l.s8.bf16 %v5540
  %v5846 = vunpack.c.l.s8.bf16 %v5541
  %v5847 = vunpack.c.l.s8.bf16 %v5542
  %v5848 = vunpack.c.l.s8.bf16 %v5543
  %v5849 = vunpack.c.l.s8.bf16 %v5544
  %v5850 = vunpack.c.h.s8.bf16 %v5540
  %v5851 = vunpack.c.h.s8.bf16 %v5541
  %v5852 = vunpack.c.h.s8.bf16 %v5542
  %v5853 = vunpack.c.h.s8.bf16 %v5543
  %v5854 = vunpack.c.h.s8.bf16 %v5544
  %v5855 = vunpack.c.l.s8.bf16 %v5545
  %v5856 = vunpack.c.l.s8.bf16 %v5546
  %v5857 = vunpack.c.l.s8.bf16 %v5547
  %v5858 = vunpack.c.l.s8.bf16 %v5548
  %v5859 = vunpack.c.l.s8.bf16 %v5549
  %v5860 = vunpack.c.h.s8.bf16 %v5545
  %v5861 = vunpack.c.h.s8.bf16 %v5546
  %v5862 = vunpack.c.h.s8.bf16 %v5547
  %v5863 = vunpack.c.h.s8.bf16 %v5548
  %v5864 = vunpack.c.h.s8.bf16 %v5549
  %v5865 = vunpack.c.l.s8.bf16 %v5550
  %v5866 = vunpack.c.l.s8.bf16 %v5551
  %v5867 = vunpack.c.l.s8.bf16 %v5552
  %v5868 = vunpack.c.l.s8.bf16 %v5553
  %v5869 = vunpack.c.l.s8.bf16 %v5554
  %v5870 = vunpack.c.h.s8.bf16 %v5550
  %v5871 = vunpack.c.h.s8.bf16 %v5551
  %v5872 = vunpack.c.h.s8.bf16 %v5552
  %v5873 = vunpack.c.h.s8.bf16 %v5553
  %v5874 = vunpack.c.h.s8.bf16 %v5554
  %v5875 = vunpack.c.l.s8.bf16 %v5555
  %v5876 = vunpack.c.l.s8.bf16 %v5556
  %v5877 = vunpack.c.l.s8.bf16 %v5557
  %v5878 = vunpack.c.l.s8.bf16 %v5558
  %v5879 = vunpack.c.l.s8.bf16 %v5559
  %v5880 = vunpack.c.h.s8.bf16 %v5555
  %v5881 = vunpack.c.h.s8.bf16 %v5556
  %v5882 = vunpack.c.h.s8.bf16 %v5557
  %v5883 = vunpack.c.h.s8.bf16 %v5558
  %v5884 = vunpack.c.h.s8.bf16 %v5559
  %v5885 = vunpack.c.l.s8.bf16 %v5560
  %v5886 = vunpack.c.l.s8.bf16 %v5561
  %v5887 = vunpack.c.l.s8.bf16 %v5562
  %v5888 = vunpack.c.l.s8.bf16 %v5563
  %v5889 = vunpack.c.l.s8.bf16 %v5564
  %v5890 = vunpack.c.h.s8.bf16 %v5560
  %v5891 = vunpack.c.h.s8.bf16 %v5561
  %v5892 = vunpack.c.h.s8.bf16 %v5562
  %v5893 = vunpack.c.h.s8.bf16 %v5563
  %v5894 = vunpack.c.h.s8.bf16 %v5564
  %v5895 = vunpack.c.l.s8.bf16 %v5565
  %v5896 = vunpack.c.l.s8.bf16 %v5566
  %v5897 = vunpack.c.l.s8.bf16 %v5567
  %v5898 = vunpack.c.l.s8.bf16 %v5568
  %v5899 = vunpack.c.l.s8.bf16 %v5569
  %v5900 = vunpack.c.h.s8.bf16 %v5565
  %v5901 = vunpack.c.h.s8.bf16 %v5566
  %v5902 = vunpack.c.h.s8.bf16 %v5567
  %v5903 = vunpack.c.h.s8.bf16 %v5568
  %v5904 = vunpack.c.h.s8.bf16 %v5569
  %v5905 = vunpack.c.l.s8.bf16 %v5570
  %v5906 = vunpack.c.l.s8.bf16 %v5571
  %v5907 = vunpack.c.l.s8.bf16 %v5572
  %v5908 = vunpack.c.l.s8.bf16 %v5573
  %v5909 = vunpack.c.l.s8.bf16 %v5574
  %v5910 = vunpack.c.h.s8.bf16 %v5570
  %v5911 = vunpack.c.h.s8.bf16 %v5571
  %v5912 = vunpack.c.h.s8.bf16 %v5572
  %v5913 = vunpack.c.h.s8.bf16 %v5573
  %v5914 = vunpack.c.h.s8.bf16 %v5574
  %v5915 = vunpack.c.l.s8.bf16 %v5575
  %v5916 = vunpack.c.l.s8.bf16 %v5576
  %v5917 = vunpack.c.l.s8.bf16 %v5577
  %v5918 = vunpack.c.l.s8.bf16 %v5578
  %v5919 = vunpack.c.l.s8.bf16 %v5579
  %v5920 = vunpack.c.h.s8.bf16 %v5575
  %v5921 = vunpack.c.h.s8.bf16 %v5576
  %v5922 = vunpack.c.h.s8.bf16 %v5577
  %v5923 = vunpack.c.h.s8.bf16 %v5578
  %v5924 = vunpack.c.h.s8.bf16 %v5579
  %v5925 = vunpack.c.l.s8.bf16 %v5580
  %v5926 = vunpack.c.l.s8.bf16 %v5581
  %v5927 = vunpack.c.l.s8.bf16 %v5582
  %v5928 = vunpack.c.l.s8.bf16 %v5583
  %v5929 = vunpack.c.l.s8.bf16 %v5584
  %v5930 = vunpack.c.h.s8.bf16 %v5580
  %v5931 = vunpack.c.h.s8.bf16 %v5581
  %v5932 = vunpack.c.h.s8.bf16 %v5582
  %v5933 = vunpack.c.h.s8.bf16 %v5583
  %v5934 = vunpack.c.h.s8.bf16 %v5584
  %v5935 = vunpack.c.l.s8.bf16 %v5585
  %v5936 = vunpack.c.l.s8.bf16 %v5586
  %v5937 = vunpack.c.l.s8.bf16 %v5587
  %v5938 = vunpack.c.l.s8.bf16 %v5588
  %v5939 = vunpack.c.l.s8.bf16 %v5589
  %v5940 = vunpack.c.h.s8.bf16 %v5585
  %v5941 = vunpack.c.h.s8.bf16 %v5586
  %v5942 = vunpack.c.h.s8.bf16 %v5587
  %v5943 = vunpack.c.h.s8.bf16 %v5588
  %v5944 = vunpack.c.h.s8.bf16 %v5589
  %v5945 = vunpack.c.l.s8.bf16 %v5590
  %v5946 = vunpack.c.l.s8.bf16 %v5591
  %v5947 = vunpack.c.l.s8.bf16 %v5592
  %v5948 = vunpack.c.l.s8.bf16 %v5593
  %v5949 = vunpack.c.l.s8.bf16 %v5594
  %v5950 = vunpack.c.h.s8.bf16 %v5590
  %v5951 = vunpack.c.h.s8.bf16 %v5591
  %v5952 = vunpack.c.h.s8.bf16 %v5592
  %v5953 = vunpack.c.h.s8.bf16 %v5593
  %v5954 = vunpack.c.h.s8.bf16 %v5594
  %v5955 = vunpack.c.l.s8.bf16 %v5595
  %v5956 = vunpack.c.l.s8.bf16 %v5596
  %v5957 = vunpack.c.l.s8.bf16 %v5597
  %v5958 = vunpack.c.l.s8.bf16 %v5598
  %v5959 = vunpack.c.l.s8.bf16 %v5599
  %v5960 = vunpack.c.h.s8.bf16 %v5595
  %v5961 = vunpack.c.h.s8.bf16 %v5596
  %v5962 = vunpack.c.h.s8.bf16 %v5597
  %v5963 = vunpack.c.h.s8.bf16 %v5598
  %v5964 = vunpack.c.h.s8.bf16 %v5599
  %v5965 = vunpack.c.l.s8.bf16 %v5600
  %v5966 = vunpack.c.l.s8.bf16 %v5601
  %v5967 = vunpack.c.l.s8.bf16 %v5602
  %v5968 = vunpack.c.l.s8.bf16 %v5603
  %v5969 = vunpack.c.l.s8.bf16 %v5604
  %v5970 = vunpack.c.h.s8.bf16 %v5600
  %v5971 = vunpack.c.h.s8.bf16 %v5601
  %v5972 = vunpack.c.h.s8.bf16 %v5602
  %v5973 = vunpack.c.h.s8.bf16 %v5603
  %v5974 = vunpack.c.h.s8.bf16 %v5604
  %v5975 = vunpack.c.l.s8.bf16 %v5605
  %v5976 = vunpack.c.l.s8.bf16 %v5606
  %v5977 = vunpack.c.l.s8.bf16 %v5607
  %v5978 = vunpack.c.l.s8.bf16 %v5608
  %v5979 = vunpack.c.l.s8.bf16 %v5609
  %v5980 = vunpack.c.h.s8.bf16 %v5605
  %v5981 = vunpack.c.h.s8.bf16 %v5606
  %v5982 = vunpack.c.h.s8.bf16 %v5607
  %v5983 = vunpack.c.h.s8.bf16 %v5608
  %v5984 = vunpack.c.h.s8.bf16 %v5609
  %v5985 = vunpack.c.l.s8.bf16 %v5610
  %v5986 = vunpack.c.l.s8.bf16 %v5611
  %v5987 = vunpack.c.l.s8.bf16 %v5612
  %v5988 = vunpack.c.l.s8.bf16 %v5613
  %v5989 = vunpack.c.l.s8.bf16 %v5614
  %v5990 = vunpack.c.h.s8.bf16 %v5610
  %v5991 = vunpack.c.h.s8.bf16 %v5611
  %v5992 = vunpack.c.h.s8.bf16 %v5612
  %v5993 = vunpack.c.h.s8.bf16 %v5613
  %v5994 = vunpack.c.h.s8.bf16 %v5614
  %v5995 = vunpack.c.l.s8.bf16 %v5615
  %v5996 = vunpack.c.l.s8.bf16 %v5616
  %v5997 = vunpack.c.l.s8.bf16 %v5617
  %v5998 = vunpack.c.l.s8.bf16 %v5618
  %v5999 = vunpack.c.l.s8.bf16 %v5619
  %v6000 = vunpack.c.h.s8.bf16 %v5615
  %v6001 = vunpack.c.h.s8.bf16 %v5616
  %v6002 = vunpack.c.h.s8.bf16 %v5617
  %v6003 = vunpack.c.h.s8.bf16 %v5618
  %v6004 = vunpack.c.h.s8.bf16 %v5619
  %v6005 = vunpack.c.l.s8.bf16 %v5620
  %v6006 = vunpack.c.l.s8.bf16 %v5621
  %v6007 = vunpack.c.l.s8.bf16 %v5622
  %v6008 = vunpack.c.l.s8.bf16 %v5623
  %v6009 = vunpack.c.l.s8.bf16 %v5624
  %v6010 = vunpack.c.h.s8.bf16 %v5620
  %v6011 = vunpack.c.h.s8.bf16 %v5621
  %v6012 = vunpack.c.h.s8.bf16 %v5622
  %v6013 = vunpack.c.h.s8.bf16 %v5623
  %v6014 = vunpack.c.h.s8.bf16 %v5624
  %v6015 = vunpack.c.l.s8.bf16 %v5625
  %v6016 = vunpack.c.l.s8.bf16 %v5626
  %v6017 = vunpack.c.l.s8.bf16 %v5627
  %v6018 = vunpack.c.l.s8.bf16 %v5628
  %v6019 = vunpack.c.l.s8.bf16 %v5629
  %v6020 = vunpack.c.h.s8.bf16 %v5625
  %v6021 = vunpack.c.h.s8.bf16 %v5626
  %v6022 = vunpack.c.h.s8.bf16 %v5627
  %v6023 = vunpack.c.h.s8.bf16 %v5628
  %v6024 = vunpack.c.h.s8.bf16 %v5629
  %v6025 = vunpack.c.l.s8.bf16 %v5630
  %v6026 = vunpack.c.l.s8.bf16 %v5631
  %v6027 = vunpack.c.l.s8.bf16 %v5632
  %v6028 = vunpack.c.l.s8.bf16 %v5633
  %v6029 = vunpack.c.l.s8.bf16 %v5634
  %v6030 = vunpack.c.h.s8.bf16 %v5630
  %v6031 = vunpack.c.h.s8.bf16 %v5631
  %v6032 = vunpack.c.h.s8.bf16 %v5632
  %v6033 = vunpack.c.h.s8.bf16 %v5633
  %v6034 = vunpack.c.h.s8.bf16 %v5634
  %v6035 = vunpack.c.l.s8.bf16 %v5635
  %v6036 = vunpack.c.l.s8.bf16 %v5636
  %v6037 = vunpack.c.l.s8.bf16 %v5637
  %v6038 = vunpack.c.l.s8.bf16 %v5638
  %v6039 = vunpack.c.l.s8.bf16 %v5639
  %v6040 = vunpack.c.h.s8.bf16 %v5635
  %v6041 = vunpack.c.h.s8.bf16 %v5636
  %v6042 = vunpack.c.h.s8.bf16 %v5637
  %v6043 = vunpack.c.h.s8.bf16 %v5638
  %v6044 = vunpack.c.h.s8.bf16 %v5639
  %v6045 = vunpack.c.l.s8.bf16 %v5640
  %v6046 = vunpack.c.l.s8.bf16 %v5641
  %v6047 = vunpack.c.l.s8.bf16 %v5642
  %v6048 = vunpack.c.l.s8.bf16 %v5643
  %v6049 = vunpack.c.l.s8.bf16 %v5644
  %v6050 = vunpack.c.h.s8.bf16 %v5640
  %v6051 = vunpack.c.h.s8.bf16 %v5641
  %v6052 = vunpack.c.h.s8.bf16 %v5642
  %v6053 = vunpack.c.h.s8.bf16 %v5643
  %v6054 = vunpack.c.h.s8.bf16 %v5644
  %v6055 = vunpack.c.l.s8.bf16 %v5645
  %v6056 = vunpack.c.l.s8.bf16 %v5646
  %v6057 = vunpack.c.l.s8.bf16 %v5647
  %v6058 = vunpack.c.l.s8.bf16 %v5648
  %v6059 = vunpack.c.l.s8.bf16 %v5649
  %v6060 = vunpack.c.h.s8.bf16 %v5645
  %v6061 = vunpack.c.h.s8.bf16 %v5646
  %v6062 = vunpack.c.h.s8.bf16 %v5647
  %v6063 = vunpack.c.h.s8.bf16 %v5648
  %v6064 = vunpack.c.h.s8.bf16 %v5649
  %v6065 = vunpack.c.l.s8.bf16 %v5650
  %v6066 = vunpack.c.l.s8.bf16 %v5651
  %v6067 = vunpack.c.l.s8.bf16 %v5652
  %v6068 = vunpack.c.l.s8.bf16 %v5653
  %v6069 = vunpack.c.l.s8.bf16 %v5654
  %v6070 = vunpack.c.h.s8.bf16 %v5650
  %v6071 = vunpack.c.h.s8.bf16 %v5651
  %v6072 = vunpack.c.h.s8.bf16 %v5652
  %v6073 = vunpack.c.h.s8.bf16 %v5653
  %v6074 = vunpack.c.h.s8.bf16 %v5654
  %v6075 = vunpack.c.l.s8.bf16 %v5655
  %v6076 = vunpack.c.l.s8.bf16 %v5656
  %v6077 = vunpack.c.l.s8.bf16 %v5657
  %v6078 = vunpack.c.l.s8.bf16 %v5658
  %v6079 = vunpack.c.l.s8.bf16 %v5659
  %v6080 = vunpack.c.h.s8.bf16 %v5655
  %v6081 = vunpack.c.h.s8.bf16 %v5656
  %v6082 = vunpack.c.h.s8.bf16 %v5657
  %v6083 = vunpack.c.h.s8.bf16 %v5658
  %v6084 = vunpack.c.h.s8.bf16 %v5659
  %v6085 = vunpack.c.l.s8.bf16 %v5660
  %v6086 = vunpack.c.l.s8.bf16 %v5661
  %v6087 = vunpack.c.l.s8.bf16 %v5662
  %v6088 = vunpack.c.l.s8.bf16 %v5663
  %v6089 = vunpack.c.l.s8.bf16 %v5664
  %v6090 = vunpack.c.h.s8.bf16 %v5660
  %v6091 = vunpack.c.h.s8.bf16 %v5661
  %v6092 = vunpack.c.h.s8.bf16 %v5662
  %v6093 = vunpack.c.h.s8.bf16 %v5663
  %v6094 = vunpack.c.h.s8.bf16 %v5664
  %v6095 = vunpack.c.l.s8.bf16 %v5665
  %v6096 = vunpack.c.l.s8.bf16 %v5666
  %v6097 = vunpack.c.l.s8.bf16 %v5667
  %v6098 = vunpack.c.l.s8.bf16 %v5668
  %v6099 = vunpack.c.l.s8.bf16 %v5669
  %v6100 = vunpack.c.h.s8.bf16 %v5665
  %v6101 = vunpack.c.h.s8.bf16 %v5666
  %v6102 = vunpack.c.h.s8.bf16 %v5667
  %v6103 = vunpack.c.h.s8.bf16 %v5668
  %v6104 = vunpack.c.h.s8.bf16 %v5669
  %v6105 = vunpack.c.l.s8.bf16 %v5670
  %v6106 = vunpack.c.l.s8.bf16 %v5671
  %v6107 = vunpack.c.l.s8.bf16 %v5672
  %v6108 = vunpack.c.l.s8.bf16 %v5673
  %v6109 = vunpack.c.l.s8.bf16 %v5674
  %v6110 = vunpack.c.h.s8.bf16 %v5670
  %v6111 = vunpack.c.h.s8.bf16 %v5671
  %v6112 = vunpack.c.h.s8.bf16 %v5672
  %v6113 = vunpack.c.h.s8.bf16 %v5673
  %v6114 = vunpack.c.h.s8.bf16 %v5674
  %v6115 = vunpack.c.l.s8.bf16 %v5675
  %v6116 = vunpack.c.l.s8.bf16 %v5676
  %v6117 = vunpack.c.l.s8.bf16 %v5677
  %v6118 = vunpack.c.l.s8.bf16 %v5678
  %v6119 = vunpack.c.l.s8.bf16 %v5679
  %v6120 = vunpack.c.h.s8.bf16 %v5675
  %v6121 = vunpack.c.h.s8.bf16 %v5676
  %v6122 = vunpack.c.h.s8.bf16 %v5677
  %v6123 = vunpack.c.h.s8.bf16 %v5678
  %v6124 = vunpack.c.h.s8.bf16 %v5679
  %v6125 = vunpack.c.l.s8.bf16 %v5680
  %v6126 = vunpack.c.l.s8.bf16 %v5681
  %v6127 = vunpack.c.l.s8.bf16 %v5682
  %v6128 = vunpack.c.l.s8.bf16 %v5683
  %v6129 = vunpack.c.l.s8.bf16 %v5684
  %v6130 = vunpack.c.h.s8.bf16 %v5680
  %v6131 = vunpack.c.h.s8.bf16 %v5681
  %v6132 = vunpack.c.h.s8.bf16 %v5682
  %v6133 = vunpack.c.h.s8.bf16 %v5683
  %v6134 = vunpack.c.h.s8.bf16 %v5684
  %v6135 = vunpack.c.l.s8.bf16 %v5685
  %v6136 = vunpack.c.l.s8.bf16 %v5686
  %v6137 = vunpack.c.l.s8.bf16 %v5687
  %v6138 = vunpack.c.l.s8.bf16 %v5688
  %v6139 = vunpack.c.l.s8.bf16 %v5689
  %v6140 = vunpack.c.h.s8.bf16 %v5685
  %v6141 = vunpack.c.h.s8.bf16 %v5686
  %v6142 = vunpack.c.h.s8.bf16 %v5687
  %v6143 = vunpack.c.h.s8.bf16 %v5688
  %v6144 = vunpack.c.h.s8.bf16 %v5689
  %v6145 = vunpack.c.l.s8.bf16 %v5690
  %v6146 = vunpack.c.l.s8.bf16 %v5691
  %v6147 = vunpack.c.l.s8.bf16 %v5692
  %v6148 = vunpack.c.l.s8.bf16 %v5693
  %v6149 = vunpack.c.l.s8.bf16 %v5694
  %v6150 = vunpack.c.h.s8.bf16 %v5690
  %v6151 = vunpack.c.h.s8.bf16 %v5691
  %v6152 = vunpack.c.h.s8.bf16 %v5692
  %v6153 = vunpack.c.h.s8.bf16 %v5693
  %v6154 = vunpack.c.h.s8.bf16 %v5694
  %v6155 = vunpack.c.l.s8.bf16 %v5695
  %v6156 = vunpack.c.l.s8.bf16 %v5696
  %v6157 = vunpack.c.l.s8.bf16 %v5697
  %v6158 = vunpack.c.l.s8.bf16 %v5698
  %v6159 = vunpack.c.l.s8.bf16 %v5699
  %v6160 = vunpack.c.h.s8.bf16 %v5695
  %v6161 = vunpack.c.h.s8.bf16 %v5696
  %v6162 = vunpack.c.h.s8.bf16 %v5697
  %v6163 = vunpack.c.h.s8.bf16 %v5698
  %v6164 = vunpack.c.h.s8.bf16 %v5699
  %v6165 = vunpack.c.l.s8.bf16 %v5700
  %v6166 = vunpack.c.l.s8.bf16 %v5701
  %v6167 = vunpack.c.l.s8.bf16 %v5702
  %v6168 = vunpack.c.l.s8.bf16 %v5703
  %v6169 = vunpack.c.l.s8.bf16 %v5704
  %v6170 = vunpack.c.h.s8.bf16 %v5700
  %v6171 = vunpack.c.h.s8.bf16 %v5701
  %v6172 = vunpack.c.h.s8.bf16 %v5702
  %v6173 = vunpack.c.h.s8.bf16 %v5703
  %v6174 = vunpack.c.h.s8.bf16 %v5704
  %v6175 = vunpack.c.l.s8.bf16 %v5705
  %v6176 = vunpack.c.l.s8.bf16 %v5706
  %v6177 = vunpack.c.l.s8.bf16 %v5707
  %v6178 = vunpack.c.l.s8.bf16 %v5708
  %v6179 = vunpack.c.l.s8.bf16 %v5709
  %v6180 = vunpack.c.h.s8.bf16 %v5705
  %v6181 = vunpack.c.h.s8.bf16 %v5706
  %v6182 = vunpack.c.h.s8.bf16 %v5707
  %v6183 = vunpack.c.h.s8.bf16 %v5708
  %v6184 = vunpack.c.h.s8.bf16 %v5709
  %v6185 = vunpack.c.l.s8.bf16 %v5710
  %v6186 = vunpack.c.l.s8.bf16 %v5711
  %v6187 = vunpack.c.l.s8.bf16 %v5712
  %v6188 = vunpack.c.l.s8.bf16 %v5713
  %v6189 = vunpack.c.l.s8.bf16 %v5714
  %v6190 = vunpack.c.h.s8.bf16 %v5710
  %v6191 = vunpack.c.h.s8.bf16 %v5711
  %v6192 = vunpack.c.h.s8.bf16 %v5712
  %v6193 = vunpack.c.h.s8.bf16 %v5713
  %v6194 = vunpack.c.h.s8.bf16 %v5714
  %v6195 = vunpack.c.l.s8.bf16 %v5715
  %v6196 = vunpack.c.l.s8.bf16 %v5716
  %v6197 = vunpack.c.l.s8.bf16 %v5717
  %v6198 = vunpack.c.l.s8.bf16 %v5718
  %v6199 = vunpack.c.l.s8.bf16 %v5719
  %v6200 = vunpack.c.h.s8.bf16 %v5715
  %v6201 = vunpack.c.h.s8.bf16 %v5716
  %v6202 = vunpack.c.h.s8.bf16 %v5717
  %v6203 = vunpack.c.h.s8.bf16 %v5718
  %v6204 = vunpack.c.h.s8.bf16 %v5719
  %v6205 = vunpack.c.l.s8.bf16 %v5720
  %v6206 = vunpack.c.l.s8.bf16 %v5721
  %v6207 = vunpack.c.l.s8.bf16 %v5722
  %v6208 = vunpack.c.l.s8.bf16 %v5723
  %v6209 = vunpack.c.l.s8.bf16 %v5724
  %v6210 = vunpack.c.h.s8.bf16 %v5720
  %v6211 = vunpack.c.h.s8.bf16 %v5721
  %v6212 = vunpack.c.h.s8.bf16 %v5722
  %v6213 = vunpack.c.h.s8.bf16 %v5723
  %v6214 = vunpack.c.h.s8.bf16 %v5724
  %v6215 = vunpack.c.l.s8.bf16 %v5725
  %v6216 = vunpack.c.l.s8.bf16 %v5726
  %v6217 = vunpack.c.l.s8.bf16 %v5727
  %v6218 = vunpack.c.l.s8.bf16 %v5728
  %v6219 = vunpack.c.l.s8.bf16 %v5729
  %v6220 = vunpack.c.h.s8.bf16 %v5725
  %v6221 = vunpack.c.h.s8.bf16 %v5726
  %v6222 = vunpack.c.h.s8.bf16 %v5727
  %v6223 = vunpack.c.h.s8.bf16 %v5728
  %v6224 = vunpack.c.h.s8.bf16 %v5729
  %v6225 = vunpack.c.l.s8.bf16 %v5730
  %v6226 = vunpack.c.l.s8.bf16 %v5731
  %v6227 = vunpack.c.l.s8.bf16 %v5732
  %v6228 = vunpack.c.l.s8.bf16 %v5733
  %v6229 = vunpack.c.l.s8.bf16 %v5734
  %v6230 = vunpack.c.h.s8.bf16 %v5730
  %v6231 = vunpack.c.h.s8.bf16 %v5731
  %v6232 = vunpack.c.h.s8.bf16 %v5732
  %v6233 = vunpack.c.h.s8.bf16 %v5733
  %v6234 = vunpack.c.h.s8.bf16 %v5734
  %v6235 = vunpack.c.l.s8.bf16 %v5735
  %v6236 = vunpack.c.l.s8.bf16 %v5736
  %v6237 = vunpack.c.l.s8.bf16 %v5737
  %v6238 = vunpack.c.l.s8.bf16 %v5738
  %v6239 = vunpack.c.l.s8.bf16 %v5739
  %v6240 = vunpack.c.h.s8.bf16 %v5735
  %v6241 = vunpack.c.h.s8.bf16 %v5736
  %v6242 = vunpack.c.h.s8.bf16 %v5737
  %v6243 = vunpack.c.h.s8.bf16 %v5738
  %v6244 = vunpack.c.h.s8.bf16 %v5739
  %v6245 = vunpack.c.l.s8.bf16 %v5740
  %v6246 = vunpack.c.l.s8.bf16 %v5741
  %v6247 = vunpack.c.l.s8.bf16 %v5742
  %v6248 = vunpack.c.l.s8.bf16 %v5743
  %v6249 = vunpack.c.l.s8.bf16 %v5744
  %v6250 = vunpack.c.h.s8.bf16 %v5740
  %v6251 = vunpack.c.h.s8.bf16 %v5741
  %v6252 = vunpack.c.h.s8.bf16 %v5742
  %v6253 = vunpack.c.h.s8.bf16 %v5743
  %v6254 = vunpack.c.h.s8.bf16 %v5744
  %v6255 = vunpack.c.l.s8.bf16 %v5745
  %v6256 = vunpack.c.l.s8.bf16 %v5746
  %v6257 = vunpack.c.l.s8.bf16 %v5747
  %v6258 = vunpack.c.l.s8.bf16 %v5748
  %v6259 = vunpack.c.l.s8.bf16 %v5749
  %v6260 = vunpack.c.h.s8.bf16 %v5745
  %v6261 = vunpack.c.h.s8.bf16 %v5746
  %v6262 = vunpack.c.h.s8.bf16 %v5747
  %v6263 = vunpack.c.h.s8.bf16 %v5748
  %v6264 = vunpack.c.h.s8.bf16 %v5749
  %v6265 = vunpack.c.l.s8.bf16 %v5750
  %v6266 = vunpack.c.l.s8.bf16 %v5751
  %v6267 = vunpack.c.l.s8.bf16 %v5752
  %v6268 = vunpack.c.l.s8.bf16 %v5753
  %v6269 = vunpack.c.l.s8.bf16 %v5754
  %v6270 = vunpack.c.h.s8.bf16 %v5750
  %v6271 = vunpack.c.h.s8.bf16 %v5751
  %v6272 = vunpack.c.h.s8.bf16 %v5752
  %v6273 = vunpack.c.h.s8.bf16 %v5753
  %v6274 = vunpack.c.h.s8.bf16 %v5754
  %v6275 = vunpack.c.l.s8.bf16 %v5755
  %v6276 = vunpack.c.l.s8.bf16 %v5756
  %v6277 = vunpack.c.l.s8.bf16 %v5757
  %v6278 = vunpack.c.l.s8.bf16 %v5758
  %v6279 = vunpack.c.l.s8.bf16 %v5759
  %v6280 = vunpack.c.h.s8.bf16 %v5755
  %v6281 = vunpack.c.h.s8.bf16 %v5756
  %v6282 = vunpack.c.h.s8.bf16 %v5757
  %v6283 = vunpack.c.h.s8.bf16 %v5758
  %v6284 = vunpack.c.h.s8.bf16 %v5759
  %v6285 = vunpack.c.l.s8.bf16 %v5760
  %v6286 = vunpack.c.l.s8.bf16 %v5761
  %v6287 = vunpack.c.l.s8.bf16 %v5762
  %v6288 = vunpack.c.l.s8.bf16 %v5763
  %v6289 = vunpack.c.l.s8.bf16 %v5764
  %v6290 = vunpack.c.h.s8.bf16 %v5760
  %v6291 = vunpack.c.h.s8.bf16 %v5761
  %v6292 = vunpack.c.h.s8.bf16 %v5762
  %v6293 = vunpack.c.h.s8.bf16 %v5763
  %v6294 = vunpack.c.h.s8.bf16 %v5764
  %v6295 = vunpack.c.l.s8.bf16 %v5765
  %v6296 = vunpack.c.l.s8.bf16 %v5766
  %v6297 = vunpack.c.l.s8.bf16 %v5767
  %v6298 = vunpack.c.l.s8.bf16 %v5768
  %v6299 = vunpack.c.l.s8.bf16 %v5769
  %v6300 = vunpack.c.h.s8.bf16 %v5765
  %v6301 = vunpack.c.h.s8.bf16 %v5766
  %v6302 = vunpack.c.h.s8.bf16 %v5767
  %v6303 = vunpack.c.h.s8.bf16 %v5768
  %v6304 = vunpack.c.h.s8.bf16 %v5769
  %v6305 = vunpack.c.l.s8.bf16 %v5770
  %v6306 = vunpack.c.l.s8.bf16 %v5771
  %v6307 = vunpack.c.l.s8.bf16 %v5772
  %v6308 = vunpack.c.l.s8.bf16 %v5773
  %v6309 = vunpack.c.l.s8.bf16 %v5774
  %v6310 = vunpack.c.h.s8.bf16 %v5770
  %v6311 = vunpack.c.h.s8.bf16 %v5771
  %v6312 = vunpack.c.h.s8.bf16 %v5772
  %v6313 = vunpack.c.h.s8.bf16 %v5773
  %v6314 = vunpack.c.h.s8.bf16 %v5774
  %v6315 = vunpack.c.l.s8.bf16 %v5775
  %v6316 = vunpack.c.l.s8.bf16 %v5776
  %v6317 = vunpack.c.l.s8.bf16 %v5777
  %v6318 = vunpack.c.l.s8.bf16 %v5778
  %v6319 = vunpack.c.l.s8.bf16 %v5779
  %v6320 = vunpack.c.h.s8.bf16 %v5775
  %v6321 = vunpack.c.h.s8.bf16 %v5776
  %v6322 = vunpack.c.h.s8.bf16 %v5777
  %v6323 = vunpack.c.h.s8.bf16 %v5778
  %v6324 = vunpack.c.h.s8.bf16 %v5779
  %v6325 = vunpack.c.l.s8.bf16 %v5780
  %v6326 = vunpack.c.l.s8.bf16 %v5781
  %v6327 = vunpack.c.l.s8.bf16 %v5782
  %v6328 = vunpack.c.l.s8.bf16 %v5783
  %v6329 = vunpack.c.l.s8.bf16 %v5784
  %v6330 = vunpack.c.h.s8.bf16 %v5780
  %v6331 = vunpack.c.h.s8.bf16 %v5781
  %v6332 = vunpack.c.h.s8.bf16 %v5782
  %v6333 = vunpack.c.h.s8.bf16 %v5783
  %v6334 = vunpack.c.h.s8.bf16 %v5784
  %v6335 = vunpack.c.l.s8.bf16 %v5785
  %v6336 = vunpack.c.l.s8.bf16 %v5786
  %v6337 = vunpack.c.l.s8.bf16 %v5787
  %v6338 = vunpack.c.l.s8.bf16 %v5788
  %v6339 = vunpack.c.l.s8.bf16 %v5789
  %v6340 = vunpack.c.h.s8.bf16 %v5785
  %v6341 = vunpack.c.h.s8.bf16 %v5786
  %v6342 = vunpack.c.h.s8.bf16 %v5787
  %v6343 = vunpack.c.h.s8.bf16 %v5788
  %v6344 = vunpack.c.h.s8.bf16 %v5789
  %v6345 = vunpack.c.l.s8.bf16 %v5790
  %v6346 = vunpack.c.l.s8.bf16 %v5791
  %v6347 = vunpack.c.l.s8.bf16 %v5792
  %v6348 = vunpack.c.l.s8.bf16 %v5793
  %v6349 = vunpack.c.l.s8.bf16 %v5794
  %v6350 = vunpack.c.h.s8.bf16 %v5790
  %v6351 = vunpack.c.h.s8.bf16 %v5791
  %v6352 = vunpack.c.h.s8.bf16 %v5792
  %v6353 = vunpack.c.h.s8.bf16 %v5793
  %v6354 = vunpack.c.h.s8.bf16 %v5794
  %v6355 = vunpack.c.l.s8.bf16 %v5795
  %v6356 = vunpack.c.l.s8.bf16 %v5796
  %v6357 = vunpack.c.l.s8.bf16 %v5797
  %v6358 = vunpack.c.l.s8.bf16 %v5798
  %v6359 = vunpack.c.l.s8.bf16 %v5799
  %v6360 = vunpack.c.h.s8.bf16 %v5795
  %v6361 = vunpack.c.h.s8.bf16 %v5796
  %v6362 = vunpack.c.h.s8.bf16 %v5797
  %v6363 = vunpack.c.h.s8.bf16 %v5798
  %v6364 = vunpack.c.h.s8.bf16 %v5799
  %v6365 = vunpack.c.l.s8.bf16 %v5800
  %v6366 = vunpack.c.l.s8.bf16 %v5801
  %v6367 = vunpack.c.l.s8.bf16 %v5802
  %v6368 = vunpack.c.l.s8.bf16 %v5803
  %v6369 = vunpack.c.l.s8.bf16 %v5804
  %v6370 = vunpack.c.h.s8.bf16 %v5800
  %v6371 = vunpack.c.h.s8.bf16 %v5801
  %v6372 = vunpack.c.h.s8.bf16 %v5802
  %v6373 = vunpack.c.h.s8.bf16 %v5803
  %v6374 = vunpack.c.h.s8.bf16 %v5804
  %v6375 = vunpack.c.l.s8.bf16 %v5805
  %v6376 = vunpack.c.l.s8.bf16 %v5806
  %v6377 = vunpack.c.l.s8.bf16 %v5807
  %v6378 = vunpack.c.l.s8.bf16 %v5808
  %v6379 = vunpack.c.l.s8.bf16 %v5809
  %v6380 = vunpack.c.h.s8.bf16 %v5805
  %v6381 = vunpack.c.h.s8.bf16 %v5806
  %v6382 = vunpack.c.h.s8.bf16 %v5807
  %v6383 = vunpack.c.h.s8.bf16 %v5808
  %v6384 = vunpack.c.h.s8.bf16 %v5809
  %v6385 = vunpack.c.l.s8.bf16 %v5810
  %v6386 = vunpack.c.l.s8.bf16 %v5811
  %v6387 = vunpack.c.l.s8.bf16 %v5812
  %v6388 = vunpack.c.l.s8.bf16 %v5813
  %v6389 = vunpack.c.l.s8.bf16 %v5814
  %v6390 = vunpack.c.h.s8.bf16 %v5810
  %v6391 = vunpack.c.h.s8.bf16 %v5811
  %v6392 = vunpack.c.h.s8.bf16 %v5812
  %v6393 = vunpack.c.h.s8.bf16 %v5813
  %v6394 = vunpack.c.h.s8.bf16 %v5814
  %v6395 = vunpack.c.l.s8.bf16 %v5815
  %v6396 = vunpack.c.l.s8.bf16 %v5816
  %v6397 = vunpack.c.l.s8.bf16 %v5817
  %v6398 = vunpack.c.l.s8.bf16 %v5818
  %v6399 = vunpack.c.l.s8.bf16 %v5819
  %v6400 = vunpack.c.h.s8.bf16 %v5815
  %v6401 = vunpack.c.h.s8.bf16 %v5816
  %v6402 = vunpack.c.h.s8.bf16 %v5817
  %v6403 = vunpack.c.h.s8.bf16 %v5818
  %v6404 = vunpack.c.h.s8.bf16 %v5819
  %v6405 = vunpack.c.l.s8.bf16 %v5820
  %v6406 = vunpack.c.l.s8.bf16 %v5821
  %v6407 = vunpack.c.l.s8.bf16 %v5822
  %v6408 = vunpack.c.l.s8.bf16 %v5823
  %v6409 = vunpack.c.l.s8.bf16 %v5824
  %v6410 = vunpack.c.h.s8.bf16 %v5820
  %v6411 = vunpack.c.h.s8.bf16 %v5821
  %v6412 = vunpack.c.h.s8.bf16 %v5822
  %v6413 = vunpack.c.h.s8.bf16 %v5823
  %v6414 = vunpack.c.h.s8.bf16 %v5824
  %v6415 = vunpack.c.l.s8.bf16 %v5825
  %v6416 = vunpack.c.l.s8.bf16 %v5826
  %v6417 = vunpack.c.l.s8.bf16 %v5827
  %v6418 = vunpack.c.l.s8.bf16 %v5828
  %v6419 = vunpack.c.l.s8.bf16 %v5829
  %v6420 = vunpack.c.h.s8.bf16 %v5825
  %v6421 = vunpack.c.h.s8.bf16 %v5826
  %v6422 = vunpack.c.h.s8.bf16 %v5827
  %v6423 = vunpack.c.h.s8.bf16 %v5828
  %v6424 = vunpack.c.h.s8.bf16 %v5829
  %v6425 = vunpack.c.l.s8.bf16 %v5830
  %v6426 = vunpack.c.l.s8.bf16 %v5831
  %v6427 = vunpack.c.l.s8.bf16 %v5832
  %v6428 = vunpack.c.l.s8.bf16 %v5833
  %v6429 = vunpack.c.l.s8.bf16 %v5834
  %v6430 = vunpack.c.h.s8.bf16 %v5830
  %v6431 = vunpack.c.h.s8.bf16 %v5831
  %v6432 = vunpack.c.h.s8.bf16 %v5832
  %v6433 = vunpack.c.h.s8.bf16 %v5833
  %v6434 = vunpack.c.h.s8.bf16 %v5834
  %v6445 = vrot.slane %v5517, 1
  %v6446 = vrot.slane %v5522, 1
  %v6447 = vsel %vm2566, %v6445, %v6446
  %v6448 = vrot.slane %v5518, 1
  %v6449 = vrot.slane %v5523, 1
  %v6450 = vsel %vm2566, %v6448, %v6449
  %v6451 = vrot.slane %v5519, 1
  %v6452 = vrot.slane %v5524, 1
  %v6453 = vsel %vm2566, %v6451, %v6452
  %v6454 = vrot.slane %v5520, 1
  %v6455 = vrot.slane %v5525, 1
  %v6456 = vsel %vm2566, %v6454, %v6455
  %v6457 = vrot.slane %v5521, 1
  %v6458 = vrot.slane %v5526, 1
  %v6459 = vsel %vm2566, %v6457, %v6458
  %v6475 = vsel %vm2566, %v6446, %v6445
  %v6476 = vsel %vm2566, %v6449, %v6448
  %v6477 = vsel %vm2566, %v6452, %v6451
  %v6478 = vsel %vm2566, %v6455, %v6454
  %v6479 = vsel %vm2566, %v6458, %v6457
  %v6480 = vrot.slane %v5517, 2
  %v6481 = vrot.slane %v5522, 2
  %v6482 = vsel %vm2581, %v6480, %v6481
  %v6483 = vrot.slane %v5518, 2
  %v6484 = vrot.slane %v5523, 2
  %v6485 = vsel %vm2581, %v6483, %v6484
  %v6486 = vrot.slane %v5519, 2
  %v6487 = vrot.slane %v5524, 2
  %v6488 = vsel %vm2581, %v6486, %v6487
  %v6489 = vrot.slane %v5520, 2
  %v6490 = vrot.slane %v5525, 2
  %v6491 = vsel %vm2581, %v6489, %v6490
  %v6492 = vrot.slane %v5521, 2
  %v6493 = vrot.slane %v5526, 2
  %v6494 = vsel %vm2581, %v6492, %v6493
  %v6510 = vsel %vm2581, %v6481, %v6480
  %v6511 = vsel %vm2581, %v6484, %v6483
  %v6512 = vsel %vm2581, %v6487, %v6486
  %v6513 = vsel %vm2581, %v6490, %v6489
  %v6514 = vsel %vm2581, %v6493, %v6492
  %v6515 = vpack.c.bf16 %v5522, %v5517
  %v6516 = vpack.c.bf16 %v5523, %v5518
  %v6517 = vpack.c.bf16 %v5524, %v5519
  %v6518 = vpack.c.bf16 %v5525, %v5520
  %v6519 = vpack.c.bf16 %v5526, %v5521
  %v6520 = vpack.c.bf16 %v6475, %v6447
  %v6521 = vpack.c.bf16 %v6476, %v6450
  %v6522 = vpack.c.bf16 %v6477, %v6453
  %v6523 = vpack.c.bf16 %v6478, %v6456
  %v6524 = vpack.c.bf16 %v6479, %v6459
  %v6525 = vpack.c.bf16 %v6510, %v6482
  %v6526 = vpack.c.bf16 %v6511, %v6485
  %v6527 = vpack.c.bf16 %v6512, %v6488
  %v6528 = vpack.c.bf16 %v6513, %v6491
  %v6529 = vpack.c.bf16 %v6514, %v6494
  %6530 = vmatprep.subr.bf16.mxu0 %v5871
  %6531 = vmatpush1.bf16.msra.mxu0 %v5870
  %6532 = vmatprep.subr.bf16.mxu0 %v5866
  %6533 = vmatpush1.bf16.msra.mxu0 %v5865
  %6534 = vmatprep.subr.bf16.mxu0 %v5861
  %6535 = vmatpush1.bf16.msra.mxu0 %v5860
  %6536 = vmatprep.subr.bf16.mxu0 %v5856
  %6537 = vmatpush1.bf16.msra.mxu0 %v5855
  %6538 = vmatprep.subr.bf16.mxu0 %v5851
  %6539 = vmatpush1.bf16.msra.mxu0 %v5850
  %6540 = vmatprep.subr.bf16.mxu0 %v5846
  %6541 = vmatpush1.bf16.msra.mxu0 %v5845
  %6542 = vmatprep.subr.bf16.mxu0 %v5841
  %6543 = vmatpush1.bf16.msra.mxu0 %v5840
  %6544 = vmatprep.subr.bf16.mxu0 %v5836
  %6545 = vmatpush1.bf16.msra.mxu0 %v5835
  %6546 = vmatprep.subr.bf16.mxu0 %v5911
  %6547 = vmatpush2.bf16.msra.mxu0 %v5910
  %6548 = vmatprep.subr.bf16.mxu0 %v5906
  %6549 = vmatpush2.bf16.msra.mxu0 %v5905
  %6550 = vmatprep.subr.bf16.mxu0 %v5901
  %6551 = vmatpush2.bf16.msra.mxu0 %v5900
  %6552 = vmatprep.subr.bf16.mxu0 %v5896
  %6553 = vmatpush2.bf16.msra.mxu0 %v5895
  %6554 = vmatprep.subr.bf16.mxu0 %v5891
  %6555 = vmatpush2.bf16.msra.mxu0 %v5890
  %6556 = vmatprep.subr.bf16.mxu0 %v5886
  %6557 = vmatpush2.bf16.msra.mxu0 %v5885
  %6558 = vmatprep.subr.bf16.mxu0 %v5881
  %6559 = vmatpush2.bf16.msra.mxu0 %v5880
  %6560 = vmatprep.subr.bf16.mxu0 %v5876
  %6561 = vmatpush2.bf16.msra.mxu0 %v5875
  %6562 = vmatprep.mubr.bf16.mxu0 %v6516
  %6563 = vmatmul.mubr.bf16.gmra.mxu0 %v6515
  %v6564 = vpop.f32.mrf.mxu0
  %v6565 = vadd.f32 0.0, %v6564
  %v6566 = vpop.f32.mrf.mxu0
  %v6567 = vadd.f32 0.0, %v6566
  %v6568 = vpop.f32.mrf.mxu0
  %v6569 = vadd.f32 0.0, %v6568
  %v6570 = vpop.f32.mrf.mxu0
  %v6571 = vadd.f32 0.0, %v6570
  %6572 = vdwg.mxu0
  %6573 = vmatprep.subr.bf16.mxu0 %v5951
  %6574 = vmatpush1.bf16.msra.mxu0 %v5950
  %6575 = vmatprep.subr.bf16.mxu0 %v5946
  %6576 = vmatpush1.bf16.msra.mxu0 %v5945
  %6577 = vmatprep.subr.bf16.mxu0 %v5941
  %6578 = vmatpush1.bf16.msra.mxu0 %v5940
  %6579 = vmatprep.subr.bf16.mxu0 %v5936
  %6580 = vmatpush1.bf16.msra.mxu0 %v5935
  %6581 = vmatprep.subr.bf16.mxu0 %v5931
  %6582 = vmatpush1.bf16.msra.mxu0 %v5930
  %6583 = vmatprep.subr.bf16.mxu0 %v5926
  %6584 = vmatpush1.bf16.msra.mxu0 %v5925
  %6585 = vmatprep.subr.bf16.mxu0 %v5921
  %6586 = vmatpush1.bf16.msra.mxu0 %v5920
  %6587 = vmatprep.subr.bf16.mxu0 %v5916
  %6588 = vmatpush1.bf16.msra.mxu0 %v5915
  %6589 = vmatprep.subr.bf16.mxu0 %v5991
  %6590 = vmatpush2.bf16.msra.mxu0 %v5990
  %6591 = vmatprep.subr.bf16.mxu0 %v5986
  %6592 = vmatpush2.bf16.msra.mxu0 %v5985
  %6593 = vmatprep.subr.bf16.mxu0 %v5981
  %6594 = vmatpush2.bf16.msra.mxu0 %v5980
  %6595 = vmatprep.subr.bf16.mxu0 %v5976
  %6596 = vmatpush2.bf16.msra.mxu0 %v5975
  %6597 = vmatprep.subr.bf16.mxu0 %v5971
  %6598 = vmatpush2.bf16.msra.mxu0 %v5970
  %6599 = vmatprep.subr.bf16.mxu0 %v5966
  %6600 = vmatpush2.bf16.msra.mxu0 %v5965
  %6601 = vmatprep.subr.bf16.mxu0 %v5961
  %6602 = vmatpush2.bf16.msra.mxu0 %v5960
  %6603 = vmatprep.subr.bf16.mxu0 %v5956
  %6604 = vmatpush2.bf16.msra.mxu0 %v5955
  %6605 = vmatprep.mubr.bf16.mxu0 %v6518
  %6606 = vmatmul.mubr.bf16.gmra.mxu0 %v6517
  %v6607 = vpop.f32.mrf.mxu0
  %v6608 = vadd.f32 %v6565, %v6607
  %v6609 = vpop.f32.mrf.mxu0
  %v6610 = vadd.f32 %v6567, %v6609
  %v6611 = vpop.f32.mrf.mxu0
  %v6612 = vadd.f32 %v6569, %v6611
  %v6613 = vpop.f32.mrf.mxu0
  %v6614 = vadd.f32 %v6571, %v6613
  %6615 = vdwg.mxu0
  %6616 = vmatprep.subr.bf16.mxu0 %v6031
  %6617 = vmatpush1.bf16.msra.mxu0 %v6030
  %6618 = vmatprep.subr.bf16.mxu0 %v6026
  %6619 = vmatpush1.bf16.msra.mxu0 %v6025
  %6620 = vmatprep.subr.bf16.mxu0 %v6021
  %6621 = vmatpush1.bf16.msra.mxu0 %v6020
  %6622 = vmatprep.subr.bf16.mxu0 %v6016
  %6623 = vmatpush1.bf16.msra.mxu0 %v6015
  %6624 = vmatprep.subr.bf16.mxu0 %v6011
  %6625 = vmatpush1.bf16.msra.mxu0 %v6010
  %6626 = vmatprep.subr.bf16.mxu0 %v6006
  %6627 = vmatpush1.bf16.msra.mxu0 %v6005
  %6628 = vmatprep.subr.bf16.mxu0 %v6001
  %6629 = vmatpush1.bf16.msra.mxu0 %v6000
  %6630 = vmatprep.subr.bf16.mxu0 %v5996
  %6631 = vmatpush1.bf16.msra.mxu0 %v5995
  %6632 = vmatprep.subr.bf16.mxu0 %v6071
  %6633 = vmatpush2.bf16.msra.mxu0 %v6070
  %6634 = vmatprep.subr.bf16.mxu0 %v6066
  %6635 = vmatpush2.bf16.msra.mxu0 %v6065
  %6636 = vmatprep.subr.bf16.mxu0 %v6061
  %6637 = vmatpush2.bf16.msra.mxu0 %v6060
  %6638 = vmatprep.subr.bf16.mxu0 %v6056
  %6639 = vmatpush2.bf16.msra.mxu0 %v6055
  %6640 = vmatprep.subr.bf16.mxu0 %v6051
  %6641 = vmatpush2.bf16.msra.mxu0 %v6050
  %6642 = vmatprep.subr.bf16.mxu0 %v6046
  %6643 = vmatpush2.bf16.msra.mxu0 %v6045
  %6644 = vmatprep.subr.bf16.mxu0 %v6041
  %6645 = vmatpush2.bf16.msra.mxu0 %v6040
  %6646 = vmatprep.subr.bf16.mxu0 %v6036
  %6647 = vmatpush2.bf16.msra.mxu0 %v6035
  %6648 = vmatprep.mubr.bf16.mxu0 %v6520
  %6649 = vmatmul.mubr.bf16.gmra.mxu0 %v6519
  %v6650 = vpop.f32.mrf.mxu0
  %v6651 = vadd.f32 %v6608, %v6650
  %v6652 = vpop.f32.mrf.mxu0
  %v6653 = vadd.f32 %v6610, %v6652
  %v6654 = vpop.f32.mrf.mxu0
  %v6655 = vadd.f32 %v6612, %v6654
  %v6656 = vpop.f32.mrf.mxu0
  %v6657 = vadd.f32 %v6614, %v6656
  %6658 = vdwg.mxu0
  %6659 = vmatprep.subr.bf16.mxu0 %v6111
  %6660 = vmatpush1.bf16.msra.mxu0 %v6110
  %6661 = vmatprep.subr.bf16.mxu0 %v6106
  %6662 = vmatpush1.bf16.msra.mxu0 %v6105
  %6663 = vmatprep.subr.bf16.mxu0 %v6101
  %6664 = vmatpush1.bf16.msra.mxu0 %v6100
  %6665 = vmatprep.subr.bf16.mxu0 %v6096
  %6666 = vmatpush1.bf16.msra.mxu0 %v6095
  %6667 = vmatprep.subr.bf16.mxu0 %v6091
  %6668 = vmatpush1.bf16.msra.mxu0 %v6090
  %6669 = vmatprep.subr.bf16.mxu0 %v6086
  %6670 = vmatpush1.bf16.msra.mxu0 %v6085
  %6671 = vmatprep.subr.bf16.mxu0 %v6081
  %6672 = vmatpush1.bf16.msra.mxu0 %v6080
  %6673 = vmatprep.subr.bf16.mxu0 %v6076
  %6674 = vmatpush1.bf16.msra.mxu0 %v6075
  %6675 = vmatprep.subr.bf16.mxu0 %v6151
  %6676 = vmatpush2.bf16.msra.mxu0 %v6150
  %6677 = vmatprep.subr.bf16.mxu0 %v6146
  %6678 = vmatpush2.bf16.msra.mxu0 %v6145
  %6679 = vmatprep.subr.bf16.mxu0 %v6141
  %6680 = vmatpush2.bf16.msra.mxu0 %v6140
  %6681 = vmatprep.subr.bf16.mxu0 %v6136
  %6682 = vmatpush2.bf16.msra.mxu0 %v6135
  %6683 = vmatprep.subr.bf16.mxu0 %v6131
  %6684 = vmatpush2.bf16.msra.mxu0 %v6130
  %6685 = vmatprep.subr.bf16.mxu0 %v6126
  %6686 = vmatpush2.bf16.msra.mxu0 %v6125
  %6687 = vmatprep.subr.bf16.mxu0 %v6121
  %6688 = vmatpush2.bf16.msra.mxu0 %v6120
  %6689 = vmatprep.subr.bf16.mxu0 %v6116
  %6690 = vmatpush2.bf16.msra.mxu0 %v6115
  %6691 = vmatprep.mubr.bf16.mxu0 %v6522
  %6692 = vmatmul.mubr.bf16.gmra.mxu0 %v6521
  %v6693 = vpop.f32.mrf.mxu0
  %v6694 = vadd.f32 %v6651, %v6693
  %v6695 = vpop.f32.mrf.mxu0
  %v6696 = vadd.f32 %v6653, %v6695
  %v6697 = vpop.f32.mrf.mxu0
  %v6698 = vadd.f32 %v6655, %v6697
  %v6699 = vpop.f32.mrf.mxu0
  %v6700 = vadd.f32 %v6657, %v6699
  %6701 = vdwg.mxu0
  %6702 = vmatprep.subr.bf16.mxu0 %v6191
  %6703 = vmatpush1.bf16.msra.mxu0 %v6190
  %6704 = vmatprep.subr.bf16.mxu0 %v6186
  %6705 = vmatpush1.bf16.msra.mxu0 %v6185
  %6706 = vmatprep.subr.bf16.mxu0 %v6181
  %6707 = vmatpush1.bf16.msra.mxu0 %v6180
  %6708 = vmatprep.subr.bf16.mxu0 %v6176
  %6709 = vmatpush1.bf16.msra.mxu0 %v6175
  %6710 = vmatprep.subr.bf16.mxu0 %v6171
  %6711 = vmatpush1.bf16.msra.mxu0 %v6170
  %6712 = vmatprep.subr.bf16.mxu0 %v6166
  %6713 = vmatpush1.bf16.msra.mxu0 %v6165
  %6714 = vmatprep.subr.bf16.mxu0 %v6161
  %6715 = vmatpush1.bf16.msra.mxu0 %v6160
  %6716 = vmatprep.subr.bf16.mxu0 %v6156
  %6717 = vmatpush1.bf16.msra.mxu0 %v6155
  %6718 = vmatprep.subr.bf16.mxu0 %v6231
  %6719 = vmatpush2.bf16.msra.mxu0 %v6230
  %6720 = vmatprep.subr.bf16.mxu0 %v6226
  %6721 = vmatpush2.bf16.msra.mxu0 %v6225
  %6722 = vmatprep.subr.bf16.mxu0 %v6221
  %6723 = vmatpush2.bf16.msra.mxu0 %v6220
  %6724 = vmatprep.subr.bf16.mxu0 %v6216
  %6725 = vmatpush2.bf16.msra.mxu0 %v6215
  %6726 = vmatprep.subr.bf16.mxu0 %v6211
  %6727 = vmatpush2.bf16.msra.mxu0 %v6210
  %6728 = vmatprep.subr.bf16.mxu0 %v6206
  %6729 = vmatpush2.bf16.msra.mxu0 %v6205
  %6730 = vmatprep.subr.bf16.mxu0 %v6201
  %6731 = vmatpush2.bf16.msra.mxu0 %v6200
  %6732 = vmatprep.subr.bf16.mxu0 %v6196
  %6733 = vmatpush2.bf16.msra.mxu0 %v6195
  %6734 = vmatprep.mubr.bf16.mxu0 %v6524
  %6735 = vmatmul.mubr.bf16.gmra.mxu0 %v6523
  %v6736 = vpop.f32.mrf.mxu0
  %v6737 = vadd.f32 %v6694, %v6736
  %v6738 = vpop.f32.mrf.mxu0
  %v6739 = vadd.f32 %v6696, %v6738
  %v6740 = vpop.f32.mrf.mxu0
  %v6741 = vadd.f32 %v6698, %v6740
  %v6742 = vpop.f32.mrf.mxu0
  %v6743 = vadd.f32 %v6700, %v6742
  %6744 = vdwg.mxu0
  %6745 = vmatprep.subr.bf16.mxu0 %v6271
  %6746 = vmatpush1.bf16.msra.mxu0 %v6270
  %6747 = vmatprep.subr.bf16.mxu0 %v6266
  %6748 = vmatpush1.bf16.msra.mxu0 %v6265
  %6749 = vmatprep.subr.bf16.mxu0 %v6261
  %6750 = vmatpush1.bf16.msra.mxu0 %v6260
  %6751 = vmatprep.subr.bf16.mxu0 %v6256
  %6752 = vmatpush1.bf16.msra.mxu0 %v6255
  %6753 = vmatprep.subr.bf16.mxu0 %v6251
  %6754 = vmatpush1.bf16.msra.mxu0 %v6250
  %6755 = vmatprep.subr.bf16.mxu0 %v6246
  %6756 = vmatpush1.bf16.msra.mxu0 %v6245
  %6757 = vmatprep.subr.bf16.mxu0 %v6241
  %6758 = vmatpush1.bf16.msra.mxu0 %v6240
  %6759 = vmatprep.subr.bf16.mxu0 %v6236
  %6760 = vmatpush1.bf16.msra.mxu0 %v6235
  %6761 = vmatprep.subr.bf16.mxu0 %v6311
  %6762 = vmatpush2.bf16.msra.mxu0 %v6310
  %6763 = vmatprep.subr.bf16.mxu0 %v6306
  %6764 = vmatpush2.bf16.msra.mxu0 %v6305
  %6765 = vmatprep.subr.bf16.mxu0 %v6301
  %6766 = vmatpush2.bf16.msra.mxu0 %v6300
  %6767 = vmatprep.subr.bf16.mxu0 %v6296
  %6768 = vmatpush2.bf16.msra.mxu0 %v6295
  %6769 = vmatprep.subr.bf16.mxu0 %v6291
  %6770 = vmatpush2.bf16.msra.mxu0 %v6290
  %6771 = vmatprep.subr.bf16.mxu0 %v6286
  %6772 = vmatpush2.bf16.msra.mxu0 %v6285
  %6773 = vmatprep.subr.bf16.mxu0 %v6281
  %6774 = vmatpush2.bf16.msra.mxu0 %v6280
  %6775 = vmatprep.subr.bf16.mxu0 %v6276
  %6776 = vmatpush2.bf16.msra.mxu0 %v6275
  %6777 = vmatprep.mubr.bf16.mxu0 %v6526
  %6778 = vmatmul.mubr.bf16.gmra.mxu0 %v6525
  %v6779 = vpop.f32.mrf.mxu0
  %v6780 = vadd.f32 %v6737, %v6779
  %v6781 = vpop.f32.mrf.mxu0
  %v6782 = vadd.f32 %v6739, %v6781
  %v6783 = vpop.f32.mrf.mxu0
  %v6784 = vadd.f32 %v6741, %v6783
  %v6785 = vpop.f32.mrf.mxu0
  %v6786 = vadd.f32 %v6743, %v6785
  %6787 = vdwg.mxu0
  %6788 = vmatprep.subr.bf16.mxu0 %v6351
  %6789 = vmatpush1.bf16.msra.mxu0 %v6350
  %6790 = vmatprep.subr.bf16.mxu0 %v6346
  %6791 = vmatpush1.bf16.msra.mxu0 %v6345
  %6792 = vmatprep.subr.bf16.mxu0 %v6341
  %6793 = vmatpush1.bf16.msra.mxu0 %v6340
  %6794 = vmatprep.subr.bf16.mxu0 %v6336
  %6795 = vmatpush1.bf16.msra.mxu0 %v6335
  %6796 = vmatprep.subr.bf16.mxu0 %v6331
  %6797 = vmatpush1.bf16.msra.mxu0 %v6330
  %6798 = vmatprep.subr.bf16.mxu0 %v6326
  %6799 = vmatpush1.bf16.msra.mxu0 %v6325
  %6800 = vmatprep.subr.bf16.mxu0 %v6321
  %6801 = vmatpush1.bf16.msra.mxu0 %v6320
  %6802 = vmatprep.subr.bf16.mxu0 %v6316
  %6803 = vmatpush1.bf16.msra.mxu0 %v6315
  %6804 = vmatprep.subr.bf16.mxu0 %v6391
  %6805 = vmatpush2.bf16.msra.mxu0 %v6390
  %6806 = vmatprep.subr.bf16.mxu0 %v6386
  %6807 = vmatpush2.bf16.msra.mxu0 %v6385
  %6808 = vmatprep.subr.bf16.mxu0 %v6381
  %6809 = vmatpush2.bf16.msra.mxu0 %v6380
  %6810 = vmatprep.subr.bf16.mxu0 %v6376
  %6811 = vmatpush2.bf16.msra.mxu0 %v6375
  %6812 = vmatprep.subr.bf16.mxu0 %v6371
  %6813 = vmatpush2.bf16.msra.mxu0 %v6370
  %6814 = vmatprep.subr.bf16.mxu0 %v6366
  %6815 = vmatpush2.bf16.msra.mxu0 %v6365
  %6816 = vmatprep.subr.bf16.mxu0 %v6361
  %6817 = vmatpush2.bf16.msra.mxu0 %v6360
  %6818 = vmatprep.subr.bf16.mxu0 %v6356
  %6819 = vmatpush2.bf16.msra.mxu0 %v6355
  %6820 = vmatprep.mubr.bf16.mxu0 %v6528
  %6821 = vmatmul.mubr.bf16.gmra.mxu0 %v6527
  %v6822 = vpop.f32.mrf.mxu0
  %v6823 = vadd.f32 %v6780, %v6822
  %v6824 = vpop.f32.mrf.mxu0
  %v6825 = vadd.f32 %v6782, %v6824
  %v6826 = vpop.f32.mrf.mxu0
  %v6827 = vadd.f32 %v6784, %v6826
  %v6828 = vpop.f32.mrf.mxu0
  %v6829 = vadd.f32 %v6786, %v6828
  %6830 = vdwg.mxu0
  %6831 = vmatprep.subr.bf16.mxu0 %v6431
  %6832 = vmatpush1.bf16.msra.mxu0 %v6430
  %6833 = vmatprep.subr.bf16.mxu0 %v6426
  %6834 = vmatpush1.bf16.msra.mxu0 %v6425
  %6835 = vmatprep.subr.bf16.mxu0 %v6421
  %6836 = vmatpush1.bf16.msra.mxu0 %v6420
  %6837 = vmatprep.subr.bf16.mxu0 %v6416
  %6838 = vmatpush1.bf16.msra.mxu0 %v6415
  %6839 = vmatprep.subr.bf16.mxu0 %v6411
  %6840 = vmatpush1.bf16.msra.mxu0 %v6410
  %6841 = vmatprep.subr.bf16.mxu0 %v6406
  %6842 = vmatpush1.bf16.msra.mxu0 %v6405
  %6843 = vmatprep.subr.bf16.mxu0 %v6401
  %6844 = vmatpush1.bf16.msra.mxu0 %v6400
  %6845 = vmatprep.subr.bf16.mxu0 %v6396
  %6846 = vmatpush1.bf16.msra.mxu0 %v6395
  %6847 = vmatprep.subr.bf16.mxu0 0
  %6848 = vmatpush2.bf16.msra.mxu0 0
  %6849 = vmatprep.subr.bf16.mxu0 0
  %6850 = vmatpush2.bf16.msra.mxu0 0
  %6851 = vmatprep.subr.bf16.mxu0 0
  %6852 = vmatpush2.bf16.msra.mxu0 0
  %6853 = vmatprep.subr.bf16.mxu0 0
  %6854 = vmatpush2.bf16.msra.mxu0 0
  %6855 = vmatprep.subr.bf16.mxu0 0
  %6856 = vmatpush2.bf16.msra.mxu0 0
  %6857 = vmatprep.subr.bf16.mxu0 0
  %6858 = vmatpush2.bf16.msra.mxu0 0
  %6859 = vmatprep.subr.bf16.mxu0 0
  %6860 = vmatpush2.bf16.msra.mxu0 0
  %6861 = vmatprep.subr.bf16.mxu0 0
  %6862 = vmatpush2.bf16.msra.mxu0 0
  %6863 = vmatprep.mubr.bf16.mxu0 0
  %6864 = vmatmul.mubr.bf16.gmra.mxu0 %v6529
  %v6865 = vpop.f32.mrf.mxu0
  %v6866 = vadd.f32 %v6823, %v6865
  %v6867 = vpop.f32.mrf.mxu0
  %v6868 = vadd.f32 %v6825, %v6867
  %v6869 = vpop.f32.mrf.mxu0
  %v6870 = vadd.f32 %v6827, %v6869
  %v6871 = vpop.f32.mrf.mxu0
  %v6872 = vadd.f32 %v6829, %v6871
  %6873 = vdwg.mxu0
  %6874 = vmatprep.subr.bf16.mxu0 %v5873
  %6875 = vmatpush1.bf16.msra.mxu0 %v5872
  %6876 = vmatprep.subr.bf16.mxu0 %v5868
  %6877 = vmatpush1.bf16.msra.mxu0 %v5867
  %6878 = vmatprep.subr.bf16.mxu0 %v5863
  %6879 = vmatpush1.bf16.msra.mxu0 %v5862
  %6880 = vmatprep.subr.bf16.mxu0 %v5858
  %6881 = vmatpush1.bf16.msra.mxu0 %v5857
  %6882 = vmatprep.subr.bf16.mxu0 %v5853
  %6883 = vmatpush1.bf16.msra.mxu0 %v5852
  %6884 = vmatprep.subr.bf16.mxu0 %v5848
  %6885 = vmatpush1.bf16.msra.mxu0 %v5847
  %6886 = vmatprep.subr.bf16.mxu0 %v5843
  %6887 = vmatpush1.bf16.msra.mxu0 %v5842
  %6888 = vmatprep.subr.bf16.mxu0 %v5838
  %6889 = vmatpush1.bf16.msra.mxu0 %v5837
  %6890 = vmatprep.subr.bf16.mxu0 %v5913
  %6891 = vmatpush2.bf16.msra.mxu0 %v5912
  %6892 = vmatprep.subr.bf16.mxu0 %v5908
  %6893 = vmatpush2.bf16.msra.mxu0 %v5907
  %6894 = vmatprep.subr.bf16.mxu0 %v5903
  %6895 = vmatpush2.bf16.msra.mxu0 %v5902
  %6896 = vmatprep.subr.bf16.mxu0 %v5898
  %6897 = vmatpush2.bf16.msra.mxu0 %v5897
  %6898 = vmatprep.subr.bf16.mxu0 %v5893
  %6899 = vmatpush2.bf16.msra.mxu0 %v5892
  %6900 = vmatprep.subr.bf16.mxu0 %v5888
  %6901 = vmatpush2.bf16.msra.mxu0 %v5887
  %6902 = vmatprep.subr.bf16.mxu0 %v5883
  %6903 = vmatpush2.bf16.msra.mxu0 %v5882
  %6904 = vmatprep.subr.bf16.mxu0 %v5878
  %6905 = vmatpush2.bf16.msra.mxu0 %v5877
  %6906 = vmatprep.mubr.bf16.mxu0 %v6516
  %6907 = vmatmul.mubr.bf16.gmra.mxu0 %v6515
  %v6908 = vpop.f32.mrf.mxu0
  %v6909 = vadd.f32 0.0, %v6908
  %v6910 = vpop.f32.mrf.mxu0
  %v6911 = vadd.f32 0.0, %v6910
  %v6912 = vpop.f32.mrf.mxu0
  %v6913 = vadd.f32 0.0, %v6912
  %v6914 = vpop.f32.mrf.mxu0
  %v6915 = vadd.f32 0.0, %v6914
  %6916 = vdwg.mxu0
  %6917 = vmatprep.subr.bf16.mxu0 %v5953
  %6918 = vmatpush1.bf16.msra.mxu0 %v5952
  %6919 = vmatprep.subr.bf16.mxu0 %v5948
  %6920 = vmatpush1.bf16.msra.mxu0 %v5947
  %6921 = vmatprep.subr.bf16.mxu0 %v5943
  %6922 = vmatpush1.bf16.msra.mxu0 %v5942
  %6923 = vmatprep.subr.bf16.mxu0 %v5938
  %6924 = vmatpush1.bf16.msra.mxu0 %v5937
  %6925 = vmatprep.subr.bf16.mxu0 %v5933
  %6926 = vmatpush1.bf16.msra.mxu0 %v5932
  %6927 = vmatprep.subr.bf16.mxu0 %v5928
  %6928 = vmatpush1.bf16.msra.mxu0 %v5927
  %6929 = vmatprep.subr.bf16.mxu0 %v5923
  %6930 = vmatpush1.bf16.msra.mxu0 %v5922
  %6931 = vmatprep.subr.bf16.mxu0 %v5918
  %6932 = vmatpush1.bf16.msra.mxu0 %v5917
  %6933 = vmatprep.subr.bf16.mxu0 %v5993
  %6934 = vmatpush2.bf16.msra.mxu0 %v5992
  %6935 = vmatprep.subr.bf16.mxu0 %v5988
  %6936 = vmatpush2.bf16.msra.mxu0 %v5987
  %6937 = vmatprep.subr.bf16.mxu0 %v5983
  %6938 = vmatpush2.bf16.msra.mxu0 %v5982
  %6939 = vmatprep.subr.bf16.mxu0 %v5978
  %6940 = vmatpush2.bf16.msra.mxu0 %v5977
  %6941 = vmatprep.subr.bf16.mxu0 %v5973
  %6942 = vmatpush2.bf16.msra.mxu0 %v5972
  %6943 = vmatprep.subr.bf16.mxu0 %v5968
  %6944 = vmatpush2.bf16.msra.mxu0 %v5967
  %6945 = vmatprep.subr.bf16.mxu0 %v5963
  %6946 = vmatpush2.bf16.msra.mxu0 %v5962
  %6947 = vmatprep.subr.bf16.mxu0 %v5958
  %6948 = vmatpush2.bf16.msra.mxu0 %v5957
  %6949 = vmatprep.mubr.bf16.mxu0 %v6518
  %6950 = vmatmul.mubr.bf16.gmra.mxu0 %v6517
  %v6951 = vpop.f32.mrf.mxu0
  %v6952 = vadd.f32 %v6909, %v6951
  %v6953 = vpop.f32.mrf.mxu0
  %v6954 = vadd.f32 %v6911, %v6953
  %v6955 = vpop.f32.mrf.mxu0
  %v6956 = vadd.f32 %v6913, %v6955
  %v6957 = vpop.f32.mrf.mxu0
  %v6958 = vadd.f32 %v6915, %v6957
  %6959 = vdwg.mxu0
  %6960 = vmatprep.subr.bf16.mxu0 %v6033
  %6961 = vmatpush1.bf16.msra.mxu0 %v6032
  %6962 = vmatprep.subr.bf16.mxu0 %v6028
  %6963 = vmatpush1.bf16.msra.mxu0 %v6027
  %6964 = vmatprep.subr.bf16.mxu0 %v6023
  %6965 = vmatpush1.bf16.msra.mxu0 %v6022
  %6966 = vmatprep.subr.bf16.mxu0 %v6018
  %6967 = vmatpush1.bf16.msra.mxu0 %v6017
  %6968 = vmatprep.subr.bf16.mxu0 %v6013
  %6969 = vmatpush1.bf16.msra.mxu0 %v6012
  %6970 = vmatprep.subr.bf16.mxu0 %v6008
  %6971 = vmatpush1.bf16.msra.mxu0 %v6007
  %6972 = vmatprep.subr.bf16.mxu0 %v6003
  %6973 = vmatpush1.bf16.msra.mxu0 %v6002
  %6974 = vmatprep.subr.bf16.mxu0 %v5998
  %6975 = vmatpush1.bf16.msra.mxu0 %v5997
  %6976 = vmatprep.subr.bf16.mxu0 %v6073
  %6977 = vmatpush2.bf16.msra.mxu0 %v6072
  %6978 = vmatprep.subr.bf16.mxu0 %v6068
  %6979 = vmatpush2.bf16.msra.mxu0 %v6067
  %6980 = vmatprep.subr.bf16.mxu0 %v6063
  %6981 = vmatpush2.bf16.msra.mxu0 %v6062
  %6982 = vmatprep.subr.bf16.mxu0 %v6058
  %6983 = vmatpush2.bf16.msra.mxu0 %v6057
  %6984 = vmatprep.subr.bf16.mxu0 %v6053
  %6985 = vmatpush2.bf16.msra.mxu0 %v6052
  %6986 = vmatprep.subr.bf16.mxu0 %v6048
  %6987 = vmatpush2.bf16.msra.mxu0 %v6047
  %6988 = vmatprep.subr.bf16.mxu0 %v6043
  %6989 = vmatpush2.bf16.msra.mxu0 %v6042
  %6990 = vmatprep.subr.bf16.mxu0 %v6038
  %6991 = vmatpush2.bf16.msra.mxu0 %v6037
  %6992 = vmatprep.mubr.bf16.mxu0 %v6520
  %6993 = vmatmul.mubr.bf16.gmra.mxu0 %v6519
  %v6994 = vpop.f32.mrf.mxu0
  %v6995 = vadd.f32 %v6952, %v6994
  %v6996 = vpop.f32.mrf.mxu0
  %v6997 = vadd.f32 %v6954, %v6996
  %v6998 = vpop.f32.mrf.mxu0
  %v6999 = vadd.f32 %v6956, %v6998
  %v7000 = vpop.f32.mrf.mxu0
  %v7001 = vadd.f32 %v6958, %v7000
  %7002 = vdwg.mxu0
  %7003 = vmatprep.subr.bf16.mxu0 %v6113
  %7004 = vmatpush1.bf16.msra.mxu0 %v6112
  %7005 = vmatprep.subr.bf16.mxu0 %v6108
  %7006 = vmatpush1.bf16.msra.mxu0 %v6107
  %7007 = vmatprep.subr.bf16.mxu0 %v6103
  %7008 = vmatpush1.bf16.msra.mxu0 %v6102
  %7009 = vmatprep.subr.bf16.mxu0 %v6098
  %7010 = vmatpush1.bf16.msra.mxu0 %v6097
  %7011 = vmatprep.subr.bf16.mxu0 %v6093
  %7012 = vmatpush1.bf16.msra.mxu0 %v6092
  %7013 = vmatprep.subr.bf16.mxu0 %v6088
  %7014 = vmatpush1.bf16.msra.mxu0 %v6087
  %7015 = vmatprep.subr.bf16.mxu0 %v6083
  %7016 = vmatpush1.bf16.msra.mxu0 %v6082
  %7017 = vmatprep.subr.bf16.mxu0 %v6078
  %7018 = vmatpush1.bf16.msra.mxu0 %v6077
  %7019 = vmatprep.subr.bf16.mxu0 %v6153
  %7020 = vmatpush2.bf16.msra.mxu0 %v6152
  %7021 = vmatprep.subr.bf16.mxu0 %v6148
  %7022 = vmatpush2.bf16.msra.mxu0 %v6147
  %7023 = vmatprep.subr.bf16.mxu0 %v6143
  %7024 = vmatpush2.bf16.msra.mxu0 %v6142
  %7025 = vmatprep.subr.bf16.mxu0 %v6138
  %7026 = vmatpush2.bf16.msra.mxu0 %v6137
  %7027 = vmatprep.subr.bf16.mxu0 %v6133
  %7028 = vmatpush2.bf16.msra.mxu0 %v6132
  %7029 = vmatprep.subr.bf16.mxu0 %v6128
  %7030 = vmatpush2.bf16.msra.mxu0 %v6127
  %7031 = vmatprep.subr.bf16.mxu0 %v6123
  %7032 = vmatpush2.bf16.msra.mxu0 %v6122
  %7033 = vmatprep.subr.bf16.mxu0 %v6118
  %7034 = vmatpush2.bf16.msra.mxu0 %v6117
  %7035 = vmatprep.mubr.bf16.mxu0 %v6522
  %7036 = vmatmul.mubr.bf16.gmra.mxu0 %v6521
  %v7037 = vpop.f32.mrf.mxu0
  %v7038 = vadd.f32 %v6995, %v7037
  %v7039 = vpop.f32.mrf.mxu0
  %v7040 = vadd.f32 %v6997, %v7039
  %v7041 = vpop.f32.mrf.mxu0
  %v7042 = vadd.f32 %v6999, %v7041
  %v7043 = vpop.f32.mrf.mxu0
  %v7044 = vadd.f32 %v7001, %v7043
  %7045 = vdwg.mxu0
  %7046 = vmatprep.subr.bf16.mxu0 %v6193
  %7047 = vmatpush1.bf16.msra.mxu0 %v6192
  %7048 = vmatprep.subr.bf16.mxu0 %v6188
  %7049 = vmatpush1.bf16.msra.mxu0 %v6187
  %7050 = vmatprep.subr.bf16.mxu0 %v6183
  %7051 = vmatpush1.bf16.msra.mxu0 %v6182
  %7052 = vmatprep.subr.bf16.mxu0 %v6178
  %7053 = vmatpush1.bf16.msra.mxu0 %v6177
  %7054 = vmatprep.subr.bf16.mxu0 %v6173
  %7055 = vmatpush1.bf16.msra.mxu0 %v6172
  %7056 = vmatprep.subr.bf16.mxu0 %v6168
  %7057 = vmatpush1.bf16.msra.mxu0 %v6167
  %7058 = vmatprep.subr.bf16.mxu0 %v6163
  %7059 = vmatpush1.bf16.msra.mxu0 %v6162
  %7060 = vmatprep.subr.bf16.mxu0 %v6158
  %7061 = vmatpush1.bf16.msra.mxu0 %v6157
  %7062 = vmatprep.subr.bf16.mxu0 %v6233
  %7063 = vmatpush2.bf16.msra.mxu0 %v6232
  %7064 = vmatprep.subr.bf16.mxu0 %v6228
  %7065 = vmatpush2.bf16.msra.mxu0 %v6227
  %7066 = vmatprep.subr.bf16.mxu0 %v6223
  %7067 = vmatpush2.bf16.msra.mxu0 %v6222
  %7068 = vmatprep.subr.bf16.mxu0 %v6218
  %7069 = vmatpush2.bf16.msra.mxu0 %v6217
  %7070 = vmatprep.subr.bf16.mxu0 %v6213
  %7071 = vmatpush2.bf16.msra.mxu0 %v6212
  %7072 = vmatprep.subr.bf16.mxu0 %v6208
  %7073 = vmatpush2.bf16.msra.mxu0 %v6207
  %7074 = vmatprep.subr.bf16.mxu0 %v6203
  %7075 = vmatpush2.bf16.msra.mxu0 %v6202
  %7076 = vmatprep.subr.bf16.mxu0 %v6198
  %7077 = vmatpush2.bf16.msra.mxu0 %v6197
  %7078 = vmatprep.mubr.bf16.mxu0 %v6524
  %7079 = vmatmul.mubr.bf16.gmra.mxu0 %v6523
  %v7080 = vpop.f32.mrf.mxu0
  %v7081 = vadd.f32 %v7038, %v7080
  %v7082 = vpop.f32.mrf.mxu0
  %v7083 = vadd.f32 %v7040, %v7082
  %v7084 = vpop.f32.mrf.mxu0
  %v7085 = vadd.f32 %v7042, %v7084
  %v7086 = vpop.f32.mrf.mxu0
  %v7087 = vadd.f32 %v7044, %v7086
  %7088 = vdwg.mxu0
  %7089 = vmatprep.subr.bf16.mxu0 %v6273
  %7090 = vmatpush1.bf16.msra.mxu0 %v6272
  %7091 = vmatprep.subr.bf16.mxu0 %v6268
  %7092 = vmatpush1.bf16.msra.mxu0 %v6267
  %7093 = vmatprep.subr.bf16.mxu0 %v6263
  %7094 = vmatpush1.bf16.msra.mxu0 %v6262
  %7095 = vmatprep.subr.bf16.mxu0 %v6258
  %7096 = vmatpush1.bf16.msra.mxu0 %v6257
  %7097 = vmatprep.subr.bf16.mxu0 %v6253
  %7098 = vmatpush1.bf16.msra.mxu0 %v6252
  %7099 = vmatprep.subr.bf16.mxu0 %v6248
  %7100 = vmatpush1.bf16.msra.mxu0 %v6247
  %7101 = vmatprep.subr.bf16.mxu0 %v6243
  %7102 = vmatpush1.bf16.msra.mxu0 %v6242
  %7103 = vmatprep.subr.bf16.mxu0 %v6238
  %7104 = vmatpush1.bf16.msra.mxu0 %v6237
  %7105 = vmatprep.subr.bf16.mxu0 %v6313
  %7106 = vmatpush2.bf16.msra.mxu0 %v6312
  %7107 = vmatprep.subr.bf16.mxu0 %v6308
  %7108 = vmatpush2.bf16.msra.mxu0 %v6307
  %7109 = vmatprep.subr.bf16.mxu0 %v6303
  %7110 = vmatpush2.bf16.msra.mxu0 %v6302
  %7111 = vmatprep.subr.bf16.mxu0 %v6298
  %7112 = vmatpush2.bf16.msra.mxu0 %v6297
  %7113 = vmatprep.subr.bf16.mxu0 %v6293
  %7114 = vmatpush2.bf16.msra.mxu0 %v6292
  %7115 = vmatprep.subr.bf16.mxu0 %v6288
  %7116 = vmatpush2.bf16.msra.mxu0 %v6287
  %7117 = vmatprep.subr.bf16.mxu0 %v6283
  %7118 = vmatpush2.bf16.msra.mxu0 %v6282
  %7119 = vmatprep.subr.bf16.mxu0 %v6278
  %7120 = vmatpush2.bf16.msra.mxu0 %v6277
  %7121 = vmatprep.mubr.bf16.mxu0 %v6526
  %7122 = vmatmul.mubr.bf16.gmra.mxu0 %v6525
  %v7123 = vpop.f32.mrf.mxu0
  %v7124 = vadd.f32 %v7081, %v7123
  %v7125 = vpop.f32.mrf.mxu0
  %v7126 = vadd.f32 %v7083, %v7125
  %v7127 = vpop.f32.mrf.mxu0
  %v7128 = vadd.f32 %v7085, %v7127
  %v7129 = vpop.f32.mrf.mxu0
  %v7130 = vadd.f32 %v7087, %v7129
  %7131 = vdwg.mxu0
  %7132 = vmatprep.subr.bf16.mxu0 %v6353
  %7133 = vmatpush1.bf16.msra.mxu0 %v6352
  %7134 = vmatprep.subr.bf16.mxu0 %v6348
  %7135 = vmatpush1.bf16.msra.mxu0 %v6347
  %7136 = vmatprep.subr.bf16.mxu0 %v6343
  %7137 = vmatpush1.bf16.msra.mxu0 %v6342
  %7138 = vmatprep.subr.bf16.mxu0 %v6338
  %7139 = vmatpush1.bf16.msra.mxu0 %v6337
  %7140 = vmatprep.subr.bf16.mxu0 %v6333
  %7141 = vmatpush1.bf16.msra.mxu0 %v6332
  %7142 = vmatprep.subr.bf16.mxu0 %v6328
  %7143 = vmatpush1.bf16.msra.mxu0 %v6327
  %7144 = vmatprep.subr.bf16.mxu0 %v6323
  %7145 = vmatpush1.bf16.msra.mxu0 %v6322
  %7146 = vmatprep.subr.bf16.mxu0 %v6318
  %7147 = vmatpush1.bf16.msra.mxu0 %v6317
  %7148 = vmatprep.subr.bf16.mxu0 %v6393
  %7149 = vmatpush2.bf16.msra.mxu0 %v6392
  %7150 = vmatprep.subr.bf16.mxu0 %v6388
  %7151 = vmatpush2.bf16.msra.mxu0 %v6387
  %7152 = vmatprep.subr.bf16.mxu0 %v6383
  %7153 = vmatpush2.bf16.msra.mxu0 %v6382
  %7154 = vmatprep.subr.bf16.mxu0 %v6378
  %7155 = vmatpush2.bf16.msra.mxu0 %v6377
  %7156 = vmatprep.subr.bf16.mxu0 %v6373
  %7157 = vmatpush2.bf16.msra.mxu0 %v6372
  %7158 = vmatprep.subr.bf16.mxu0 %v6368
  %7159 = vmatpush2.bf16.msra.mxu0 %v6367
  %7160 = vmatprep.subr.bf16.mxu0 %v6363
  %7161 = vmatpush2.bf16.msra.mxu0 %v6362
  %7162 = vmatprep.subr.bf16.mxu0 %v6358
  %7163 = vmatpush2.bf16.msra.mxu0 %v6357
  %7164 = vmatprep.mubr.bf16.mxu0 %v6528
  %7165 = vmatmul.mubr.bf16.gmra.mxu0 %v6527
  %v7166 = vpop.f32.mrf.mxu0
  %v7167 = vadd.f32 %v7124, %v7166
  %v7168 = vpop.f32.mrf.mxu0
  %v7169 = vadd.f32 %v7126, %v7168
  %v7170 = vpop.f32.mrf.mxu0
  %v7171 = vadd.f32 %v7128, %v7170
  %v7172 = vpop.f32.mrf.mxu0
  %v7173 = vadd.f32 %v7130, %v7172
  %7174 = vdwg.mxu0
  %7175 = vmatprep.subr.bf16.mxu0 %v6433
  %7176 = vmatpush1.bf16.msra.mxu0 %v6432
  %7177 = vmatprep.subr.bf16.mxu0 %v6428
  %7178 = vmatpush1.bf16.msra.mxu0 %v6427
  %7179 = vmatprep.subr.bf16.mxu0 %v6423
  %7180 = vmatpush1.bf16.msra.mxu0 %v6422
  %7181 = vmatprep.subr.bf16.mxu0 %v6418
  %7182 = vmatpush1.bf16.msra.mxu0 %v6417
  %7183 = vmatprep.subr.bf16.mxu0 %v6413
  %7184 = vmatpush1.bf16.msra.mxu0 %v6412
  %7185 = vmatprep.subr.bf16.mxu0 %v6408
  %7186 = vmatpush1.bf16.msra.mxu0 %v6407
  %7187 = vmatprep.subr.bf16.mxu0 %v6403
  %7188 = vmatpush1.bf16.msra.mxu0 %v6402
  %7189 = vmatprep.subr.bf16.mxu0 %v6398
  %7190 = vmatpush1.bf16.msra.mxu0 %v6397
  %7191 = vmatprep.subr.bf16.mxu0 0
  %7192 = vmatpush2.bf16.msra.mxu0 0
  %7193 = vmatprep.subr.bf16.mxu0 0
  %7194 = vmatpush2.bf16.msra.mxu0 0
  %7195 = vmatprep.subr.bf16.mxu0 0
  %7196 = vmatpush2.bf16.msra.mxu0 0
  %7197 = vmatprep.subr.bf16.mxu0 0
  %7198 = vmatpush2.bf16.msra.mxu0 0
  %7199 = vmatprep.subr.bf16.mxu0 0
  %7200 = vmatpush2.bf16.msra.mxu0 0
  %7201 = vmatprep.subr.bf16.mxu0 0
  %7202 = vmatpush2.bf16.msra.mxu0 0
  %7203 = vmatprep.subr.bf16.mxu0 0
  %7204 = vmatpush2.bf16.msra.mxu0 0
  %7205 = vmatprep.subr.bf16.mxu0 0
  %7206 = vmatpush2.bf16.msra.mxu0 0
  %7207 = vmatprep.mubr.bf16.mxu0 0
  %7208 = vmatmul.mubr.bf16.gmra.mxu0 %v6529
  %v7209 = vpop.f32.mrf.mxu0
  %v7210 = vadd.f32 %v7167, %v7209
  %v7211 = vpop.f32.mrf.mxu0
  %v7212 = vadd.f32 %v7169, %v7211
  %v7213 = vpop.f32.mrf.mxu0
  %v7214 = vadd.f32 %v7171, %v7213
  %v7215 = vpop.f32.mrf.mxu0
  %v7216 = vadd.f32 %v7173, %v7215
  %7217 = vdwg.mxu0
  %7218 = vmatprep.subr.bf16.mxu0 0
  %7219 = vmatpush1.bf16.msra.mxu0 %v5874
  %7220 = vmatprep.subr.bf16.mxu0 0
  %7221 = vmatpush1.bf16.msra.mxu0 %v5869
  %7222 = vmatprep.subr.bf16.mxu0 0
  %7223 = vmatpush1.bf16.msra.mxu0 %v5864
  %7224 = vmatprep.subr.bf16.mxu0 0
  %7225 = vmatpush1.bf16.msra.mxu0 %v5859
  %7226 = vmatprep.subr.bf16.mxu0 0
  %7227 = vmatpush1.bf16.msra.mxu0 %v5854
  %7228 = vmatprep.subr.bf16.mxu0 0
  %7229 = vmatpush1.bf16.msra.mxu0 %v5849
  %7230 = vmatprep.subr.bf16.mxu0 0
  %7231 = vmatpush1.bf16.msra.mxu0 %v5844
  %7232 = vmatprep.subr.bf16.mxu0 0
  %7233 = vmatpush1.bf16.msra.mxu0 %v5839
  %7234 = vmatprep.subr.bf16.mxu0 0
  %7235 = vmatpush2.bf16.msra.mxu0 %v5914
  %7236 = vmatprep.subr.bf16.mxu0 0
  %7237 = vmatpush2.bf16.msra.mxu0 %v5909
  %7238 = vmatprep.subr.bf16.mxu0 0
  %7239 = vmatpush2.bf16.msra.mxu0 %v5904
  %7240 = vmatprep.subr.bf16.mxu0 0
  %7241 = vmatpush2.bf16.msra.mxu0 %v5899
  %7242 = vmatprep.subr.bf16.mxu0 0
  %7243 = vmatpush2.bf16.msra.mxu0 %v5894
  %7244 = vmatprep.subr.bf16.mxu0 0
  %7245 = vmatpush2.bf16.msra.mxu0 %v5889
  %7246 = vmatprep.subr.bf16.mxu0 0
  %7247 = vmatpush2.bf16.msra.mxu0 %v5884
  %7248 = vmatprep.subr.bf16.mxu0 0
  %7249 = vmatpush2.bf16.msra.mxu0 %v5879
  %7250 = vmatprep.mubr.bf16.mxu0 %v6516
  %7251 = vmatmul.mubr.bf16.gmra.mxu0 %v6515
  %v7252 = vpop.f32.mrf.mxu0
  %v7253 = vadd.f32 0.0, %v7252
  %v7254 = vpop.f32.mrf.mxu0
  %v7255 = vpop.f32.mrf.mxu0
  %v7256 = vadd.f32 0.0, %v7255
  %v7257 = vpop.f32.mrf.mxu0
  %7258 = vdwg.mxu0
  %7259 = vmatprep.subr.bf16.mxu0 0
  %7260 = vmatpush1.bf16.msra.mxu0 %v5954
  %7261 = vmatprep.subr.bf16.mxu0 0
  %7262 = vmatpush1.bf16.msra.mxu0 %v5949
  %7263 = vmatprep.subr.bf16.mxu0 0
  %7264 = vmatpush1.bf16.msra.mxu0 %v5944
  %7265 = vmatprep.subr.bf16.mxu0 0
  %7266 = vmatpush1.bf16.msra.mxu0 %v5939
  %7267 = vmatprep.subr.bf16.mxu0 0
  %7268 = vmatpush1.bf16.msra.mxu0 %v5934
  %7269 = vmatprep.subr.bf16.mxu0 0
  %7270 = vmatpush1.bf16.msra.mxu0 %v5929
  %7271 = vmatprep.subr.bf16.mxu0 0
  %7272 = vmatpush1.bf16.msra.mxu0 %v5924
  %7273 = vmatprep.subr.bf16.mxu0 0
  %7274 = vmatpush1.bf16.msra.mxu0 %v5919
  %7275 = vmatprep.subr.bf16.mxu0 0
  %7276 = vmatpush2.bf16.msra.mxu0 %v5994
  %7277 = vmatprep.subr.bf16.mxu0 0
  %7278 = vmatpush2.bf16.msra.mxu0 %v5989
  %7279 = vmatprep.subr.bf16.mxu0 0
  %7280 = vmatpush2.bf16.msra.mxu0 %v5984
  %7281 = vmatprep.subr.bf16.mxu0 0
  %7282 = vmatpush2.bf16.msra.mxu0 %v5979
  %7283 = vmatprep.subr.bf16.mxu0 0
  %7284 = vmatpush2.bf16.msra.mxu0 %v5974
  %7285 = vmatprep.subr.bf16.mxu0 0
  %7286 = vmatpush2.bf16.msra.mxu0 %v5969
  %7287 = vmatprep.subr.bf16.mxu0 0
  %7288 = vmatpush2.bf16.msra.mxu0 %v5964
  %7289 = vmatprep.subr.bf16.mxu0 0
  %7290 = vmatpush2.bf16.msra.mxu0 %v5959
  %7291 = vmatprep.mubr.bf16.mxu0 %v6518
  %7292 = vmatmul.mubr.bf16.gmra.mxu0 %v6517
  %v7293 = vpop.f32.mrf.mxu0
  %v7294 = vadd.f32 %v7253, %v7293
  %v7295 = vpop.f32.mrf.mxu0
  %v7296 = vpop.f32.mrf.mxu0
  %v7297 = vadd.f32 %v7256, %v7296
  %v7298 = vpop.f32.mrf.mxu0
  %7299 = vdwg.mxu0
  %7300 = vmatprep.subr.bf16.mxu0 0
  %7301 = vmatpush1.bf16.msra.mxu0 %v6034
  %7302 = vmatprep.subr.bf16.mxu0 0
  %7303 = vmatpush1.bf16.msra.mxu0 %v6029
  %7304 = vmatprep.subr.bf16.mxu0 0
  %7305 = vmatpush1.bf16.msra.mxu0 %v6024
  %7306 = vmatprep.subr.bf16.mxu0 0
  %7307 = vmatpush1.bf16.msra.mxu0 %v6019
  %7308 = vmatprep.subr.bf16.mxu0 0
  %7309 = vmatpush1.bf16.msra.mxu0 %v6014
  %7310 = vmatprep.subr.bf16.mxu0 0
  %7311 = vmatpush1.bf16.msra.mxu0 %v6009
  %7312 = vmatprep.subr.bf16.mxu0 0
  %7313 = vmatpush1.bf16.msra.mxu0 %v6004
  %7314 = vmatprep.subr.bf16.mxu0 0
  %7315 = vmatpush1.bf16.msra.mxu0 %v5999
  %7316 = vmatprep.subr.bf16.mxu0 0
  %7317 = vmatpush2.bf16.msra.mxu0 %v6074
  %7318 = vmatprep.subr.bf16.mxu0 0
  %7319 = vmatpush2.bf16.msra.mxu0 %v6069
  %7320 = vmatprep.subr.bf16.mxu0 0
  %7321 = vmatpush2.bf16.msra.mxu0 %v6064
  %7322 = vmatprep.subr.bf16.mxu0 0
  %7323 = vmatpush2.bf16.msra.mxu0 %v6059
  %7324 = vmatprep.subr.bf16.mxu0 0
  %7325 = vmatpush2.bf16.msra.mxu0 %v6054
  %7326 = vmatprep.subr.bf16.mxu0 0
  %7327 = vmatpush2.bf16.msra.mxu0 %v6049
  %7328 = vmatprep.subr.bf16.mxu0 0
  %7329 = vmatpush2.bf16.msra.mxu0 %v6044
  %7330 = vmatprep.subr.bf16.mxu0 0
  %7331 = vmatpush2.bf16.msra.mxu0 %v6039
  %7332 = vmatprep.mubr.bf16.mxu0 %v6520
  %7333 = vmatmul.mubr.bf16.gmra.mxu0 %v6519
  %v7334 = vpop.f32.mrf.mxu0
  %v7335 = vadd.f32 %v7294, %v7334
  %v7336 = vpop.f32.mrf.mxu0
  %v7337 = vpop.f32.mrf.mxu0
  %v7338 = vadd.f32 %v7297, %v7337
  %v7339 = vpop.f32.mrf.mxu0
  %7340 = vdwg.mxu0
  %7341 = vmatprep.subr.bf16.mxu0 0
  %7342 = vmatpush1.bf16.msra.mxu0 %v6114
  %7343 = vmatprep.subr.bf16.mxu0 0
  %7344 = vmatpush1.bf16.msra.mxu0 %v6109
  %7345 = vmatprep.subr.bf16.mxu0 0
  %7346 = vmatpush1.bf16.msra.mxu0 %v6104
  %7347 = vmatprep.subr.bf16.mxu0 0
  %7348 = vmatpush1.bf16.msra.mxu0 %v6099
  %7349 = vmatprep.subr.bf16.mxu0 0
  %7350 = vmatpush1.bf16.msra.mxu0 %v6094
  %7351 = vmatprep.subr.bf16.mxu0 0
  %7352 = vmatpush1.bf16.msra.mxu0 %v6089
  %7353 = vmatprep.subr.bf16.mxu0 0
  %7354 = vmatpush1.bf16.msra.mxu0 %v6084
  %7355 = vmatprep.subr.bf16.mxu0 0
  %7356 = vmatpush1.bf16.msra.mxu0 %v6079
  %7357 = vmatprep.subr.bf16.mxu0 0
  %7358 = vmatpush2.bf16.msra.mxu0 %v6154
  %7359 = vmatprep.subr.bf16.mxu0 0
  %7360 = vmatpush2.bf16.msra.mxu0 %v6149
  %7361 = vmatprep.subr.bf16.mxu0 0
  %7362 = vmatpush2.bf16.msra.mxu0 %v6144
  %7363 = vmatprep.subr.bf16.mxu0 0
  %7364 = vmatpush2.bf16.msra.mxu0 %v6139
  %7365 = vmatprep.subr.bf16.mxu0 0
  %7366 = vmatpush2.bf16.msra.mxu0 %v6134
  %7367 = vmatprep.subr.bf16.mxu0 0
  %7368 = vmatpush2.bf16.msra.mxu0 %v6129
  %7369 = vmatprep.subr.bf16.mxu0 0
  %7370 = vmatpush2.bf16.msra.mxu0 %v6124
  %7371 = vmatprep.subr.bf16.mxu0 0
  %7372 = vmatpush2.bf16.msra.mxu0 %v6119
  %7373 = vmatprep.mubr.bf16.mxu0 %v6522
  %7374 = vmatmul.mubr.bf16.gmra.mxu0 %v6521
  %v7375 = vpop.f32.mrf.mxu0
  %v7376 = vadd.f32 %v7335, %v7375
  %v7377 = vpop.f32.mrf.mxu0
  %v7378 = vpop.f32.mrf.mxu0
  %v7379 = vadd.f32 %v7338, %v7378
  %v7380 = vpop.f32.mrf.mxu0
  %7381 = vdwg.mxu0
  %7382 = vmatprep.subr.bf16.mxu0 0
  %7383 = vmatpush1.bf16.msra.mxu0 %v6194
  %7384 = vmatprep.subr.bf16.mxu0 0
  %7385 = vmatpush1.bf16.msra.mxu0 %v6189
  %7386 = vmatprep.subr.bf16.mxu0 0
  %7387 = vmatpush1.bf16.msra.mxu0 %v6184
  %7388 = vmatprep.subr.bf16.mxu0 0
  %7389 = vmatpush1.bf16.msra.mxu0 %v6179
  %7390 = vmatprep.subr.bf16.mxu0 0
  %7391 = vmatpush1.bf16.msra.mxu0 %v6174
  %7392 = vmatprep.subr.bf16.mxu0 0
  %7393 = vmatpush1.bf16.msra.mxu0 %v6169
  %7394 = vmatprep.subr.bf16.mxu0 0
  %7395 = vmatpush1.bf16.msra.mxu0 %v6164
  %7396 = vmatprep.subr.bf16.mxu0 0
  %7397 = vmatpush1.bf16.msra.mxu0 %v6159
  %7398 = vmatprep.subr.bf16.mxu0 0
  %7399 = vmatpush2.bf16.msra.mxu0 %v6234
  %7400 = vmatprep.subr.bf16.mxu0 0
  %7401 = vmatpush2.bf16.msra.mxu0 %v6229
  %7402 = vmatprep.subr.bf16.mxu0 0
  %7403 = vmatpush2.bf16.msra.mxu0 %v6224
  %7404 = vmatprep.subr.bf16.mxu0 0
  %7405 = vmatpush2.bf16.msra.mxu0 %v6219
  %7406 = vmatprep.subr.bf16.mxu0 0
  %7407 = vmatpush2.bf16.msra.mxu0 %v6214
  %7408 = vmatprep.subr.bf16.mxu0 0
  %7409 = vmatpush2.bf16.msra.mxu0 %v6209
  %7410 = vmatprep.subr.bf16.mxu0 0
  %7411 = vmatpush2.bf16.msra.mxu0 %v6204
  %7412 = vmatprep.subr.bf16.mxu0 0
  %7413 = vmatpush2.bf16.msra.mxu0 %v6199
  %7414 = vmatprep.mubr.bf16.mxu0 %v6524
  %7415 = vmatmul.mubr.bf16.gmra.mxu0 %v6523
  %v7416 = vpop.f32.mrf.mxu0
  %v7417 = vadd.f32 %v7376, %v7416
  %v7418 = vpop.f32.mrf.mxu0
  %v7419 = vpop.f32.mrf.mxu0
  %v7420 = vadd.f32 %v7379, %v7419
  %v7421 = vpop.f32.mrf.mxu0
  %7422 = vdwg.mxu0
  %7423 = vmatprep.subr.bf16.mxu0 0
  %7424 = vmatpush1.bf16.msra.mxu0 %v6274
  %7425 = vmatprep.subr.bf16.mxu0 0
  %7426 = vmatpush1.bf16.msra.mxu0 %v6269
  %7427 = vmatprep.subr.bf16.mxu0 0
  %7428 = vmatpush1.bf16.msra.mxu0 %v6264
  %7429 = vmatprep.subr.bf16.mxu0 0
  %7430 = vmatpush1.bf16.msra.mxu0 %v6259
  %7431 = vmatprep.subr.bf16.mxu0 0
  %7432 = vmatpush1.bf16.msra.mxu0 %v6254
  %7433 = vmatprep.subr.bf16.mxu0 0
  %7434 = vmatpush1.bf16.msra.mxu0 %v6249
  %7435 = vmatprep.subr.bf16.mxu0 0
  %7436 = vmatpush1.bf16.msra.mxu0 %v6244
  %7437 = vmatprep.subr.bf16.mxu0 0
  %7438 = vmatpush1.bf16.msra.mxu0 %v6239
  %7439 = vmatprep.subr.bf16.mxu0 0
  %7440 = vmatpush2.bf16.msra.mxu0 %v6314
  %7441 = vmatprep.subr.bf16.mxu0 0
  %7442 = vmatpush2.bf16.msra.mxu0 %v6309
  %7443 = vmatprep.subr.bf16.mxu0 0
  %7444 = vmatpush2.bf16.msra.mxu0 %v6304
  %7445 = vmatprep.subr.bf16.mxu0 0
  %7446 = vmatpush2.bf16.msra.mxu0 %v6299
  %7447 = vmatprep.subr.bf16.mxu0 0
  %7448 = vmatpush2.bf16.msra.mxu0 %v6294
  %7449 = vmatprep.subr.bf16.mxu0 0
  %7450 = vmatpush2.bf16.msra.mxu0 %v6289
  %7451 = vmatprep.subr.bf16.mxu0 0
  %7452 = vmatpush2.bf16.msra.mxu0 %v6284
  %7453 = vmatprep.subr.bf16.mxu0 0
  %7454 = vmatpush2.bf16.msra.mxu0 %v6279
  %7455 = vmatprep.mubr.bf16.mxu0 %v6526
  %7456 = vmatmul.mubr.bf16.gmra.mxu0 %v6525
  %v7457 = vpop.f32.mrf.mxu0
  %v7458 = vadd.f32 %v7417, %v7457
  %v7459 = vpop.f32.mrf.mxu0
  %v7460 = vpop.f32.mrf.mxu0
  %v7461 = vadd.f32 %v7420, %v7460
  %v7462 = vpop.f32.mrf.mxu0
  %7463 = vdwg.mxu0
  %7464 = vmatprep.subr.bf16.mxu0 0
  %7465 = vmatpush1.bf16.msra.mxu0 %v6354
  %7466 = vmatprep.subr.bf16.mxu0 0
  %7467 = vmatpush1.bf16.msra.mxu0 %v6349
  %7468 = vmatprep.subr.bf16.mxu0 0
  %7469 = vmatpush1.bf16.msra.mxu0 %v6344
  %7470 = vmatprep.subr.bf16.mxu0 0
  %7471 = vmatpush1.bf16.msra.mxu0 %v6339
  %7472 = vmatprep.subr.bf16.mxu0 0
  %7473 = vmatpush1.bf16.msra.mxu0 %v6334
  %7474 = vmatprep.subr.bf16.mxu0 0
  %7475 = vmatpush1.bf16.msra.mxu0 %v6329
  %7476 = vmatprep.subr.bf16.mxu0 0
  %7477 = vmatpush1.bf16.msra.mxu0 %v6324
  %7478 = vmatprep.subr.bf16.mxu0 0
  %7479 = vmatpush1.bf16.msra.mxu0 %v6319
  %7480 = vmatprep.subr.bf16.mxu0 0
  %7481 = vmatpush2.bf16.msra.mxu0 %v6394
  %7482 = vmatprep.subr.bf16.mxu0 0
  %7483 = vmatpush2.bf16.msra.mxu0 %v6389
  %7484 = vmatprep.subr.bf16.mxu0 0
  %7485 = vmatpush2.bf16.msra.mxu0 %v6384
  %7486 = vmatprep.subr.bf16.mxu0 0
  %7487 = vmatpush2.bf16.msra.mxu0 %v6379
  %7488 = vmatprep.subr.bf16.mxu0 0
  %7489 = vmatpush2.bf16.msra.mxu0 %v6374
  %7490 = vmatprep.subr.bf16.mxu0 0
  %7491 = vmatpush2.bf16.msra.mxu0 %v6369
  %7492 = vmatprep.subr.bf16.mxu0 0
  %7493 = vmatpush2.bf16.msra.mxu0 %v6364
  %7494 = vmatprep.subr.bf16.mxu0 0
  %7495 = vmatpush2.bf16.msra.mxu0 %v6359
  %7496 = vmatprep.mubr.bf16.mxu0 %v6528
  %7497 = vmatmul.mubr.bf16.gmra.mxu0 %v6527
  %v7498 = vpop.f32.mrf.mxu0
  %v7499 = vadd.f32 %v7458, %v7498
  %v7500 = vpop.f32.mrf.mxu0
  %v7501 = vpop.f32.mrf.mxu0
  %v7502 = vadd.f32 %v7461, %v7501
  %v7503 = vpop.f32.mrf.mxu0
  %7504 = vdwg.mxu0
  %7505 = vmatprep.subr.bf16.mxu0 0
  %7506 = vmatpush1.bf16.msra.mxu0 %v6434
  %7507 = vmatprep.subr.bf16.mxu0 0
  %7508 = vmatpush1.bf16.msra.mxu0 %v6429
  %7509 = vmatprep.subr.bf16.mxu0 0
  %7510 = vmatpush1.bf16.msra.mxu0 %v6424
  %7511 = vmatprep.subr.bf16.mxu0 0
  %7512 = vmatpush1.bf16.msra.mxu0 %v6419
  %7513 = vmatprep.subr.bf16.mxu0 0
  %7514 = vmatpush1.bf16.msra.mxu0 %v6414
  %7515 = vmatprep.subr.bf16.mxu0 0
  %7516 = vmatpush1.bf16.msra.mxu0 %v6409
  %7517 = vmatprep.subr.bf16.mxu0 0
  %7518 = vmatpush1.bf16.msra.mxu0 %v6404
  %7519 = vmatprep.subr.bf16.mxu0 0
  %7520 = vmatpush1.bf16.msra.mxu0 %v6399
  %7521 = vmatprep.subr.bf16.mxu0 0
  %7522 = vmatpush2.bf16.msra.mxu0 0
  %7523 = vmatprep.subr.bf16.mxu0 0
  %7524 = vmatpush2.bf16.msra.mxu0 0
  %7525 = vmatprep.subr.bf16.mxu0 0
  %7526 = vmatpush2.bf16.msra.mxu0 0
  %7527 = vmatprep.subr.bf16.mxu0 0
  %7528 = vmatpush2.bf16.msra.mxu0 0
  %7529 = vmatprep.subr.bf16.mxu0 0
  %7530 = vmatpush2.bf16.msra.mxu0 0
  %7531 = vmatprep.subr.bf16.mxu0 0
  %7532 = vmatpush2.bf16.msra.mxu0 0
  %7533 = vmatprep.subr.bf16.mxu0 0
  %7534 = vmatpush2.bf16.msra.mxu0 0
  %7535 = vmatprep.subr.bf16.mxu0 0
  %7536 = vmatpush2.bf16.msra.mxu0 0
  %7537 = vmatprep.mubr.bf16.mxu0 0
  %7538 = vmatmul.mubr.bf16.gmra.mxu0 %v6529
  %v7539 = vpop.f32.mrf.mxu0
  %v7540 = vadd.f32 %v7499, %v7539
  %v7541 = vpop.f32.mrf.mxu0
  %v7542 = vpop.f32.mrf.mxu0
  %v7543 = vadd.f32 %v7502, %v7542
  %v7544 = vpop.f32.mrf.mxu0
  %7545 = vdwg.mxu0
  %v7546 = vld [vmem:[%s12] ss:$2 sm:$0x1f]
  %s7547 = scalar_lea.vmem %s12, 1
  %v7548 = vld [vmem:[%s7547] ss:$2 sm:$0x1f]
  %v7550 = vlaneseq
  %v7551 = vshrl.u32 %v7550, 7
  %v7552 = vsub.s32 0, %v7551
  %v7553 = vrot.slane %v7546, %v7552
  %v7554 = vlaneseq
  %v7555 = vshrl.u32 %v7554, 7
  %v7556 = vsub.s32 1, %v7555
  %v7557 = vrot.slane %v7546, %v7556
  %v7558 = vlaneseq
  %v7559 = vshrl.u32 %v7558, 7
  %v7560 = vsub.s32 2, %v7559
  %v7561 = vrot.slane %v7546, %v7560
  %v7562 = vlaneseq
  %v7563 = vshrl.u32 %v7562, 7
  %v7564 = vsub.s32 3, %v7563
  %v7565 = vrot.slane %v7546, %v7564
  %v7566 = vlaneseq
  %v7567 = vshrl.u32 %v7566, 7
  %v7568 = vsub.s32 4, %v7567
  %v7569 = vrot.slane %v7546, %v7568
  %v7575 = vmul.f32 %v6866, %v7553
  %v7576 = vmul.f32 %v6868, %v7557
  %v7577 = vmul.f32 %v7210, %v7561
  %v7578 = vmul.f32 %v7212, %v7565
  %v7579 = vmul.f32 %v7540, %v7569
  %v7580 = vmul.f32 %v6870, %v7553
  %v7581 = vmul.f32 %v6872, %v7557
  %v7582 = vmul.f32 %v7214, %v7561
  %v7583 = vmul.f32 %v7216, %v7565
  %v7584 = vmul.f32 %v7543, %v7569
  %v7586 = vlaneseq
  %v7587 = vshrl.u32 %v7586, 7
  %v7588 = vsub.s32 0, %v7587
  %v7589 = vrot.slane %v7548, %v7588
  %v7590 = vlaneseq
  %v7591 = vshrl.u32 %v7590, 7
  %v7592 = vsub.s32 1, %v7591
  %v7593 = vrot.slane %v7548, %v7592
  %v7594 = vlaneseq
  %v7595 = vshrl.u32 %v7594, 7
  %v7596 = vsub.s32 2, %v7595
  %v7597 = vrot.slane %v7548, %v7596
  %v7598 = vlaneseq
  %v7599 = vshrl.u32 %v7598, 7
  %v7600 = vsub.s32 3, %v7599
  %v7601 = vrot.slane %v7548, %v7600
  %v7602 = vlaneseq
  %v7603 = vshrl.u32 %v7602, 7
  %v7604 = vsub.s32 4, %v7603
  %v7605 = vrot.slane %v7548, %v7604
  %v7611 = vadd.f32 %v7575, %v7589
  %v7612 = vadd.f32 %v7576, %v7593
  %v7613 = vadd.f32 %v7577, %v7597
  %v7614 = vadd.f32 %v7578, %v7601
  %v7615 = vadd.f32 %v7579, %v7605
  %v7616 = vadd.f32 %v7580, %v7589
  %v7617 = vadd.f32 %v7581, %v7593
  %v7618 = vadd.f32 %v7582, %v7597
  %v7619 = vadd.f32 %v7583, %v7601
  %v7620 = vadd.f32 %v7584, %v7605
  %v7621 = vxor.u32 %v7611, 2147483648
  %v7622 = vxor.u32 %v7612, 2147483648
  %v7623 = vxor.u32 %v7613, 2147483648
  %v7624 = vxor.u32 %v7614, 2147483648
  %v7625 = vxor.u32 %v7615, 2147483648
  %v7626 = vxor.u32 %v7616, 2147483648
  %v7627 = vxor.u32 %v7617, 2147483648
  %v7628 = vxor.u32 %v7618, 2147483648
  %v7629 = vxor.u32 %v7619, 2147483648
  %v7630 = vxor.u32 %v7620, 2147483648
  %v7631 = vmul.f32 %v7621, 1.442695
  %v7632 = vpow.pop %v7631
  %v7633 = vmul.f32 %v7622, 1.442695
  %v7634 = vpow.pop %v7633
  %v7635 = vmul.f32 %v7623, 1.442695
  %v7636 = vpow.pop %v7635
  %v7637 = vmul.f32 %v7624, 1.442695
  %v7638 = vpow.pop %v7637
  %v7639 = vmul.f32 %v7625, 1.442695
  %v7640 = vpow.pop %v7639
  %v7641 = vmul.f32 %v7626, 1.442695
  %v7642 = vpow.pop %v7641
  %v7643 = vmul.f32 %v7627, 1.442695
  %v7644 = vpow.pop %v7643
  %v7645 = vmul.f32 %v7628, 1.442695
  %v7646 = vpow.pop %v7645
  %v7647 = vmul.f32 %v7629, 1.442695
  %v7648 = vpow.pop %v7647
  %v7649 = vmul.f32 %v7630, 1.442695
  %v7650 = vpow.pop %v7649
  %v7651 = vadd.f32 %v7632, 1.0
  %v7652 = vadd.f32 %v7634, 1.0
  %v7653 = vadd.f32 %v7636, 1.0
  %v7654 = vadd.f32 %v7638, 1.0
  %v7655 = vadd.f32 %v7640, 1.0
  %v7656 = vadd.f32 %v7642, 1.0
  %v7657 = vadd.f32 %v7644, 1.0
  %v7658 = vadd.f32 %v7646, 1.0
  %v7659 = vadd.f32 %v7648, 1.0
  %v7660 = vadd.f32 %v7650, 1.0
  %v7661 = vrcp.pop %v7651
  %v7662 = vmul.f32 1.0, %v7661
  %v7663 = vrcp.pop %v7652
  %v7664 = vmul.f32 1.0, %v7663
  %v7665 = vrcp.pop %v7653
  %v7666 = vmul.f32 1.0, %v7665
  %v7667 = vrcp.pop %v7654
  %v7668 = vmul.f32 1.0, %v7667
  %v7669 = vrcp.pop %v7655
  %v7670 = vmul.f32 1.0, %v7669
  %v7671 = vrcp.pop %v7656
  %v7672 = vmul.f32 1.0, %v7671
  %v7673 = vrcp.pop %v7657
  %v7674 = vmul.f32 1.0, %v7673
  %v7675 = vrcp.pop %v7658
  %v7676 = vmul.f32 1.0, %v7675
  %v7677 = vrcp.pop %v7659
  %v7678 = vmul.f32 1.0, %v7677
  %v7679 = vrcp.pop %v7660
  %v7680 = vmul.f32 1.0, %v7679
  %v7681 = vmul.f32 %v7611, %v7662
  %v7682 = vmul.f32 %v7612, %v7664
  %v7683 = vmul.f32 %v7613, %v7666
  %v7684 = vmul.f32 %v7614, %v7668
  %v7685 = vmul.f32 %v7615, %v7670
  %v7686 = vmul.f32 %v7616, %v7672
  %v7687 = vmul.f32 %v7617, %v7674
  %v7688 = vmul.f32 %v7618, %v7676
  %v7689 = vmul.f32 %v7619, %v7678
  %v7690 = vmul.f32 %v7620, %v7680
  // Predicated region
  $region266: #{encoder2_forward.1} parent=0 // pred_check
    %p7691 = pneg %p37
  $region267: #{encoder2_forward.1} parent=0 // pred_check_branch
    %7693 = sbr.rel (%p7691) target = $region269
  $region268: #{encoder2_forward.1} parent=0 // pred_region
    %s7694 = scalar_lea.sflag [#allocation9], 5
    %s7695 = smul.u32 2, 160
    %s7696 = smul.u32 %s7695, 6
    %s7697 = sshll.u32 %s7696, 4
    %7698 = dma.done %s7694, %s7697
  $region269: #{encoder2_forward.1} parent=0 // pred_fallthru
    _
  %v7699 = vld [vmem:[#allocation7] sm:$0xff]
  %v7700 = vld [vmem:[#allocation7 + $0x8] sm:$0xff]
  %v7701 = vld [vmem:[#allocation7 + $0x10] sm:$0xff]
  %v7702 = vld [vmem:[#allocation7 + $0x18] sm:$0xff]
  %v7703 = vld [vmem:[#allocation7 + $0x20] sm:$0xff]
  %v7704 = vld [vmem:[#allocation7 + $0x28] sm:$0xff]
  %v7705 = vld [vmem:[#allocation7 + $0x30] sm:$0xff]
  %v7706 = vld [vmem:[#allocation7 + $0x38] sm:$0xff]
  %v7707 = vld [vmem:[#allocation7 + $0x40] sm:$0xff]
  %v7708 = vld [vmem:[#allocation7 + $0x48] sm:$0xff]
  %v7709 = vld [vmem:[#allocation7 + $0x50] sm:$0xff]
  %v7710 = vld [vmem:[#allocation7 + $0x58] sm:$0xff]
  %v7711 = vld [vmem:[#allocation7 + $0x60] sm:$0xff]
  %v7712 = vld [vmem:[#allocation7 + $0x68] sm:$0xff]
  %v7713 = vld [vmem:[#allocation7 + $0x70] sm:$0xff]
  %v7714 = vld [vmem:[#allocation7 + $0x78] sm:$0xff]
  %v7715 = vld [vmem:[#allocation7 + $0x80] sm:$0xff]
  %v7716 = vld [vmem:[#allocation7 + $0x88] sm:$0xff]
  %v7717 = vld [vmem:[#allocation7 + $0x90] sm:$0xff]
  %v7718 = vld [vmem:[#allocation7 + $0x98] sm:$0xff]
  %v7719 = vld [vmem:[#allocation7 + $0xa0] sm:$0xff]
  %v7720 = vld [vmem:[#allocation7 + $0xa8] sm:$0xff]
  %v7721 = vld [vmem:[#allocation7 + $0xb0] sm:$0xff]
  %v7722 = vld [vmem:[#allocation7 + $0xb8] sm:$0xff]
  %v7723 = vld [vmem:[#allocation7 + $0xc0] sm:$0xff]
  %v7724 = vld [vmem:[#allocation7 + $0xc8] sm:$0xff]
  %v7725 = vld [vmem:[#allocation7 + $0xd0] sm:$0xff]
  %v7726 = vld [vmem:[#allocation7 + $0xd8] sm:$0xff]
  %v7727 = vld [vmem:[#allocation7 + $0xe0] sm:$0xff]
  %v7728 = vld [vmem:[#allocation7 + $0xe8] sm:$0xff]
  %v7729 = vld [vmem:[#allocation7 + $0xf0] sm:$0xff]
  %v7730 = vld [vmem:[#allocation7 + $0xf8] sm:$0xff]
  %v7731 = vld [vmem:[#allocation7 + $0x100] sm:$0xff]
  %v7732 = vld [vmem:[#allocation7 + $0x108] sm:$0xff]
  %v7733 = vld [vmem:[#allocation7 + $0x110] sm:$0xff]
  %v7734 = vld [vmem:[#allocation7 + $0x118] sm:$0xff]
  %v7735 = vld [vmem:[#allocation7 + $0x120] sm:$0xff]
  %v7736 = vld [vmem:[#allocation7 + $0x128] sm:$0xff]
  %v7737 = vld [vmem:[#allocation7 + $0x130] sm:$0xff]
  %v7738 = vld [vmem:[#allocation7 + $0x138] sm:$0xff]
  %v7739 = vld [vmem:[#allocation7 + $0x140] sm:$0xff]
  %v7740 = vld [vmem:[#allocation7 + $0x148] sm:$0xff]
  %v7741 = vld [vmem:[#allocation7 + $0x150] sm:$0xff]
  %v7742 = vld [vmem:[#allocation7 + $0x158] sm:$0xff]
  %v7743 = vld [vmem:[#allocation7 + $0x160] sm:$0xff]
  %v7744 = vld [vmem:[#allocation7 + $0x168] sm:$0xff]
  %v7745 = vld [vmem:[#allocation7 + $0x170] sm:$0xff]
  %v7746 = vld [vmem:[#allocation7 + $0x178] sm:$0xff]
  %v7747 = vld [vmem:[#allocation7 + $0x180] sm:$0xff]
  %v7748 = vld [vmem:[#allocation7 + $0x188] sm:$0xff]
  %v7749 = vld [vmem:[#allocation7 + $0x190] sm:$0xff]
  %v7750 = vld [vmem:[#allocation7 + $0x198] sm:$0xff]
  %v7751 = vld [vmem:[#allocation7 + $0x1a0] sm:$0xff]
  %v7752 = vld [vmem:[#allocation7 + $0x1a8] sm:$0xff]
  %v7753 = vld [vmem:[#allocation7 + $0x1b0] sm:$0xff]
  %v7754 = vld [vmem:[#allocation7 + $0x1b8] sm:$0xff]
  %v7755 = vld [vmem:[#allocation7 + $0x1c0] sm:$0xff]
  %v7756 = vld [vmem:[#allocation7 + $0x1c8] sm:$0xff]
  %v7757 = vld [vmem:[#allocation7 + $0x1d0] sm:$0xff]
  %v7758 = vld [vmem:[#allocation7 + $0x1d8] sm:$0xff]
  %v7759 = vld [vmem:[#allocation7 + $0x1e0] sm:$0xff]
  %v7760 = vld [vmem:[#allocation7 + $0x1e8] sm:$0xff]
  %v7761 = vld [vmem:[#allocation7 + $0x1f0] sm:$0xff]
  %v7762 = vld [vmem:[#allocation7 + $0x1f8] sm:$0xff]
  %v7763 = vld [vmem:[#allocation7 + $0x200] sm:$0xff]
  %v7764 = vld [vmem:[#allocation7 + $0x208] sm:$0xff]
  %v7765 = vld [vmem:[#allocation7 + $0x210] sm:$0xff]
  %v7766 = vld [vmem:[#allocation7 + $0x218] sm:$0xff]
  %v7767 = vld [vmem:[#allocation7 + $0x220] sm:$0xff]
  %v7768 = vld [vmem:[#allocation7 + $0x228] sm:$0xff]
  %v7769 = vld [vmem:[#allocation7 + $0x230] sm:$0xff]
  %v7770 = vld [vmem:[#allocation7 + $0x238] sm:$0xff]
  %v7771 = vld [vmem:[#allocation7 + $0x240] sm:$0xff]
  %v7772 = vld [vmem:[#allocation7 + $0x248] sm:$0xff]
  %v7773 = vld [vmem:[#allocation7 + $0x250] sm:$0xff]
  %v7774 = vld [vmem:[#allocation7 + $0x258] sm:$0xff]
  %v7775 = vld [vmem:[#allocation7 + $0x260] sm:$0xff]
  %v7776 = vld [vmem:[#allocation7 + $0x268] sm:$0xff]
  %v7777 = vld [vmem:[#allocation7 + $0x270] sm:$0xff]
  %v7778 = vld [vmem:[#allocation7 + $0x278] sm:$0xff]
  %v7779 = vld [vmem:[#allocation7 + $0x280] sm:$0xff]
  %v7780 = vld [vmem:[#allocation7 + $0x288] sm:$0xff]
  %v7781 = vld [vmem:[#allocation7 + $0x290] sm:$0xff]
  %v7782 = vld [vmem:[#allocation7 + $0x298] sm:$0xff]
  %v7783 = vld [vmem:[#allocation7 + $0x2a0] sm:$0xff]
  %v7784 = vld [vmem:[#allocation7 + $0x2a8] sm:$0xff]
  %v7785 = vld [vmem:[#allocation7 + $0x2b0] sm:$0xff]
  %v7786 = vld [vmem:[#allocation7 + $0x2b8] sm:$0xff]
  %v7787 = vld [vmem:[#allocation7 + $0x2c0] sm:$0xff]
  %v7788 = vld [vmem:[#allocation7 + $0x2c8] sm:$0xff]
  %v7789 = vld [vmem:[#allocation7 + $0x2d0] sm:$0xff]
  %v7790 = vld [vmem:[#allocation7 + $0x2d8] sm:$0xff]
  %v7791 = vld [vmem:[#allocation7 + $0x2e0] sm:$0xff]
  %v7792 = vld [vmem:[#allocation7 + $0x2e8] sm:$0xff]
  %v7793 = vld [vmem:[#allocation7 + $0x2f0] sm:$0xff]
  %v7794 = vld [vmem:[#allocation7 + $0x2f8] sm:$0xff]
  %v7795 = vld [vmem:[#allocation7 + $0x300] sm:$0xff]
  %v7796 = vld [vmem:[#allocation7 + $0x308] sm:$0xff]
  %v7797 = vld [vmem:[#allocation7 + $0x310] sm:$0xff]
  %v7798 = vld [vmem:[#allocation7 + $0x318] sm:$0xff]
  %v7799 = vld [vmem:[#allocation7 + $0x320] sm:$0xff]
  %v7800 = vld [vmem:[#allocation7 + $0x328] sm:$0xff]
  %v7801 = vld [vmem:[#allocation7 + $0x330] sm:$0xff]
  %v7802 = vld [vmem:[#allocation7 + $0x338] sm:$0xff]
  %v7803 = vld [vmem:[#allocation7 + $0x340] sm:$0xff]
  %v7804 = vld [vmem:[#allocation7 + $0x348] sm:$0xff]
  %v7805 = vld [vmem:[#allocation7 + $0x350] sm:$0xff]
  %v7806 = vld [vmem:[#allocation7 + $0x358] sm:$0xff]
  %v7807 = vld [vmem:[#allocation7 + $0x360] sm:$0xff]
  %v7808 = vld [vmem:[#allocation7 + $0x368] sm:$0xff]
  %v7809 = vld [vmem:[#allocation7 + $0x370] sm:$0xff]
  %v7810 = vld [vmem:[#allocation7 + $0x378] sm:$0xff]
  %v7811 = vld [vmem:[#allocation7 + $0x380] sm:$0xff]
  %v7812 = vld [vmem:[#allocation7 + $0x388] sm:$0xff]
  %v7813 = vld [vmem:[#allocation7 + $0x390] sm:$0xff]
  %v7814 = vld [vmem:[#allocation7 + $0x398] sm:$0xff]
  %v7815 = vld [vmem:[#allocation7 + $0x3a0] sm:$0xff]
  %v7816 = vld [vmem:[#allocation7 + $0x3a8] sm:$0xff]
  %v7817 = vld [vmem:[#allocation7 + $0x3b0] sm:$0xff]
  %v7818 = vld [vmem:[#allocation7 + $0x3b8] sm:$0xff]
  %v7819 = vld [vmem:[#allocation7 + $0x3c0] sm:$0xff]
  %v7820 = vld [vmem:[#allocation7 + $0x3c8] sm:$0xff]
  %v7821 = vld [vmem:[#allocation7 + $0x3d0] sm:$0xff]
  %v7822 = vld [vmem:[#allocation7 + $0x3d8] sm:$0xff]
  %v7823 = vld [vmem:[#allocation7 + $0x3e0] sm:$0xff]
  %v7824 = vld [vmem:[#allocation7 + $0x3e8] sm:$0xff]
  %v7825 = vld [vmem:[#allocation7 + $0x3f0] sm:$0xff]
  %v7826 = vld [vmem:[#allocation7 + $0x3f8] sm:$0xff]
  %v7827 = vld [vmem:[#allocation7 + $0x400] sm:$0xff]
  %v7828 = vld [vmem:[#allocation7 + $0x408] sm:$0xff]
  %v7829 = vld [vmem:[#allocation7 + $0x410] sm:$0xff]
  %v7830 = vld [vmem:[#allocation7 + $0x418] sm:$0xff]
  %v7831 = vld [vmem:[#allocation7 + $0x420] sm:$0xff]
  %v7832 = vld [vmem:[#allocation7 + $0x428] sm:$0xff]
  %v7833 = vld [vmem:[#allocation7 + $0x430] sm:$0xff]
  %v7834 = vld [vmem:[#allocation7 + $0x438] sm:$0xff]
  %v7835 = vld [vmem:[#allocation7 + $0x440] sm:$0xff]
  %v7836 = vld [vmem:[#allocation7 + $0x448] sm:$0xff]
  %v7837 = vld [vmem:[#allocation7 + $0x450] sm:$0xff]
  %v7838 = vld [vmem:[#allocation7 + $0x458] sm:$0xff]
  %v7839 = vld [vmem:[#allocation7 + $0x460] sm:$0xff]
  %v7840 = vld [vmem:[#allocation7 + $0x468] sm:$0xff]
  %v7841 = vld [vmem:[#allocation7 + $0x470] sm:$0xff]
  %v7842 = vld [vmem:[#allocation7 + $0x478] sm:$0xff]
  %v7843 = vld [vmem:[#allocation7 + $0x480] sm:$0xff]
  %v7844 = vld [vmem:[#allocation7 + $0x488] sm:$0xff]
  %v7845 = vld [vmem:[#allocation7 + $0x490] sm:$0xff]
  %v7846 = vld [vmem:[#allocation7 + $0x498] sm:$0xff]
  %v7847 = vld [vmem:[#allocation7 + $0x4a0] sm:$0xff]
  %v7848 = vld [vmem:[#allocation7 + $0x4a8] sm:$0xff]
  %v7849 = vld [vmem:[#allocation7 + $0x4b0] sm:$0xff]
  %v7850 = vld [vmem:[#allocation7 + $0x4b8] sm:$0xff]
  %v7851 = vld [vmem:[#allocation7 + $0x4c0] sm:$0xff]
  %v7852 = vld [vmem:[#allocation7 + $0x4c8] sm:$0xff]
  %v7853 = vld [vmem:[#allocation7 + $0x4d0] sm:$0xff]
  %v7854 = vld [vmem:[#allocation7 + $0x4d8] sm:$0xff]
  %v7855 = vld [vmem:[#allocation7 + $0x4e0] sm:$0xff]
  %v7856 = vld [vmem:[#allocation7 + $0x4e8] sm:$0xff]
  %v7857 = vld [vmem:[#allocation7 + $0x4f0] sm:$0xff]
  %v7858 = vld [vmem:[#allocation7 + $0x4f8] sm:$0xff]
  %v7859 = vld [vmem:[#allocation7 + $0x500] sm:$0xff]
  %v7860 = vld [vmem:[#allocation7 + $0x508] sm:$0xff]
  %v7861 = vld [vmem:[#allocation7 + $0x510] sm:$0xff]
  %v7862 = vld [vmem:[#allocation7 + $0x518] sm:$0xff]
  %v7863 = vld [vmem:[#allocation7 + $0x520] sm:$0xff]
  %v7864 = vld [vmem:[#allocation7 + $0x528] sm:$0xff]
  %v7865 = vld [vmem:[#allocation7 + $0x530] sm:$0xff]
  %v7866 = vld [vmem:[#allocation7 + $0x538] sm:$0xff]
  %v7867 = vld [vmem:[#allocation7 + $0x540] sm:$0xff]
  %v7868 = vld [vmem:[#allocation7 + $0x548] sm:$0xff]
  %v7869 = vld [vmem:[#allocation7 + $0x550] sm:$0xff]
  %v7870 = vld [vmem:[#allocation7 + $0x558] sm:$0xff]
  %v7871 = vld [vmem:[#allocation7 + $0x560] sm:$0xff]
  %v7872 = vld [vmem:[#allocation7 + $0x568] sm:$0xff]
  %v7873 = vld [vmem:[#allocation7 + $0x570] sm:$0xff]
  %v7874 = vld [vmem:[#allocation7 + $0x578] sm:$0xff]
  %v7875 = vld [vmem:[#allocation7 + $0x580] sm:$0xff]
  %v7876 = vld [vmem:[#allocation7 + $0x588] sm:$0xff]
  %v7877 = vld [vmem:[#allocation7 + $0x590] sm:$0xff]
  %v7878 = vld [vmem:[#allocation7 + $0x598] sm:$0xff]
  %v7879 = vld [vmem:[#allocation7 + $0x5a0] sm:$0xff]
  %v7880 = vld [vmem:[#allocation7 + $0x5a8] sm:$0xff]
  %v7881 = vld [vmem:[#allocation7 + $0x5b0] sm:$0xff]
  %v7882 = vld [vmem:[#allocation7 + $0x5b8] sm:$0xff]
  %v7883 = vld [vmem:[#allocation7 + $0x5c0] sm:$0xff]
  %v7884 = vld [vmem:[#allocation7 + $0x5c8] sm:$0xff]
  %v7885 = vld [vmem:[#allocation7 + $0x5d0] sm:$0xff]
  %v7886 = vld [vmem:[#allocation7 + $0x5d8] sm:$0xff]
  %v7887 = vld [vmem:[#allocation7 + $0x5e0] sm:$0xff]
  %v7888 = vld [vmem:[#allocation7 + $0x5e8] sm:$0xff]
  %v7889 = vld [vmem:[#allocation7 + $0x5f0] sm:$0xff]
  %v7890 = vld [vmem:[#allocation7 + $0x5f8] sm:$0xff]
  %v7891 = vld [vmem:[#allocation7 + $0x600] sm:$0xff]
  %v7892 = vld [vmem:[#allocation7 + $0x608] sm:$0xff]
  %v7893 = vld [vmem:[#allocation7 + $0x610] sm:$0xff]
  %v7894 = vld [vmem:[#allocation7 + $0x618] sm:$0xff]
  %v7895 = vld [vmem:[#allocation7 + $0x620] sm:$0xff]
  %v7896 = vld [vmem:[#allocation7 + $0x628] sm:$0xff]
  %v7897 = vld [vmem:[#allocation7 + $0x630] sm:$0xff]
  %v7898 = vld [vmem:[#allocation7 + $0x638] sm:$0xff]
  %v7899 = vld [vmem:[#allocation7 + $0x640] sm:$0xff]
  %v7900 = vld [vmem:[#allocation7 + $0x648] sm:$0xff]
  %v7901 = vld [vmem:[#allocation7 + $0x650] sm:$0xff]
  %v7902 = vld [vmem:[#allocation7 + $0x658] sm:$0xff]
  %v7903 = vld [vmem:[#allocation7 + $0x660] sm:$0xff]
  %v7904 = vld [vmem:[#allocation7 + $0x668] sm:$0xff]
  %v7905 = vld [vmem:[#allocation7 + $0x670] sm:$0xff]
  %v7906 = vld [vmem:[#allocation7 + $0x678] sm:$0xff]
  %v7907 = vld [vmem:[#allocation7 + $0x680] sm:$0xff]
  %v7908 = vld [vmem:[#allocation7 + $0x688] sm:$0xff]
  %v7909 = vld [vmem:[#allocation7 + $0x690] sm:$0xff]
  %v7910 = vld [vmem:[#allocation7 + $0x698] sm:$0xff]
  %v7911 = vld [vmem:[#allocation7 + $0x6a0] sm:$0xff]
  %v7912 = vld [vmem:[#allocation7 + $0x6a8] sm:$0xff]
  %v7913 = vld [vmem:[#allocation7 + $0x6b0] sm:$0xff]
  %v7914 = vld [vmem:[#allocation7 + $0x6b8] sm:$0xff]
  %v7915 = vld [vmem:[#allocation7 + $0x6c0] sm:$0xff]
  %v7916 = vld [vmem:[#allocation7 + $0x6c8] sm:$0xff]
  %v7917 = vld [vmem:[#allocation7 + $0x6d0] sm:$0xff]
  %v7918 = vld [vmem:[#allocation7 + $0x6d8] sm:$0xff]
  %v7919 = vld [vmem:[#allocation7 + $0x6e0] sm:$0xff]
  %v7920 = vld [vmem:[#allocation7 + $0x6e8] sm:$0xff]
  %v7921 = vld [vmem:[#allocation7 + $0x6f0] sm:$0xff]
  %v7922 = vld [vmem:[#allocation7 + $0x6f8] sm:$0xff]
  %v7923 = vld [vmem:[#allocation7 + $0x700] sm:$0xff]
  %v7924 = vld [vmem:[#allocation7 + $0x708] sm:$0xff]
  %v7925 = vld [vmem:[#allocation7 + $0x710] sm:$0xff]
  %v7926 = vld [vmem:[#allocation7 + $0x718] sm:$0xff]
  %v7927 = vld [vmem:[#allocation7 + $0x720] sm:$0xff]
  %v7928 = vld [vmem:[#allocation7 + $0x728] sm:$0xff]
  %v7929 = vld [vmem:[#allocation7 + $0x730] sm:$0xff]
  %v7930 = vld [vmem:[#allocation7 + $0x738] sm:$0xff]
  %v7931 = vld [vmem:[#allocation7 + $0x740] sm:$0xff]
  %v7932 = vld [vmem:[#allocation7 + $0x748] sm:$0xff]
  %v7933 = vld [vmem:[#allocation7 + $0x750] sm:$0xff]
  %v7934 = vld [vmem:[#allocation7 + $0x758] sm:$0xff]
  %v7935 = vld [vmem:[#allocation7 + $0x760] sm:$0xff]
  %v7936 = vld [vmem:[#allocation7 + $0x768] sm:$0xff]
  %v7937 = vld [vmem:[#allocation7 + $0x770] sm:$0xff]
  %v7938 = vld [vmem:[#allocation7 + $0x778] sm:$0xff]
  %v7939 = vunpack.c.l.s8.bf16 %v7699
  %v7940 = vunpack.c.l.s8.bf16 %v7700
  %v7941 = vunpack.c.l.s8.bf16 %v7701
  %v7942 = vunpack.c.l.s8.bf16 %v7702
  %v7943 = vunpack.c.l.s8.bf16 %v7703
  %v7944 = vunpack.c.l.s8.bf16 %v7704
  %v7945 = vunpack.c.h.s8.bf16 %v7699
  %v7946 = vunpack.c.h.s8.bf16 %v7700
  %v7947 = vunpack.c.h.s8.bf16 %v7701
  %v7948 = vunpack.c.h.s8.bf16 %v7702
  %v7949 = vunpack.c.h.s8.bf16 %v7703
  %v7950 = vunpack.c.h.s8.bf16 %v7704
  %v7951 = vunpack.c.l.s8.bf16 %v7705
  %v7952 = vunpack.c.l.s8.bf16 %v7706
  %v7953 = vunpack.c.l.s8.bf16 %v7707
  %v7954 = vunpack.c.l.s8.bf16 %v7708
  %v7955 = vunpack.c.l.s8.bf16 %v7709
  %v7956 = vunpack.c.l.s8.bf16 %v7710
  %v7957 = vunpack.c.h.s8.bf16 %v7705
  %v7958 = vunpack.c.h.s8.bf16 %v7706
  %v7959 = vunpack.c.h.s8.bf16 %v7707
  %v7960 = vunpack.c.h.s8.bf16 %v7708
  %v7961 = vunpack.c.h.s8.bf16 %v7709
  %v7962 = vunpack.c.h.s8.bf16 %v7710
  %v7963 = vunpack.c.l.s8.bf16 %v7711
  %v7964 = vunpack.c.l.s8.bf16 %v7712
  %v7965 = vunpack.c.l.s8.bf16 %v7713
  %v7966 = vunpack.c.l.s8.bf16 %v7714
  %v7967 = vunpack.c.l.s8.bf16 %v7715
  %v7968 = vunpack.c.l.s8.bf16 %v7716
  %v7969 = vunpack.c.h.s8.bf16 %v7711
  %v7970 = vunpack.c.h.s8.bf16 %v7712
  %v7971 = vunpack.c.h.s8.bf16 %v7713
  %v7972 = vunpack.c.h.s8.bf16 %v7714
  %v7973 = vunpack.c.h.s8.bf16 %v7715
  %v7974 = vunpack.c.h.s8.bf16 %v7716
  %v7975 = vunpack.c.l.s8.bf16 %v7717
  %v7976 = vunpack.c.l.s8.bf16 %v7718
  %v7977 = vunpack.c.l.s8.bf16 %v7719
  %v7978 = vunpack.c.l.s8.bf16 %v7720
  %v7979 = vunpack.c.l.s8.bf16 %v7721
  %v7980 = vunpack.c.l.s8.bf16 %v7722
  %v7981 = vunpack.c.h.s8.bf16 %v7717
  %v7982 = vunpack.c.h.s8.bf16 %v7718
  %v7983 = vunpack.c.h.s8.bf16 %v7719
  %v7984 = vunpack.c.h.s8.bf16 %v7720
  %v7985 = vunpack.c.h.s8.bf16 %v7721
  %v7986 = vunpack.c.h.s8.bf16 %v7722
  %v7987 = vunpack.c.l.s8.bf16 %v7723
  %v7988 = vunpack.c.l.s8.bf16 %v7724
  %v7989 = vunpack.c.l.s8.bf16 %v7725
  %v7990 = vunpack.c.l.s8.bf16 %v7726
  %v7991 = vunpack.c.l.s8.bf16 %v7727
  %v7992 = vunpack.c.l.s8.bf16 %v7728
  %v7993 = vunpack.c.h.s8.bf16 %v7723
  %v7994 = vunpack.c.h.s8.bf16 %v7724
  %v7995 = vunpack.c.h.s8.bf16 %v7725
  %v7996 = vunpack.c.h.s8.bf16 %v7726
  %v7997 = vunpack.c.h.s8.bf16 %v7727
  %v7998 = vunpack.c.h.s8.bf16 %v7728
  %v7999 = vunpack.c.l.s8.bf16 %v7729
  %v8000 = vunpack.c.l.s8.bf16 %v7730
  %v8001 = vunpack.c.l.s8.bf16 %v7731
  %v8002 = vunpack.c.l.s8.bf16 %v7732
  %v8003 = vunpack.c.l.s8.bf16 %v7733
  %v8004 = vunpack.c.l.s8.bf16 %v7734
  %v8005 = vunpack.c.h.s8.bf16 %v7729
  %v8006 = vunpack.c.h.s8.bf16 %v7730
  %v8007 = vunpack.c.h.s8.bf16 %v7731
  %v8008 = vunpack.c.h.s8.bf16 %v7732
  %v8009 = vunpack.c.h.s8.bf16 %v7733
  %v8010 = vunpack.c.h.s8.bf16 %v7734
  %v8011 = vunpack.c.l.s8.bf16 %v7735
  %v8012 = vunpack.c.l.s8.bf16 %v7736
  %v8013 = vunpack.c.l.s8.bf16 %v7737
  %v8014 = vunpack.c.l.s8.bf16 %v7738
  %v8015 = vunpack.c.l.s8.bf16 %v7739
  %v8016 = vunpack.c.l.s8.bf16 %v7740
  %v8017 = vunpack.c.h.s8.bf16 %v7735
  %v8018 = vunpack.c.h.s8.bf16 %v7736
  %v8019 = vunpack.c.h.s8.bf16 %v7737
  %v8020 = vunpack.c.h.s8.bf16 %v7738
  %v8021 = vunpack.c.h.s8.bf16 %v7739
  %v8022 = vunpack.c.h.s8.bf16 %v7740
  %v8023 = vunpack.c.l.s8.bf16 %v7741
  %v8024 = vunpack.c.l.s8.bf16 %v7742
  %v8025 = vunpack.c.l.s8.bf16 %v7743
  %v8026 = vunpack.c.l.s8.bf16 %v7744
  %v8027 = vunpack.c.l.s8.bf16 %v7745
  %v8028 = vunpack.c.l.s8.bf16 %v7746
  %v8029 = vunpack.c.h.s8.bf16 %v7741
  %v8030 = vunpack.c.h.s8.bf16 %v7742
  %v8031 = vunpack.c.h.s8.bf16 %v7743
  %v8032 = vunpack.c.h.s8.bf16 %v7744
  %v8033 = vunpack.c.h.s8.bf16 %v7745
  %v8034 = vunpack.c.h.s8.bf16 %v7746
  %v8035 = vunpack.c.l.s8.bf16 %v7747
  %v8036 = vunpack.c.l.s8.bf16 %v7748
  %v8037 = vunpack.c.l.s8.bf16 %v7749
  %v8038 = vunpack.c.l.s8.bf16 %v7750
  %v8039 = vunpack.c.l.s8.bf16 %v7751
  %v8040 = vunpack.c.l.s8.bf16 %v7752
  %v8041 = vunpack.c.h.s8.bf16 %v7747
  %v8042 = vunpack.c.h.s8.bf16 %v7748
  %v8043 = vunpack.c.h.s8.bf16 %v7749
  %v8044 = vunpack.c.h.s8.bf16 %v7750
  %v8045 = vunpack.c.h.s8.bf16 %v7751
  %v8046 = vunpack.c.h.s8.bf16 %v7752
  %v8047 = vunpack.c.l.s8.bf16 %v7753
  %v8048 = vunpack.c.l.s8.bf16 %v7754
  %v8049 = vunpack.c.l.s8.bf16 %v7755
  %v8050 = vunpack.c.l.s8.bf16 %v7756
  %v8051 = vunpack.c.l.s8.bf16 %v7757
  %v8052 = vunpack.c.l.s8.bf16 %v7758
  %v8053 = vunpack.c.h.s8.bf16 %v7753
  %v8054 = vunpack.c.h.s8.bf16 %v7754
  %v8055 = vunpack.c.h.s8.bf16 %v7755
  %v8056 = vunpack.c.h.s8.bf16 %v7756
  %v8057 = vunpack.c.h.s8.bf16 %v7757
  %v8058 = vunpack.c.h.s8.bf16 %v7758
  %v8059 = vunpack.c.l.s8.bf16 %v7759
  %v8060 = vunpack.c.l.s8.bf16 %v7760
  %v8061 = vunpack.c.l.s8.bf16 %v7761
  %v8062 = vunpack.c.l.s8.bf16 %v7762
  %v8063 = vunpack.c.l.s8.bf16 %v7763
  %v8064 = vunpack.c.l.s8.bf16 %v7764
  %v8065 = vunpack.c.h.s8.bf16 %v7759
  %v8066 = vunpack.c.h.s8.bf16 %v7760
  %v8067 = vunpack.c.h.s8.bf16 %v7761
  %v8068 = vunpack.c.h.s8.bf16 %v7762
  %v8069 = vunpack.c.h.s8.bf16 %v7763
  %v8070 = vunpack.c.h.s8.bf16 %v7764
  %v8071 = vunpack.c.l.s8.bf16 %v7765
  %v8072 = vunpack.c.l.s8.bf16 %v7766
  %v8073 = vunpack.c.l.s8.bf16 %v7767
  %v8074 = vunpack.c.l.s8.bf16 %v7768
  %v8075 = vunpack.c.l.s8.bf16 %v7769
  %v8076 = vunpack.c.l.s8.bf16 %v7770
  %v8077 = vunpack.c.h.s8.bf16 %v7765
  %v8078 = vunpack.c.h.s8.bf16 %v7766
  %v8079 = vunpack.c.h.s8.bf16 %v7767
  %v8080 = vunpack.c.h.s8.bf16 %v7768
  %v8081 = vunpack.c.h.s8.bf16 %v7769
  %v8082 = vunpack.c.h.s8.bf16 %v7770
  %v8083 = vunpack.c.l.s8.bf16 %v7771
  %v8084 = vunpack.c.l.s8.bf16 %v7772
  %v8085 = vunpack.c.l.s8.bf16 %v7773
  %v8086 = vunpack.c.l.s8.bf16 %v7774
  %v8087 = vunpack.c.l.s8.bf16 %v7775
  %v8088 = vunpack.c.l.s8.bf16 %v7776
  %v8089 = vunpack.c.h.s8.bf16 %v7771
  %v8090 = vunpack.c.h.s8.bf16 %v7772
  %v8091 = vunpack.c.h.s8.bf16 %v7773
  %v8092 = vunpack.c.h.s8.bf16 %v7774
  %v8093 = vunpack.c.h.s8.bf16 %v7775
  %v8094 = vunpack.c.h.s8.bf16 %v7776
  %v8095 = vunpack.c.l.s8.bf16 %v7777
  %v8096 = vunpack.c.l.s8.bf16 %v7778
  %v8097 = vunpack.c.l.s8.bf16 %v7779
  %v8098 = vunpack.c.l.s8.bf16 %v7780
  %v8099 = vunpack.c.l.s8.bf16 %v7781
  %v8100 = vunpack.c.l.s8.bf16 %v7782
  %v8101 = vunpack.c.h.s8.bf16 %v7777
  %v8102 = vunpack.c.h.s8.bf16 %v7778
  %v8103 = vunpack.c.h.s8.bf16 %v7779
  %v8104 = vunpack.c.h.s8.bf16 %v7780
  %v8105 = vunpack.c.h.s8.bf16 %v7781
  %v8106 = vunpack.c.h.s8.bf16 %v7782
  %v8107 = vunpack.c.l.s8.bf16 %v7783
  %v8108 = vunpack.c.l.s8.bf16 %v7784
  %v8109 = vunpack.c.l.s8.bf16 %v7785
  %v8110 = vunpack.c.l.s8.bf16 %v7786
  %v8111 = vunpack.c.l.s8.bf16 %v7787
  %v8112 = vunpack.c.l.s8.bf16 %v7788
  %v8113 = vunpack.c.h.s8.bf16 %v7783
  %v8114 = vunpack.c.h.s8.bf16 %v7784
  %v8115 = vunpack.c.h.s8.bf16 %v7785
  %v8116 = vunpack.c.h.s8.bf16 %v7786
  %v8117 = vunpack.c.h.s8.bf16 %v7787
  %v8118 = vunpack.c.h.s8.bf16 %v7788
  %v8119 = vunpack.c.l.s8.bf16 %v7789
  %v8120 = vunpack.c.l.s8.bf16 %v7790
  %v8121 = vunpack.c.l.s8.bf16 %v7791
  %v8122 = vunpack.c.l.s8.bf16 %v7792
  %v8123 = vunpack.c.l.s8.bf16 %v7793
  %v8124 = vunpack.c.l.s8.bf16 %v7794
  %v8125 = vunpack.c.h.s8.bf16 %v7789
  %v8126 = vunpack.c.h.s8.bf16 %v7790
  %v8127 = vunpack.c.h.s8.bf16 %v7791
  %v8128 = vunpack.c.h.s8.bf16 %v7792
  %v8129 = vunpack.c.h.s8.bf16 %v7793
  %v8130 = vunpack.c.h.s8.bf16 %v7794
  %v8131 = vunpack.c.l.s8.bf16 %v7795
  %v8132 = vunpack.c.l.s8.bf16 %v7796
  %v8133 = vunpack.c.l.s8.bf16 %v7797
  %v8134 = vunpack.c.l.s8.bf16 %v7798
  %v8135 = vunpack.c.l.s8.bf16 %v7799
  %v8136 = vunpack.c.l.s8.bf16 %v7800
  %v8137 = vunpack.c.h.s8.bf16 %v7795
  %v8138 = vunpack.c.h.s8.bf16 %v7796
  %v8139 = vunpack.c.h.s8.bf16 %v7797
  %v8140 = vunpack.c.h.s8.bf16 %v7798
  %v8141 = vunpack.c.h.s8.bf16 %v7799
  %v8142 = vunpack.c.h.s8.bf16 %v7800
  %v8143 = vunpack.c.l.s8.bf16 %v7801
  %v8144 = vunpack.c.l.s8.bf16 %v7802
  %v8145 = vunpack.c.l.s8.bf16 %v7803
  %v8146 = vunpack.c.l.s8.bf16 %v7804
  %v8147 = vunpack.c.l.s8.bf16 %v7805
  %v8148 = vunpack.c.l.s8.bf16 %v7806
  %v8149 = vunpack.c.h.s8.bf16 %v7801
  %v8150 = vunpack.c.h.s8.bf16 %v7802
  %v8151 = vunpack.c.h.s8.bf16 %v7803
  %v8152 = vunpack.c.h.s8.bf16 %v7804
  %v8153 = vunpack.c.h.s8.bf16 %v7805
  %v8154 = vunpack.c.h.s8.bf16 %v7806
  %v8155 = vunpack.c.l.s8.bf16 %v7807
  %v8156 = vunpack.c.l.s8.bf16 %v7808
  %v8157 = vunpack.c.l.s8.bf16 %v7809
  %v8158 = vunpack.c.l.s8.bf16 %v7810
  %v8159 = vunpack.c.l.s8.bf16 %v7811
  %v8160 = vunpack.c.l.s8.bf16 %v7812
  %v8161 = vunpack.c.h.s8.bf16 %v7807
  %v8162 = vunpack.c.h.s8.bf16 %v7808
  %v8163 = vunpack.c.h.s8.bf16 %v7809
  %v8164 = vunpack.c.h.s8.bf16 %v7810
  %v8165 = vunpack.c.h.s8.bf16 %v7811
  %v8166 = vunpack.c.h.s8.bf16 %v7812
  %v8167 = vunpack.c.l.s8.bf16 %v7813
  %v8168 = vunpack.c.l.s8.bf16 %v7814
  %v8169 = vunpack.c.l.s8.bf16 %v7815
  %v8170 = vunpack.c.l.s8.bf16 %v7816
  %v8171 = vunpack.c.l.s8.bf16 %v7817
  %v8172 = vunpack.c.l.s8.bf16 %v7818
  %v8173 = vunpack.c.h.s8.bf16 %v7813
  %v8174 = vunpack.c.h.s8.bf16 %v7814
  %v8175 = vunpack.c.h.s8.bf16 %v7815
  %v8176 = vunpack.c.h.s8.bf16 %v7816
  %v8177 = vunpack.c.h.s8.bf16 %v7817
  %v8178 = vunpack.c.h.s8.bf16 %v7818
  %v8179 = vunpack.c.l.s8.bf16 %v7819
  %v8180 = vunpack.c.l.s8.bf16 %v7820
  %v8181 = vunpack.c.l.s8.bf16 %v7821
  %v8182 = vunpack.c.l.s8.bf16 %v7822
  %v8183 = vunpack.c.l.s8.bf16 %v7823
  %v8184 = vunpack.c.l.s8.bf16 %v7824
  %v8185 = vunpack.c.h.s8.bf16 %v7819
  %v8186 = vunpack.c.h.s8.bf16 %v7820
  %v8187 = vunpack.c.h.s8.bf16 %v7821
  %v8188 = vunpack.c.h.s8.bf16 %v7822
  %v8189 = vunpack.c.h.s8.bf16 %v7823
  %v8190 = vunpack.c.h.s8.bf16 %v7824
  %v8191 = vunpack.c.l.s8.bf16 %v7825
  %v8192 = vunpack.c.l.s8.bf16 %v7826
  %v8193 = vunpack.c.l.s8.bf16 %v7827
  %v8194 = vunpack.c.l.s8.bf16 %v7828
  %v8195 = vunpack.c.l.s8.bf16 %v7829
  %v8196 = vunpack.c.l.s8.bf16 %v7830
  %v8197 = vunpack.c.h.s8.bf16 %v7825
  %v8198 = vunpack.c.h.s8.bf16 %v7826
  %v8199 = vunpack.c.h.s8.bf16 %v7827
  %v8200 = vunpack.c.h.s8.bf16 %v7828
  %v8201 = vunpack.c.h.s8.bf16 %v7829
  %v8202 = vunpack.c.h.s8.bf16 %v7830
  %v8203 = vunpack.c.l.s8.bf16 %v7831
  %v8204 = vunpack.c.l.s8.bf16 %v7832
  %v8205 = vunpack.c.l.s8.bf16 %v7833
  %v8206 = vunpack.c.l.s8.bf16 %v7834
  %v8207 = vunpack.c.l.s8.bf16 %v7835
  %v8208 = vunpack.c.l.s8.bf16 %v7836
  %v8209 = vunpack.c.h.s8.bf16 %v7831
  %v8210 = vunpack.c.h.s8.bf16 %v7832
  %v8211 = vunpack.c.h.s8.bf16 %v7833
  %v8212 = vunpack.c.h.s8.bf16 %v7834
  %v8213 = vunpack.c.h.s8.bf16 %v7835
  %v8214 = vunpack.c.h.s8.bf16 %v7836
  %v8215 = vunpack.c.l.s8.bf16 %v7837
  %v8216 = vunpack.c.l.s8.bf16 %v7838
  %v8217 = vunpack.c.l.s8.bf16 %v7839
  %v8218 = vunpack.c.l.s8.bf16 %v7840
  %v8219 = vunpack.c.l.s8.bf16 %v7841
  %v8220 = vunpack.c.l.s8.bf16 %v7842
  %v8221 = vunpack.c.h.s8.bf16 %v7837
  %v8222 = vunpack.c.h.s8.bf16 %v7838
  %v8223 = vunpack.c.h.s8.bf16 %v7839
  %v8224 = vunpack.c.h.s8.bf16 %v7840
  %v8225 = vunpack.c.h.s8.bf16 %v7841
  %v8226 = vunpack.c.h.s8.bf16 %v7842
  %v8227 = vunpack.c.l.s8.bf16 %v7843
  %v8228 = vunpack.c.l.s8.bf16 %v7844
  %v8229 = vunpack.c.l.s8.bf16 %v7845
  %v8230 = vunpack.c.l.s8.bf16 %v7846
  %v8231 = vunpack.c.l.s8.bf16 %v7847
  %v8232 = vunpack.c.l.s8.bf16 %v7848
  %v8233 = vunpack.c.h.s8.bf16 %v7843
  %v8234 = vunpack.c.h.s8.bf16 %v7844
  %v8235 = vunpack.c.h.s8.bf16 %v7845
  %v8236 = vunpack.c.h.s8.bf16 %v7846
  %v8237 = vunpack.c.h.s8.bf16 %v7847
  %v8238 = vunpack.c.h.s8.bf16 %v7848
  %v8239 = vunpack.c.l.s8.bf16 %v7849
  %v8240 = vunpack.c.l.s8.bf16 %v7850
  %v8241 = vunpack.c.l.s8.bf16 %v7851
  %v8242 = vunpack.c.l.s8.bf16 %v7852
  %v8243 = vunpack.c.l.s8.bf16 %v7853
  %v8244 = vunpack.c.l.s8.bf16 %v7854
  %v8245 = vunpack.c.h.s8.bf16 %v7849
  %v8246 = vunpack.c.h.s8.bf16 %v7850
  %v8247 = vunpack.c.h.s8.bf16 %v7851
  %v8248 = vunpack.c.h.s8.bf16 %v7852
  %v8249 = vunpack.c.h.s8.bf16 %v7853
  %v8250 = vunpack.c.h.s8.bf16 %v7854
  %v8251 = vunpack.c.l.s8.bf16 %v7855
  %v8252 = vunpack.c.l.s8.bf16 %v7856
  %v8253 = vunpack.c.l.s8.bf16 %v7857
  %v8254 = vunpack.c.l.s8.bf16 %v7858
  %v8255 = vunpack.c.l.s8.bf16 %v7859
  %v8256 = vunpack.c.l.s8.bf16 %v7860
  %v8257 = vunpack.c.h.s8.bf16 %v7855
  %v8258 = vunpack.c.h.s8.bf16 %v7856
  %v8259 = vunpack.c.h.s8.bf16 %v7857
  %v8260 = vunpack.c.h.s8.bf16 %v7858
  %v8261 = vunpack.c.h.s8.bf16 %v7859
  %v8262 = vunpack.c.h.s8.bf16 %v7860
  %v8263 = vunpack.c.l.s8.bf16 %v7861
  %v8264 = vunpack.c.l.s8.bf16 %v7862
  %v8265 = vunpack.c.l.s8.bf16 %v7863
  %v8266 = vunpack.c.l.s8.bf16 %v7864
  %v8267 = vunpack.c.l.s8.bf16 %v7865
  %v8268 = vunpack.c.l.s8.bf16 %v7866
  %v8269 = vunpack.c.h.s8.bf16 %v7861
  %v8270 = vunpack.c.h.s8.bf16 %v7862
  %v8271 = vunpack.c.h.s8.bf16 %v7863
  %v8272 = vunpack.c.h.s8.bf16 %v7864
  %v8273 = vunpack.c.h.s8.bf16 %v7865
  %v8274 = vunpack.c.h.s8.bf16 %v7866
  %v8275 = vunpack.c.l.s8.bf16 %v7867
  %v8276 = vunpack.c.l.s8.bf16 %v7868
  %v8277 = vunpack.c.l.s8.bf16 %v7869
  %v8278 = vunpack.c.l.s8.bf16 %v7870
  %v8279 = vunpack.c.l.s8.bf16 %v7871
  %v8280 = vunpack.c.l.s8.bf16 %v7872
  %v8281 = vunpack.c.h.s8.bf16 %v7867
  %v8282 = vunpack.c.h.s8.bf16 %v7868
  %v8283 = vunpack.c.h.s8.bf16 %v7869
  %v8284 = vunpack.c.h.s8.bf16 %v7870
  %v8285 = vunpack.c.h.s8.bf16 %v7871
  %v8286 = vunpack.c.h.s8.bf16 %v7872
  %v8287 = vunpack.c.l.s8.bf16 %v7873
  %v8288 = vunpack.c.l.s8.bf16 %v7874
  %v8289 = vunpack.c.l.s8.bf16 %v7875
  %v8290 = vunpack.c.l.s8.bf16 %v7876
  %v8291 = vunpack.c.l.s8.bf16 %v7877
  %v8292 = vunpack.c.l.s8.bf16 %v7878
  %v8293 = vunpack.c.h.s8.bf16 %v7873
  %v8294 = vunpack.c.h.s8.bf16 %v7874
  %v8295 = vunpack.c.h.s8.bf16 %v7875
  %v8296 = vunpack.c.h.s8.bf16 %v7876
  %v8297 = vunpack.c.h.s8.bf16 %v7877
  %v8298 = vunpack.c.h.s8.bf16 %v7878
  %v8299 = vunpack.c.l.s8.bf16 %v7879
  %v8300 = vunpack.c.l.s8.bf16 %v7880
  %v8301 = vunpack.c.l.s8.bf16 %v7881
  %v8302 = vunpack.c.l.s8.bf16 %v7882
  %v8303 = vunpack.c.l.s8.bf16 %v7883
  %v8304 = vunpack.c.l.s8.bf16 %v7884
  %v8305 = vunpack.c.h.s8.bf16 %v7879
  %v8306 = vunpack.c.h.s8.bf16 %v7880
  %v8307 = vunpack.c.h.s8.bf16 %v7881
  %v8308 = vunpack.c.h.s8.bf16 %v7882
  %v8309 = vunpack.c.h.s8.bf16 %v7883
  %v8310 = vunpack.c.h.s8.bf16 %v7884
  %v8311 = vunpack.c.l.s8.bf16 %v7885
  %v8312 = vunpack.c.l.s8.bf16 %v7886
  %v8313 = vunpack.c.l.s8.bf16 %v7887
  %v8314 = vunpack.c.l.s8.bf16 %v7888
  %v8315 = vunpack.c.l.s8.bf16 %v7889
  %v8316 = vunpack.c.l.s8.bf16 %v7890
  %v8317 = vunpack.c.h.s8.bf16 %v7885
  %v8318 = vunpack.c.h.s8.bf16 %v7886
  %v8319 = vunpack.c.h.s8.bf16 %v7887
  %v8320 = vunpack.c.h.s8.bf16 %v7888
  %v8321 = vunpack.c.h.s8.bf16 %v7889
  %v8322 = vunpack.c.h.s8.bf16 %v7890
  %v8323 = vunpack.c.l.s8.bf16 %v7891
  %v8324 = vunpack.c.l.s8.bf16 %v7892
  %v8325 = vunpack.c.l.s8.bf16 %v7893
  %v8326 = vunpack.c.l.s8.bf16 %v7894
  %v8327 = vunpack.c.l.s8.bf16 %v7895
  %v8328 = vunpack.c.l.s8.bf16 %v7896
  %v8329 = vunpack.c.h.s8.bf16 %v7891
  %v8330 = vunpack.c.h.s8.bf16 %v7892
  %v8331 = vunpack.c.h.s8.bf16 %v7893
  %v8332 = vunpack.c.h.s8.bf16 %v7894
  %v8333 = vunpack.c.h.s8.bf16 %v7895
  %v8334 = vunpack.c.h.s8.bf16 %v7896
  %v8335 = vunpack.c.l.s8.bf16 %v7897
  %v8336 = vunpack.c.l.s8.bf16 %v7898
  %v8337 = vunpack.c.l.s8.bf16 %v7899
  %v8338 = vunpack.c.l.s8.bf16 %v7900
  %v8339 = vunpack.c.l.s8.bf16 %v7901
  %v8340 = vunpack.c.l.s8.bf16 %v7902
  %v8341 = vunpack.c.h.s8.bf16 %v7897
  %v8342 = vunpack.c.h.s8.bf16 %v7898
  %v8343 = vunpack.c.h.s8.bf16 %v7899
  %v8344 = vunpack.c.h.s8.bf16 %v7900
  %v8345 = vunpack.c.h.s8.bf16 %v7901
  %v8346 = vunpack.c.h.s8.bf16 %v7902
  %v8347 = vunpack.c.l.s8.bf16 %v7903
  %v8348 = vunpack.c.l.s8.bf16 %v7904
  %v8349 = vunpack.c.l.s8.bf16 %v7905
  %v8350 = vunpack.c.l.s8.bf16 %v7906
  %v8351 = vunpack.c.l.s8.bf16 %v7907
  %v8352 = vunpack.c.l.s8.bf16 %v7908
  %v8353 = vunpack.c.h.s8.bf16 %v7903
  %v8354 = vunpack.c.h.s8.bf16 %v7904
  %v8355 = vunpack.c.h.s8.bf16 %v7905
  %v8356 = vunpack.c.h.s8.bf16 %v7906
  %v8357 = vunpack.c.h.s8.bf16 %v7907
  %v8358 = vunpack.c.h.s8.bf16 %v7908
  %v8359 = vunpack.c.l.s8.bf16 %v7909
  %v8360 = vunpack.c.l.s8.bf16 %v7910
  %v8361 = vunpack.c.l.s8.bf16 %v7911
  %v8362 = vunpack.c.l.s8.bf16 %v7912
  %v8363 = vunpack.c.l.s8.bf16 %v7913
  %v8364 = vunpack.c.l.s8.bf16 %v7914
  %v8365 = vunpack.c.h.s8.bf16 %v7909
  %v8366 = vunpack.c.h.s8.bf16 %v7910
  %v8367 = vunpack.c.h.s8.bf16 %v7911
  %v8368 = vunpack.c.h.s8.bf16 %v7912
  %v8369 = vunpack.c.h.s8.bf16 %v7913
  %v8370 = vunpack.c.h.s8.bf16 %v7914
  %v8371 = vunpack.c.l.s8.bf16 %v7915
  %v8372 = vunpack.c.l.s8.bf16 %v7916
  %v8373 = vunpack.c.l.s8.bf16 %v7917
  %v8374 = vunpack.c.l.s8.bf16 %v7918
  %v8375 = vunpack.c.l.s8.bf16 %v7919
  %v8376 = vunpack.c.l.s8.bf16 %v7920
  %v8377 = vunpack.c.h.s8.bf16 %v7915
  %v8378 = vunpack.c.h.s8.bf16 %v7916
  %v8379 = vunpack.c.h.s8.bf16 %v7917
  %v8380 = vunpack.c.h.s8.bf16 %v7918
  %v8381 = vunpack.c.h.s8.bf16 %v7919
  %v8382 = vunpack.c.h.s8.bf16 %v7920
  %v8383 = vunpack.c.l.s8.bf16 %v7921
  %v8384 = vunpack.c.l.s8.bf16 %v7922
  %v8385 = vunpack.c.l.s8.bf16 %v7923
  %v8386 = vunpack.c.l.s8.bf16 %v7924
  %v8387 = vunpack.c.l.s8.bf16 %v7925
  %v8388 = vunpack.c.l.s8.bf16 %v7926
  %v8389 = vunpack.c.h.s8.bf16 %v7921
  %v8390 = vunpack.c.h.s8.bf16 %v7922
  %v8391 = vunpack.c.h.s8.bf16 %v7923
  %v8392 = vunpack.c.h.s8.bf16 %v7924
  %v8393 = vunpack.c.h.s8.bf16 %v7925
  %v8394 = vunpack.c.h.s8.bf16 %v7926
  %v8395 = vunpack.c.l.s8.bf16 %v7927
  %v8396 = vunpack.c.l.s8.bf16 %v7928
  %v8397 = vunpack.c.l.s8.bf16 %v7929
  %v8398 = vunpack.c.l.s8.bf16 %v7930
  %v8399 = vunpack.c.l.s8.bf16 %v7931
  %v8400 = vunpack.c.l.s8.bf16 %v7932
  %v8401 = vunpack.c.h.s8.bf16 %v7927
  %v8402 = vunpack.c.h.s8.bf16 %v7928
  %v8403 = vunpack.c.h.s8.bf16 %v7929
  %v8404 = vunpack.c.h.s8.bf16 %v7930
  %v8405 = vunpack.c.h.s8.bf16 %v7931
  %v8406 = vunpack.c.h.s8.bf16 %v7932
  %v8407 = vunpack.c.l.s8.bf16 %v7933
  %v8408 = vunpack.c.l.s8.bf16 %v7934
  %v8409 = vunpack.c.l.s8.bf16 %v7935
  %v8410 = vunpack.c.l.s8.bf16 %v7936
  %v8411 = vunpack.c.l.s8.bf16 %v7937
  %v8412 = vunpack.c.l.s8.bf16 %v7938
  %v8413 = vunpack.c.h.s8.bf16 %v7933
  %v8414 = vunpack.c.h.s8.bf16 %v7934
  %v8415 = vunpack.c.h.s8.bf16 %v7935
  %v8416 = vunpack.c.h.s8.bf16 %v7936
  %v8417 = vunpack.c.h.s8.bf16 %v7937
  %v8418 = vunpack.c.h.s8.bf16 %v7938
  %v8429 = vrot.slane %v7681, 1
  %v8430 = vrot.slane %v7686, 1
  %v8431 = vsel %vm2566, %v8429, %v8430
  %v8432 = vrot.slane %v7682, 1
  %v8433 = vrot.slane %v7687, 1
  %v8434 = vsel %vm2566, %v8432, %v8433
  %v8435 = vrot.slane %v7683, 1
  %v8436 = vrot.slane %v7688, 1
  %v8437 = vsel %vm2566, %v8435, %v8436
  %v8438 = vrot.slane %v7684, 1
  %v8439 = vrot.slane %v7689, 1
  %v8440 = vsel %vm2566, %v8438, %v8439
  %v8441 = vrot.slane %v7685, 1
  %v8442 = vrot.slane %v7690, 1
  %v8443 = vsel %vm2566, %v8441, %v8442
  %v8459 = vsel %vm2566, %v8430, %v8429
  %v8460 = vsel %vm2566, %v8433, %v8432
  %v8461 = vsel %vm2566, %v8436, %v8435
  %v8462 = vsel %vm2566, %v8439, %v8438
  %v8463 = vsel %vm2566, %v8442, %v8441
  %v8464 = vpack.c.bf16 %v7686, %v7681
  %v8465 = vpack.c.bf16 %v7687, %v7682
  %v8466 = vpack.c.bf16 %v7688, %v7683
  %v8467 = vpack.c.bf16 %v7689, %v7684
  %v8468 = vpack.c.bf16 %v7690, %v7685
  %v8469 = vpack.c.bf16 %v8459, %v8431
  %v8470 = vpack.c.bf16 %v8460, %v8434
  %v8471 = vpack.c.bf16 %v8461, %v8437
  %v8472 = vpack.c.bf16 %v8462, %v8440
  %v8473 = vpack.c.bf16 %v8463, %v8443
  %8474 = vmatprep.subr.bf16.mxu0 %v7982
  %8475 = vmatpush1.bf16.msra.mxu0 %v7981
  %8476 = vmatprep.subr.bf16.mxu0 %v7976
  %8477 = vmatpush1.bf16.msra.mxu0 %v7975
  %8478 = vmatprep.subr.bf16.mxu0 %v7970
  %8479 = vmatpush1.bf16.msra.mxu0 %v7969
  %8480 = vmatprep.subr.bf16.mxu0 %v7964
  %8481 = vmatpush1.bf16.msra.mxu0 %v7963
  %8482 = vmatprep.subr.bf16.mxu0 %v7958
  %8483 = vmatpush1.bf16.msra.mxu0 %v7957
  %8484 = vmatprep.subr.bf16.mxu0 %v7952
  %8485 = vmatpush1.bf16.msra.mxu0 %v7951
  %8486 = vmatprep.subr.bf16.mxu0 %v7946
  %8487 = vmatpush1.bf16.msra.mxu0 %v7945
  %8488 = vmatprep.subr.bf16.mxu0 %v7940
  %8489 = vmatpush1.bf16.msra.mxu0 %v7939
  %8490 = vmatprep.subr.bf16.mxu0 %v8030
  %8491 = vmatpush2.bf16.msra.mxu0 %v8029
  %8492 = vmatprep.subr.bf16.mxu0 %v8024
  %8493 = vmatpush2.bf16.msra.mxu0 %v8023
  %8494 = vmatprep.subr.bf16.mxu0 %v8018
  %8495 = vmatpush2.bf16.msra.mxu0 %v8017
  %8496 = vmatprep.subr.bf16.mxu0 %v8012
  %8497 = vmatpush2.bf16.msra.mxu0 %v8011
  %8498 = vmatprep.subr.bf16.mxu0 %v8006
  %8499 = vmatpush2.bf16.msra.mxu0 %v8005
  %8500 = vmatprep.subr.bf16.mxu0 %v8000
  %8501 = vmatpush2.bf16.msra.mxu0 %v7999
  %8502 = vmatprep.subr.bf16.mxu0 %v7994
  %8503 = vmatpush2.bf16.msra.mxu0 %v7993
  %8504 = vmatprep.subr.bf16.mxu0 %v7988
  %8505 = vmatpush2.bf16.msra.mxu0 %v7987
  %8506 = vmatprep.mubr.bf16.mxu0 %v8465
  %8507 = vmatmul.mubr.bf16.gmra.mxu0 %v8464
  %v8508 = vpop.f32.mrf.mxu0
  %v8509 = vadd.f32 0.0, %v8508
  %v8510 = vpop.f32.mrf.mxu0
  %v8511 = vadd.f32 0.0, %v8510
  %v8512 = vpop.f32.mrf.mxu0
  %v8513 = vadd.f32 0.0, %v8512
  %v8514 = vpop.f32.mrf.mxu0
  %v8515 = vadd.f32 0.0, %v8514
  %8516 = vdwg.mxu0
  %8517 = vmatprep.subr.bf16.mxu0 %v8078
  %8518 = vmatpush1.bf16.msra.mxu0 %v8077
  %8519 = vmatprep.subr.bf16.mxu0 %v8072
  %8520 = vmatpush1.bf16.msra.mxu0 %v8071
  %8521 = vmatprep.subr.bf16.mxu0 %v8066
  %8522 = vmatpush1.bf16.msra.mxu0 %v8065
  %8523 = vmatprep.subr.bf16.mxu0 %v8060
  %8524 = vmatpush1.bf16.msra.mxu0 %v8059
  %8525 = vmatprep.subr.bf16.mxu0 %v8054
  %8526 = vmatpush1.bf16.msra.mxu0 %v8053
  %8527 = vmatprep.subr.bf16.mxu0 %v8048
  %8528 = vmatpush1.bf16.msra.mxu0 %v8047
  %8529 = vmatprep.subr.bf16.mxu0 %v8042
  %8530 = vmatpush1.bf16.msra.mxu0 %v8041
  %8531 = vmatprep.subr.bf16.mxu0 %v8036
  %8532 = vmatpush1.bf16.msra.mxu0 %v8035
  %8533 = vmatprep.subr.bf16.mxu0 %v8126
  %8534 = vmatpush2.bf16.msra.mxu0 %v8125
  %8535 = vmatprep.subr.bf16.mxu0 %v8120
  %8536 = vmatpush2.bf16.msra.mxu0 %v8119
  %8537 = vmatprep.subr.bf16.mxu0 %v8114
  %8538 = vmatpush2.bf16.msra.mxu0 %v8113
  %8539 = vmatprep.subr.bf16.mxu0 %v8108
  %8540 = vmatpush2.bf16.msra.mxu0 %v8107
  %8541 = vmatprep.subr.bf16.mxu0 %v8102
  %8542 = vmatpush2.bf16.msra.mxu0 %v8101
  %8543 = vmatprep.subr.bf16.mxu0 %v8096
  %8544 = vmatpush2.bf16.msra.mxu0 %v8095
  %8545 = vmatprep.subr.bf16.mxu0 %v8090
  %8546 = vmatpush2.bf16.msra.mxu0 %v8089
  %8547 = vmatprep.subr.bf16.mxu0 %v8084
  %8548 = vmatpush2.bf16.msra.mxu0 %v8083
  %8549 = vmatprep.mubr.bf16.mxu0 %v8467
  %8550 = vmatmul.mubr.bf16.gmra.mxu0 %v8466
  %v8551 = vpop.f32.mrf.mxu0
  %v8552 = vadd.f32 %v8509, %v8551
  %v8553 = vpop.f32.mrf.mxu0
  %v8554 = vadd.f32 %v8511, %v8553
  %v8555 = vpop.f32.mrf.mxu0
  %v8556 = vadd.f32 %v8513, %v8555
  %v8557 = vpop.f32.mrf.mxu0
  %v8558 = vadd.f32 %v8515, %v8557
  %8559 = vdwg.mxu0
  %8560 = vmatprep.subr.bf16.mxu0 %v8174
  %8561 = vmatpush1.bf16.msra.mxu0 %v8173
  %8562 = vmatprep.subr.bf16.mxu0 %v8168
  %8563 = vmatpush1.bf16.msra.mxu0 %v8167
  %8564 = vmatprep.subr.bf16.mxu0 %v8162
  %8565 = vmatpush1.bf16.msra.mxu0 %v8161
  %8566 = vmatprep.subr.bf16.mxu0 %v8156
  %8567 = vmatpush1.bf16.msra.mxu0 %v8155
  %8568 = vmatprep.subr.bf16.mxu0 %v8150
  %8569 = vmatpush1.bf16.msra.mxu0 %v8149
  %8570 = vmatprep.subr.bf16.mxu0 %v8144
  %8571 = vmatpush1.bf16.msra.mxu0 %v8143
  %8572 = vmatprep.subr.bf16.mxu0 %v8138
  %8573 = vmatpush1.bf16.msra.mxu0 %v8137
  %8574 = vmatprep.subr.bf16.mxu0 %v8132
  %8575 = vmatpush1.bf16.msra.mxu0 %v8131
  %8576 = vmatprep.subr.bf16.mxu0 %v8222
  %8577 = vmatpush2.bf16.msra.mxu0 %v8221
  %8578 = vmatprep.subr.bf16.mxu0 %v8216
  %8579 = vmatpush2.bf16.msra.mxu0 %v8215
  %8580 = vmatprep.subr.bf16.mxu0 %v8210
  %8581 = vmatpush2.bf16.msra.mxu0 %v8209
  %8582 = vmatprep.subr.bf16.mxu0 %v8204
  %8583 = vmatpush2.bf16.msra.mxu0 %v8203
  %8584 = vmatprep.subr.bf16.mxu0 %v8198
  %8585 = vmatpush2.bf16.msra.mxu0 %v8197
  %8586 = vmatprep.subr.bf16.mxu0 %v8192
  %8587 = vmatpush2.bf16.msra.mxu0 %v8191
  %8588 = vmatprep.subr.bf16.mxu0 %v8186
  %8589 = vmatpush2.bf16.msra.mxu0 %v8185
  %8590 = vmatprep.subr.bf16.mxu0 %v8180
  %8591 = vmatpush2.bf16.msra.mxu0 %v8179
  %8592 = vmatprep.mubr.bf16.mxu0 %v8469
  %8593 = vmatmul.mubr.bf16.gmra.mxu0 %v8468
  %v8594 = vpop.f32.mrf.mxu0
  %v8595 = vadd.f32 %v8552, %v8594
  %v8596 = vpop.f32.mrf.mxu0
  %v8597 = vadd.f32 %v8554, %v8596
  %v8598 = vpop.f32.mrf.mxu0
  %v8599 = vadd.f32 %v8556, %v8598
  %v8600 = vpop.f32.mrf.mxu0
  %v8601 = vadd.f32 %v8558, %v8600
  %8602 = vdwg.mxu0
  %8603 = vmatprep.subr.bf16.mxu0 %v8270
  %8604 = vmatpush1.bf16.msra.mxu0 %v8269
  %8605 = vmatprep.subr.bf16.mxu0 %v8264
  %8606 = vmatpush1.bf16.msra.mxu0 %v8263
  %8607 = vmatprep.subr.bf16.mxu0 %v8258
  %8608 = vmatpush1.bf16.msra.mxu0 %v8257
  %8609 = vmatprep.subr.bf16.mxu0 %v8252
  %8610 = vmatpush1.bf16.msra.mxu0 %v8251
  %8611 = vmatprep.subr.bf16.mxu0 %v8246
  %8612 = vmatpush1.bf16.msra.mxu0 %v8245
  %8613 = vmatprep.subr.bf16.mxu0 %v8240
  %8614 = vmatpush1.bf16.msra.mxu0 %v8239
  %8615 = vmatprep.subr.bf16.mxu0 %v8234
  %8616 = vmatpush1.bf16.msra.mxu0 %v8233
  %8617 = vmatprep.subr.bf16.mxu0 %v8228
  %8618 = vmatpush1.bf16.msra.mxu0 %v8227
  %8619 = vmatprep.subr.bf16.mxu0 %v8318
  %8620 = vmatpush2.bf16.msra.mxu0 %v8317
  %8621 = vmatprep.subr.bf16.mxu0 %v8312
  %8622 = vmatpush2.bf16.msra.mxu0 %v8311
  %8623 = vmatprep.subr.bf16.mxu0 %v8306
  %8624 = vmatpush2.bf16.msra.mxu0 %v8305
  %8625 = vmatprep.subr.bf16.mxu0 %v8300
  %8626 = vmatpush2.bf16.msra.mxu0 %v8299
  %8627 = vmatprep.subr.bf16.mxu0 %v8294
  %8628 = vmatpush2.bf16.msra.mxu0 %v8293
  %8629 = vmatprep.subr.bf16.mxu0 %v8288
  %8630 = vmatpush2.bf16.msra.mxu0 %v8287
  %8631 = vmatprep.subr.bf16.mxu0 %v8282
  %8632 = vmatpush2.bf16.msra.mxu0 %v8281
  %8633 = vmatprep.subr.bf16.mxu0 %v8276
  %8634 = vmatpush2.bf16.msra.mxu0 %v8275
  %8635 = vmatprep.mubr.bf16.mxu0 %v8471
  %8636 = vmatmul.mubr.bf16.gmra.mxu0 %v8470
  %v8637 = vpop.f32.mrf.mxu0
  %v8638 = vadd.f32 %v8595, %v8637
  %v8639 = vpop.f32.mrf.mxu0
  %v8640 = vadd.f32 %v8597, %v8639
  %v8641 = vpop.f32.mrf.mxu0
  %v8642 = vadd.f32 %v8599, %v8641
  %v8643 = vpop.f32.mrf.mxu0
  %v8644 = vadd.f32 %v8601, %v8643
  %8645 = vdwg.mxu0
  %8646 = vmatprep.subr.bf16.mxu0 %v8366
  %8647 = vmatpush1.bf16.msra.mxu0 %v8365
  %8648 = vmatprep.subr.bf16.mxu0 %v8360
  %8649 = vmatpush1.bf16.msra.mxu0 %v8359
  %8650 = vmatprep.subr.bf16.mxu0 %v8354
  %8651 = vmatpush1.bf16.msra.mxu0 %v8353
  %8652 = vmatprep.subr.bf16.mxu0 %v8348
  %8653 = vmatpush1.bf16.msra.mxu0 %v8347
  %8654 = vmatprep.subr.bf16.mxu0 %v8342
  %8655 = vmatpush1.bf16.msra.mxu0 %v8341
  %8656 = vmatprep.subr.bf16.mxu0 %v8336
  %8657 = vmatpush1.bf16.msra.mxu0 %v8335
  %8658 = vmatprep.subr.bf16.mxu0 %v8330
  %8659 = vmatpush1.bf16.msra.mxu0 %v8329
  %8660 = vmatprep.subr.bf16.mxu0 %v8324
  %8661 = vmatpush1.bf16.msra.mxu0 %v8323
  %8662 = vmatprep.subr.bf16.mxu0 %v8414
  %8663 = vmatpush2.bf16.msra.mxu0 %v8413
  %8664 = vmatprep.subr.bf16.mxu0 %v8408
  %8665 = vmatpush2.bf16.msra.mxu0 %v8407
  %8666 = vmatprep.subr.bf16.mxu0 %v8402
  %8667 = vmatpush2.bf16.msra.mxu0 %v8401
  %8668 = vmatprep.subr.bf16.mxu0 %v8396
  %8669 = vmatpush2.bf16.msra.mxu0 %v8395
  %8670 = vmatprep.subr.bf16.mxu0 %v8390
  %8671 = vmatpush2.bf16.msra.mxu0 %v8389
  %8672 = vmatprep.subr.bf16.mxu0 %v8384
  %8673 = vmatpush2.bf16.msra.mxu0 %v8383
  %8674 = vmatprep.subr.bf16.mxu0 %v8378
  %8675 = vmatpush2.bf16.msra.mxu0 %v8377
  %8676 = vmatprep.subr.bf16.mxu0 %v8372
  %8677 = vmatpush2.bf16.msra.mxu0 %v8371
  %8678 = vmatprep.mubr.bf16.mxu0 %v8473
  %8679 = vmatmul.mubr.bf16.gmra.mxu0 %v8472
  %v8680 = vpop.f32.mrf.mxu0
  %v8681 = vadd.f32 %v8638, %v8680
  %v8682 = vpop.f32.mrf.mxu0
  %v8683 = vadd.f32 %v8640, %v8682
  %v8684 = vpop.f32.mrf.mxu0
  %v8685 = vadd.f32 %v8642, %v8684
  %v8686 = vpop.f32.mrf.mxu0
  %v8687 = vadd.f32 %v8644, %v8686
  %8688 = vdwg.mxu0
  %8689 = vmatprep.subr.bf16.mxu0 %v7984
  %8690 = vmatpush1.bf16.msra.mxu0 %v7983
  %8691 = vmatprep.subr.bf16.mxu0 %v7978
  %8692 = vmatpush1.bf16.msra.mxu0 %v7977
  %8693 = vmatprep.subr.bf16.mxu0 %v7972
  %8694 = vmatpush1.bf16.msra.mxu0 %v7971
  %8695 = vmatprep.subr.bf16.mxu0 %v7966
  %8696 = vmatpush1.bf16.msra.mxu0 %v7965
  %8697 = vmatprep.subr.bf16.mxu0 %v7960
  %8698 = vmatpush1.bf16.msra.mxu0 %v7959
  %8699 = vmatprep.subr.bf16.mxu0 %v7954
  %8700 = vmatpush1.bf16.msra.mxu0 %v7953
  %8701 = vmatprep.subr.bf16.mxu0 %v7948
  %8702 = vmatpush1.bf16.msra.mxu0 %v7947
  %8703 = vmatprep.subr.bf16.mxu0 %v7942
  %8704 = vmatpush1.bf16.msra.mxu0 %v7941
  %8705 = vmatprep.subr.bf16.mxu0 %v8032
  %8706 = vmatpush2.bf16.msra.mxu0 %v8031
  %8707 = vmatprep.subr.bf16.mxu0 %v8026
  %8708 = vmatpush2.bf16.msra.mxu0 %v8025
  %8709 = vmatprep.subr.bf16.mxu0 %v8020
  %8710 = vmatpush2.bf16.msra.mxu0 %v8019
  %8711 = vmatprep.subr.bf16.mxu0 %v8014
  %8712 = vmatpush2.bf16.msra.mxu0 %v8013
  %8713 = vmatprep.subr.bf16.mxu0 %v8008
  %8714 = vmatpush2.bf16.msra.mxu0 %v8007
  %8715 = vmatprep.subr.bf16.mxu0 %v8002
  %8716 = vmatpush2.bf16.msra.mxu0 %v8001
  %8717 = vmatprep.subr.bf16.mxu0 %v7996
  %8718 = vmatpush2.bf16.msra.mxu0 %v7995
  %8719 = vmatprep.subr.bf16.mxu0 %v7990
  %8720 = vmatpush2.bf16.msra.mxu0 %v7989
  %8721 = vmatprep.mubr.bf16.mxu0 %v8465
  %8722 = vmatmul.mubr.bf16.gmra.mxu0 %v8464
  %v8723 = vpop.f32.mrf.mxu0
  %v8724 = vadd.f32 0.0, %v8723
  %v8725 = vpop.f32.mrf.mxu0
  %v8726 = vadd.f32 0.0, %v8725
  %v8727 = vpop.f32.mrf.mxu0
  %v8728 = vadd.f32 0.0, %v8727
  %v8729 = vpop.f32.mrf.mxu0
  %v8730 = vadd.f32 0.0, %v8729
  %8731 = vdwg.mxu0
  %8732 = vmatprep.subr.bf16.mxu0 %v8080
  %8733 = vmatpush1.bf16.msra.mxu0 %v8079
  %8734 = vmatprep.subr.bf16.mxu0 %v8074
  %8735 = vmatpush1.bf16.msra.mxu0 %v8073
  %8736 = vmatprep.subr.bf16.mxu0 %v8068
  %8737 = vmatpush1.bf16.msra.mxu0 %v8067
  %8738 = vmatprep.subr.bf16.mxu0 %v8062
  %8739 = vmatpush1.bf16.msra.mxu0 %v8061
  %8740 = vmatprep.subr.bf16.mxu0 %v8056
  %8741 = vmatpush1.bf16.msra.mxu0 %v8055
  %8742 = vmatprep.subr.bf16.mxu0 %v8050
  %8743 = vmatpush1.bf16.msra.mxu0 %v8049
  %8744 = vmatprep.subr.bf16.mxu0 %v8044
  %8745 = vmatpush1.bf16.msra.mxu0 %v8043
  %8746 = vmatprep.subr.bf16.mxu0 %v8038
  %8747 = vmatpush1.bf16.msra.mxu0 %v8037
  %8748 = vmatprep.subr.bf16.mxu0 %v8128
  %8749 = vmatpush2.bf16.msra.mxu0 %v8127
  %8750 = vmatprep.subr.bf16.mxu0 %v8122
  %8751 = vmatpush2.bf16.msra.mxu0 %v8121
  %8752 = vmatprep.subr.bf16.mxu0 %v8116
  %8753 = vmatpush2.bf16.msra.mxu0 %v8115
  %8754 = vmatprep.subr.bf16.mxu0 %v8110
  %8755 = vmatpush2.bf16.msra.mxu0 %v8109
  %8756 = vmatprep.subr.bf16.mxu0 %v8104
  %8757 = vmatpush2.bf16.msra.mxu0 %v8103
  %8758 = vmatprep.subr.bf16.mxu0 %v8098
  %8759 = vmatpush2.bf16.msra.mxu0 %v8097
  %8760 = vmatprep.subr.bf16.mxu0 %v8092
  %8761 = vmatpush2.bf16.msra.mxu0 %v8091
  %8762 = vmatprep.subr.bf16.mxu0 %v8086
  %8763 = vmatpush2.bf16.msra.mxu0 %v8085
  %8764 = vmatprep.mubr.bf16.mxu0 %v8467
  %8765 = vmatmul.mubr.bf16.gmra.mxu0 %v8466
  %v8766 = vpop.f32.mrf.mxu0
  %v8767 = vadd.f32 %v8724, %v8766
  %v8768 = vpop.f32.mrf.mxu0
  %v8769 = vadd.f32 %v8726, %v8768
  %v8770 = vpop.f32.mrf.mxu0
  %v8771 = vadd.f32 %v8728, %v8770
  %v8772 = vpop.f32.mrf.mxu0
  %v8773 = vadd.f32 %v8730, %v8772
  %8774 = vdwg.mxu0
  %8775 = vmatprep.subr.bf16.mxu0 %v8176
  %8776 = vmatpush1.bf16.msra.mxu0 %v8175
  %8777 = vmatprep.subr.bf16.mxu0 %v8170
  %8778 = vmatpush1.bf16.msra.mxu0 %v8169
  %8779 = vmatprep.subr.bf16.mxu0 %v8164
  %8780 = vmatpush1.bf16.msra.mxu0 %v8163
  %8781 = vmatprep.subr.bf16.mxu0 %v8158
  %8782 = vmatpush1.bf16.msra.mxu0 %v8157
  %8783 = vmatprep.subr.bf16.mxu0 %v8152
  %8784 = vmatpush1.bf16.msra.mxu0 %v8151
  %8785 = vmatprep.subr.bf16.mxu0 %v8146
  %8786 = vmatpush1.bf16.msra.mxu0 %v8145
  %8787 = vmatprep.subr.bf16.mxu0 %v8140
  %8788 = vmatpush1.bf16.msra.mxu0 %v8139
  %8789 = vmatprep.subr.bf16.mxu0 %v8134
  %8790 = vmatpush1.bf16.msra.mxu0 %v8133
  %8791 = vmatprep.subr.bf16.mxu0 %v8224
  %8792 = vmatpush2.bf16.msra.mxu0 %v8223
  %8793 = vmatprep.subr.bf16.mxu0 %v8218
  %8794 = vmatpush2.bf16.msra.mxu0 %v8217
  %8795 = vmatprep.subr.bf16.mxu0 %v8212
  %8796 = vmatpush2.bf16.msra.mxu0 %v8211
  %8797 = vmatprep.subr.bf16.mxu0 %v8206
  %8798 = vmatpush2.bf16.msra.mxu0 %v8205
  %8799 = vmatprep.subr.bf16.mxu0 %v8200
  %8800 = vmatpush2.bf16.msra.mxu0 %v8199
  %8801 = vmatprep.subr.bf16.mxu0 %v8194
  %8802 = vmatpush2.bf16.msra.mxu0 %v8193
  %8803 = vmatprep.subr.bf16.mxu0 %v8188
  %8804 = vmatpush2.bf16.msra.mxu0 %v8187
  %8805 = vmatprep.subr.bf16.mxu0 %v8182
  %8806 = vmatpush2.bf16.msra.mxu0 %v8181
  %8807 = vmatprep.mubr.bf16.mxu0 %v8469
  %8808 = vmatmul.mubr.bf16.gmra.mxu0 %v8468
  %v8809 = vpop.f32.mrf.mxu0
  %v8810 = vadd.f32 %v8767, %v8809
  %v8811 = vpop.f32.mrf.mxu0
  %v8812 = vadd.f32 %v8769, %v8811
  %v8813 = vpop.f32.mrf.mxu0
  %v8814 = vadd.f32 %v8771, %v8813
  %v8815 = vpop.f32.mrf.mxu0
  %v8816 = vadd.f32 %v8773, %v8815
  %8817 = vdwg.mxu0
  %8818 = vmatprep.subr.bf16.mxu0 %v8272
  %8819 = vmatpush1.bf16.msra.mxu0 %v8271
  %8820 = vmatprep.subr.bf16.mxu0 %v8266
  %8821 = vmatpush1.bf16.msra.mxu0 %v8265
  %8822 = vmatprep.subr.bf16.mxu0 %v8260
  %8823 = vmatpush1.bf16.msra.mxu0 %v8259
  %8824 = vmatprep.subr.bf16.mxu0 %v8254
  %8825 = vmatpush1.bf16.msra.mxu0 %v8253
  %8826 = vmatprep.subr.bf16.mxu0 %v8248
  %8827 = vmatpush1.bf16.msra.mxu0 %v8247
  %8828 = vmatprep.subr.bf16.mxu0 %v8242
  %8829 = vmatpush1.bf16.msra.mxu0 %v8241
  %8830 = vmatprep.subr.bf16.mxu0 %v8236
  %8831 = vmatpush1.bf16.msra.mxu0 %v8235
  %8832 = vmatprep.subr.bf16.mxu0 %v8230
  %8833 = vmatpush1.bf16.msra.mxu0 %v8229
  %8834 = vmatprep.subr.bf16.mxu0 %v8320
  %8835 = vmatpush2.bf16.msra.mxu0 %v8319
  %8836 = vmatprep.subr.bf16.mxu0 %v8314
  %8837 = vmatpush2.bf16.msra.mxu0 %v8313
  %8838 = vmatprep.subr.bf16.mxu0 %v8308
  %8839 = vmatpush2.bf16.msra.mxu0 %v8307
  %8840 = vmatprep.subr.bf16.mxu0 %v8302
  %8841 = vmatpush2.bf16.msra.mxu0 %v8301
  %8842 = vmatprep.subr.bf16.mxu0 %v8296
  %8843 = vmatpush2.bf16.msra.mxu0 %v8295
  %8844 = vmatprep.subr.bf16.mxu0 %v8290
  %8845 = vmatpush2.bf16.msra.mxu0 %v8289
  %8846 = vmatprep.subr.bf16.mxu0 %v8284
  %8847 = vmatpush2.bf16.msra.mxu0 %v8283
  %8848 = vmatprep.subr.bf16.mxu0 %v8278
  %8849 = vmatpush2.bf16.msra.mxu0 %v8277
  %8850 = vmatprep.mubr.bf16.mxu0 %v8471
  %8851 = vmatmul.mubr.bf16.gmra.mxu0 %v8470
  %v8852 = vpop.f32.mrf.mxu0
  %v8853 = vadd.f32 %v8810, %v8852
  %v8854 = vpop.f32.mrf.mxu0
  %v8855 = vadd.f32 %v8812, %v8854
  %v8856 = vpop.f32.mrf.mxu0
  %v8857 = vadd.f32 %v8814, %v8856
  %v8858 = vpop.f32.mrf.mxu0
  %v8859 = vadd.f32 %v8816, %v8858
  %8860 = vdwg.mxu0
  %8861 = vmatprep.subr.bf16.mxu0 %v8368
  %8862 = vmatpush1.bf16.msra.mxu0 %v8367
  %8863 = vmatprep.subr.bf16.mxu0 %v8362
  %8864 = vmatpush1.bf16.msra.mxu0 %v8361
  %8865 = vmatprep.subr.bf16.mxu0 %v8356
  %8866 = vmatpush1.bf16.msra.mxu0 %v8355
  %8867 = vmatprep.subr.bf16.mxu0 %v8350
  %8868 = vmatpush1.bf16.msra.mxu0 %v8349
  %8869 = vmatprep.subr.bf16.mxu0 %v8344
  %8870 = vmatpush1.bf16.msra.mxu0 %v8343
  %8871 = vmatprep.subr.bf16.mxu0 %v8338
  %8872 = vmatpush1.bf16.msra.mxu0 %v8337
  %8873 = vmatprep.subr.bf16.mxu0 %v8332
  %8874 = vmatpush1.bf16.msra.mxu0 %v8331
  %8875 = vmatprep.subr.bf16.mxu0 %v8326
  %8876 = vmatpush1.bf16.msra.mxu0 %v8325
  %8877 = vmatprep.subr.bf16.mxu0 %v8416
  %8878 = vmatpush2.bf16.msra.mxu0 %v8415
  %8879 = vmatprep.subr.bf16.mxu0 %v8410
  %8880 = vmatpush2.bf16.msra.mxu0 %v8409
  %8881 = vmatprep.subr.bf16.mxu0 %v8404
  %8882 = vmatpush2.bf16.msra.mxu0 %v8403
  %8883 = vmatprep.subr.bf16.mxu0 %v8398
  %8884 = vmatpush2.bf16.msra.mxu0 %v8397
  %8885 = vmatprep.subr.bf16.mxu0 %v8392
  %8886 = vmatpush2.bf16.msra.mxu0 %v8391
  %8887 = vmatprep.subr.bf16.mxu0 %v8386
  %8888 = vmatpush2.bf16.msra.mxu0 %v8385
  %8889 = vmatprep.subr.bf16.mxu0 %v8380
  %8890 = vmatpush2.bf16.msra.mxu0 %v8379
  %8891 = vmatprep.subr.bf16.mxu0 %v8374
  %8892 = vmatpush2.bf16.msra.mxu0 %v8373
  %8893 = vmatprep.mubr.bf16.mxu0 %v8473
  %8894 = vmatmul.mubr.bf16.gmra.mxu0 %v8472
  %v8895 = vpop.f32.mrf.mxu0
  %v8896 = vadd.f32 %v8853, %v8895
  %v8897 = vpop.f32.mrf.mxu0
  %v8898 = vadd.f32 %v8855, %v8897
  %v8899 = vpop.f32.mrf.mxu0
  %v8900 = vadd.f32 %v8857, %v8899
  %v8901 = vpop.f32.mrf.mxu0
  %v8902 = vadd.f32 %v8859, %v8901
  %8903 = vdwg.mxu0
  %8904 = vmatprep.subr.bf16.mxu0 %v7986
  %8905 = vmatpush1.bf16.msra.mxu0 %v7985
  %8906 = vmatprep.subr.bf16.mxu0 %v7980
  %8907 = vmatpush1.bf16.msra.mxu0 %v7979
  %8908 = vmatprep.subr.bf16.mxu0 %v7974
  %8909 = vmatpush1.bf16.msra.mxu0 %v7973
  %8910 = vmatprep.subr.bf16.mxu0 %v7968
  %8911 = vmatpush1.bf16.msra.mxu0 %v7967
  %8912 = vmatprep.subr.bf16.mxu0 %v7962
  %8913 = vmatpush1.bf16.msra.mxu0 %v7961
  %8914 = vmatprep.subr.bf16.mxu0 %v7956
  %8915 = vmatpush1.bf16.msra.mxu0 %v7955
  %8916 = vmatprep.subr.bf16.mxu0 %v7950
  %8917 = vmatpush1.bf16.msra.mxu0 %v7949
  %8918 = vmatprep.subr.bf16.mxu0 %v7944
  %8919 = vmatpush1.bf16.msra.mxu0 %v7943
  %8920 = vmatprep.subr.bf16.mxu0 %v8034
  %8921 = vmatpush2.bf16.msra.mxu0 %v8033
  %8922 = vmatprep.subr.bf16.mxu0 %v8028
  %8923 = vmatpush2.bf16.msra.mxu0 %v8027
  %8924 = vmatprep.subr.bf16.mxu0 %v8022
  %8925 = vmatpush2.bf16.msra.mxu0 %v8021
  %8926 = vmatprep.subr.bf16.mxu0 %v8016
  %8927 = vmatpush2.bf16.msra.mxu0 %v8015
  %8928 = vmatprep.subr.bf16.mxu0 %v8010
  %8929 = vmatpush2.bf16.msra.mxu0 %v8009
  %8930 = vmatprep.subr.bf16.mxu0 %v8004
  %8931 = vmatpush2.bf16.msra.mxu0 %v8003
  %8932 = vmatprep.subr.bf16.mxu0 %v7998
  %8933 = vmatpush2.bf16.msra.mxu0 %v7997
  %8934 = vmatprep.subr.bf16.mxu0 %v7992
  %8935 = vmatpush2.bf16.msra.mxu0 %v7991
  %8936 = vmatprep.mubr.bf16.mxu0 %v8465
  %8937 = vmatmul.mubr.bf16.gmra.mxu0 %v8464
  %v8938 = vpop.f32.mrf.mxu0
  %v8939 = vadd.f32 0.0, %v8938
  %v8940 = vpop.f32.mrf.mxu0
  %v8941 = vadd.f32 0.0, %v8940
  %v8942 = vpop.f32.mrf.mxu0
  %v8943 = vadd.f32 0.0, %v8942
  %v8944 = vpop.f32.mrf.mxu0
  %v8945 = vadd.f32 0.0, %v8944
  %8946 = vdwg.mxu0
  %8947 = vmatprep.subr.bf16.mxu0 %v8082
  %8948 = vmatpush1.bf16.msra.mxu0 %v8081
  %8949 = vmatprep.subr.bf16.mxu0 %v8076
  %8950 = vmatpush1.bf16.msra.mxu0 %v8075
  %8951 = vmatprep.subr.bf16.mxu0 %v8070
  %8952 = vmatpush1.bf16.msra.mxu0 %v8069
  %8953 = vmatprep.subr.bf16.mxu0 %v8064
  %8954 = vmatpush1.bf16.msra.mxu0 %v8063
  %8955 = vmatprep.subr.bf16.mxu0 %v8058
  %8956 = vmatpush1.bf16.msra.mxu0 %v8057
  %8957 = vmatprep.subr.bf16.mxu0 %v8052
  %8958 = vmatpush1.bf16.msra.mxu0 %v8051
  %8959 = vmatprep.subr.bf16.mxu0 %v8046
  %8960 = vmatpush1.bf16.msra.mxu0 %v8045
  %8961 = vmatprep.subr.bf16.mxu0 %v8040
  %8962 = vmatpush1.bf16.msra.mxu0 %v8039
  %8963 = vmatprep.subr.bf16.mxu0 %v8130
  %8964 = vmatpush2.bf16.msra.mxu0 %v8129
  %8965 = vmatprep.subr.bf16.mxu0 %v8124
  %8966 = vmatpush2.bf16.msra.mxu0 %v8123
  %8967 = vmatprep.subr.bf16.mxu0 %v8118
  %8968 = vmatpush2.bf16.msra.mxu0 %v8117
  %8969 = vmatprep.subr.bf16.mxu0 %v8112
  %8970 = vmatpush2.bf16.msra.mxu0 %v8111
  %8971 = vmatprep.subr.bf16.mxu0 %v8106
  %8972 = vmatpush2.bf16.msra.mxu0 %v8105
  %8973 = vmatprep.subr.bf16.mxu0 %v8100
  %8974 = vmatpush2.bf16.msra.mxu0 %v8099
  %8975 = vmatprep.subr.bf16.mxu0 %v8094
  %8976 = vmatpush2.bf16.msra.mxu0 %v8093
  %8977 = vmatprep.subr.bf16.mxu0 %v8088
  %8978 = vmatpush2.bf16.msra.mxu0 %v8087
  %8979 = vmatprep.mubr.bf16.mxu0 %v8467
  %8980 = vmatmul.mubr.bf16.gmra.mxu0 %v8466
  %v8981 = vpop.f32.mrf.mxu0
  %v8982 = vadd.f32 %v8939, %v8981
  %v8983 = vpop.f32.mrf.mxu0
  %v8984 = vadd.f32 %v8941, %v8983
  %v8985 = vpop.f32.mrf.mxu0
  %v8986 = vadd.f32 %v8943, %v8985
  %v8987 = vpop.f32.mrf.mxu0
  %v8988 = vadd.f32 %v8945, %v8987
  %8989 = vdwg.mxu0
  %8990 = vmatprep.subr.bf16.mxu0 %v8178
  %8991 = vmatpush1.bf16.msra.mxu0 %v8177
  %8992 = vmatprep.subr.bf16.mxu0 %v8172
  %8993 = vmatpush1.bf16.msra.mxu0 %v8171
  %8994 = vmatprep.subr.bf16.mxu0 %v8166
  %8995 = vmatpush1.bf16.msra.mxu0 %v8165
  %8996 = vmatprep.subr.bf16.mxu0 %v8160
  %8997 = vmatpush1.bf16.msra.mxu0 %v8159
  %8998 = vmatprep.subr.bf16.mxu0 %v8154
  %8999 = vmatpush1.bf16.msra.mxu0 %v8153
  %9000 = vmatprep.subr.bf16.mxu0 %v8148
  %9001 = vmatpush1.bf16.msra.mxu0 %v8147
  %9002 = vmatprep.subr.bf16.mxu0 %v8142
  %9003 = vmatpush1.bf16.msra.mxu0 %v8141
  %9004 = vmatprep.subr.bf16.mxu0 %v8136
  %9005 = vmatpush1.bf16.msra.mxu0 %v8135
  %9006 = vmatprep.subr.bf16.mxu0 %v8226
  %9007 = vmatpush2.bf16.msra.mxu0 %v8225
  %9008 = vmatprep.subr.bf16.mxu0 %v8220
  %9009 = vmatpush2.bf16.msra.mxu0 %v8219
  %9010 = vmatprep.subr.bf16.mxu0 %v8214
  %9011 = vmatpush2.bf16.msra.mxu0 %v8213
  %9012 = vmatprep.subr.bf16.mxu0 %v8208
  %9013 = vmatpush2.bf16.msra.mxu0 %v8207
  %9014 = vmatprep.subr.bf16.mxu0 %v8202
  %9015 = vmatpush2.bf16.msra.mxu0 %v8201
  %9016 = vmatprep.subr.bf16.mxu0 %v8196
  %9017 = vmatpush2.bf16.msra.mxu0 %v8195
  %9018 = vmatprep.subr.bf16.mxu0 %v8190
  %9019 = vmatpush2.bf16.msra.mxu0 %v8189
  %9020 = vmatprep.subr.bf16.mxu0 %v8184
  %9021 = vmatpush2.bf16.msra.mxu0 %v8183
  %9022 = vmatprep.mubr.bf16.mxu0 %v8469
  %9023 = vmatmul.mubr.bf16.gmra.mxu0 %v8468
  %v9024 = vpop.f32.mrf.mxu0
  %v9025 = vadd.f32 %v8982, %v9024
  %v9026 = vpop.f32.mrf.mxu0
  %v9027 = vadd.f32 %v8984, %v9026
  %v9028 = vpop.f32.mrf.mxu0
  %v9029 = vadd.f32 %v8986, %v9028
  %v9030 = vpop.f32.mrf.mxu0
  %v9031 = vadd.f32 %v8988, %v9030
  %9032 = vdwg.mxu0
  %9033 = vmatprep.subr.bf16.mxu0 %v8274
  %9034 = vmatpush1.bf16.msra.mxu0 %v8273
  %9035 = vmatprep.subr.bf16.mxu0 %v8268
  %9036 = vmatpush1.bf16.msra.mxu0 %v8267
  %9037 = vmatprep.subr.bf16.mxu0 %v8262
  %9038 = vmatpush1.bf16.msra.mxu0 %v8261
  %9039 = vmatprep.subr.bf16.mxu0 %v8256
  %9040 = vmatpush1.bf16.msra.mxu0 %v8255
  %9041 = vmatprep.subr.bf16.mxu0 %v8250
  %9042 = vmatpush1.bf16.msra.mxu0 %v8249
  %9043 = vmatprep.subr.bf16.mxu0 %v8244
  %9044 = vmatpush1.bf16.msra.mxu0 %v8243
  %9045 = vmatprep.subr.bf16.mxu0 %v8238
  %9046 = vmatpush1.bf16.msra.mxu0 %v8237
  %9047 = vmatprep.subr.bf16.mxu0 %v8232
  %9048 = vmatpush1.bf16.msra.mxu0 %v8231
  %9049 = vmatprep.subr.bf16.mxu0 %v8322
  %9050 = vmatpush2.bf16.msra.mxu0 %v8321
  %9051 = vmatprep.subr.bf16.mxu0 %v8316
  %9052 = vmatpush2.bf16.msra.mxu0 %v8315
  %9053 = vmatprep.subr.bf16.mxu0 %v8310
  %9054 = vmatpush2.bf16.msra.mxu0 %v8309
  %9055 = vmatprep.subr.bf16.mxu0 %v8304
  %9056 = vmatpush2.bf16.msra.mxu0 %v8303
  %9057 = vmatprep.subr.bf16.mxu0 %v8298
  %9058 = vmatpush2.bf16.msra.mxu0 %v8297
  %9059 = vmatprep.subr.bf16.mxu0 %v8292
  %9060 = vmatpush2.bf16.msra.mxu0 %v8291
  %9061 = vmatprep.subr.bf16.mxu0 %v8286
  %9062 = vmatpush2.bf16.msra.mxu0 %v8285
  %9063 = vmatprep.subr.bf16.mxu0 %v8280
  %9064 = vmatpush2.bf16.msra.mxu0 %v8279
  %9065 = vmatprep.mubr.bf16.mxu0 %v8471
  %9066 = vmatmul.mubr.bf16.gmra.mxu0 %v8470
  %v9067 = vpop.f32.mrf.mxu0
  %v9068 = vadd.f32 %v9025, %v9067
  %v9069 = vpop.f32.mrf.mxu0
  %v9070 = vadd.f32 %v9027, %v9069
  %v9071 = vpop.f32.mrf.mxu0
  %v9072 = vadd.f32 %v9029, %v9071
  %v9073 = vpop.f32.mrf.mxu0
  %v9074 = vadd.f32 %v9031, %v9073
  %9075 = vdwg.mxu0
  %9076 = vmatprep.subr.bf16.mxu0 %v8370
  %9077 = vmatpush1.bf16.msra.mxu0 %v8369
  %9078 = vmatprep.subr.bf16.mxu0 %v8364
  %9079 = vmatpush1.bf16.msra.mxu0 %v8363
  %9080 = vmatprep.subr.bf16.mxu0 %v8358
  %9081 = vmatpush1.bf16.msra.mxu0 %v8357
  %9082 = vmatprep.subr.bf16.mxu0 %v8352
  %9083 = vmatpush1.bf16.msra.mxu0 %v8351
  %9084 = vmatprep.subr.bf16.mxu0 %v8346
  %9085 = vmatpush1.bf16.msra.mxu0 %v8345
  %9086 = vmatprep.subr.bf16.mxu0 %v8340
  %9087 = vmatpush1.bf16.msra.mxu0 %v8339
  %9088 = vmatprep.subr.bf16.mxu0 %v8334
  %9089 = vmatpush1.bf16.msra.mxu0 %v8333
  %9090 = vmatprep.subr.bf16.mxu0 %v8328
  %9091 = vmatpush1.bf16.msra.mxu0 %v8327
  %9092 = vmatprep.subr.bf16.mxu0 %v8418
  %9093 = vmatpush2.bf16.msra.mxu0 %v8417
  %9094 = vmatprep.subr.bf16.mxu0 %v8412
  %9095 = vmatpush2.bf16.msra.mxu0 %v8411
  %9096 = vmatprep.subr.bf16.mxu0 %v8406
  %9097 = vmatpush2.bf16.msra.mxu0 %v8405
  %9098 = vmatprep.subr.bf16.mxu0 %v8400
  %9099 = vmatpush2.bf16.msra.mxu0 %v8399
  %9100 = vmatprep.subr.bf16.mxu0 %v8394
  %9101 = vmatpush2.bf16.msra.mxu0 %v8393
  %9102 = vmatprep.subr.bf16.mxu0 %v8388
  %9103 = vmatpush2.bf16.msra.mxu0 %v8387
  %9104 = vmatprep.subr.bf16.mxu0 %v8382
  %9105 = vmatpush2.bf16.msra.mxu0 %v8381
  %9106 = vmatprep.subr.bf16.mxu0 %v8376
  %9107 = vmatpush2.bf16.msra.mxu0 %v8375
  %9108 = vmatprep.mubr.bf16.mxu0 %v8473
  %9109 = vmatmul.mubr.bf16.gmra.mxu0 %v8472
  %v9110 = vpop.f32.mrf.mxu0
  %v9111 = vadd.f32 %v9068, %v9110
  %v9112 = vpop.f32.mrf.mxu0
  %v9113 = vadd.f32 %v9070, %v9112
  %v9114 = vpop.f32.mrf.mxu0
  %v9115 = vadd.f32 %v9072, %v9114
  %v9116 = vpop.f32.mrf.mxu0
  %v9117 = vadd.f32 %v9074, %v9116
  %9118 = vdwg.mxu0
  %v9119 = vld [vmem:[%s13] ss:$2 sm:$0x3f]
  %s9120 = scalar_lea.vmem %s13, 1
  %v9121 = vld [vmem:[%s9120] ss:$2 sm:$0x3f]
  %v9123 = vlaneseq
  %v9124 = vshrl.u32 %v9123, 7
  %v9125 = vsub.s32 0, %v9124
  %v9126 = vrot.slane %v9119, %v9125
  %v9127 = vlaneseq
  %v9128 = vshrl.u32 %v9127, 7
  %v9129 = vsub.s32 1, %v9128
  %v9130 = vrot.slane %v9119, %v9129
  %v9131 = vlaneseq
  %v9132 = vshrl.u32 %v9131, 7
  %v9133 = vsub.s32 2, %v9132
  %v9134 = vrot.slane %v9119, %v9133
  %v9135 = vlaneseq
  %v9136 = vshrl.u32 %v9135, 7
  %v9137 = vsub.s32 3, %v9136
  %v9138 = vrot.slane %v9119, %v9137
  %v9139 = vlaneseq
  %v9140 = vshrl.u32 %v9139, 7
  %v9141 = vsub.s32 4, %v9140
  %v9142 = vrot.slane %v9119, %v9141
  %v9143 = vlaneseq
  %v9144 = vshrl.u32 %v9143, 7
  %v9145 = vsub.s32 5, %v9144
  %v9146 = vrot.slane %v9119, %v9145
  %v9153 = vmul.f32 %v8681, %v9126
  %v9154 = vmul.f32 %v8683, %v9130
  %v9155 = vmul.f32 %v8896, %v9134
  %v9156 = vmul.f32 %v8898, %v9138
  %v9157 = vmul.f32 %v9111, %v9142
  %v9158 = vmul.f32 %v9113, %v9146
  %v9159 = vmul.f32 %v8685, %v9126
  %v9160 = vmul.f32 %v8687, %v9130
  %v9161 = vmul.f32 %v8900, %v9134
  %v9162 = vmul.f32 %v8902, %v9138
  %v9163 = vmul.f32 %v9115, %v9142
  %v9164 = vmul.f32 %v9117, %v9146
  %v9166 = vlaneseq
  %v9167 = vshrl.u32 %v9166, 7
  %v9168 = vsub.s32 0, %v9167
  %v9169 = vrot.slane %v9121, %v9168
  %v9170 = vlaneseq
  %v9171 = vshrl.u32 %v9170, 7
  %v9172 = vsub.s32 1, %v9171
  %v9173 = vrot.slane %v9121, %v9172
  %v9174 = vlaneseq
  %v9175 = vshrl.u32 %v9174, 7
  %v9176 = vsub.s32 2, %v9175
  %v9177 = vrot.slane %v9121, %v9176
  %v9178 = vlaneseq
  %v9179 = vshrl.u32 %v9178, 7
  %v9180 = vsub.s32 3, %v9179
  %v9181 = vrot.slane %v9121, %v9180
  %v9182 = vlaneseq
  %v9183 = vshrl.u32 %v9182, 7
  %v9184 = vsub.s32 4, %v9183
  %v9185 = vrot.slane %v9121, %v9184
  %v9186 = vlaneseq
  %v9187 = vshrl.u32 %v9186, 7
  %v9188 = vsub.s32 5, %v9187
  %v9189 = vrot.slane %v9121, %v9188
  %v9196 = vadd.f32 %v9153, %v9169
  %v9197 = vadd.f32 %v9154, %v9173
  %v9198 = vadd.f32 %v9155, %v9177
  %v9199 = vadd.f32 %v9156, %v9181
  %v9200 = vadd.f32 %v9157, %v9185
  %v9201 = vadd.f32 %v9158, %v9189
  %v9202 = vadd.f32 %v9159, %v9169
  %v9203 = vadd.f32 %v9160, %v9173
  %v9204 = vadd.f32 %v9161, %v9177
  %v9205 = vadd.f32 %v9162, %v9181
  %v9206 = vadd.f32 %v9163, %v9185
  %v9207 = vadd.f32 %v9164, %v9189
  %v9208 = vxor.u32 %v9196, 2147483648
  %v9209 = vxor.u32 %v9197, 2147483648
  %v9210 = vxor.u32 %v9198, 2147483648
  %v9211 = vxor.u32 %v9199, 2147483648
  %v9212 = vxor.u32 %v9200, 2147483648
  %v9213 = vxor.u32 %v9201, 2147483648
  %v9214 = vxor.u32 %v9202, 2147483648
  %v9215 = vxor.u32 %v9203, 2147483648
  %v9216 = vxor.u32 %v9204, 2147483648
  %v9217 = vxor.u32 %v9205, 2147483648
  %v9218 = vxor.u32 %v9206, 2147483648
  %v9219 = vxor.u32 %v9207, 2147483648
  %v9220 = vmul.f32 %v9208, 1.442695
  %v9221 = vpow.pop %v9220
  %v9222 = vmul.f32 %v9209, 1.442695
  %v9223 = vpow.pop %v9222
  %v9224 = vmul.f32 %v9210, 1.442695
  %v9225 = vpow.pop %v9224
  %v9226 = vmul.f32 %v9211, 1.442695
  %v9227 = vpow.pop %v9226
  %v9228 = vmul.f32 %v9212, 1.442695
  %v9229 = vpow.pop %v9228
  %v9230 = vmul.f32 %v9213, 1.442695
  %v9231 = vpow.pop %v9230
  %v9232 = vmul.f32 %v9214, 1.442695
  %v9233 = vpow.pop %v9232
  %v9234 = vmul.f32 %v9215, 1.442695
  %v9235 = vpow.pop %v9234
  %v9236 = vmul.f32 %v9216, 1.442695
  %v9237 = vpow.pop %v9236
  %v9238 = vmul.f32 %v9217, 1.442695
  %v9239 = vpow.pop %v9238
  %v9240 = vmul.f32 %v9218, 1.442695
  %v9241 = vpow.pop %v9240
  %v9242 = vmul.f32 %v9219, 1.442695
  %v9243 = vpow.pop %v9242
  %v9244 = vadd.f32 %v9221, 1.0
  %v9245 = vadd.f32 %v9223, 1.0
  %v9246 = vadd.f32 %v9225, 1.0
  %v9247 = vadd.f32 %v9227, 1.0
  %v9248 = vadd.f32 %v9229, 1.0
  %v9249 = vadd.f32 %v9231, 1.0
  %v9250 = vadd.f32 %v9233, 1.0
  %v9251 = vadd.f32 %v9235, 1.0
  %v9252 = vadd.f32 %v9237, 1.0
  %v9253 = vadd.f32 %v9239, 1.0
  %v9254 = vadd.f32 %v9241, 1.0
  %v9255 = vadd.f32 %v9243, 1.0
  %v9256 = vrcp.pop %v9244
  %v9257 = vmul.f32 1.0, %v9256
  %v9258 = vrcp.pop %v9245
  %v9259 = vmul.f32 1.0, %v9258
  %v9260 = vrcp.pop %v9246
  %v9261 = vmul.f32 1.0, %v9260
  %v9262 = vrcp.pop %v9247
  %v9263 = vmul.f32 1.0, %v9262
  %v9264 = vrcp.pop %v9248
  %v9265 = vmul.f32 1.0, %v9264
  %v9266 = vrcp.pop %v9249
  %v9267 = vmul.f32 1.0, %v9266
  %v9268 = vrcp.pop %v9250
  %v9269 = vmul.f32 1.0, %v9268
  %v9270 = vrcp.pop %v9251
  %v9271 = vmul.f32 1.0, %v9270
  %v9272 = vrcp.pop %v9252
  %v9273 = vmul.f32 1.0, %v9272
  %v9274 = vrcp.pop %v9253
  %v9275 = vmul.f32 1.0, %v9274
  %v9276 = vrcp.pop %v9254
  %v9277 = vmul.f32 1.0, %v9276
  %v9278 = vrcp.pop %v9255
  %v9279 = vmul.f32 1.0, %v9278
  %v9280 = vmul.f32 %v9196, %v9257
  %v9281 = vmul.f32 %v9197, %v9259
  %v9282 = vmul.f32 %v9198, %v9261
  %v9283 = vmul.f32 %v9199, %v9263
  %v9284 = vmul.f32 %v9200, %v9265
  %v9285 = vmul.f32 %v9201, %v9267
  %v9286 = vmul.f32 %v9202, %v9269
  %v9287 = vmul.f32 %v9203, %v9271
  %v9288 = vmul.f32 %v9204, %v9273
  %v9289 = vmul.f32 %v9205, %v9275
  %v9290 = vmul.f32 %v9206, %v9277
  %v9291 = vmul.f32 %v9207, %v9279
  // Predicated region
  $region270: #{encoder2_forward.1} parent=0 // pred_check
    %p9292 = pneg %p37
  $region271: #{encoder2_forward.1} parent=0 // pred_check_branch
    %9294 = sbr.rel (%p9292) target = $region273
  $region272: #{encoder2_forward.1} parent=0 // pred_region
    %s9295 = scalar_lea.sflag [#allocation9], 6
    %s9296 = smul.u32 2, 96
    %s9297 = smul.u32 %s9296, 1
    %s9298 = sshll.u32 %s9297, 4
    %9299 = dma.done %s9295, %s9298
  $region273: #{encoder2_forward.1} parent=0 // pred_fallthru
    _
  %v9300 = vld [vmem:[#allocation8] sm:$0xff]
  %v9301 = vld [vmem:[#allocation8 + $0x8] sm:$0xff]
  %v9302 = vld [vmem:[#allocation8 + $0x10] sm:$0xff]
  %v9303 = vld [vmem:[#allocation8 + $0x18] sm:$0xff]
  %v9304 = vld [vmem:[#allocation8 + $0x20] sm:$0xff]
  %v9305 = vld [vmem:[#allocation8 + $0x28] sm:$0xff]
  %v9306 = vld [vmem:[#allocation8 + $0x30] sm:$0xff]
  %v9307 = vld [vmem:[#allocation8 + $0x38] sm:$0xff]
  %v9308 = vld [vmem:[#allocation8 + $0x40] sm:$0xff]
  %v9309 = vld [vmem:[#allocation8 + $0x48] sm:$0xff]
  %v9310 = vld [vmem:[#allocation8 + $0x50] sm:$0xff]
  %v9311 = vld [vmem:[#allocation8 + $0x58] sm:$0xff]
  %v9312 = vld [vmem:[#allocation8 + $0x60] sm:$0xff]
  %v9313 = vld [vmem:[#allocation8 + $0x68] sm:$0xff]
  %v9314 = vld [vmem:[#allocation8 + $0x70] sm:$0xff]
  %v9315 = vld [vmem:[#allocation8 + $0x78] sm:$0xff]
  %v9316 = vld [vmem:[#allocation8 + $0x80] sm:$0xff]
  %v9317 = vld [vmem:[#allocation8 + $0x88] sm:$0xff]
  %v9318 = vld [vmem:[#allocation8 + $0x90] sm:$0xff]
  %v9319 = vld [vmem:[#allocation8 + $0x98] sm:$0xff]
  %v9320 = vld [vmem:[#allocation8 + $0xa0] sm:$0xff]
  %v9321 = vld [vmem:[#allocation8 + $0xa8] sm:$0xff]
  %v9322 = vld [vmem:[#allocation8 + $0xb0] sm:$0xff]
  %v9323 = vld [vmem:[#allocation8 + $0xb8] sm:$0xff]
  %v9324 = vunpack.c.l.s8.bf16 %v9300
  %v9325 = vunpack.c.h.s8.bf16 %v9300
  %v9326 = vunpack.c.l.s8.bf16 %v9301
  %v9327 = vunpack.c.h.s8.bf16 %v9301
  %v9328 = vunpack.c.l.s8.bf16 %v9302
  %v9329 = vunpack.c.h.s8.bf16 %v9302
  %v9330 = vunpack.c.l.s8.bf16 %v9303
  %v9331 = vunpack.c.h.s8.bf16 %v9303
  %v9332 = vunpack.c.l.s8.bf16 %v9304
  %v9333 = vunpack.c.h.s8.bf16 %v9304
  %v9334 = vunpack.c.l.s8.bf16 %v9305
  %v9335 = vunpack.c.h.s8.bf16 %v9305
  %v9336 = vunpack.c.l.s8.bf16 %v9306
  %v9337 = vunpack.c.h.s8.bf16 %v9306
  %v9338 = vunpack.c.l.s8.bf16 %v9307
  %v9339 = vunpack.c.h.s8.bf16 %v9307
  %v9340 = vunpack.c.l.s8.bf16 %v9308
  %v9341 = vunpack.c.h.s8.bf16 %v9308
  %v9342 = vunpack.c.l.s8.bf16 %v9309
  %v9343 = vunpack.c.h.s8.bf16 %v9309
  %v9344 = vunpack.c.l.s8.bf16 %v9310
  %v9345 = vunpack.c.h.s8.bf16 %v9310
  %v9346 = vunpack.c.l.s8.bf16 %v9311
  %v9347 = vunpack.c.h.s8.bf16 %v9311
  %v9348 = vunpack.c.l.s8.bf16 %v9312
  %v9349 = vunpack.c.h.s8.bf16 %v9312
  %v9350 = vunpack.c.l.s8.bf16 %v9313
  %v9351 = vunpack.c.h.s8.bf16 %v9313
  %v9352 = vunpack.c.l.s8.bf16 %v9314
  %v9353 = vunpack.c.h.s8.bf16 %v9314
  %v9354 = vunpack.c.l.s8.bf16 %v9315
  %v9355 = vunpack.c.h.s8.bf16 %v9315
  %v9356 = vunpack.c.l.s8.bf16 %v9316
  %v9357 = vunpack.c.h.s8.bf16 %v9316
  %v9358 = vunpack.c.l.s8.bf16 %v9317
  %v9359 = vunpack.c.h.s8.bf16 %v9317
  %v9360 = vunpack.c.l.s8.bf16 %v9318
  %v9361 = vunpack.c.h.s8.bf16 %v9318
  %v9362 = vunpack.c.l.s8.bf16 %v9319
  %v9363 = vunpack.c.h.s8.bf16 %v9319
  %v9364 = vunpack.c.l.s8.bf16 %v9320
  %v9365 = vunpack.c.h.s8.bf16 %v9320
  %v9366 = vunpack.c.l.s8.bf16 %v9321
  %v9367 = vunpack.c.h.s8.bf16 %v9321
  %v9368 = vunpack.c.l.s8.bf16 %v9322
  %v9369 = vunpack.c.h.s8.bf16 %v9322
  %v9370 = vunpack.c.l.s8.bf16 %v9323
  %v9371 = vunpack.c.h.s8.bf16 %v9323
  %v9372 = vpack.c.bf16 %v9286, %v9280
  %v9373 = vpack.c.bf16 %v9287, %v9281
  %v9374 = vpack.c.bf16 %v9288, %v9282
  %v9375 = vpack.c.bf16 %v9289, %v9283
  %v9376 = vpack.c.bf16 %v9290, %v9284
  %v9377 = vpack.c.bf16 %v9291, %v9285
  %9378 = vmatprep.subr.bf16.mxu0 0
  %9379 = vmatpush1.bf16.msra.mxu0 %v9331
  %9380 = vmatprep.subr.bf16.mxu0 0
  %9381 = vmatpush1.bf16.msra.mxu0 %v9330
  %9382 = vmatprep.subr.bf16.mxu0 0
  %9383 = vmatpush1.bf16.msra.mxu0 %v9329
  %9384 = vmatprep.subr.bf16.mxu0 0
  %9385 = vmatpush1.bf16.msra.mxu0 %v9328
  %9386 = vmatprep.subr.bf16.mxu0 0
  %9387 = vmatpush1.bf16.msra.mxu0 %v9327
  %9388 = vmatprep.subr.bf16.mxu0 0
  %9389 = vmatpush1.bf16.msra.mxu0 %v9326
  %9390 = vmatprep.subr.bf16.mxu0 0
  %9391 = vmatpush1.bf16.msra.mxu0 %v9325
  %9392 = vmatprep.subr.bf16.mxu0 0
  %9393 = vmatpush1.bf16.msra.mxu0 %v9324
  %9394 = vmatprep.subr.bf16.mxu0 0
  %9395 = vmatpush2.bf16.msra.mxu0 %v9339
  %9396 = vmatprep.subr.bf16.mxu0 0
  %9397 = vmatpush2.bf16.msra.mxu0 %v9338
  %9398 = vmatprep.subr.bf16.mxu0 0
  %9399 = vmatpush2.bf16.msra.mxu0 %v9337
  %9400 = vmatprep.subr.bf16.mxu0 0
  %9401 = vmatpush2.bf16.msra.mxu0 %v9336
  %9402 = vmatprep.subr.bf16.mxu0 0
  %9403 = vmatpush2.bf16.msra.mxu0 %v9335
  %9404 = vmatprep.subr.bf16.mxu0 0
  %9405 = vmatpush2.bf16.msra.mxu0 %v9334
  %9406 = vmatprep.subr.bf16.mxu0 0
  %9407 = vmatpush2.bf16.msra.mxu0 %v9333
  %9408 = vmatprep.subr.bf16.mxu0 0
  %9409 = vmatpush2.bf16.msra.mxu0 %v9332
  %9410 = vmatprep.mubr.bf16.mxu0 %v9373
  %9411 = vmatmul.mubr.bf16.gmra.mxu0 %v9372
  %v9412 = vpop.f32.mrf.mxu0
  %v9413 = vadd.f32 0.0, %v9412
  %v9414 = vpop.f32.mrf.mxu0
  %v9415 = vpop.f32.mrf.mxu0
  %v9416 = vadd.f32 0.0, %v9415
  %v9417 = vpop.f32.mrf.mxu0
  %9418 = vdwg.mxu0
  %9419 = vmatprep.subr.bf16.mxu0 0
  %9420 = vmatpush1.bf16.msra.mxu0 %v9347
  %9421 = vmatprep.subr.bf16.mxu0 0
  %9422 = vmatpush1.bf16.msra.mxu0 %v9346
  %9423 = vmatprep.subr.bf16.mxu0 0
  %9424 = vmatpush1.bf16.msra.mxu0 %v9345
  %9425 = vmatprep.subr.bf16.mxu0 0
  %9426 = vmatpush1.bf16.msra.mxu0 %v9344
  %9427 = vmatprep.subr.bf16.mxu0 0
  %9428 = vmatpush1.bf16.msra.mxu0 %v9343
  %9429 = vmatprep.subr.bf16.mxu0 0
  %9430 = vmatpush1.bf16.msra.mxu0 %v9342
  %9431 = vmatprep.subr.bf16.mxu0 0
  %9432 = vmatpush1.bf16.msra.mxu0 %v9341
  %9433 = vmatprep.subr.bf16.mxu0 0
  %9434 = vmatpush1.bf16.msra.mxu0 %v9340
  %9435 = vmatprep.subr.bf16.mxu0 0
  %9436 = vmatpush2.bf16.msra.mxu0 %v9355
  %9437 = vmatprep.subr.bf16.mxu0 0
  %9438 = vmatpush2.bf16.msra.mxu0 %v9354
  %9439 = vmatprep.subr.bf16.mxu0 0
  %9440 = vmatpush2.bf16.msra.mxu0 %v9353
  %9441 = vmatprep.subr.bf16.mxu0 0
  %9442 = vmatpush2.bf16.msra.mxu0 %v9352
  %9443 = vmatprep.subr.bf16.mxu0 0
  %9444 = vmatpush2.bf16.msra.mxu0 %v9351
  %9445 = vmatprep.subr.bf16.mxu0 0
  %9446 = vmatpush2.bf16.msra.mxu0 %v9350
  %9447 = vmatprep.subr.bf16.mxu0 0
  %9448 = vmatpush2.bf16.msra.mxu0 %v9349
  %9449 = vmatprep.subr.bf16.mxu0 0
  %9450 = vmatpush2.bf16.msra.mxu0 %v9348
  %9451 = vmatprep.mubr.bf16.mxu0 %v9375
  %9452 = vmatmul.mubr.bf16.gmra.mxu0 %v9374
  %v9453 = vpop.f32.mrf.mxu0
  %v9454 = vadd.f32 %v9413, %v9453
  %v9455 = vpop.f32.mrf.mxu0
  %v9456 = vpop.f32.mrf.mxu0
  %v9457 = vadd.f32 %v9416, %v9456
  %v9458 = vpop.f32.mrf.mxu0
  %9459 = vdwg.mxu0
  %9460 = vmatprep.subr.bf16.mxu0 0
  %9461 = vmatpush1.bf16.msra.mxu0 %v9363
  %9462 = vmatprep.subr.bf16.mxu0 0
  %9463 = vmatpush1.bf16.msra.mxu0 %v9362
  %9464 = vmatprep.subr.bf16.mxu0 0
  %9465 = vmatpush1.bf16.msra.mxu0 %v9361
  %9466 = vmatprep.subr.bf16.mxu0 0
  %9467 = vmatpush1.bf16.msra.mxu0 %v9360
  %9468 = vmatprep.subr.bf16.mxu0 0
  %9469 = vmatpush1.bf16.msra.mxu0 %v9359
  %9470 = vmatprep.subr.bf16.mxu0 0
  %9471 = vmatpush1.bf16.msra.mxu0 %v9358
  %9472 = vmatprep.subr.bf16.mxu0 0
  %9473 = vmatpush1.bf16.msra.mxu0 %v9357
  %9474 = vmatprep.subr.bf16.mxu0 0
  %9475 = vmatpush1.bf16.msra.mxu0 %v9356
  %9476 = vmatprep.subr.bf16.mxu0 0
  %9477 = vmatpush2.bf16.msra.mxu0 %v9371
  %9478 = vmatprep.subr.bf16.mxu0 0
  %9479 = vmatpush2.bf16.msra.mxu0 %v9370
  %9480 = vmatprep.subr.bf16.mxu0 0
  %9481 = vmatpush2.bf16.msra.mxu0 %v9369
  %9482 = vmatprep.subr.bf16.mxu0 0
  %9483 = vmatpush2.bf16.msra.mxu0 %v9368
  %9484 = vmatprep.subr.bf16.mxu0 0
  %9485 = vmatpush2.bf16.msra.mxu0 %v9367
  %9486 = vmatprep.subr.bf16.mxu0 0
  %9487 = vmatpush2.bf16.msra.mxu0 %v9366
  %9488 = vmatprep.subr.bf16.mxu0 0
  %9489 = vmatpush2.bf16.msra.mxu0 %v9365
  %9490 = vmatprep.subr.bf16.mxu0 0
  %9491 = vmatpush2.bf16.msra.mxu0 %v9364
  %9492 = vmatprep.mubr.bf16.mxu0 %v9377
  %9493 = vmatmul.mubr.bf16.gmra.mxu0 %v9376
  %v9494 = vpop.f32.mrf.mxu0
  %v9495 = vadd.f32 %v9454, %v9494
  %v9496 = vpop.f32.mrf.mxu0
  %v9497 = vpop.f32.mrf.mxu0
  %v9498 = vadd.f32 %v9457, %v9497
  %v9499 = vpop.f32.mrf.mxu0
  %9500 = vdwg.mxu0
  %v9501 = vld [vmem:[%s14] sm:$0x1]
  %v9502 = vld [vmem:[%s14 + $0x1] sm:$0x1]
  %v9503 = vlaneseq
  %v9504 = vshrl.u32 %v9503, 7
  %v9505 = vsub.s32 0, %v9504
  %v9506 = vrot.slane %v9501, %v9505
  %v9507 = vmul.f32 %v9495, %v9506
  %v9508 = vmul.f32 %v9498, %v9506
  %v9509 = vlaneseq
  %v9510 = vshrl.u32 %v9509, 7
  %v9511 = vsub.s32 0, %v9510
  %v9512 = vrot.slane %v9502, %v9511
  %v9513 = vadd.f32 %v9507, %v9512
  %v9514 = vadd.f32 %v9508, %v9512
  %v9515 = vtanh.pop %v9513
  %v9516 = vtanh.pop %v9514
  %vm9517 = vcmask 523264
  %9518 = vst.msk [vmem:[%s15] sm:$0xff] %vm9517, %v9515
  %9519 = vst.msk [vmem:[%s15 + $0x8] sm:$0xff] %vm9517, %v9516
  // Predicated region
  $region274: #{encoder2_forward.1} parent=0 // pred_check
    _
  $region275: #{encoder2_forward.1} parent=0 // pred_check_branch
    %9521 = sbr.rel (0) target = $region277
  $region276: #{encoder2_forward.1} parent=0 // pred_region
    _
  $region277: #{encoder2_forward.1} parent=0 // pred_fallthru
    _
  // Predicated region
  $region278: #{encoder2_forward.1} parent=0 // pred_check
    _
  $region279: #{encoder2_forward.1} parent=0 // pred_check_branch
    %9523 = sbr.rel (0) target = $region281
  $region280: #{encoder2_forward.1} parent=0 // pred_region
    _
  $region281: #{encoder2_forward.1} parent=0 // pred_fallthru
    _
  %9524 = vsyncmov [#allocation9]
  %s9525 = vpop.sfrf %9524
  %p9526 = scmp.eq.s32.totalorder %s9525, 0
  %p9527 = pneg %p9526
  %9529 = shalt.err (%p9527)
  %s9530 = scalar_lea.sflag [#allocation9], 1
  %9531 = vsyncmov %s9530
  %s9532 = vpop.sfrf %9531
  %p9533 = scmp.eq.s32.totalorder %s9532, 0
  %p9534 = pneg %p9533
  %9536 = shalt.err (%p9534)
  %s9537 = scalar_lea.sflag [#allocation9], 2
  %9538 = vsyncmov %s9537
  %s9539 = vpop.sfrf %9538
  %p9540 = scmp.eq.s32.totalorder %s9539, 0
  %p9541 = pneg %p9540
  %9543 = shalt.err (%p9541)
  %s9544 = scalar_lea.sflag [#allocation9], 3
  %9545 = vsyncmov %s9544
  %s9546 = vpop.sfrf %9545
  %p9547 = scmp.eq.s32.totalorder %s9546, 0
  %p9548 = pneg %p9547
  %9550 = shalt.err (%p9548)
  %s9551 = scalar_lea.sflag [#allocation9], 4
  %9552 = vsyncmov %s9551
  %s9553 = vpop.sfrf %9552
  %p9554 = scmp.eq.s32.totalorder %s9553, 0
  %p9555 = pneg %p9554
  %9557 = shalt.err (%p9555)
  %s9558 = scalar_lea.sflag [#allocation9], 5
  %9559 = vsyncmov %s9558
  %s9560 = vpop.sfrf %9559
  %p9561 = scmp.eq.s32.totalorder %s9560, 0
  %p9562 = pneg %p9561
  %9564 = shalt.err (%p9562)
  %s9565 = scalar_lea.sflag [#allocation9], 6
  %9566 = vsyncmov %s9565
  %s9567 = vpop.sfrf %9566
  %p9568 = scmp.eq.s32.totalorder %s9567, 0
  %p9569 = pneg %p9568
  %9571 = shalt.err (%p9569)

</llo_original>
